<compile_context>
chip_gen: v5e
topology: v5e:2x2
jax: 0.10.0
libtpu: 0.0.40
codegen_flags: <defaults>
</compile_context>

<pallas_src>
import functools
import math

import jax
import jax.numpy as jnp
import numpy as np
from jax.experimental import pallas as pl
from jax.experimental.pallas import tpu as pltpu

SHIFT_SIZE = 5
PAD = SHIFT_SIZE // 2
LN_EPS = 1e-5


# ----------------------------- in-kernel math ------------------------------

def _erf_f32(x):
    # Abramowitz & Stegun 7.1.26, |abs err| <= 1.5e-7.  All ops exact f32
    # (the previous approx-reciprocal variant introduced ~1e-4 abs error).
    a1, a2, a3, a4, a5 = (0.254829592, -0.284496736, 1.421413741,
                          -1.453152027, 1.061405429)
    p = 0.3275911
    sgn = jnp.where(x < 0.0, -1.0, 1.0)
    ax = jnp.abs(x)
    t = 1.0 / (1.0 + p * ax)
    poly = ((((a5 * t + a4) * t + a3) * t + a2) * t + a1) * t
    return sgn * (1.0 - poly * jnp.exp(-ax * ax))


def _gelu_exact(x):
    return 0.5 * x * (1.0 + _erf_f32(x * (1.0 / math.sqrt(2.0))))


# ------------------------------ fused kernel --------------------------------

def _shifted_block_kernel(x_ref, col_ref, ln_g_ref, ln_b_ref, fc1_w_ref,
                          fc1_b_ref, dw_w_ref, dw_b_ref, fc2_w_ref, fc2_b_ref,
                          o_ref, pad_ref, *, W, matmul_in_bf16):
    """One grid step: o[b] = x[b] + shiftmlp(LayerNorm(x[b])) for each image b.

    pad_ref is a (N + 4W, CH) f32 staging buffer: rows [2W, 2W+N) hold the
    current activation (flat n = h*W + w); the 2-image-row halos on each side
    stay zero, so every H shift / conv row tap is a static-offset row slice
    (all whole-image-row offsets -> 8-sublane aligned when W % 8 == 0).
    """
    nimg, N, C = x_ref.shape
    CH = fc1_w_ref.shape[1]
    BASE = 2 * W

    # Zero the halo every step (cheap: 4W rows); unconditional so each core's
    # private scratch is valid even when a "parallel" grid is split across TCs.
    zhalo = jnp.zeros((BASE, CH), jnp.float32)
    pad_ref[0:BASE, :] = zhalo
    pad_ref[BASE + N:BASE + N + BASE, :] = zhalo

    # ---- per-step constants, hoisted out of the image loop ------------------
    ln_g = ln_g_ref[...]
    ln_b = ln_b_ref[...]
    fc1_b = fc1_b_ref[...]
    dw_b = dw_b_ref[...]
    fc2_b = fc2_b_ref[...]
    fc1_w = fc1_w_ref[...]
    fc2_w = fc2_w_ref[...]
    if matmul_in_bf16:                       # v6e/v7x MXU-native operands
        fc1_w = fc1_w.astype(jnp.bfloat16)
        fc2_w = fc2_w.astype(jnp.bfloat16)
    dw_rows = [dw_w_ref[i:i + 1, :] for i in range(9)]          # 9 x (1, CH)

    # channel -> shift-group masks (torch.chunk(., 5) over channels), built
    # once from a (1, C) lane iota -> five one-vreg masks.
    chunk = -(-C // SHIFT_SIZE)              # ceil(C / 5)
    ngroups = -(-C // chunk)
    cidx = jax.lax.broadcasted_iota(jnp.int32, (1, C), 1)
    gmasks = [(cidx >= g * chunk) & (cidx < (g + 1) * chunk)
              for g in range(ngroups)]

    # image-column index q = n mod W comes in precomputed -> (N, 1) edge masks,
    # no vector modulo / division in the kernel (works for any W).
    col = col_ref[...]
    not_left = col >= 1
    not_right = col <= W - 2

    def mm(a, w):
        if matmul_in_bf16:
            a = a.astype(jnp.bfloat16)
        return jnp.dot(a, w, preferred_element_type=jnp.float32)

    for b in range(nimg):
        # ---------------- LayerNorm (two-pass variance) ----------------------
        xin = x_ref[b].astype(jnp.float32)
        mean = jnp.mean(xin, axis=-1, keepdims=True)
        ctr = xin - mean
        var = jnp.mean(ctr * ctr, axis=-1, keepdims=True)
        xn = ctr * jax.lax.rsqrt(var + LN_EPS) * ln_g + ln_b

        # -------- stage 1: channel-group shift along H (zero fill) + fc1 -----
        pad_ref[BASE:BASE + N, :] = xn
        xh = jnp.zeros((N, C), jnp.float32)
        for g in range(ngroups):
            s = g - PAD                           # group shift: -2..+2 rows
            piece = pad_ref[BASE - s * W:BASE - s * W + N, :]   # aligned rows
            xh = xh + jnp.where(gmasks[g], piece, 0.0)          # disjoint add
        h = mm(xh, fc1_w) + fc1_b

        # -------- stage 2: 3x3 depthwise conv (pad=1) + bias + exact GELU ----
        # Taps grouped by image column -> the left/right edge mask is applied
        # once per column (2 selects total instead of 6).
        pad_ref[BASE:BASE + N, :] = h
        acc = jnp.zeros((N, CH), jnp.float32)
        for kw in range(3):
            dwc = kw - 1
            colsum = jnp.zeros((N, CH), jnp.float32)
            for kh in range(3):                   # H taps hit the zero halo
                off = BASE + (kh - 1) * W + dwc
                colsum = colsum + pad_ref[off:off + N, :] * dw_rows[kh * 3 + kw]
            if dwc == -1:
                colsum = jnp.where(not_left, colsum, 0.0)
            elif dwc == 1:
                colsum = jnp.where(not_right, colsum, 0.0)
            acc = acc + colsum
        act = _gelu_exact(acc + dw_b)

        # -------- stage 3: channel-group shift along W (zero fill) + fc2 -----
        pad_ref[BASE:BASE + N, :] = act
        xw = jnp.zeros((N, CH), jnp.float32)
        for g in range(ngroups):
            s = g - PAD
            piece = pad_ref[BASE - s:BASE - s + N, :]
            if s == 0:
                m = gmasks[g]
            elif s > 0:
                m = gmasks[g] & (col >= s)
            else:
                m = gmasks[g] & (col <= W - 1 + s)
            xw = xw + jnp.where(m, piece, 0.0)
        y = mm(xw, fc2_w) + fc2_b

        # Residual: x is re-read here (not kept live since the LayerNorm) so a
        # 32-vreg value doesn't sit across all three stages.
        o_ref[b] = (y + x_ref[b].astype(jnp.float32)).astype(o_ref.dtype)


def shifted_block_forward(x, params, H, W, *, images_per_step=1,
                          matmul_in_bf16=False):
    """x: (B, N, C), N = H*W.  Returns x + shiftmlp(LayerNorm(x), H, W)."""
    B, N, C = x.shape
    CH = params["fc1_w"].shape[1]
    assert N == H * W
    assert CH == C, "shiftmlp only type-checks when hidden == dim (mlp_ratio=1)"
    bb = images_per_step
    assert B % bb == 0

    # Precomputed column index (q = n mod W) so the kernel never runs a vector
    # modulo; tiny (N,1) int32 input.
    col_idx = (jnp.arange(N, dtype=jnp.int32) % W).reshape(N, 1)

    kernel = functools.partial(_shifted_block_kernel, W=W,
                               matmul_in_bf16=matmul_in_bf16)
    return pl.pallas_call(
        kernel,
        out_shape=jax.ShapeDtypeStruct((B, N, C), x.dtype),
        grid=(B // bb,),
        in_specs=[
            pl.BlockSpec((bb, N, C), lambda b: (b, 0, 0)),   # x
            pl.BlockSpec((N, 1), lambda b: (0, 0)),          # column index
            pl.BlockSpec((1, C), lambda b: (0, 0)),          # ln gamma
            pl.BlockSpec((1, C), lambda b: (0, 0)),          # ln beta
            pl.BlockSpec((C, CH), lambda b: (0, 0)),         # fc1 weight (dim, hidden)
            pl.BlockSpec((1, CH), lambda b: (0, 0)),         # fc1 bias
            pl.BlockSpec((9, CH), lambda b: (0, 0)),         # dwconv weight (3*3, hidden)
            pl.BlockSpec((1, CH), lambda b: (0, 0)),         # dwconv bias
            pl.BlockSpec((CH, C), lambda b: (0, 0)),         # fc2 weight
            pl.BlockSpec((1, C), lambda b: (0, 0)),          # fc2 bias
        ],
        out_specs=pl.BlockSpec((bb, N, C), lambda b: (b, 0, 0)),
        scratch_shapes=[pltpu.VMEM((N + 4 * W, CH), jnp.float32)],
        compiler_params=pltpu.CompilerParams(
            dimension_semantics=("parallel",)),
    )(x, col_idx,
      params["ln_g"].reshape(1, C), params["ln_b"].reshape(1, C),
      params["fc1_w"], params["fc1_b"].reshape(1, CH),
      params["dw_w"].reshape(9, CH), params["dw_b"].reshape(1, CH),
      params["fc2_w"], params["fc2_b"].reshape(1, C))


# ------------------------------ reference (JAX) ------------------------------

def _channel_group_shift(x_nhwc, axis):
    """torch.chunk(.,5,ch) + per-chunk roll(-2..+2) + pad/narrow == per-channel
    zero-filled spatial shift along `axis` (1=H, 2=W).  Reference-only glue."""
    C = x_nhwc.shape[-1]
    L = x_nhwc.shape[axis]
    chunk = -(-C // SHIFT_SIZE)
    s = jnp.arange(C) // chunk - PAD
    idx = jnp.arange(L)[:, None] - s[None, :]
    valid = (idx >= 0) & (idx < L)
    idx = jnp.clip(idx, 0, L - 1)
    shape4 = [1, 1, 1, C]
    shape4[axis] = L
    idx4 = jnp.broadcast_to(idx.reshape(shape4), x_nhwc.shape)
    valid4 = jnp.broadcast_to(valid.reshape(shape4), x_nhwc.shape)
    out = jnp.take_along_axis(x_nhwc, idx4, axis=axis)
    return jnp.where(valid4, out, 0.0)


def reference_forward(x, params, H, W):
    B, N, C = x.shape
    mean = x.mean(-1, keepdims=True)
    var = ((x - mean) ** 2).mean(-1, keepdims=True)
    xn = (x - mean) / jnp.sqrt(var + LN_EPS) * params["ln_g"] + params["ln_b"]
    xh = _channel_group_shift(xn.reshape(B, H, W, C), axis=1).reshape(B, N, C)
    h = xh @ params["fc1_w"] + params["fc1_b"]
    hh = h.reshape(B, H, W, -1)
    conv = jax.lax.conv_general_dilated(
        hh, params["dw_w"].reshape(3, 3, 1, -1),
        window_strides=(1, 1), padding=((1, 1), (1, 1)),
        dimension_numbers=("NHWC", "HWIO", "NHWC"),
        feature_group_count=hh.shape[-1]) + params["dw_b"]
    act = jax.nn.gelu(conv, approximate=False)
    xw = _channel_group_shift(act, axis=2).reshape(B, N, -1)
    return xw @ params["fc2_w"] + params["fc2_b"] + x


# ---------------------------------- main -------------------------------------

def init_params(key, dim, hidden):
    k1, k2, k3 = jax.random.split(key, 3)
    trunc = lambda k, shp: 0.02 * jax.random.truncated_normal(
        k, -2.0, 2.0, shp, jnp.float32)
    return {
        "ln_g": jnp.ones((dim,), jnp.float32),
        "ln_b": jnp.zeros((dim,), jnp.float32),
        "fc1_w": trunc(k1, (dim, hidden)),            # torch fc1.weight.T
        "fc1_b": jnp.zeros((hidden,), jnp.float32),
        "dw_w": math.sqrt(2.0 / 9.0) * jax.random.normal(
            k2, (3, 3, hidden), jnp.float32),
        "dw_b": jnp.zeros((hidden,), jnp.float32),
        "fc2_w": trunc(k3, (hidden, dim)),            # torch fc2.weight.T
        "fc2_b": jnp.zeros((dim,), jnp.float32),
    }


if __name__ == "__main__":
    B, H, W, dim = 2, 16, 16, 32
    hidden = dim                                       # mlp_ratio = 1.0 (see NOTE)
    N = H * W

    key = jax.random.PRNGKey(0)
    kx, kp = jax.random.split(key)
    x = jax.random.normal(kx, (B, N, dim), jnp.float32)
    params = init_params(kp, dim, hidden)

    # images_per_step=B folds the whole batch into one grid step (amortizes the
    # per-step overhead on single-TC v5e/v6e; set to 1 on v7x so both TCs work).
    out = jax.block_until_ready(
        shifted_block_forward(x, params, H, W, images_per_step=B))
    ref = jax.block_until_ready(reference_forward(x, params, H, W))

    # Tolerance sized for TPU fp32-matmul (bf16-pass MXU) differences between
    # the in-kernel dot and the XLA reference dot; any structural error in the
    # shift/conv/LN plumbing produces mismatches orders of magnitude larger.
    np.testing.assert_allclose(np.asarray(out), np.asarray(ref),
                               rtol=1e-3, atol=3e-4)

    print("KERNEL_OK")
</pallas_src>

<mosaic_0001>
module attributes {stable_mosaic.version = 11 : i64} {
  func.func @_shifted_block_kernel(%arg0: i32, %arg1: memref<2x256x32xf32, #tpu.memory_space<vmem>>, %arg2: memref<256x1xi32, #tpu.memory_space<vmem>>, %arg3: memref<1x32xf32, #tpu.memory_space<vmem>>, %arg4: memref<1x32xf32, #tpu.memory_space<vmem>>, %arg5: memref<32x32xf32, #tpu.memory_space<vmem>>, %arg6: memref<1x32xf32, #tpu.memory_space<vmem>>, %arg7: memref<9x32xf32, #tpu.memory_space<vmem>>, %arg8: memref<1x32xf32, #tpu.memory_space<vmem>>, %arg9: memref<32x32xf32, #tpu.memory_space<vmem>>, %arg10: memref<1x32xf32, #tpu.memory_space<vmem>>, %arg11: memref<2x256x32xf32, #tpu.memory_space<vmem>>, %arg12: memref<320x32xf32, #tpu.memory_space<vmem>>) attributes {dimension_semantics = [#tpu.dimension_semantics<parallel>], iteration_bounds = array<i64: 1>, scalar_prefetch = 0 : i64, scratch_operands = 1 : i64, tpu.core_type = #tpu.core_type<tc>, window_params = [{transform_indices = @transform_0, window_bounds = array<i64: 2, 256, 32>}, {pipeline_mode = #tpu.pipeline_mode<synchronous>, transform_indices = @transform_1, window_bounds = array<i64: 256, 1>}, {pipeline_mode = #tpu.pipeline_mode<synchronous>, transform_indices = @transform_2, window_bounds = array<i64: 1, 32>}, {pipeline_mode = #tpu.pipeline_mode<synchronous>, transform_indices = @transform_3, window_bounds = array<i64: 1, 32>}, {pipeline_mode = #tpu.pipeline_mode<synchronous>, transform_indices = @transform_4, window_bounds = array<i64: 32, 32>}, {pipeline_mode = #tpu.pipeline_mode<synchronous>, transform_indices = @transform_5, window_bounds = array<i64: 1, 32>}, {pipeline_mode = #tpu.pipeline_mode<synchronous>, transform_indices = @transform_6, window_bounds = array<i64: 9, 32>}, {pipeline_mode = #tpu.pipeline_mode<synchronous>, transform_indices = @transform_7, window_bounds = array<i64: 1, 32>}, {pipeline_mode = #tpu.pipeline_mode<synchronous>, transform_indices = @transform_8, window_bounds = array<i64: 32, 32>}, {pipeline_mode = #tpu.pipeline_mode<synchronous>, transform_indices = @transform_9, window_bounds = array<i64: 1, 32>}, {transform_indices = @transform_10, window_bounds = array<i64: 2, 256, 32>}]} {
    %cst = arith.constant 0.000000e+00 : f32
    %0 = vector.broadcast %cst : f32 to vector<32x32xf32>
    %c0 = arith.constant 0 : index
    %c0_0 = arith.constant 0 : index
    %1 = vector.load %arg12[%c0, %c0_0] : memref<320x32xf32, #tpu.memory_space<vmem>>, vector<32x32xf32>
    tpu.vector_store %arg12[%c0, %c0_0], %0 {strides = array<i32>} : memref<320x32xf32, #tpu.memory_space<vmem>>, vector<32x32xf32>,
    %c288 = arith.constant 288 : index
    %c0_1 = arith.constant 0 : index
    %2 = vector.load %arg12[%c288, %c0_1] : memref<320x32xf32, #tpu.memory_space<vmem>>, vector<32x32xf32>
    tpu.vector_store %arg12[%c288, %c0_1], %0 {strides = array<i32>} : memref<320x32xf32, #tpu.memory_space<vmem>>, vector<32x32xf32>,
    %c0_2 = arith.constant 0 : index
    %c0_3 = arith.constant 0 : index
    %3 = vector.load %arg3[%c0_2, %c0_3] : memref<1x32xf32, #tpu.memory_space<vmem>>, vector<1x32xf32>
    %c0_4 = arith.constant 0 : index
    %c0_5 = arith.constant 0 : index
    %4 = vector.load %arg4[%c0_4, %c0_5] : memref<1x32xf32, #tpu.memory_space<vmem>>, vector<1x32xf32>
    %c0_6 = arith.constant 0 : index
    %c0_7 = arith.constant 0 : index
    %5 = vector.load %arg6[%c0_6, %c0_7] : memref<1x32xf32, #tpu.memory_space<vmem>>, vector<1x32xf32>
    %c0_8 = arith.constant 0 : index
    %c0_9 = arith.constant 0 : index
    %6 = vector.load %arg8[%c0_8, %c0_9] : memref<1x32xf32, #tpu.memory_space<vmem>>, vector<1x32xf32>
    %c0_10 = arith.constant 0 : index
    %c0_11 = arith.constant 0 : index
    %7 = vector.load %arg10[%c0_10, %c0_11] : memref<1x32xf32, #tpu.memory_space<vmem>>, vector<1x32xf32>
    %c0_12 = arith.constant 0 : index
    %c0_13 = arith.constant 0 : index
    %8 = vector.load %arg5[%c0_12, %c0_13] : memref<32x32xf32, #tpu.memory_space<vmem>>, vector<32x32xf32>
    %c0_14 = arith.constant 0 : index
    %c0_15 = arith.constant 0 : index
    %9 = vector.load %arg9[%c0_14, %c0_15] : memref<32x32xf32, #tpu.memory_space<vmem>>, vector<32x32xf32>
    %c0_16 = arith.constant 0 : index
    %c0_17 = arith.constant 0 : index
    %10 = vector.load %arg7[%c0_16, %c0_17] : memref<9x32xf32, #tpu.memory_space<vmem>>, vector<1x32xf32>
    %c1 = arith.constant 1 : index
    %c0_18 = arith.constant 0 : index
    %11 = vector.load %arg7[%c1, %c0_18] : memref<9x32xf32, #tpu.memory_space<vmem>>, vector<1x32xf32>
    %c2 = arith.constant 2 : index
    %c0_19 = arith.constant 0 : index
    %12 = vector.load %arg7[%c2, %c0_19] : memref<9x32xf32, #tpu.memory_space<vmem>>, vector<1x32xf32>
    %c3 = arith.constant 3 : index
    %c0_20 = arith.constant 0 : index
    %13 = vector.load %arg7[%c3, %c0_20] : memref<9x32xf32, #tpu.memory_space<vmem>>, vector<1x32xf32>
    %c4 = arith.constant 4 : index
    %c0_21 = arith.constant 0 : index
    %14 = vector.load %arg7[%c4, %c0_21] : memref<9x32xf32, #tpu.memory_space<vmem>>, vector<1x32xf32>
    %c5 = arith.constant 5 : index
    %c0_22 = arith.constant 0 : index
    %15 = vector.load %arg7[%c5, %c0_22] : memref<9x32xf32, #tpu.memory_space<vmem>>, vector<1x32xf32>
    %c6 = arith.constant 6 : index
    %c0_23 = arith.constant 0 : index
    %16 = vector.load %arg7[%c6, %c0_23] : memref<9x32xf32, #tpu.memory_space<vmem>>, vector<1x32xf32>
    %c7 = arith.constant 7 : index
    %c0_24 = arith.constant 0 : index
    %17 = vector.load %arg7[%c7, %c0_24] : memref<9x32xf32, #tpu.memory_space<vmem>>, vector<1x32xf32>
    %c8 = arith.constant 8 : index
    %c0_25 = arith.constant 0 : index
    %18 = vector.load %arg7[%c8, %c0_25] : memref<9x32xf32, #tpu.memory_space<vmem>>, vector<1x32xf32>
    %19 = tpu.iota {dimensions = array<i32: 1>} : vector<1x32xi32>
    %c0_i32 = arith.constant 0 : i32
    %20 = vector.broadcast %c0_i32 : i32 to vector<1x32xi32>
    %21 = arith.cmpi sge, %19, %20 : vector<1x32xi32>
    %c7_i32 = arith.constant 7 : i32
    %22 = vector.broadcast %c7_i32 : i32 to vector<1x32xi32>
    %23 = arith.cmpi slt, %19, %22 : vector<1x32xi32>
    %24 = arith.andi %21, %23 : vector<1x32xi1>
    %c7_i32_26 = arith.constant 7 : i32
    %25 = vector.broadcast %c7_i32_26 : i32 to vector<1x32xi32>
    %26 = arith.cmpi sge, %19, %25 : vector<1x32xi32>
    %c14_i32 = arith.constant 14 : i32
    %27 = vector.broadcast %c14_i32 : i32 to vector<1x32xi32>
    %28 = arith.cmpi slt, %19, %27 : vector<1x32xi32>
    %29 = arith.andi %26, %28 : vector<1x32xi1>
    %c14_i32_27 = arith.constant 14 : i32
    %30 = vector.broadcast %c14_i32_27 : i32 to vector<1x32xi32>
    %31 = arith.cmpi sge, %19, %30 : vector<1x32xi32>
    %c21_i32 = arith.constant 21 : i32
    %32 = vector.broadcast %c21_i32 : i32 to vector<1x32xi32>
    %33 = arith.cmpi slt, %19, %32 : vector<1x32xi32>
    %34 = arith.andi %31, %33 : vector<1x32xi1>
    %c21_i32_28 = arith.constant 21 : i32
    %35 = vector.broadcast %c21_i32_28 : i32 to vector<1x32xi32>
    %36 = arith.cmpi sge, %19, %35 : vector<1x32xi32>
    %c28_i32 = arith.constant 28 : i32
    %37 = vector.broadcast %c28_i32 : i32 to vector<1x32xi32>
    %38 = arith.cmpi slt, %19, %37 : vector<1x32xi32>
    %39 = arith.andi %36, %38 : vector<1x32xi1>
    %c28_i32_29 = arith.constant 28 : i32
    %40 = vector.broadcast %c28_i32_29 : i32 to vector<1x32xi32>
    %41 = arith.cmpi sge, %19, %40 : vector<1x32xi32>
    %c35_i32 = arith.constant 35 : i32
    %42 = vector.broadcast %c35_i32 : i32 to vector<1x32xi32>
    %43 = arith.cmpi slt, %19, %42 : vector<1x32xi32>
    %44 = arith.andi %41, %43 : vector<1x32xi1>
    %c0_30 = arith.constant 0 : index
    %c0_31 = arith.constant 0 : index
    %45 = vector.load %arg2[%c0_30, %c0_31] : memref<256x1xi32, #tpu.memory_space<vmem>>, vector<256x1xi32>
    %c1_i32 = arith.constant 1 : i32
    %46 = vector.broadcast %c1_i32 : i32 to vector<256x1xi32>
    %47 = arith.cmpi sge, %45, %46 : vector<256x1xi32>
    %c14_i32_32 = arith.constant 14 : i32
    %48 = vector.broadcast %c14_i32_32 : i32 to vector<256x1xi32>
    %49 = arith.cmpi sle, %45, %48 : vector<256x1xi32>
    %c0_33 = arith.constant 0 : index
    %c0_34 = arith.constant 0 : index
    %c0_35 = arith.constant 0 : index
    %50 = vector.load %arg1[%c0_33, %c0_34, %c0_35] : memref<2x256x32xf32, #tpu.memory_space<vmem>>, vector<1x256x32xf32>
    %51 = vector.shape_cast %50 : vector<1x256x32xf32> to vector<256x32xf32>
    %cst_36 = arith.constant dense<0.000000e+00> : vector<256xf32>
    %52 = vector.multi_reduction <add>, %51, %cst_36 [1] : vector<256x32xf32> to vector<256xf32>
    %53 = vector.shape_cast %52 : vector<256xf32> to vector<256x1xf32>
    %cst_37 = arith.constant 3.200000e+01 : f32
    %54 = vector.broadcast %cst_37 : f32 to vector<256x1xf32>
    %55 = arith.divf %53, %54 : vector<256x1xf32>
    %56 = vector.broadcast %55 : vector<256x1xf32> to vector<256x32xf32>
    %57 = arith.subf %51, %56 : vector<256x32xf32>
    %58 = arith.mulf %57, %57 : vector<256x32xf32>
    %cst_38 = arith.constant dense<0.000000e+00> : vector<256xf32>
    %59 = vector.multi_reduction <add>, %58, %cst_38 [1] : vector<256x32xf32> to vector<256xf32>
    %60 = vector.shape_cast %59 : vector<256xf32> to vector<256x1xf32>
    %cst_39 = arith.constant 3.200000e+01 : f32
    %61 = vector.broadcast %cst_39 : f32 to vector<256x1xf32>
    %62 = arith.divf %60, %61 : vector<256x1xf32>
    %cst_40 = arith.constant 9.99999974E-6 : f32
    %63 = vector.broadcast %cst_40 : f32 to vector<256x1xf32>
    %64 = arith.addf %62, %63 : vector<256x1xf32>
    %65 = math.rsqrt %64 : vector<256x1xf32>
    %66 = vector.broadcast %65 : vector<256x1xf32> to vector<256x32xf32>
    %67 = arith.mulf %57, %66 : vector<256x32xf32>
    %68 = vector.broadcast %3 : vector<1x32xf32> to vector<256x32xf32>
    %69 = arith.mulf %67, %68 : vector<256x32xf32>
    %70 = vector.broadcast %4 : vector<1x32xf32> to vector<256x32xf32>
    %71 = arith.addf %69, %70 : vector<256x32xf32>
    %c32 = arith.constant 32 : index
    %c0_41 = arith.constant 0 : index
    %72 = vector.load %arg12[%c32, %c0_41] : memref<320x32xf32, #tpu.memory_space<vmem>>, vector<256x32xf32>
    tpu.vector_store %arg12[%c32, %c0_41], %71 {strides = array<i32>} : memref<320x32xf32, #tpu.memory_space<vmem>>, vector<256x32xf32>,
    %cst_42 = arith.constant 0.000000e+00 : f32
    %73 = vector.broadcast %cst_42 : f32 to vector<256x32xf32>
    %c64 = arith.constant 64 : index
    %c0_43 = arith.constant 0 : index
    %74 = vector.load %arg12[%c64, %c0_43] : memref<320x32xf32, #tpu.memory_space<vmem>>, vector<256x32xf32>
    %cst_44 = arith.constant 0.000000e+00 : f32
    %75 = vector.shape_cast %24 : vector<1x32xi1> to vector<1x32xi1>
    %76 = vector.broadcast %75 : vector<1x32xi1> to vector<256x32xi1>
    %77 = vector.broadcast %cst_44 : f32 to vector<256x32xf32>
    %78 = arith.select %76, %74, %77 : vector<256x32xi1>, vector<256x32xf32>
    %79 = arith.addf %73, %78 : vector<256x32xf32>
    %c48 = arith.constant 48 : index
    %c0_45 = arith.constant 0 : index
    %80 = vector.load %arg12[%c48, %c0_45] : memref<320x32xf32, #tpu.memory_space<vmem>>, vector<256x32xf32>
    %cst_46 = arith.constant 0.000000e+00 : f32
    %81 = vector.shape_cast %29 : vector<1x32xi1> to vector<1x32xi1>
    %82 = vector.broadcast %81 : vector<1x32xi1> to vector<256x32xi1>
    %83 = vector.broadcast %cst_46 : f32 to vector<256x32xf32>
    %84 = arith.select %82, %80, %83 : vector<256x32xi1>, vector<256x32xf32>
    %85 = arith.addf %79, %84 : vector<256x32xf32>
    %c32_47 = arith.constant 32 : index
    %c0_48 = arith.constant 0 : index
    %86 = vector.load %arg12[%c32_47, %c0_48] : memref<320x32xf32, #tpu.memory_space<vmem>>, vector<256x32xf32>
    %cst_49 = arith.constant 0.000000e+00 : f32
    %87 = vector.shape_cast %34 : vector<1x32xi1> to vector<1x32xi1>
    %88 = vector.broadcast %87 : vector<1x32xi1> to vector<256x32xi1>
    %89 = vector.broadcast %cst_49 : f32 to vector<256x32xf32>
    %90 = arith.select %88, %86, %89 : vector<256x32xi1>, vector<256x32xf32>
    %91 = arith.addf %85, %90 : vector<256x32xf32>
    %c16 = arith.constant 16 : index
    %c0_50 = arith.constant 0 : index
    %92 = vector.load %arg12[%c16, %c0_50] : memref<320x32xf32, #tpu.memory_space<vmem>>, vector<256x32xf32>
    %cst_51 = arith.constant 0.000000e+00 : f32
    %93 = vector.shape_cast %39 : vector<1x32xi1> to vector<1x32xi1>
    %94 = vector.broadcast %93 : vector<1x32xi1> to vector<256x32xi1>
    %95 = vector.broadcast %cst_51 : f32 to vector<256x32xf32>
    %96 = arith.select %94, %92, %95 : vector<256x32xi1>, vector<256x32xf32>
    %97 = arith.addf %91, %96 : vector<256x32xf32>
    %c0_52 = arith.constant 0 : index
    %c0_53 = arith.constant 0 : index
    %98 = vector.load %arg12[%c0_52, %c0_53] : memref<320x32xf32, #tpu.memory_space<vmem>>, vector<256x32xf32>
    %cst_54 = arith.constant 0.000000e+00 : f32
    %99 = vector.shape_cast %44 : vector<1x32xi1> to vector<1x32xi1>
    %100 = vector.broadcast %99 : vector<1x32xi1> to vector<256x32xi1>
    %101 = vector.broadcast %cst_54 : f32 to vector<256x32xf32>
    %102 = arith.select %100, %98, %101 : vector<256x32xi1>, vector<256x32xf32>
    %103 = arith.addf %97, %102 : vector<256x32xf32>
    %cst_55 = arith.constant dense<0.000000e+00> : vector<256x32xf32>
    %104 = tpu.matmul %103, %8, %cst_55 {dimension_numbers = #tpu.dot_dimension_numbers<[1], [0], [0], [1], [0, 0, 1, 1], [], []>} : vector<256x32xf32>, vector<32x32xf32>, vector<256x32xf32> -> vector<256x32xf32>
    %105 = vector.broadcast %5 : vector<1x32xf32> to vector<256x32xf32>
    %106 = arith.addf %104, %105 : vector<256x32xf32>
    %c32_56 = arith.constant 32 : index
    %c0_57 = arith.constant 0 : index
    %107 = vector.load %arg12[%c32_56, %c0_57] : memref<320x32xf32, #tpu.memory_space<vmem>>, vector<256x32xf32>
    tpu.vector_store %arg12[%c32_56, %c0_57], %106 {strides = array<i32>} : memref<320x32xf32, #tpu.memory_space<vmem>>, vector<256x32xf32>,
    %cst_58 = arith.constant 0.000000e+00 : f32
    %108 = vector.broadcast %cst_58 : f32 to vector<256x32xf32>
    %cst_59 = arith.constant 0.000000e+00 : f32
    %109 = vector.broadcast %cst_59 : f32 to vector<256x32xf32>
    %c15 = arith.constant 15 : index
    %c0_60 = arith.constant 0 : index
    %110 = vector.load %arg12[%c15, %c0_60] : memref<320x32xf32, #tpu.memory_space<vmem>>, vector<256x32xf32>
    %111 = vector.broadcast %10 : vector<1x32xf32> to vector<256x32xf32>
    %112 = arith.mulf %110, %111 : vector<256x32xf32>
    %113 = arith.addf %109, %112 : vector<256x32xf32>
    %c31 = arith.constant 31 : index
    %c0_61 = arith.constant 0 : index
    %114 = vector.load %arg12[%c31, %c0_61] : memref<320x32xf32, #tpu.memory_space<vmem>>, vector<256x32xf32>
    %115 = vector.broadcast %13 : vector<1x32xf32> to vector<256x32xf32>
    %116 = arith.mulf %114, %115 : vector<256x32xf32>
    %117 = arith.addf %113, %116 : vector<256x32xf32>
    %c47 = arith.constant 47 : index
    %c0_62 = arith.constant 0 : index
    %118 = vector.load %arg12[%c47, %c0_62] : memref<320x32xf32, #tpu.memory_space<vmem>>, vector<256x32xf32>
    %119 = vector.broadcast %16 : vector<1x32xf32> to vector<256x32xf32>
    %120 = arith.mulf %118, %119 : vector<256x32xf32>
    %121 = arith.addf %117, %120 : vector<256x32xf32>
    %cst_63 = arith.constant 0.000000e+00 : f32
    %122 = vector.shape_cast %47 : vector<256x1xi1> to vector<256x1xi1>
    %123 = vector.broadcast %122 : vector<256x1xi1> to vector<256x32xi1>
    %124 = vector.broadcast %cst_63 : f32 to vector<256x32xf32>
    %125 = arith.select %123, %121, %124 : vector<256x32xi1>, vector<256x32xf32>
    %126 = arith.addf %108, %125 : vector<256x32xf32>
    %cst_64 = arith.constant 0.000000e+00 : f32
    %127 = vector.broadcast %cst_64 : f32 to vector<256x32xf32>
    %c16_65 = arith.constant 16 : index
    %c0_66 = arith.constant 0 : index
    %128 = vector.load %arg12[%c16_65, %c0_66] : memref<320x32xf32, #tpu.memory_space<vmem>>, vector<256x32xf32>
    %129 = vector.broadcast %11 : vector<1x32xf32> to vector<256x32xf32>
    %130 = arith.mulf %128, %129 : vector<256x32xf32>
    %131 = arith.addf %127, %130 : vector<256x32xf32>
    %c32_67 = arith.constant 32 : index
    %c0_68 = arith.constant 0 : index
    %132 = vector.load %arg12[%c32_67, %c0_68] : memref<320x32xf32, #tpu.memory_space<vmem>>, vector<256x32xf32>
    %133 = vector.broadcast %14 : vector<1x32xf32> to vector<256x32xf32>
    %134 = arith.mulf %132, %133 : vector<256x32xf32>
    %135 = arith.addf %131, %134 : vector<256x32xf32>
    %c48_69 = arith.constant 48 : index
    %c0_70 = arith.constant 0 : index
    %136 = vector.load %arg12[%c48_69, %c0_70] : memref<320x32xf32, #tpu.memory_space<vmem>>, vector<256x32xf32>
    %137 = vector.broadcast %17 : vector<1x32xf32> to vector<256x32xf32>
    %138 = arith.mulf %136, %137 : vector<256x32xf32>
    %139 = arith.addf %135, %138 : vector<256x32xf32>
    %140 = arith.addf %126, %139 : vector<256x32xf32>
    %cst_71 = arith.constant 0.000000e+00 : f32
    %141 = vector.broadcast %cst_71 : f32 to vector<256x32xf32>
    %c17 = arith.constant 17 : index
    %c0_72 = arith.constant 0 : index
    %142 = vector.load %arg12[%c17, %c0_72] : memref<320x32xf32, #tpu.memory_space<vmem>>, vector<256x32xf32>
    %143 = vector.broadcast %12 : vector<1x32xf32> to vector<256x32xf32>
    %144 = arith.mulf %142, %143 : vector<256x32xf32>
    %145 = arith.addf %141, %144 : vector<256x32xf32>
    %c33 = arith.constant 33 : index
    %c0_73 = arith.constant 0 : index
    %146 = vector.load %arg12[%c33, %c0_73] : memref<320x32xf32, #tpu.memory_space<vmem>>, vector<256x32xf32>
    %147 = vector.broadcast %15 : vector<1x32xf32> to vector<256x32xf32>
    %148 = arith.mulf %146, %147 : vector<256x32xf32>
    %149 = arith.addf %145, %148 : vector<256x32xf32>
    %c49 = arith.constant 49 : index
    %c0_74 = arith.constant 0 : index
    %150 = vector.load %arg12[%c49, %c0_74] : memref<320x32xf32, #tpu.memory_space<vmem>>, vector<256x32xf32>
    %151 = vector.broadcast %18 : vector<1x32xf32> to vector<256x32xf32>
    %152 = arith.mulf %150, %151 : vector<256x32xf32>
    %153 = arith.addf %149, %152 : vector<256x32xf32>
    %cst_75 = arith.constant 0.000000e+00 : f32
    %154 = vector.shape_cast %49 : vector<256x1xi1> to vector<256x1xi1>
    %155 = vector.broadcast %154 : vector<256x1xi1> to vector<256x32xi1>
    %156 = vector.broadcast %cst_75 : f32 to vector<256x32xf32>
    %157 = arith.select %155, %153, %156 : vector<256x32xi1>, vector<256x32xf32>
    %158 = arith.addf %140, %157 : vector<256x32xf32>
    %159 = vector.broadcast %6 : vector<1x32xf32> to vector<256x32xf32>
    %160 = arith.addf %158, %159 : vector<256x32xf32>
    %cst_76 = arith.constant 5.000000e-01 : f32
    %161 = vector.broadcast %cst_76 : f32 to vector<256x32xf32>
    %162 = arith.mulf %161, %160 : vector<256x32xf32>
    %cst_77 = arith.constant 0.707106769 : f32
    %163 = vector.broadcast %cst_77 : f32 to vector<256x32xf32>
    %164 = arith.mulf %160, %163 : vector<256x32xf32>
    %cst_78 = arith.constant 0.000000e+00 : f32
    %165 = vector.broadcast %cst_78 : f32 to vector<256x32xf32>
    %166 = arith.cmpf olt, %164, %165 : vector<256x32xf32>
    %cst_79 = arith.constant -1.000000e+00 : f32
    %cst_80 = arith.constant 1.000000e+00 : f32
    %167 = vector.broadcast %cst_79 : f32 to vector<256x32xf32>
    %168 = vector.broadcast %cst_80 : f32 to vector<256x32xf32>
    %169 = arith.select %166, %167, %168 : vector<256x32xi1>, vector<256x32xf32>
    %170 = math.absf %164 : vector<256x32xf32>
    %cst_81 = arith.constant 0.327591091 : f32
    %171 = vector.broadcast %cst_81 : f32 to vector<256x32xf32>
    %172 = arith.mulf %171, %170 : vector<256x32xf32>
    %cst_82 = arith.constant 1.000000e+00 : f32
    %173 = vector.broadcast %cst_82 : f32 to vector<256x32xf32>
    %174 = arith.addf %173, %172 : vector<256x32xf32>
    %cst_83 = arith.constant 1.000000e+00 : f32
    %175 = vector.broadcast %cst_83 : f32 to vector<256x32xf32>
    %176 = arith.divf %175, %174 : vector<256x32xf32>
    %cst_84 = arith.constant 1.06140542 : f32
    %177 = vector.broadcast %cst_84 : f32 to vector<256x32xf32>
    %178 = arith.mulf %177, %176 : vector<256x32xf32>
    %cst_85 = arith.constant -1.45315206 : f32
    %179 = vector.broadcast %cst_85 : f32 to vector<256x32xf32>
    %180 = arith.addf %178, %179 : vector<256x32xf32>
    %181 = arith.mulf %180, %176 : vector<256x32xf32>
    %cst_86 = arith.constant 1.42141378 : f32
    %182 = vector.broadcast %cst_86 : f32 to vector<256x32xf32>
    %183 = arith.addf %181, %182 : vector<256x32xf32>
    %184 = arith.mulf %183, %176 : vector<256x32xf32>
    %cst_87 = arith.constant -0.284496725 : f32
    %185 = vector.broadcast %cst_87 : f32 to vector<256x32xf32>
    %186 = arith.addf %184, %185 : vector<256x32xf32>
    %187 = arith.mulf %186, %176 : vector<256x32xf32>
    %cst_88 = arith.constant 0.254829586 : f32
    %188 = vector.broadcast %cst_88 : f32 to vector<256x32xf32>
    %189 = arith.addf %187, %188 : vector<256x32xf32>
    %190 = arith.mulf %189, %176 : vector<256x32xf32>
    %cst_89 = arith.constant 0.000000e+00 : f32
    %191 = vector.broadcast %cst_89 : f32 to vector<256x32xf32>
    %192 = arith.subf %191, %170 : vector<256x32xf32>
    %193 = arith.mulf %192, %170 : vector<256x32xf32>
    %194 = math.exp %193 : vector<256x32xf32>
    %195 = arith.mulf %190, %194 : vector<256x32xf32>
    %cst_90 = arith.constant 1.000000e+00 : f32
    %196 = vector.broadcast %cst_90 : f32 to vector<256x32xf32>
    %197 = arith.subf %196, %195 : vector<256x32xf32>
    %198 = arith.mulf %169, %197 : vector<256x32xf32>
    %cst_91 = arith.constant 1.000000e+00 : f32
    %199 = vector.broadcast %cst_91 : f32 to vector<256x32xf32>
    %200 = arith.addf %199, %198 : vector<256x32xf32>
    %201 = arith.mulf %162, %200 : vector<256x32xf32>
    %c32_92 = arith.constant 32 : index
    %c0_93 = arith.constant 0 : index
    %202 = vector.load %arg12[%c32_92, %c0_93] : memref<320x32xf32, #tpu.memory_space<vmem>>, vector<256x32xf32>
    tpu.vector_store %arg12[%c32_92, %c0_93], %201 {strides = array<i32>} : memref<320x32xf32, #tpu.memory_space<vmem>>, vector<256x32xf32>,
    %cst_94 = arith.constant 0.000000e+00 : f32
    %203 = vector.broadcast %cst_94 : f32 to vector<256x32xf32>
    %c34 = arith.constant 34 : index
    %c0_95 = arith.constant 0 : index
    %204 = vector.load %arg12[%c34, %c0_95] : memref<320x32xf32, #tpu.memory_space<vmem>>, vector<256x32xf32>
    %c13_i32 = arith.constant 13 : i32
    %205 = vector.broadcast %c13_i32 : i32 to vector<256x1xi32>
    %206 = arith.cmpi sle, %45, %205 : vector<256x1xi32>
    %207 = vector.broadcast %24 : vector<1x32xi1> to vector<256x32xi1>
    %208 = vector.broadcast %206 : vector<256x1xi1> to vector<256x32xi1>
    %209 = arith.andi %207, %208 : vector<256x32xi1>
    %cst_96 = arith.constant 0.000000e+00 : f32
    %210 = vector.broadcast %cst_96 : f32 to vector<256x32xf32>
    %211 = arith.select %209, %204, %210 : vector<256x32xi1>, vector<256x32xf32>
    %212 = arith.addf %203, %211 : vector<256x32xf32>
    %c33_97 = arith.constant 33 : index
    %c0_98 = arith.constant 0 : index
    %213 = vector.load %arg12[%c33_97, %c0_98] : memref<320x32xf32, #tpu.memory_space<vmem>>, vector<256x32xf32>
    %c14_i32_99 = arith.constant 14 : i32
    %214 = vector.broadcast %c14_i32_99 : i32 to vector<256x1xi32>
    %215 = arith.cmpi sle, %45, %214 : vector<256x1xi32>
    %216 = vector.broadcast %29 : vector<1x32xi1> to vector<256x32xi1>
    %217 = vector.broadcast %215 : vector<256x1xi1> to vector<256x32xi1>
    %218 = arith.andi %216, %217 : vector<256x32xi1>
    %cst_100 = arith.constant 0.000000e+00 : f32
    %219 = vector.broadcast %cst_100 : f32 to vector<256x32xf32>
    %220 = arith.select %218, %213, %219 : vector<256x32xi1>, vector<256x32xf32>
    %221 = arith.addf %212, %220 : vector<256x32xf32>
    %c32_101 = arith.constant 32 : index
    %c0_102 = arith.constant 0 : index
    %222 = vector.load %arg12[%c32_101, %c0_102] : memref<320x32xf32, #tpu.memory_space<vmem>>, vector<256x32xf32>
    %cst_103 = arith.constant 0.000000e+00 : f32
    %223 = vector.shape_cast %34 : vector<1x32xi1> to vector<1x32xi1>
    %224 = vector.broadcast %223 : vector<1x32xi1> to vector<256x32xi1>
    %225 = vector.broadcast %cst_103 : f32 to vector<256x32xf32>
    %226 = arith.select %224, %222, %225 : vector<256x32xi1>, vector<256x32xf32>
    %227 = arith.addf %221, %226 : vector<256x32xf32>
    %c31_104 = arith.constant 31 : index
    %c0_105 = arith.constant 0 : index
    %228 = vector.load %arg12[%c31_104, %c0_105] : memref<320x32xf32, #tpu.memory_space<vmem>>, vector<256x32xf32>
    %c1_i32_106 = arith.constant 1 : i32
    %229 = vector.broadcast %c1_i32_106 : i32 to vector<256x1xi32>
    %230 = arith.cmpi sge, %45, %229 : vector<256x1xi32>
    %231 = vector.broadcast %39 : vector<1x32xi1> to vector<256x32xi1>
    %232 = vector.broadcast %230 : vector<256x1xi1> to vector<256x32xi1>
    %233 = arith.andi %231, %232 : vector<256x32xi1>
    %cst_107 = arith.constant 0.000000e+00 : f32
    %234 = vector.broadcast %cst_107 : f32 to vector<256x32xf32>
    %235 = arith.select %233, %228, %234 : vector<256x32xi1>, vector<256x32xf32>
    %236 = arith.addf %227, %235 : vector<256x32xf32>
    %c30 = arith.constant 30 : index
    %c0_108 = arith.constant 0 : index
    %237 = vector.load %arg12[%c30, %c0_108] : memref<320x32xf32, #tpu.memory_space<vmem>>, vector<256x32xf32>
    %c2_i32 = arith.constant 2 : i32
    %238 = vector.broadcast %c2_i32 : i32 to vector<256x1xi32>
    %239 = arith.cmpi sge, %45, %238 : vector<256x1xi32>
    %240 = vector.broadcast %44 : vector<1x32xi1> to vector<256x32xi1>
    %241 = vector.broadcast %239 : vector<256x1xi1> to vector<256x32xi1>
    %242 = arith.andi %240, %241 : vector<256x32xi1>
    %cst_109 = arith.constant 0.000000e+00 : f32
    %243 = vector.broadcast %cst_109 : f32 to vector<256x32xf32>
    %244 = arith.select %242, %237, %243 : vector<256x32xi1>, vector<256x32xf32>
    %245 = arith.addf %236, %244 : vector<256x32xf32>
    %cst_110 = arith.constant dense<0.000000e+00> : vector<256x32xf32>
    %246 = tpu.matmul %245, %9, %cst_110 {dimension_numbers = #tpu.dot_dimension_numbers<[1], [0], [0], [1], [0, 0, 1, 1], [], []>} : vector<256x32xf32>, vector<32x32xf32>, vector<256x32xf32> -> vector<256x32xf32>
    %247 = vector.broadcast %7 : vector<1x32xf32> to vector<256x32xf32>
    %248 = arith.addf %246, %247 : vector<256x32xf32>
    %c0_111 = arith.constant 0 : index
    %c0_112 = arith.constant 0 : index
    %c0_113 = arith.constant 0 : index
    %249 = vector.load %arg1[%c0_111, %c0_112, %c0_113] : memref<2x256x32xf32, #tpu.memory_space<vmem>>, vector<1x256x32xf32>
    %250 = vector.shape_cast %249 : vector<1x256x32xf32> to vector<256x32xf32>
    %251 = arith.addf %248, %250 : vector<256x32xf32>
    %c0_114 = arith.constant 0 : index
    %c0_115 = arith.constant 0 : index
    %c0_116 = arith.constant 0 : index
    %252 = vector.load %arg11[%c0_114, %c0_115, %c0_116] : memref<2x256x32xf32, #tpu.memory_space<vmem>>, vector<1x256x32xf32>
    %253 = vector.shape_cast %252 : vector<1x256x32xf32> to vector<256x32xf32>
    %254 = vector.shape_cast %251 : vector<256x32xf32> to vector<1x256x32xf32>
    tpu.vector_store %arg11[%c0_114, %c0_115, %c0_116], %254 {strides = array<i32>} : memref<2x256x32xf32, #tpu.memory_space<vmem>>, vector<1x256x32xf32>,
    %c1_117 = arith.constant 1 : index
    %c0_118 = arith.constant 0 : index
    %c0_119 = arith.constant 0 : index
    %255 = vector.load %arg1[%c1_117, %c0_118, %c0_119] : memref<2x256x32xf32, #tpu.memory_space<vmem>>, vector<1x256x32xf32>
    %256 = vector.shape_cast %255 : vector<1x256x32xf32> to vector<256x32xf32>
    %cst_120 = arith.constant dense<0.000000e+00> : vector<256xf32>
    %257 = vector.multi_reduction <add>, %256, %cst_120 [1] : vector<256x32xf32> to vector<256xf32>
    %258 = vector.shape_cast %257 : vector<256xf32> to vector<256x1xf32>
    %cst_121 = arith.constant 3.200000e+01 : f32
    %259 = vector.broadcast %cst_121 : f32 to vector<256x1xf32>
    %260 = arith.divf %258, %259 : vector<256x1xf32>
    %261 = vector.broadcast %260 : vector<256x1xf32> to vector<256x32xf32>
    %262 = arith.subf %256, %261 : vector<256x32xf32>
    %263 = arith.mulf %262, %262 : vector<256x32xf32>
    %cst_122 = arith.constant dense<0.000000e+00> : vector<256xf32>
    %264 = vector.multi_reduction <add>, %263, %cst_122 [1] : vector<256x32xf32> to vector<256xf32>
    %265 = vector.shape_cast %264 : vector<256xf32> to vector<256x1xf32>
    %cst_123 = arith.constant 3.200000e+01 : f32
    %266 = vector.broadcast %cst_123 : f32 to vector<256x1xf32>
    %267 = arith.divf %265, %266 : vector<256x1xf32>
    %cst_124 = arith.constant 9.99999974E-6 : f32
    %268 = vector.broadcast %cst_124 : f32 to vector<256x1xf32>
    %269 = arith.addf %267, %268 : vector<256x1xf32>
    %270 = math.rsqrt %269 : vector<256x1xf32>
    %271 = vector.broadcast %270 : vector<256x1xf32> to vector<256x32xf32>
    %272 = arith.mulf %262, %271 : vector<256x32xf32>
    %273 = vector.broadcast %3 : vector<1x32xf32> to vector<256x32xf32>
    %274 = arith.mulf %272, %273 : vector<256x32xf32>
    %275 = vector.broadcast %4 : vector<1x32xf32> to vector<256x32xf32>
    %276 = arith.addf %274, %275 : vector<256x32xf32>
    %c32_125 = arith.constant 32 : index
    %c0_126 = arith.constant 0 : index
    %277 = vector.load %arg12[%c32_125, %c0_126] : memref<320x32xf32, #tpu.memory_space<vmem>>, vector<256x32xf32>
    tpu.vector_store %arg12[%c32_125, %c0_126], %276 {strides = array<i32>} : memref<320x32xf32, #tpu.memory_space<vmem>>, vector<256x32xf32>,
    %cst_127 = arith.constant 0.000000e+00 : f32
    %278 = vector.broadcast %cst_127 : f32 to vector<256x32xf32>
    %c64_128 = arith.constant 64 : index
    %c0_129 = arith.constant 0 : index
    %279 = vector.load %arg12[%c64_128, %c0_129] : memref<320x32xf32, #tpu.memory_space<vmem>>, vector<256x32xf32>
    %cst_130 = arith.constant 0.000000e+00 : f32
    %280 = vector.shape_cast %24 : vector<1x32xi1> to vector<1x32xi1>
    %281 = vector.broadcast %280 : vector<1x32xi1> to vector<256x32xi1>
    %282 = vector.broadcast %cst_130 : f32 to vector<256x32xf32>
    %283 = arith.select %281, %279, %282 : vector<256x32xi1>, vector<256x32xf32>
    %284 = arith.addf %278, %283 : vector<256x32xf32>
    %c48_131 = arith.constant 48 : index
    %c0_132 = arith.constant 0 : index
    %285 = vector.load %arg12[%c48_131, %c0_132] : memref<320x32xf32, #tpu.memory_space<vmem>>, vector<256x32xf32>
    %cst_133 = arith.constant 0.000000e+00 : f32
    %286 = vector.shape_cast %29 : vector<1x32xi1> to vector<1x32xi1>
    %287 = vector.broadcast %286 : vector<1x32xi1> to vector<256x32xi1>
    %288 = vector.broadcast %cst_133 : f32 to vector<256x32xf32>
    %289 = arith.select %287, %285, %288 : vector<256x32xi1>, vector<256x32xf32>
    %290 = arith.addf %284, %289 : vector<256x32xf32>
    %c32_134 = arith.constant 32 : index
    %c0_135 = arith.constant 0 : index
    %291 = vector.load %arg12[%c32_134, %c0_135] : memref<320x32xf32, #tpu.memory_space<vmem>>, vector<256x32xf32>
    %cst_136 = arith.constant 0.000000e+00 : f32
    %292 = vector.shape_cast %34 : vector<1x32xi1> to vector<1x32xi1>
    %293 = vector.broadcast %292 : vector<1x32xi1> to vector<256x32xi1>
    %294 = vector.broadcast %cst_136 : f32 to vector<256x32xf32>
    %295 = arith.select %293, %291, %294 : vector<256x32xi1>, vector<256x32xf32>
    %296 = arith.addf %290, %295 : vector<256x32xf32>
    %c16_137 = arith.constant 16 : index
    %c0_138 = arith.constant 0 : index
    %297 = vector.load %arg12[%c16_137, %c0_138] : memref<320x32xf32, #tpu.memory_space<vmem>>, vector<256x32xf32>
    %cst_139 = arith.constant 0.000000e+00 : f32
    %298 = vector.shape_cast %39 : vector<1x32xi1> to vector<1x32xi1>
    %299 = vector.broadcast %298 : vector<1x32xi1> to vector<256x32xi1>
    %300 = vector.broadcast %cst_139 : f32 to vector<256x32xf32>
    %301 = arith.select %299, %297, %300 : vector<256x32xi1>, vector<256x32xf32>
    %302 = arith.addf %296, %301 : vector<256x32xf32>
    %c0_140 = arith.constant 0 : index
    %c0_141 = arith.constant 0 : index
    %303 = vector.load %arg12[%c0_140, %c0_141] : memref<320x32xf32, #tpu.memory_space<vmem>>, vector<256x32xf32>
    %cst_142 = arith.constant 0.000000e+00 : f32
    %304 = vector.shape_cast %44 : vector<1x32xi1> to vector<1x32xi1>
    %305 = vector.broadcast %304 : vector<1x32xi1> to vector<256x32xi1>
    %306 = vector.broadcast %cst_142 : f32 to vector<256x32xf32>
    %307 = arith.select %305, %303, %306 : vector<256x32xi1>, vector<256x32xf32>
    %308 = arith.addf %302, %307 : vector<256x32xf32>
    %cst_143 = arith.constant dense<0.000000e+00> : vector<256x32xf32>
    %309 = tpu.matmul %308, %8, %cst_143 {dimension_numbers = #tpu.dot_dimension_numbers<[1], [0], [0], [1], [0, 0, 1, 1], [], []>} : vector<256x32xf32>, vector<32x32xf32>, vector<256x32xf32> -> vector<256x32xf32>
    %310 = vector.broadcast %5 : vector<1x32xf32> to vector<256x32xf32>
    %311 = arith.addf %309, %310 : vector<256x32xf32>
    %c32_144 = arith.constant 32 : index
    %c0_145 = arith.constant 0 : index
    %312 = vector.load %arg12[%c32_144, %c0_145] : memref<320x32xf32, #tpu.memory_space<vmem>>, vector<256x32xf32>
    tpu.vector_store %arg12[%c32_144, %c0_145], %311 {strides = array<i32>} : memref<320x32xf32, #tpu.memory_space<vmem>>, vector<256x32xf32>,
    %cst_146 = arith.constant 0.000000e+00 : f32
    %313 = vector.broadcast %cst_146 : f32 to vector<256x32xf32>
    %cst_147 = arith.constant 0.000000e+00 : f32
    %314 = vector.broadcast %cst_147 : f32 to vector<256x32xf32>
    %c15_148 = arith.constant 15 : index
    %c0_149 = arith.constant 0 : index
    %315 = vector.load %arg12[%c15_148, %c0_149] : memref<320x32xf32, #tpu.memory_space<vmem>>, vector<256x32xf32>
    %316 = vector.broadcast %10 : vector<1x32xf32> to vector<256x32xf32>
    %317 = arith.mulf %315, %316 : vector<256x32xf32>
    %318 = arith.addf %314, %317 : vector<256x32xf32>
    %c31_150 = arith.constant 31 : index
    %c0_151 = arith.constant 0 : index
    %319 = vector.load %arg12[%c31_150, %c0_151] : memref<320x32xf32, #tpu.memory_space<vmem>>, vector<256x32xf32>
    %320 = vector.broadcast %13 : vector<1x32xf32> to vector<256x32xf32>
    %321 = arith.mulf %319, %320 : vector<256x32xf32>
    %322 = arith.addf %318, %321 : vector<256x32xf32>
    %c47_152 = arith.constant 47 : index
    %c0_153 = arith.constant 0 : index
    %323 = vector.load %arg12[%c47_152, %c0_153] : memref<320x32xf32, #tpu.memory_space<vmem>>, vector<256x32xf32>
    %324 = vector.broadcast %16 : vector<1x32xf32> to vector<256x32xf32>
    %325 = arith.mulf %323, %324 : vector<256x32xf32>
    %326 = arith.addf %322, %325 : vector<256x32xf32>
    %cst_154 = arith.constant 0.000000e+00 : f32
    %327 = vector.shape_cast %47 : vector<256x1xi1> to vector<256x1xi1>
    %328 = vector.broadcast %327 : vector<256x1xi1> to vector<256x32xi1>
    %329 = vector.broadcast %cst_154 : f32 to vector<256x32xf32>
    %330 = arith.select %328, %326, %329 : vector<256x32xi1>, vector<256x32xf32>
    %331 = arith.addf %313, %330 : vector<256x32xf32>
    %cst_155 = arith.constant 0.000000e+00 : f32
    %332 = vector.broadcast %cst_155 : f32 to vector<256x32xf32>
    %c16_156 = arith.constant 16 : index
    %c0_157 = arith.constant 0 : index
    %333 = vector.load %arg12[%c16_156, %c0_157] : memref<320x32xf32, #tpu.memory_space<vmem>>, vector<256x32xf32>
    %334 = vector.broadcast %11 : vector<1x32xf32> to vector<256x32xf32>
    %335 = arith.mulf %333, %334 : vector<256x32xf32>
    %336 = arith.addf %332, %335 : vector<256x32xf32>
    %c32_158 = arith.constant 32 : index
    %c0_159 = arith.constant 0 : index
    %337 = vector.load %arg12[%c32_158, %c0_159] : memref<320x32xf32, #tpu.memory_space<vmem>>, vector<256x32xf32>
    %338 = vector.broadcast %14 : vector<1x32xf32> to vector<256x32xf32>
    %339 = arith.mulf %337, %338 : vector<256x32xf32>
    %340 = arith.addf %336, %339 : vector<256x32xf32>
    %c48_160 = arith.constant 48 : index
    %c0_161 = arith.constant 0 : index
    %341 = vector.load %arg12[%c48_160, %c0_161] : memref<320x32xf32, #tpu.memory_space<vmem>>, vector<256x32xf32>
    %342 = vector.broadcast %17 : vector<1x32xf32> to vector<256x32xf32>
    %343 = arith.mulf %341, %342 : vector<256x32xf32>
    %344 = arith.addf %340, %343 : vector<256x32xf32>
    %345 = arith.addf %331, %344 : vector<256x32xf32>
    %cst_162 = arith.constant 0.000000e+00 : f32
    %346 = vector.broadcast %cst_162 : f32 to vector<256x32xf32>
    %c17_163 = arith.constant 17 : index
    %c0_164 = arith.constant 0 : index
    %347 = vector.load %arg12[%c17_163, %c0_164] : memref<320x32xf32, #tpu.memory_space<vmem>>, vector<256x32xf32>
    %348 = vector.broadcast %12 : vector<1x32xf32> to vector<256x32xf32>
    %349 = arith.mulf %347, %348 : vector<256x32xf32>
    %350 = arith.addf %346, %349 : vector<256x32xf32>
    %c33_165 = arith.constant 33 : index
    %c0_166 = arith.constant 0 : index
    %351 = vector.load %arg12[%c33_165, %c0_166] : memref<320x32xf32, #tpu.memory_space<vmem>>, vector<256x32xf32>
    %352 = vector.broadcast %15 : vector<1x32xf32> to vector<256x32xf32>
    %353 = arith.mulf %351, %352 : vector<256x32xf32>
    %354 = arith.addf %350, %353 : vector<256x32xf32>
    %c49_167 = arith.constant 49 : index
    %c0_168 = arith.constant 0 : index
    %355 = vector.load %arg12[%c49_167, %c0_168] : memref<320x32xf32, #tpu.memory_space<vmem>>, vector<256x32xf32>
    %356 = vector.broadcast %18 : vector<1x32xf32> to vector<256x32xf32>
    %357 = arith.mulf %355, %356 : vector<256x32xf32>
    %358 = arith.addf %354, %357 : vector<256x32xf32>
    %cst_169 = arith.constant 0.000000e+00 : f32
    %359 = vector.shape_cast %49 : vector<256x1xi1> to vector<256x1xi1>
    %360 = vector.broadcast %359 : vector<256x1xi1> to vector<256x32xi1>
    %361 = vector.broadcast %cst_169 : f32 to vector<256x32xf32>
    %362 = arith.select %360, %358, %361 : vector<256x32xi1>, vector<256x32xf32>
    %363 = arith.addf %345, %362 : vector<256x32xf32>
    %364 = vector.broadcast %6 : vector<1x32xf32> to vector<256x32xf32>
    %365 = arith.addf %363, %364 : vector<256x32xf32>
    %cst_170 = arith.constant 5.000000e-01 : f32
    %366 = vector.broadcast %cst_170 : f32 to vector<256x32xf32>
    %367 = arith.mulf %366, %365 : vector<256x32xf32>
    %cst_171 = arith.constant 0.707106769 : f32
    %368 = vector.broadcast %cst_171 : f32 to vector<256x32xf32>
    %369 = arith.mulf %365, %368 : vector<256x32xf32>
    %cst_172 = arith.constant 0.000000e+00 : f32
    %370 = vector.broadcast %cst_172 : f32 to vector<256x32xf32>
    %371 = arith.cmpf olt, %369, %370 : vector<256x32xf32>
    %cst_173 = arith.constant -1.000000e+00 : f32
    %cst_174 = arith.constant 1.000000e+00 : f32
    %372 = vector.broadcast %cst_173 : f32 to vector<256x32xf32>
    %373 = vector.broadcast %cst_174 : f32 to vector<256x32xf32>
    %374 = arith.select %371, %372, %373 : vector<256x32xi1>, vector<256x32xf32>
    %375 = math.absf %369 : vector<256x32xf32>
    %cst_175 = arith.constant 0.327591091 : f32
    %376 = vector.broadcast %cst_175 : f32 to vector<256x32xf32>
    %377 = arith.mulf %376, %375 : vector<256x32xf32>
    %cst_176 = arith.constant 1.000000e+00 : f32
    %378 = vector.broadcast %cst_176 : f32 to vector<256x32xf32>
    %379 = arith.addf %378, %377 : vector<256x32xf32>
    %cst_177 = arith.constant 1.000000e+00 : f32
    %380 = vector.broadcast %cst_177 : f32 to vector<256x32xf32>
    %381 = arith.divf %380, %379 : vector<256x32xf32>
    %cst_178 = arith.constant 1.06140542 : f32
    %382 = vector.broadcast %cst_178 : f32 to vector<256x32xf32>
    %383 = arith.mulf %382, %381 : vector<256x32xf32>
    %cst_179 = arith.constant -1.45315206 : f32
    %384 = vector.broadcast %cst_179 : f32 to vector<256x32xf32>
    %385 = arith.addf %383, %384 : vector<256x32xf32>
    %386 = arith.mulf %385, %381 : vector<256x32xf32>
    %cst_180 = arith.constant 1.42141378 : f32
    %387 = vector.broadcast %cst_180 : f32 to vector<256x32xf32>
    %388 = arith.addf %386, %387 : vector<256x32xf32>
    %389 = arith.mulf %388, %381 : vector<256x32xf32>
    %cst_181 = arith.constant -0.284496725 : f32
    %390 = vector.broadcast %cst_181 : f32 to vector<256x32xf32>
    %391 = arith.addf %389, %390 : vector<256x32xf32>
    %392 = arith.mulf %391, %381 : vector<256x32xf32>
    %cst_182 = arith.constant 0.254829586 : f32
    %393 = vector.broadcast %cst_182 : f32 to vector<256x32xf32>
    %394 = arith.addf %392, %393 : vector<256x32xf32>
    %395 = arith.mulf %394, %381 : vector<256x32xf32>
    %cst_183 = arith.constant 0.000000e+00 : f32
    %396 = vector.broadcast %cst_183 : f32 to vector<256x32xf32>
    %397 = arith.subf %396, %375 : vector<256x32xf32>
    %398 = arith.mulf %397, %375 : vector<256x32xf32>
    %399 = math.exp %398 : vector<256x32xf32>
    %400 = arith.mulf %395, %399 : vector<256x32xf32>
    %cst_184 = arith.constant 1.000000e+00 : f32
    %401 = vector.broadcast %cst_184 : f32 to vector<256x32xf32>
    %402 = arith.subf %401, %400 : vector<256x32xf32>
    %403 = arith.mulf %374, %402 : vector<256x32xf32>
    %cst_185 = arith.constant 1.000000e+00 : f32
    %404 = vector.broadcast %cst_185 : f32 to vector<256x32xf32>
    %405 = arith.addf %404, %403 : vector<256x32xf32>
    %406 = arith.mulf %367, %405 : vector<256x32xf32>
    %c32_186 = arith.constant 32 : index
    %c0_187 = arith.constant 0 : index
    %407 = vector.load %arg12[%c32_186, %c0_187] : memref<320x32xf32, #tpu.memory_space<vmem>>, vector<256x32xf32>
    tpu.vector_store %arg12[%c32_186, %c0_187], %406 {strides = array<i32>} : memref<320x32xf32, #tpu.memory_space<vmem>>, vector<256x32xf32>,
    %cst_188 = arith.constant 0.000000e+00 : f32
    %408 = vector.broadcast %cst_188 : f32 to vector<256x32xf32>
    %c34_189 = arith.constant 34 : index
    %c0_190 = arith.constant 0 : index
    %409 = vector.load %arg12[%c34_189, %c0_190] : memref<320x32xf32, #tpu.memory_space<vmem>>, vector<256x32xf32>
    %c13_i32_191 = arith.constant 13 : i32
    %410 = vector.broadcast %c13_i32_191 : i32 to vector<256x1xi32>
    %411 = arith.cmpi sle, %45, %410 : vector<256x1xi32>
    %412 = vector.broadcast %24 : vector<1x32xi1> to vector<256x32xi1>
    %413 = vector.broadcast %411 : vector<256x1xi1> to vector<256x32xi1>
    %414 = arith.andi %412, %413 : vector<256x32xi1>
    %cst_192 = arith.constant 0.000000e+00 : f32
    %415 = vector.broadcast %cst_192 : f32 to vector<256x32xf32>
    %416 = arith.select %414, %409, %415 : vector<256x32xi1>, vector<256x32xf32>
    %417 = arith.addf %408, %416 : vector<256x32xf32>
    %c33_193 = arith.constant 33 : index
    %c0_194 = arith.constant 0 : index
    %418 = vector.load %arg12[%c33_193, %c0_194] : memref<320x32xf32, #tpu.memory_space<vmem>>, vector<256x32xf32>
    %c14_i32_195 = arith.constant 14 : i32
    %419 = vector.broadcast %c14_i32_195 : i32 to vector<256x1xi32>
    %420 = arith.cmpi sle, %45, %419 : vector<256x1xi32>
    %421 = vector.broadcast %29 : vector<1x32xi1> to vector<256x32xi1>
    %422 = vector.broadcast %420 : vector<256x1xi1> to vector<256x32xi1>
    %423 = arith.andi %421, %422 : vector<256x32xi1>
    %cst_196 = arith.constant 0.000000e+00 : f32
    %424 = vector.broadcast %cst_196 : f32 to vector<256x32xf32>
    %425 = arith.select %423, %418, %424 : vector<256x32xi1>, vector<256x32xf32>
    %426 = arith.addf %417, %425 : vector<256x32xf32>
    %c32_197 = arith.constant 32 : index
    %c0_198 = arith.constant 0 : index
    %427 = vector.load %arg12[%c32_197, %c0_198] : memref<320x32xf32, #tpu.memory_space<vmem>>, vector<256x32xf32>
    %cst_199 = arith.constant 0.000000e+00 : f32
    %428 = vector.shape_cast %34 : vector<1x32xi1> to vector<1x32xi1>
    %429 = vector.broadcast %428 : vector<1x32xi1> to vector<256x32xi1>
    %430 = vector.broadcast %cst_199 : f32 to vector<256x32xf32>
    %431 = arith.select %429, %427, %430 : vector<256x32xi1>, vector<256x32xf32>
    %432 = arith.addf %426, %431 : vector<256x32xf32>
    %c31_200 = arith.constant 31 : index
    %c0_201 = arith.constant 0 : index
    %433 = vector.load %arg12[%c31_200, %c0_201] : memref<320x32xf32, #tpu.memory_space<vmem>>, vector<256x32xf32>
    %c1_i32_202 = arith.constant 1 : i32
    %434 = vector.broadcast %c1_i32_202 : i32 to vector<256x1xi32>
    %435 = arith.cmpi sge, %45, %434 : vector<256x1xi32>
    %436 = vector.broadcast %39 : vector<1x32xi1> to vector<256x32xi1>
    %437 = vector.broadcast %435 : vector<256x1xi1> to vector<256x32xi1>
    %438 = arith.andi %436, %437 : vector<256x32xi1>
    %cst_203 = arith.constant 0.000000e+00 : f32
    %439 = vector.broadcast %cst_203 : f32 to vector<256x32xf32>
    %440 = arith.select %438, %433, %439 : vector<256x32xi1>, vector<256x32xf32>
    %441 = arith.addf %432, %440 : vector<256x32xf32>
    %c30_204 = arith.constant 30 : index
    %c0_205 = arith.constant 0 : index
    %442 = vector.load %arg12[%c30_204, %c0_205] : memref<320x32xf32, #tpu.memory_space<vmem>>, vector<256x32xf32>
    %c2_i32_206 = arith.constant 2 : i32
    %443 = vector.broadcast %c2_i32_206 : i32 to vector<256x1xi32>
    %444 = arith.cmpi sge, %45, %443 : vector<256x1xi32>
    %445 = vector.broadcast %44 : vector<1x32xi1> to vector<256x32xi1>
    %446 = vector.broadcast %444 : vector<256x1xi1> to vector<256x32xi1>
    %447 = arith.andi %445, %446 : vector<256x32xi1>
    %cst_207 = arith.constant 0.000000e+00 : f32
    %448 = vector.broadcast %cst_207 : f32 to vector<256x32xf32>
    %449 = arith.select %447, %442, %448 : vector<256x32xi1>, vector<256x32xf32>
    %450 = arith.addf %441, %449 : vector<256x32xf32>
    %cst_208 = arith.constant dense<0.000000e+00> : vector<256x32xf32>
    %451 = tpu.matmul %450, %9, %cst_208 {dimension_numbers = #tpu.dot_dimension_numbers<[1], [0], [0], [1], [0, 0, 1, 1], [], []>} : vector<256x32xf32>, vector<32x32xf32>, vector<256x32xf32> -> vector<256x32xf32>
    %452 = vector.broadcast %7 : vector<1x32xf32> to vector<256x32xf32>
    %453 = arith.addf %451, %452 : vector<256x32xf32>
    %c1_209 = arith.constant 1 : index
    %c0_210 = arith.constant 0 : index
    %c0_211 = arith.constant 0 : index
    %454 = vector.load %arg1[%c1_209, %c0_210, %c0_211] : memref<2x256x32xf32, #tpu.memory_space<vmem>>, vector<1x256x32xf32>
    %455 = vector.shape_cast %454 : vector<1x256x32xf32> to vector<256x32xf32>
    %456 = arith.addf %453, %455 : vector<256x32xf32>
    %c1_212 = arith.constant 1 : index
    %c0_213 = arith.constant 0 : index
    %c0_214 = arith.constant 0 : index
    %457 = vector.load %arg11[%c1_212, %c0_213, %c0_214] : memref<2x256x32xf32, #tpu.memory_space<vmem>>, vector<1x256x32xf32>
    %458 = vector.shape_cast %457 : vector<1x256x32xf32> to vector<256x32xf32>
    %459 = vector.shape_cast %456 : vector<256x32xf32> to vector<1x256x32xf32>
    tpu.vector_store %arg11[%c1_212, %c0_213, %c0_214], %459 {strides = array<i32>} : memref<2x256x32xf32, #tpu.memory_space<vmem>>, vector<1x256x32xf32>,
    return
  }
  func.func @transform_0(%arg0: i32) -> (i32, i32, i32) {
    %c0_i32 = arith.constant 0 : i32
    %c0_i32_0 = arith.constant 0 : i32
    %c0_i32_1 = arith.constant 0 : i32
    return %arg0, %c0_i32, %c0_i32_0 : i32, i32, i32
  }
  func.func @transform_1(%arg0: i32) -> (i32, i32) {
    %c0_i32 = arith.constant 0 : i32
    %c0_i32_0 = arith.constant 0 : i32
    %c0_i32_1 = arith.constant 0 : i32
    return %c0_i32, %c0_i32_0 : i32, i32
  }
  func.func @transform_2(%arg0: i32) -> (i32, i32) {
    %c0_i32 = arith.constant 0 : i32
    %c0_i32_0 = arith.constant 0 : i32
    %c0_i32_1 = arith.constant 0 : i32
    return %c0_i32, %c0_i32_0 : i32, i32
  }
  func.func @transform_3(%arg0: i32) -> (i32, i32) {
    %c0_i32 = arith.constant 0 : i32
    %c0_i32_0 = arith.constant 0 : i32
    %c0_i32_1 = arith.constant 0 : i32
    return %c0_i32, %c0_i32_0 : i32, i32
  }
  func.func @transform_4(%arg0: i32) -> (i32, i32) {
    %c0_i32 = arith.constant 0 : i32
    %c0_i32_0 = arith.constant 0 : i32
    %c0_i32_1 = arith.constant 0 : i32
    return %c0_i32, %c0_i32_0 : i32, i32
  }
  func.func @transform_5(%arg0: i32) -> (i32, i32) {
    %c0_i32 = arith.constant 0 : i32
    %c0_i32_0 = arith.constant 0 : i32
    %c0_i32_1 = arith.constant 0 : i32
    return %c0_i32, %c0_i32_0 : i32, i32
  }
  func.func @transform_6(%arg0: i32) -> (i32, i32) {
    %c0_i32 = arith.constant 0 : i32
    %c0_i32_0 = arith.constant 0 : i32
    %c0_i32_1 = arith.constant 0 : i32
    return %c0_i32, %c0_i32_0 : i32, i32
  }
  func.func @transform_7(%arg0: i32) -> (i32, i32) {
    %c0_i32 = arith.constant 0 : i32
    %c0_i32_0 = arith.constant 0 : i32
    %c0_i32_1 = arith.constant 0 : i32
    return %c0_i32, %c0_i32_0 : i32, i32
  }
  func.func @transform_8(%arg0: i32) -> (i32, i32) {
    %c0_i32 = arith.constant 0 : i32
    %c0_i32_0 = arith.constant 0 : i32
    %c0_i32_1 = arith.constant 0 : i32
    return %c0_i32, %c0_i32_0 : i32, i32
  }
  func.func @transform_9(%arg0: i32) -> (i32, i32) {
    %c0_i32 = arith.constant 0 : i32
    %c0_i32_0 = arith.constant 0 : i32
    %c0_i32_1 = arith.constant 0 : i32
    return %c0_i32, %c0_i32_0 : i32, i32
  }
  func.func @transform_10(%arg0: i32) -> (i32, i32, i32) {
    %c0_i32 = arith.constant 0 : i32
    %c0_i32_0 = arith.constant 0 : i32
    %c0_i32_1 = arith.constant 0 : i32
    return %arg0, %c0_i32, %c0_i32_0 : i32, i32, i32
  }
}

</mosaic_0001>

<llo_original>
// kernel: tpu_custom_call.1
$region0: #{tpu_custom_call.1}
  #allocation0 [shape = 'u32[]', space=smem, size = 0x4, offset = 0x4, fixed_abs, tag = 'smem constant byte address 0x4 - core index']
  #allocation1 [shape = 'u32[72,128]{1,0:T(1,128)}', space=vmem, size = 0x9000, scoped, tag = 'internal scratch']
  #allocation2 [shape = 'f32[320,32]{1,0:T(8,128)}', space=vmem, size = 0x28000, scoped, tag = 'scratch operand']
  %s0 = inlined_call_operand.vmem [shape: f32[2,256,32], index: 0, kind: input, shape index: {}]
  %s1 = inlined_call_operand.vmem [shape: s32[256,1], index: 1, kind: input, shape index: {}]
  %s2 = inlined_call_operand.vmem [shape: f32[1,32], index: 2, kind: input, shape index: {}]
  %s3 = inlined_call_operand.vmem [shape: f32[1,32], index: 3, kind: input, shape index: {}]
  %s4 = inlined_call_operand.vmem [shape: f32[32,32], index: 4, kind: input, shape index: {}]
  %s5 = inlined_call_operand.vmem [shape: f32[1,32], index: 5, kind: input, shape index: {}]
  %s6 = inlined_call_operand.vmem [shape: f32[9,32], index: 6, kind: input, shape index: {}]
  %s7 = inlined_call_operand.vmem [shape: f32[1,32], index: 7, kind: input, shape index: {}]
  %s8 = inlined_call_operand.vmem [shape: f32[32,32], index: 8, kind: input, shape index: {}]
  %s9 = inlined_call_operand.vmem [shape: f32[1,32], index: 9, kind: input, shape index: {}]
  %s10 = inlined_call_operand.vmem [shape: f32[2,256,32], index: 10, kind: output, shape index: {}]
  %s11 = sld [smem:[#allocation0]]
  $region50: #{tpu_custom_call.1} parent=0
    _
  %s13 = ssub.s32 1, %s11
  %s14 = scalar_select 0, %s13, %s11
  // Predicated region
  $region2: #{tpu_custom_call.1} parent=0 // pred_check
    _
  $region3: #{tpu_custom_call.1} parent=0 // pred_check_branch
    %16 = sbr.rel (0) target = $region5
  $region4: #{tpu_custom_call.1} parent=0 // pred_region
    _
  $region5: #{tpu_custom_call.1} parent=0 // pred_fallthru
    _
  // Predicated region
  $region6: #{tpu_custom_call.1} parent=0 // pred_check
    _
  $region7: #{tpu_custom_call.1} parent=0 // pred_check_branch
    %18 = sbr.rel (0) target = $region9
  $region8: #{tpu_custom_call.1} parent=0 // pred_region
    _
  $region9: #{tpu_custom_call.1} parent=0 // pred_fallthru
    _
  // Predicated region
  $region10: #{tpu_custom_call.1} parent=0 // pred_check
    _
  $region11: #{tpu_custom_call.1} parent=0 // pred_check_branch
    %20 = sbr.rel (0) target = $region13
  $region12: #{tpu_custom_call.1} parent=0 // pred_region
    _
  $region13: #{tpu_custom_call.1} parent=0 // pred_fallthru
    _
  // Predicated region
  $region14: #{tpu_custom_call.1} parent=0 // pred_check
    _
  $region15: #{tpu_custom_call.1} parent=0 // pred_check_branch
    %22 = sbr.rel (0) target = $region17
  $region16: #{tpu_custom_call.1} parent=0 // pred_region
    _
  $region17: #{tpu_custom_call.1} parent=0 // pred_fallthru
    _
  // Predicated region
  $region18: #{tpu_custom_call.1} parent=0 // pred_check
    _
  $region19: #{tpu_custom_call.1} parent=0 // pred_check_branch
    %24 = sbr.rel (0) target = $region21
  $region20: #{tpu_custom_call.1} parent=0 // pred_region
    _
  $region21: #{tpu_custom_call.1} parent=0 // pred_fallthru
    _
  // Predicated region
  $region22: #{tpu_custom_call.1} parent=0 // pred_check
    _
  $region23: #{tpu_custom_call.1} parent=0 // pred_check_branch
    %26 = sbr.rel (0) target = $region25
  $region24: #{tpu_custom_call.1} parent=0 // pred_region
    _
  $region25: #{tpu_custom_call.1} parent=0 // pred_fallthru
    _
  // Predicated region
  $region26: #{tpu_custom_call.1} parent=0 // pred_check
    _
  $region27: #{tpu_custom_call.1} parent=0 // pred_check_branch
    %28 = sbr.rel (0) target = $region29
  $region28: #{tpu_custom_call.1} parent=0 // pred_region
    _
  $region29: #{tpu_custom_call.1} parent=0 // pred_fallthru
    _
  // Predicated region
  $region30: #{tpu_custom_call.1} parent=0 // pred_check
    _
  $region31: #{tpu_custom_call.1} parent=0 // pred_check_branch
    %30 = sbr.rel (0) target = $region33
  $region32: #{tpu_custom_call.1} parent=0 // pred_region
    _
  $region33: #{tpu_custom_call.1} parent=0 // pred_fallthru
    _
  // Predicated region
  $region34: #{tpu_custom_call.1} parent=0 // pred_check
    _
  $region35: #{tpu_custom_call.1} parent=0 // pred_check_branch
    %32 = sbr.rel (0) target = $region37
  $region36: #{tpu_custom_call.1} parent=0 // pred_region
    _
  $region37: #{tpu_custom_call.1} parent=0 // pred_fallthru
    _
  // Predicated region
  $region38: #{tpu_custom_call.1} parent=0 // pred_check
    _
  $region39: #{tpu_custom_call.1} parent=0 // pred_check_branch
    %34 = sbr.rel (0) target = $region41
  $region40: #{tpu_custom_call.1} parent=0 // pred_region
    _
  $region41: #{tpu_custom_call.1} parent=0 // pred_fallthru
    _
  %vm35 = vcmask 261120
  %36 = vst.msk [vmem:[#allocation2] sm:$0xff] %vm35, 0.0
  %37 = vst.msk [vmem:[#allocation2 + $0x8] sm:$0xff] %vm35, 0.0
  %38 = vst.msk [vmem:[#allocation2 + $0x10] sm:$0xff] %vm35, 0.0
  %39 = vst.msk [vmem:[#allocation2 + $0x18] sm:$0xff] %vm35, 0.0
  %40 = vst.msk [vmem:[#allocation2 + $0x120] sm:$0xff] %vm35, 0.0
  %41 = vst.msk [vmem:[#allocation2 + $0x128] sm:$0xff] %vm35, 0.0
  %42 = vst.msk [vmem:[#allocation2 + $0x130] sm:$0xff] %vm35, 0.0
  %43 = vst.msk [vmem:[#allocation2 + $0x138] sm:$0xff] %vm35, 0.0
  %v44 = vld [vmem:[%s2] sm:$0x1]
  %v45 = vld [vmem:[%s3] sm:$0x1]
  %v46 = vld [vmem:[%s5] sm:$0x1]
  %v47 = vld [vmem:[%s7] sm:$0x1]
  %v48 = vld [vmem:[%s9] sm:$0x1]
  %v49 = vld [vmem:[%s4] sm:$0xff]
  %v50 = vld [vmem:[%s4 + $0x8] sm:$0xff]
  %v51 = vld [vmem:[%s4 + $0x10] sm:$0xff]
  %v52 = vld [vmem:[%s4 + $0x18] sm:$0xff]
  %v53 = vld [vmem:[%s8] sm:$0xff]
  %v54 = vld [vmem:[%s8 + $0x8] sm:$0xff]
  %v55 = vld [vmem:[%s8 + $0x10] sm:$0xff]
  %v56 = vld [vmem:[%s8 + $0x18] sm:$0xff]
  %v57 = vld [vmem:[%s6] sm:$0x1]
  %v58 = vld [vmem:[%s6 + $0x1] sm:$0x1]
  %v59 = vld [vmem:[%s6 + $0x2] sm:$0x1]
  %v60 = vld [vmem:[%s6 + $0x3] sm:$0x1]
  %v61 = vld [vmem:[%s6 + $0x4] sm:$0x1]
  %v62 = vld [vmem:[%s6 + $0x5] sm:$0x1]
  %v63 = vld [vmem:[%s6 + $0x6] sm:$0x1]
  %v64 = vld [vmem:[%s6 + $0x7] sm:$0x1]
  %v65 = vld [vmem:[%s6 + $0x8] sm:$0x1]
  %v66 = vlaneseq
  %v67 = vand.u32 %v66, 127
  %vm68 = vcmp.ge.s32.totalorder %v67, 0
  %vm69 = vcmp.lt.s32.totalorder %v67, 7
  %vm70 = vmand %vm68, %vm69
  %vm71 = vcmp.ge.s32.totalorder %v67, 7
  %vm72 = vcmp.lt.s32.totalorder %v67, 14
  %vm73 = vmand %vm71, %vm72
  %vm74 = vcmp.ge.s32.totalorder %v67, 14
  %vm75 = vcmp.lt.s32.totalorder %v67, 21
  %vm76 = vmand %vm74, %vm75
  %vm77 = vcmp.ge.s32.totalorder %v67, 21
  %vm78 = vcmp.lt.s32.totalorder %v67, 28
  %vm79 = vmand %vm77, %vm78
  %vm80 = vcmp.ge.s32.totalorder %v67, 28
  %vm81 = vcmp.lt.s32.totalorder %v67, 35
  %vm82 = vmand %vm80, %vm81
  %v83 = vld [vmem:[%s1] sm:$0xff]
  %v84 = vld [vmem:[%s1 + $0x8] sm:$0xff]
  %v85 = vld [vmem:[%s1 + $0x10] sm:$0xff]
  %v86 = vld [vmem:[%s1 + $0x18] sm:$0xff]
  %v87 = vld [vmem:[%s1 + $0x20] sm:$0xff]
  %v88 = vld [vmem:[%s1 + $0x28] sm:$0xff]
  %v89 = vld [vmem:[%s1 + $0x30] sm:$0xff]
  %v90 = vld [vmem:[%s1 + $0x38] sm:$0xff]
  %v91 = vld [vmem:[%s1 + $0x40] sm:$0xff]
  %v92 = vld [vmem:[%s1 + $0x48] sm:$0xff]
  %v93 = vld [vmem:[%s1 + $0x50] sm:$0xff]
  %v94 = vld [vmem:[%s1 + $0x58] sm:$0xff]
  %v95 = vld [vmem:[%s1 + $0x60] sm:$0xff]
  %v96 = vld [vmem:[%s1 + $0x68] sm:$0xff]
  %v97 = vld [vmem:[%s1 + $0x70] sm:$0xff]
  %v98 = vld [vmem:[%s1 + $0x78] sm:$0xff]
  %v99 = vld [vmem:[%s1 + $0x80] sm:$0xff]
  %v100 = vld [vmem:[%s1 + $0x88] sm:$0xff]
  %v101 = vld [vmem:[%s1 + $0x90] sm:$0xff]
  %v102 = vld [vmem:[%s1 + $0x98] sm:$0xff]
  %v103 = vld [vmem:[%s1 + $0xa0] sm:$0xff]
  %v104 = vld [vmem:[%s1 + $0xa8] sm:$0xff]
  %v105 = vld [vmem:[%s1 + $0xb0] sm:$0xff]
  %v106 = vld [vmem:[%s1 + $0xb8] sm:$0xff]
  %v107 = vld [vmem:[%s1 + $0xc0] sm:$0xff]
  %v108 = vld [vmem:[%s1 + $0xc8] sm:$0xff]
  %v109 = vld [vmem:[%s1 + $0xd0] sm:$0xff]
  %v110 = vld [vmem:[%s1 + $0xd8] sm:$0xff]
  %v111 = vld [vmem:[%s1 + $0xe0] sm:$0xff]
  %v112 = vld [vmem:[%s1 + $0xe8] sm:$0xff]
  %v113 = vld [vmem:[%s1 + $0xf0] sm:$0xff]
  %v114 = vld [vmem:[%s1 + $0xf8] sm:$0xff]
  %vm115 = vcmp.ge.s32.totalorder %v83, 1
  %vm116 = vcmp.ge.s32.totalorder %v84, 1
  %vm117 = vcmp.ge.s32.totalorder %v85, 1
  %vm118 = vcmp.ge.s32.totalorder %v86, 1
  %vm119 = vcmp.ge.s32.totalorder %v87, 1
  %vm120 = vcmp.ge.s32.totalorder %v88, 1
  %vm121 = vcmp.ge.s32.totalorder %v89, 1
  %vm122 = vcmp.ge.s32.totalorder %v90, 1
  %vm123 = vcmp.ge.s32.totalorder %v91, 1
  %vm124 = vcmp.ge.s32.totalorder %v92, 1
  %vm125 = vcmp.ge.s32.totalorder %v93, 1
  %vm126 = vcmp.ge.s32.totalorder %v94, 1
  %vm127 = vcmp.ge.s32.totalorder %v95, 1
  %vm128 = vcmp.ge.s32.totalorder %v96, 1
  %vm129 = vcmp.ge.s32.totalorder %v97, 1
  %vm130 = vcmp.ge.s32.totalorder %v98, 1
  %vm131 = vcmp.ge.s32.totalorder %v99, 1
  %vm132 = vcmp.ge.s32.totalorder %v100, 1
  %vm133 = vcmp.ge.s32.totalorder %v101, 1
  %vm134 = vcmp.ge.s32.totalorder %v102, 1
  %vm135 = vcmp.ge.s32.totalorder %v103, 1
  %vm136 = vcmp.ge.s32.totalorder %v104, 1
  %vm137 = vcmp.ge.s32.totalorder %v105, 1
  %vm138 = vcmp.ge.s32.totalorder %v106, 1
  %vm139 = vcmp.ge.s32.totalorder %v107, 1
  %vm140 = vcmp.ge.s32.totalorder %v108, 1
  %vm141 = vcmp.ge.s32.totalorder %v109, 1
  %vm142 = vcmp.ge.s32.totalorder %v110, 1
  %vm143 = vcmp.ge.s32.totalorder %v111, 1
  %vm144 = vcmp.ge.s32.totalorder %v112, 1
  %vm145 = vcmp.ge.s32.totalorder %v113, 1
  %vm146 = vcmp.ge.s32.totalorder %v114, 1
  %vm147 = vcmp.le.s32.totalorder %v83, 14
  %vm148 = vcmp.le.s32.totalorder %v84, 14
  %vm149 = vcmp.le.s32.totalorder %v85, 14
  %vm150 = vcmp.le.s32.totalorder %v86, 14
  %vm151 = vcmp.le.s32.totalorder %v87, 14
  %vm152 = vcmp.le.s32.totalorder %v88, 14
  %vm153 = vcmp.le.s32.totalorder %v89, 14
  %vm154 = vcmp.le.s32.totalorder %v90, 14
  %vm155 = vcmp.le.s32.totalorder %v91, 14
  %vm156 = vcmp.le.s32.totalorder %v92, 14
  %vm157 = vcmp.le.s32.totalorder %v93, 14
  %vm158 = vcmp.le.s32.totalorder %v94, 14
  %vm159 = vcmp.le.s32.totalorder %v95, 14
  %vm160 = vcmp.le.s32.totalorder %v96, 14
  %vm161 = vcmp.le.s32.totalorder %v97, 14
  %vm162 = vcmp.le.s32.totalorder %v98, 14
  %vm163 = vcmp.le.s32.totalorder %v99, 14
  %vm164 = vcmp.le.s32.totalorder %v100, 14
  %vm165 = vcmp.le.s32.totalorder %v101, 14
  %vm166 = vcmp.le.s32.totalorder %v102, 14
  %vm167 = vcmp.le.s32.totalorder %v103, 14
  %vm168 = vcmp.le.s32.totalorder %v104, 14
  %vm169 = vcmp.le.s32.totalorder %v105, 14
  %vm170 = vcmp.le.s32.totalorder %v106, 14
  %vm171 = vcmp.le.s32.totalorder %v107, 14
  %vm172 = vcmp.le.s32.totalorder %v108, 14
  %vm173 = vcmp.le.s32.totalorder %v109, 14
  %vm174 = vcmp.le.s32.totalorder %v110, 14
  %vm175 = vcmp.le.s32.totalorder %v111, 14
  %vm176 = vcmp.le.s32.totalorder %v112, 14
  %vm177 = vcmp.le.s32.totalorder %v113, 14
  %vm178 = vcmp.le.s32.totalorder %v114, 14
  %v179 = vld [vmem:[%s0] sm:$0xff]
  %v180 = vld [vmem:[%s0 + $0x8] sm:$0xff]
  %v181 = vld [vmem:[%s0 + $0x10] sm:$0xff]
  %v182 = vld [vmem:[%s0 + $0x18] sm:$0xff]
  %v183 = vld [vmem:[%s0 + $0x20] sm:$0xff]
  %v184 = vld [vmem:[%s0 + $0x28] sm:$0xff]
  %v185 = vld [vmem:[%s0 + $0x30] sm:$0xff]
  %v186 = vld [vmem:[%s0 + $0x38] sm:$0xff]
  %v187 = vld [vmem:[%s0 + $0x40] sm:$0xff]
  %v188 = vld [vmem:[%s0 + $0x48] sm:$0xff]
  %v189 = vld [vmem:[%s0 + $0x50] sm:$0xff]
  %v190 = vld [vmem:[%s0 + $0x58] sm:$0xff]
  %v191 = vld [vmem:[%s0 + $0x60] sm:$0xff]
  %v192 = vld [vmem:[%s0 + $0x68] sm:$0xff]
  %v193 = vld [vmem:[%s0 + $0x70] sm:$0xff]
  %v194 = vld [vmem:[%s0 + $0x78] sm:$0xff]
  %v195 = vld [vmem:[%s0 + $0x80] sm:$0xff]
  %v196 = vld [vmem:[%s0 + $0x88] sm:$0xff]
  %v197 = vld [vmem:[%s0 + $0x90] sm:$0xff]
  %v198 = vld [vmem:[%s0 + $0x98] sm:$0xff]
  %v199 = vld [vmem:[%s0 + $0xa0] sm:$0xff]
  %v200 = vld [vmem:[%s0 + $0xa8] sm:$0xff]
  %v201 = vld [vmem:[%s0 + $0xb0] sm:$0xff]
  %v202 = vld [vmem:[%s0 + $0xb8] sm:$0xff]
  %v203 = vld [vmem:[%s0 + $0xc0] sm:$0xff]
  %v204 = vld [vmem:[%s0 + $0xc8] sm:$0xff]
  %v205 = vld [vmem:[%s0 + $0xd0] sm:$0xff]
  %v206 = vld [vmem:[%s0 + $0xd8] sm:$0xff]
  %v207 = vld [vmem:[%s0 + $0xe0] sm:$0xff]
  %v208 = vld [vmem:[%s0 + $0xe8] sm:$0xff]
  %v209 = vld [vmem:[%s0 + $0xf0] sm:$0xff]
  %v210 = vld [vmem:[%s0 + $0xf8] sm:$0xff]
  %v211 = vsel %vm35, %v179, 0.0
  %212 = vadd.xlane.f32.xlu0 %v211
  %v213 = vpop.xlane.xlu0 %212
  %v214 = vsel %vm35, %v180, 0.0
  %215 = vadd.xlane.f32.xlu0 %v214
  %v216 = vpop.xlane.xlu0 %215
  %v217 = vsel %vm35, %v181, 0.0
  %218 = vadd.xlane.f32.xlu0 %v217
  %v219 = vpop.xlane.xlu0 %218
  %v220 = vsel %vm35, %v182, 0.0
  %221 = vadd.xlane.f32.xlu0 %v220
  %v222 = vpop.xlane.xlu0 %221
  %v223 = vsel %vm35, %v183, 0.0
  %224 = vadd.xlane.f32.xlu0 %v223
  %v225 = vpop.xlane.xlu0 %224
  %v226 = vsel %vm35, %v184, 0.0
  %227 = vadd.xlane.f32.xlu0 %v226
  %v228 = vpop.xlane.xlu0 %227
  %v229 = vsel %vm35, %v185, 0.0
  %230 = vadd.xlane.f32.xlu0 %v229
  %v231 = vpop.xlane.xlu0 %230
  %v232 = vsel %vm35, %v186, 0.0
  %233 = vadd.xlane.f32.xlu0 %v232
  %v234 = vpop.xlane.xlu0 %233
  %v235 = vsel %vm35, %v187, 0.0
  %236 = vadd.xlane.f32.xlu0 %v235
  %v237 = vpop.xlane.xlu0 %236
  %v238 = vsel %vm35, %v188, 0.0
  %239 = vadd.xlane.f32.xlu0 %v238
  %v240 = vpop.xlane.xlu0 %239
  %v241 = vsel %vm35, %v189, 0.0
  %242 = vadd.xlane.f32.xlu0 %v241
  %v243 = vpop.xlane.xlu0 %242
  %v244 = vsel %vm35, %v190, 0.0
  %245 = vadd.xlane.f32.xlu0 %v244
  %v246 = vpop.xlane.xlu0 %245
  %v247 = vsel %vm35, %v191, 0.0
  %248 = vadd.xlane.f32.xlu0 %v247
  %v249 = vpop.xlane.xlu0 %248
  %v250 = vsel %vm35, %v192, 0.0
  %251 = vadd.xlane.f32.xlu0 %v250
  %v252 = vpop.xlane.xlu0 %251
  %v253 = vsel %vm35, %v193, 0.0
  %254 = vadd.xlane.f32.xlu0 %v253
  %v255 = vpop.xlane.xlu0 %254
  %v256 = vsel %vm35, %v194, 0.0
  %257 = vadd.xlane.f32.xlu0 %v256
  %v258 = vpop.xlane.xlu0 %257
  %v259 = vsel %vm35, %v195, 0.0
  %260 = vadd.xlane.f32.xlu0 %v259
  %v261 = vpop.xlane.xlu0 %260
  %v262 = vsel %vm35, %v196, 0.0
  %263 = vadd.xlane.f32.xlu0 %v262
  %v264 = vpop.xlane.xlu0 %263
  %v265 = vsel %vm35, %v197, 0.0
  %266 = vadd.xlane.f32.xlu0 %v265
  %v267 = vpop.xlane.xlu0 %266
  %v268 = vsel %vm35, %v198, 0.0
  %269 = vadd.xlane.f32.xlu0 %v268
  %v270 = vpop.xlane.xlu0 %269
  %v271 = vsel %vm35, %v199, 0.0
  %272 = vadd.xlane.f32.xlu0 %v271
  %v273 = vpop.xlane.xlu0 %272
  %v274 = vsel %vm35, %v200, 0.0
  %275 = vadd.xlane.f32.xlu0 %v274
  %v276 = vpop.xlane.xlu0 %275
  %v277 = vsel %vm35, %v201, 0.0
  %278 = vadd.xlane.f32.xlu0 %v277
  %v279 = vpop.xlane.xlu0 %278
  %v280 = vsel %vm35, %v202, 0.0
  %281 = vadd.xlane.f32.xlu0 %v280
  %v282 = vpop.xlane.xlu0 %281
  %v283 = vsel %vm35, %v203, 0.0
  %284 = vadd.xlane.f32.xlu0 %v283
  %v285 = vpop.xlane.xlu0 %284
  %v286 = vsel %vm35, %v204, 0.0
  %287 = vadd.xlane.f32.xlu0 %v286
  %v288 = vpop.xlane.xlu0 %287
  %v289 = vsel %vm35, %v205, 0.0
  %290 = vadd.xlane.f32.xlu0 %v289
  %v291 = vpop.xlane.xlu0 %290
  %v292 = vsel %vm35, %v206, 0.0
  %293 = vadd.xlane.f32.xlu0 %v292
  %v294 = vpop.xlane.xlu0 %293
  %v295 = vsel %vm35, %v207, 0.0
  %296 = vadd.xlane.f32.xlu0 %v295
  %v297 = vpop.xlane.xlu0 %296
  %v298 = vsel %vm35, %v208, 0.0
  %299 = vadd.xlane.f32.xlu0 %v298
  %v300 = vpop.xlane.xlu0 %299
  %v301 = vsel %vm35, %v209, 0.0
  %302 = vadd.xlane.f32.xlu0 %v301
  %v303 = vpop.xlane.xlu0 %302
  %v304 = vsel %vm35, %v210, 0.0
  %305 = vadd.xlane.f32.xlu0 %v304
  %v306 = vpop.xlane.xlu0 %305
  %v307 = vrcp.pop 32.0
  %v308 = vmul.f32 32.0, %v307
  %v309 = vsub.f32 1.0, %v308
  %v310 = vmul.f32 %v307, %v309
  %v311 = vadd.f32 %v307, %v310
  %vm312 = vweird.f32 %v307
  %v313 = vsel %vm312, %v307, %v311
  %v314 = vmul.f32 %v213, %v313
  %v315 = vmul.f32 %v216, %v313
  %v316 = vmul.f32 %v219, %v313
  %v317 = vmul.f32 %v222, %v313
  %v318 = vmul.f32 %v225, %v313
  %v319 = vmul.f32 %v228, %v313
  %v320 = vmul.f32 %v231, %v313
  %v321 = vmul.f32 %v234, %v313
  %v322 = vmul.f32 %v237, %v313
  %v323 = vmul.f32 %v240, %v313
  %v324 = vmul.f32 %v243, %v313
  %v325 = vmul.f32 %v246, %v313
  %v326 = vmul.f32 %v249, %v313
  %v327 = vmul.f32 %v252, %v313
  %v328 = vmul.f32 %v255, %v313
  %v329 = vmul.f32 %v258, %v313
  %v330 = vmul.f32 %v261, %v313
  %v331 = vmul.f32 %v264, %v313
  %v332 = vmul.f32 %v267, %v313
  %v333 = vmul.f32 %v270, %v313
  %v334 = vmul.f32 %v273, %v313
  %v335 = vmul.f32 %v276, %v313
  %v336 = vmul.f32 %v279, %v313
  %v337 = vmul.f32 %v282, %v313
  %v338 = vmul.f32 %v285, %v313
  %v339 = vmul.f32 %v288, %v313
  %v340 = vmul.f32 %v291, %v313
  %v341 = vmul.f32 %v294, %v313
  %v342 = vmul.f32 %v297, %v313
  %v343 = vmul.f32 %v300, %v313
  %v344 = vmul.f32 %v303, %v313
  %v345 = vmul.f32 %v306, %v313
  %v346 = vsub.f32 %v179, %v314
  %v347 = vsub.f32 %v180, %v315
  %v348 = vsub.f32 %v181, %v316
  %v349 = vsub.f32 %v182, %v317
  %v350 = vsub.f32 %v183, %v318
  %v351 = vsub.f32 %v184, %v319
  %v352 = vsub.f32 %v185, %v320
  %v353 = vsub.f32 %v186, %v321
  %v354 = vsub.f32 %v187, %v322
  %v355 = vsub.f32 %v188, %v323
  %v356 = vsub.f32 %v189, %v324
  %v357 = vsub.f32 %v190, %v325
  %v358 = vsub.f32 %v191, %v326
  %v359 = vsub.f32 %v192, %v327
  %v360 = vsub.f32 %v193, %v328
  %v361 = vsub.f32 %v194, %v329
  %v362 = vsub.f32 %v195, %v330
  %v363 = vsub.f32 %v196, %v331
  %v364 = vsub.f32 %v197, %v332
  %v365 = vsub.f32 %v198, %v333
  %v366 = vsub.f32 %v199, %v334
  %v367 = vsub.f32 %v200, %v335
  %v368 = vsub.f32 %v201, %v336
  %v369 = vsub.f32 %v202, %v337
  %v370 = vsub.f32 %v203, %v338
  %v371 = vsub.f32 %v204, %v339
  %v372 = vsub.f32 %v205, %v340
  %v373 = vsub.f32 %v206, %v341
  %v374 = vsub.f32 %v207, %v342
  %v375 = vsub.f32 %v208, %v343
  %v376 = vsub.f32 %v209, %v344
  %v377 = vsub.f32 %v210, %v345
  %v378 = vmul.f32 %v346, %v346
  %v379 = vmul.f32 %v347, %v347
  %v380 = vmul.f32 %v348, %v348
  %v381 = vmul.f32 %v349, %v349
  %v382 = vmul.f32 %v350, %v350
  %v383 = vmul.f32 %v351, %v351
  %v384 = vmul.f32 %v352, %v352
  %v385 = vmul.f32 %v353, %v353
  %v386 = vmul.f32 %v354, %v354
  %v387 = vmul.f32 %v355, %v355
  %v388 = vmul.f32 %v356, %v356
  %v389 = vmul.f32 %v357, %v357
  %v390 = vmul.f32 %v358, %v358
  %v391 = vmul.f32 %v359, %v359
  %v392 = vmul.f32 %v360, %v360
  %v393 = vmul.f32 %v361, %v361
  %v394 = vmul.f32 %v362, %v362
  %v395 = vmul.f32 %v363, %v363
  %v396 = vmul.f32 %v364, %v364
  %v397 = vmul.f32 %v365, %v365
  %v398 = vmul.f32 %v366, %v366
  %v399 = vmul.f32 %v367, %v367
  %v400 = vmul.f32 %v368, %v368
  %v401 = vmul.f32 %v369, %v369
  %v402 = vmul.f32 %v370, %v370
  %v403 = vmul.f32 %v371, %v371
  %v404 = vmul.f32 %v372, %v372
  %v405 = vmul.f32 %v373, %v373
  %v406 = vmul.f32 %v374, %v374
  %v407 = vmul.f32 %v375, %v375
  %v408 = vmul.f32 %v376, %v376
  %v409 = vmul.f32 %v377, %v377
  %v410 = vsel %vm35, %v378, 0.0
  %411 = vadd.xlane.f32.xlu0 %v410
  %v412 = vpop.xlane.xlu0 %411
  %v413 = vsel %vm35, %v379, 0.0
  %414 = vadd.xlane.f32.xlu0 %v413
  %v415 = vpop.xlane.xlu0 %414
  %v416 = vsel %vm35, %v380, 0.0
  %417 = vadd.xlane.f32.xlu0 %v416
  %v418 = vpop.xlane.xlu0 %417
  %v419 = vsel %vm35, %v381, 0.0
  %420 = vadd.xlane.f32.xlu0 %v419
  %v421 = vpop.xlane.xlu0 %420
  %v422 = vsel %vm35, %v382, 0.0
  %423 = vadd.xlane.f32.xlu0 %v422
  %v424 = vpop.xlane.xlu0 %423
  %v425 = vsel %vm35, %v383, 0.0
  %426 = vadd.xlane.f32.xlu0 %v425
  %v427 = vpop.xlane.xlu0 %426
  %v428 = vsel %vm35, %v384, 0.0
  %429 = vadd.xlane.f32.xlu0 %v428
  %v430 = vpop.xlane.xlu0 %429
  %v431 = vsel %vm35, %v385, 0.0
  %432 = vadd.xlane.f32.xlu0 %v431
  %v433 = vpop.xlane.xlu0 %432
  %v434 = vsel %vm35, %v386, 0.0
  %435 = vadd.xlane.f32.xlu0 %v434
  %v436 = vpop.xlane.xlu0 %435
  %v437 = vsel %vm35, %v387, 0.0
  %438 = vadd.xlane.f32.xlu0 %v437
  %v439 = vpop.xlane.xlu0 %438
  %v440 = vsel %vm35, %v388, 0.0
  %441 = vadd.xlane.f32.xlu0 %v440
  %v442 = vpop.xlane.xlu0 %441
  %v443 = vsel %vm35, %v389, 0.0
  %444 = vadd.xlane.f32.xlu0 %v443
  %v445 = vpop.xlane.xlu0 %444
  %v446 = vsel %vm35, %v390, 0.0
  %447 = vadd.xlane.f32.xlu0 %v446
  %v448 = vpop.xlane.xlu0 %447
  %v449 = vsel %vm35, %v391, 0.0
  %450 = vadd.xlane.f32.xlu0 %v449
  %v451 = vpop.xlane.xlu0 %450
  %v452 = vsel %vm35, %v392, 0.0
  %453 = vadd.xlane.f32.xlu0 %v452
  %v454 = vpop.xlane.xlu0 %453
  %v455 = vsel %vm35, %v393, 0.0
  %456 = vadd.xlane.f32.xlu0 %v455
  %v457 = vpop.xlane.xlu0 %456
  %v458 = vsel %vm35, %v394, 0.0
  %459 = vadd.xlane.f32.xlu0 %v458
  %v460 = vpop.xlane.xlu0 %459
  %v461 = vsel %vm35, %v395, 0.0
  %462 = vadd.xlane.f32.xlu0 %v461
  %v463 = vpop.xlane.xlu0 %462
  %v464 = vsel %vm35, %v396, 0.0
  %465 = vadd.xlane.f32.xlu0 %v464
  %v466 = vpop.xlane.xlu0 %465
  %v467 = vsel %vm35, %v397, 0.0
  %468 = vadd.xlane.f32.xlu0 %v467
  %v469 = vpop.xlane.xlu0 %468
  %v470 = vsel %vm35, %v398, 0.0
  %471 = vadd.xlane.f32.xlu0 %v470
  %v472 = vpop.xlane.xlu0 %471
  %v473 = vsel %vm35, %v399, 0.0
  %474 = vadd.xlane.f32.xlu0 %v473
  %v475 = vpop.xlane.xlu0 %474
  %v476 = vsel %vm35, %v400, 0.0
  %477 = vadd.xlane.f32.xlu0 %v476
  %v478 = vpop.xlane.xlu0 %477
  %v479 = vsel %vm35, %v401, 0.0
  %480 = vadd.xlane.f32.xlu0 %v479
  %v481 = vpop.xlane.xlu0 %480
  %v482 = vsel %vm35, %v402, 0.0
  %483 = vadd.xlane.f32.xlu0 %v482
  %v484 = vpop.xlane.xlu0 %483
  %v485 = vsel %vm35, %v403, 0.0
  %486 = vadd.xlane.f32.xlu0 %v485
  %v487 = vpop.xlane.xlu0 %486
  %v488 = vsel %vm35, %v404, 0.0
  %489 = vadd.xlane.f32.xlu0 %v488
  %v490 = vpop.xlane.xlu0 %489
  %v491 = vsel %vm35, %v405, 0.0
  %492 = vadd.xlane.f32.xlu0 %v491
  %v493 = vpop.xlane.xlu0 %492
  %v494 = vsel %vm35, %v406, 0.0
  %495 = vadd.xlane.f32.xlu0 %v494
  %v496 = vpop.xlane.xlu0 %495
  %v497 = vsel %vm35, %v407, 0.0
  %498 = vadd.xlane.f32.xlu0 %v497
  %v499 = vpop.xlane.xlu0 %498
  %v500 = vsel %vm35, %v408, 0.0
  %501 = vadd.xlane.f32.xlu0 %v500
  %v502 = vpop.xlane.xlu0 %501
  %v503 = vsel %vm35, %v409, 0.0
  %504 = vadd.xlane.f32.xlu0 %v503
  %v505 = vpop.xlane.xlu0 %504
  %v506 = vmul.f32 %v412, %v313
  %v507 = vmul.f32 %v415, %v313
  %v508 = vmul.f32 %v418, %v313
  %v509 = vmul.f32 %v421, %v313
  %v510 = vmul.f32 %v424, %v313
  %v511 = vmul.f32 %v427, %v313
  %v512 = vmul.f32 %v430, %v313
  %v513 = vmul.f32 %v433, %v313
  %v514 = vmul.f32 %v436, %v313
  %v515 = vmul.f32 %v439, %v313
  %v516 = vmul.f32 %v442, %v313
  %v517 = vmul.f32 %v445, %v313
  %v518 = vmul.f32 %v448, %v313
  %v519 = vmul.f32 %v451, %v313
  %v520 = vmul.f32 %v454, %v313
  %v521 = vmul.f32 %v457, %v313
  %v522 = vmul.f32 %v460, %v313
  %v523 = vmul.f32 %v463, %v313
  %v524 = vmul.f32 %v466, %v313
  %v525 = vmul.f32 %v469, %v313
  %v526 = vmul.f32 %v472, %v313
  %v527 = vmul.f32 %v475, %v313
  %v528 = vmul.f32 %v478, %v313
  %v529 = vmul.f32 %v481, %v313
  %v530 = vmul.f32 %v484, %v313
  %v531 = vmul.f32 %v487, %v313
  %v532 = vmul.f32 %v490, %v313
  %v533 = vmul.f32 %v493, %v313
  %v534 = vmul.f32 %v496, %v313
  %v535 = vmul.f32 %v499, %v313
  %v536 = vmul.f32 %v502, %v313
  %v537 = vmul.f32 %v505, %v313
  %v538 = vadd.f32 %v506, 1e-05
  %v539 = vadd.f32 %v507, 1e-05
  %v540 = vadd.f32 %v508, 1e-05
  %v541 = vadd.f32 %v509, 1e-05
  %v542 = vadd.f32 %v510, 1e-05
  %v543 = vadd.f32 %v511, 1e-05
  %v544 = vadd.f32 %v512, 1e-05
  %v545 = vadd.f32 %v513, 1e-05
  %v546 = vadd.f32 %v514, 1e-05
  %v547 = vadd.f32 %v515, 1e-05
  %v548 = vadd.f32 %v516, 1e-05
  %v549 = vadd.f32 %v517, 1e-05
  %v550 = vadd.f32 %v518, 1e-05
  %v551 = vadd.f32 %v519, 1e-05
  %v552 = vadd.f32 %v520, 1e-05
  %v553 = vadd.f32 %v521, 1e-05
  %v554 = vadd.f32 %v522, 1e-05
  %v555 = vadd.f32 %v523, 1e-05
  %v556 = vadd.f32 %v524, 1e-05
  %v557 = vadd.f32 %v525, 1e-05
  %v558 = vadd.f32 %v526, 1e-05
  %v559 = vadd.f32 %v527, 1e-05
  %v560 = vadd.f32 %v528, 1e-05
  %v561 = vadd.f32 %v529, 1e-05
  %v562 = vadd.f32 %v530, 1e-05
  %v563 = vadd.f32 %v531, 1e-05
  %v564 = vadd.f32 %v532, 1e-05
  %v565 = vadd.f32 %v533, 1e-05
  %v566 = vadd.f32 %v534, 1e-05
  %v567 = vadd.f32 %v535, 1e-05
  %v568 = vadd.f32 %v536, 1e-05
  %v569 = vadd.f32 %v537, 1e-05
  %v570 = vrsqrt.pop %v538
  %v571 = vmul.f32 %v570, %v538
  %v572 = vmul.f32 %v571, %v570
  %v573 = vmul.f32 0.5, %v572
  %v574 = vsub.f32 1.5, %v573
  %v575 = vmul.f32 %v570, %v574
  %vm576 = vweird.f32 %v538
  %vm577 = vweird.f32 %v570
  %vm578 = vmor %vm576, %vm577
  %v579 = vsel %vm578, %v570, %v575
  %v580 = vrsqrt.pop %v539
  %v581 = vmul.f32 %v580, %v539
  %v582 = vmul.f32 %v581, %v580
  %v583 = vmul.f32 0.5, %v582
  %v584 = vsub.f32 1.5, %v583
  %v585 = vmul.f32 %v580, %v584
  %vm586 = vweird.f32 %v539
  %vm587 = vweird.f32 %v580
  %vm588 = vmor %vm586, %vm587
  %v589 = vsel %vm588, %v580, %v585
  %v590 = vrsqrt.pop %v540
  %v591 = vmul.f32 %v590, %v540
  %v592 = vmul.f32 %v591, %v590
  %v593 = vmul.f32 0.5, %v592
  %v594 = vsub.f32 1.5, %v593
  %v595 = vmul.f32 %v590, %v594
  %vm596 = vweird.f32 %v540
  %vm597 = vweird.f32 %v590
  %vm598 = vmor %vm596, %vm597
  %v599 = vsel %vm598, %v590, %v595
  %v600 = vrsqrt.pop %v541
  %v601 = vmul.f32 %v600, %v541
  %v602 = vmul.f32 %v601, %v600
  %v603 = vmul.f32 0.5, %v602
  %v604 = vsub.f32 1.5, %v603
  %v605 = vmul.f32 %v600, %v604
  %vm606 = vweird.f32 %v541
  %vm607 = vweird.f32 %v600
  %vm608 = vmor %vm606, %vm607
  %v609 = vsel %vm608, %v600, %v605
  %v610 = vrsqrt.pop %v542
  %v611 = vmul.f32 %v610, %v542
  %v612 = vmul.f32 %v611, %v610
  %v613 = vmul.f32 0.5, %v612
  %v614 = vsub.f32 1.5, %v613
  %v615 = vmul.f32 %v610, %v614
  %vm616 = vweird.f32 %v542
  %vm617 = vweird.f32 %v610
  %vm618 = vmor %vm616, %vm617
  %v619 = vsel %vm618, %v610, %v615
  %v620 = vrsqrt.pop %v543
  %v621 = vmul.f32 %v620, %v543
  %v622 = vmul.f32 %v621, %v620
  %v623 = vmul.f32 0.5, %v622
  %v624 = vsub.f32 1.5, %v623
  %v625 = vmul.f32 %v620, %v624
  %vm626 = vweird.f32 %v543
  %vm627 = vweird.f32 %v620
  %vm628 = vmor %vm626, %vm627
  %v629 = vsel %vm628, %v620, %v625
  %v630 = vrsqrt.pop %v544
  %v631 = vmul.f32 %v630, %v544
  %v632 = vmul.f32 %v631, %v630
  %v633 = vmul.f32 0.5, %v632
  %v634 = vsub.f32 1.5, %v633
  %v635 = vmul.f32 %v630, %v634
  %vm636 = vweird.f32 %v544
  %vm637 = vweird.f32 %v630
  %vm638 = vmor %vm636, %vm637
  %v639 = vsel %vm638, %v630, %v635
  %v640 = vrsqrt.pop %v545
  %v641 = vmul.f32 %v640, %v545
  %v642 = vmul.f32 %v641, %v640
  %v643 = vmul.f32 0.5, %v642
  %v644 = vsub.f32 1.5, %v643
  %v645 = vmul.f32 %v640, %v644
  %vm646 = vweird.f32 %v545
  %vm647 = vweird.f32 %v640
  %vm648 = vmor %vm646, %vm647
  %v649 = vsel %vm648, %v640, %v645
  %v650 = vrsqrt.pop %v546
  %v651 = vmul.f32 %v650, %v546
  %v652 = vmul.f32 %v651, %v650
  %v653 = vmul.f32 0.5, %v652
  %v654 = vsub.f32 1.5, %v653
  %v655 = vmul.f32 %v650, %v654
  %vm656 = vweird.f32 %v546
  %vm657 = vweird.f32 %v650
  %vm658 = vmor %vm656, %vm657
  %v659 = vsel %vm658, %v650, %v655
  %v660 = vrsqrt.pop %v547
  %v661 = vmul.f32 %v660, %v547
  %v662 = vmul.f32 %v661, %v660
  %v663 = vmul.f32 0.5, %v662
  %v664 = vsub.f32 1.5, %v663
  %v665 = vmul.f32 %v660, %v664
  %vm666 = vweird.f32 %v547
  %vm667 = vweird.f32 %v660
  %vm668 = vmor %vm666, %vm667
  %v669 = vsel %vm668, %v660, %v665
  %v670 = vrsqrt.pop %v548
  %v671 = vmul.f32 %v670, %v548
  %v672 = vmul.f32 %v671, %v670
  %v673 = vmul.f32 0.5, %v672
  %v674 = vsub.f32 1.5, %v673
  %v675 = vmul.f32 %v670, %v674
  %vm676 = vweird.f32 %v548
  %vm677 = vweird.f32 %v670
  %vm678 = vmor %vm676, %vm677
  %v679 = vsel %vm678, %v670, %v675
  %v680 = vrsqrt.pop %v549
  %v681 = vmul.f32 %v680, %v549
  %v682 = vmul.f32 %v681, %v680
  %v683 = vmul.f32 0.5, %v682
  %v684 = vsub.f32 1.5, %v683
  %v685 = vmul.f32 %v680, %v684
  %vm686 = vweird.f32 %v549
  %vm687 = vweird.f32 %v680
  %vm688 = vmor %vm686, %vm687
  %v689 = vsel %vm688, %v680, %v685
  %v690 = vrsqrt.pop %v550
  %v691 = vmul.f32 %v690, %v550
  %v692 = vmul.f32 %v691, %v690
  %v693 = vmul.f32 0.5, %v692
  %v694 = vsub.f32 1.5, %v693
  %v695 = vmul.f32 %v690, %v694
  %vm696 = vweird.f32 %v550
  %vm697 = vweird.f32 %v690
  %vm698 = vmor %vm696, %vm697
  %v699 = vsel %vm698, %v690, %v695
  %v700 = vrsqrt.pop %v551
  %v701 = vmul.f32 %v700, %v551
  %v702 = vmul.f32 %v701, %v700
  %v703 = vmul.f32 0.5, %v702
  %v704 = vsub.f32 1.5, %v703
  %v705 = vmul.f32 %v700, %v704
  %vm706 = vweird.f32 %v551
  %vm707 = vweird.f32 %v700
  %vm708 = vmor %vm706, %vm707
  %v709 = vsel %vm708, %v700, %v705
  %v710 = vrsqrt.pop %v552
  %v711 = vmul.f32 %v710, %v552
  %v712 = vmul.f32 %v711, %v710
  %v713 = vmul.f32 0.5, %v712
  %v714 = vsub.f32 1.5, %v713
  %v715 = vmul.f32 %v710, %v714
  %vm716 = vweird.f32 %v552
  %vm717 = vweird.f32 %v710
  %vm718 = vmor %vm716, %vm717
  %v719 = vsel %vm718, %v710, %v715
  %v720 = vrsqrt.pop %v553
  %v721 = vmul.f32 %v720, %v553
  %v722 = vmul.f32 %v721, %v720
  %v723 = vmul.f32 0.5, %v722
  %v724 = vsub.f32 1.5, %v723
  %v725 = vmul.f32 %v720, %v724
  %vm726 = vweird.f32 %v553
  %vm727 = vweird.f32 %v720
  %vm728 = vmor %vm726, %vm727
  %v729 = vsel %vm728, %v720, %v725
  %v730 = vrsqrt.pop %v554
  %v731 = vmul.f32 %v730, %v554
  %v732 = vmul.f32 %v731, %v730
  %v733 = vmul.f32 0.5, %v732
  %v734 = vsub.f32 1.5, %v733
  %v735 = vmul.f32 %v730, %v734
  %vm736 = vweird.f32 %v554
  %vm737 = vweird.f32 %v730
  %vm738 = vmor %vm736, %vm737
  %v739 = vsel %vm738, %v730, %v735
  %v740 = vrsqrt.pop %v555
  %v741 = vmul.f32 %v740, %v555
  %v742 = vmul.f32 %v741, %v740
  %v743 = vmul.f32 0.5, %v742
  %v744 = vsub.f32 1.5, %v743
  %v745 = vmul.f32 %v740, %v744
  %vm746 = vweird.f32 %v555
  %vm747 = vweird.f32 %v740
  %vm748 = vmor %vm746, %vm747
  %v749 = vsel %vm748, %v740, %v745
  %v750 = vrsqrt.pop %v556
  %v751 = vmul.f32 %v750, %v556
  %v752 = vmul.f32 %v751, %v750
  %v753 = vmul.f32 0.5, %v752
  %v754 = vsub.f32 1.5, %v753
  %v755 = vmul.f32 %v750, %v754
  %vm756 = vweird.f32 %v556
  %vm757 = vweird.f32 %v750
  %vm758 = vmor %vm756, %vm757
  %v759 = vsel %vm758, %v750, %v755
  %v760 = vrsqrt.pop %v557
  %v761 = vmul.f32 %v760, %v557
  %v762 = vmul.f32 %v761, %v760
  %v763 = vmul.f32 0.5, %v762
  %v764 = vsub.f32 1.5, %v763
  %v765 = vmul.f32 %v760, %v764
  %vm766 = vweird.f32 %v557
  %vm767 = vweird.f32 %v760
  %vm768 = vmor %vm766, %vm767
  %v769 = vsel %vm768, %v760, %v765
  %v770 = vrsqrt.pop %v558
  %v771 = vmul.f32 %v770, %v558
  %v772 = vmul.f32 %v771, %v770
  %v773 = vmul.f32 0.5, %v772
  %v774 = vsub.f32 1.5, %v773
  %v775 = vmul.f32 %v770, %v774
  %vm776 = vweird.f32 %v558
  %vm777 = vweird.f32 %v770
  %vm778 = vmor %vm776, %vm777
  %v779 = vsel %vm778, %v770, %v775
  %v780 = vrsqrt.pop %v559
  %v781 = vmul.f32 %v780, %v559
  %v782 = vmul.f32 %v781, %v780
  %v783 = vmul.f32 0.5, %v782
  %v784 = vsub.f32 1.5, %v783
  %v785 = vmul.f32 %v780, %v784
  %vm786 = vweird.f32 %v559
  %vm787 = vweird.f32 %v780
  %vm788 = vmor %vm786, %vm787
  %v789 = vsel %vm788, %v780, %v785
  %v790 = vrsqrt.pop %v560
  %v791 = vmul.f32 %v790, %v560
  %v792 = vmul.f32 %v791, %v790
  %v793 = vmul.f32 0.5, %v792
  %v794 = vsub.f32 1.5, %v793
  %v795 = vmul.f32 %v790, %v794
  %vm796 = vweird.f32 %v560
  %vm797 = vweird.f32 %v790
  %vm798 = vmor %vm796, %vm797
  %v799 = vsel %vm798, %v790, %v795
  %v800 = vrsqrt.pop %v561
  %v801 = vmul.f32 %v800, %v561
  %v802 = vmul.f32 %v801, %v800
  %v803 = vmul.f32 0.5, %v802
  %v804 = vsub.f32 1.5, %v803
  %v805 = vmul.f32 %v800, %v804
  %vm806 = vweird.f32 %v561
  %vm807 = vweird.f32 %v800
  %vm808 = vmor %vm806, %vm807
  %v809 = vsel %vm808, %v800, %v805
  %v810 = vrsqrt.pop %v562
  %v811 = vmul.f32 %v810, %v562
  %v812 = vmul.f32 %v811, %v810
  %v813 = vmul.f32 0.5, %v812
  %v814 = vsub.f32 1.5, %v813
  %v815 = vmul.f32 %v810, %v814
  %vm816 = vweird.f32 %v562
  %vm817 = vweird.f32 %v810
  %vm818 = vmor %vm816, %vm817
  %v819 = vsel %vm818, %v810, %v815
  %v820 = vrsqrt.pop %v563
  %v821 = vmul.f32 %v820, %v563
  %v822 = vmul.f32 %v821, %v820
  %v823 = vmul.f32 0.5, %v822
  %v824 = vsub.f32 1.5, %v823
  %v825 = vmul.f32 %v820, %v824
  %vm826 = vweird.f32 %v563
  %vm827 = vweird.f32 %v820
  %vm828 = vmor %vm826, %vm827
  %v829 = vsel %vm828, %v820, %v825
  %v830 = vrsqrt.pop %v564
  %v831 = vmul.f32 %v830, %v564
  %v832 = vmul.f32 %v831, %v830
  %v833 = vmul.f32 0.5, %v832
  %v834 = vsub.f32 1.5, %v833
  %v835 = vmul.f32 %v830, %v834
  %vm836 = vweird.f32 %v564
  %vm837 = vweird.f32 %v830
  %vm838 = vmor %vm836, %vm837
  %v839 = vsel %vm838, %v830, %v835
  %v840 = vrsqrt.pop %v565
  %v841 = vmul.f32 %v840, %v565
  %v842 = vmul.f32 %v841, %v840
  %v843 = vmul.f32 0.5, %v842
  %v844 = vsub.f32 1.5, %v843
  %v845 = vmul.f32 %v840, %v844
  %vm846 = vweird.f32 %v565
  %vm847 = vweird.f32 %v840
  %vm848 = vmor %vm846, %vm847
  %v849 = vsel %vm848, %v840, %v845
  %v850 = vrsqrt.pop %v566
  %v851 = vmul.f32 %v850, %v566
  %v852 = vmul.f32 %v851, %v850
  %v853 = vmul.f32 0.5, %v852
  %v854 = vsub.f32 1.5, %v853
  %v855 = vmul.f32 %v850, %v854
  %vm856 = vweird.f32 %v566
  %vm857 = vweird.f32 %v850
  %vm858 = vmor %vm856, %vm857
  %v859 = vsel %vm858, %v850, %v855
  %v860 = vrsqrt.pop %v567
  %v861 = vmul.f32 %v860, %v567
  %v862 = vmul.f32 %v861, %v860
  %v863 = vmul.f32 0.5, %v862
  %v864 = vsub.f32 1.5, %v863
  %v865 = vmul.f32 %v860, %v864
  %vm866 = vweird.f32 %v567
  %vm867 = vweird.f32 %v860
  %vm868 = vmor %vm866, %vm867
  %v869 = vsel %vm868, %v860, %v865
  %v870 = vrsqrt.pop %v568
  %v871 = vmul.f32 %v870, %v568
  %v872 = vmul.f32 %v871, %v870
  %v873 = vmul.f32 0.5, %v872
  %v874 = vsub.f32 1.5, %v873
  %v875 = vmul.f32 %v870, %v874
  %vm876 = vweird.f32 %v568
  %vm877 = vweird.f32 %v870
  %vm878 = vmor %vm876, %vm877
  %v879 = vsel %vm878, %v870, %v875
  %v880 = vrsqrt.pop %v569
  %v881 = vmul.f32 %v880, %v569
  %v882 = vmul.f32 %v881, %v880
  %v883 = vmul.f32 0.5, %v882
  %v884 = vsub.f32 1.5, %v883
  %v885 = vmul.f32 %v880, %v884
  %vm886 = vweird.f32 %v569
  %vm887 = vweird.f32 %v880
  %vm888 = vmor %vm886, %vm887
  %v889 = vsel %vm888, %v880, %v885
  %v890 = vmul.f32 %v346, %v579
  %v891 = vmul.f32 %v347, %v589
  %v892 = vmul.f32 %v348, %v599
  %v893 = vmul.f32 %v349, %v609
  %v894 = vmul.f32 %v350, %v619
  %v895 = vmul.f32 %v351, %v629
  %v896 = vmul.f32 %v352, %v639
  %v897 = vmul.f32 %v353, %v649
  %v898 = vmul.f32 %v354, %v659
  %v899 = vmul.f32 %v355, %v669
  %v900 = vmul.f32 %v356, %v679
  %v901 = vmul.f32 %v357, %v689
  %v902 = vmul.f32 %v358, %v699
  %v903 = vmul.f32 %v359, %v709
  %v904 = vmul.f32 %v360, %v719
  %v905 = vmul.f32 %v361, %v729
  %v906 = vmul.f32 %v362, %v739
  %v907 = vmul.f32 %v363, %v749
  %v908 = vmul.f32 %v364, %v759
  %v909 = vmul.f32 %v365, %v769
  %v910 = vmul.f32 %v366, %v779
  %v911 = vmul.f32 %v367, %v789
  %v912 = vmul.f32 %v368, %v799
  %v913 = vmul.f32 %v369, %v809
  %v914 = vmul.f32 %v370, %v819
  %v915 = vmul.f32 %v371, %v829
  %v916 = vmul.f32 %v372, %v839
  %v917 = vmul.f32 %v373, %v849
  %v918 = vmul.f32 %v374, %v859
  %v919 = vmul.f32 %v375, %v869
  %v920 = vmul.f32 %v376, %v879
  %v921 = vmul.f32 %v377, %v889
  %v923 = vperm.slane %v44, 0
  %v925 = vmul.f32 %v890, %v923
  %v926 = vmul.f32 %v891, %v923
  %v927 = vmul.f32 %v892, %v923
  %v928 = vmul.f32 %v893, %v923
  %v929 = vmul.f32 %v894, %v923
  %v930 = vmul.f32 %v895, %v923
  %v931 = vmul.f32 %v896, %v923
  %v932 = vmul.f32 %v897, %v923
  %v933 = vmul.f32 %v898, %v923
  %v934 = vmul.f32 %v899, %v923
  %v935 = vmul.f32 %v900, %v923
  %v936 = vmul.f32 %v901, %v923
  %v937 = vmul.f32 %v902, %v923
  %v938 = vmul.f32 %v903, %v923
  %v939 = vmul.f32 %v904, %v923
  %v940 = vmul.f32 %v905, %v923
  %v941 = vmul.f32 %v906, %v923
  %v942 = vmul.f32 %v907, %v923
  %v943 = vmul.f32 %v908, %v923
  %v944 = vmul.f32 %v909, %v923
  %v945 = vmul.f32 %v910, %v923
  %v946 = vmul.f32 %v911, %v923
  %v947 = vmul.f32 %v912, %v923
  %v948 = vmul.f32 %v913, %v923
  %v949 = vmul.f32 %v914, %v923
  %v950 = vmul.f32 %v915, %v923
  %v951 = vmul.f32 %v916, %v923
  %v952 = vmul.f32 %v917, %v923
  %v953 = vmul.f32 %v918, %v923
  %v954 = vmul.f32 %v919, %v923
  %v955 = vmul.f32 %v920, %v923
  %v956 = vmul.f32 %v921, %v923
  %v958 = vperm.slane %v45, 0
  %v960 = vadd.f32 %v925, %v958
  %v961 = vadd.f32 %v926, %v958
  %v962 = vadd.f32 %v927, %v958
  %v963 = vadd.f32 %v928, %v958
  %v964 = vadd.f32 %v929, %v958
  %v965 = vadd.f32 %v930, %v958
  %v966 = vadd.f32 %v931, %v958
  %v967 = vadd.f32 %v932, %v958
  %v968 = vadd.f32 %v933, %v958
  %v969 = vadd.f32 %v934, %v958
  %v970 = vadd.f32 %v935, %v958
  %v971 = vadd.f32 %v936, %v958
  %v972 = vadd.f32 %v937, %v958
  %v973 = vadd.f32 %v938, %v958
  %v974 = vadd.f32 %v939, %v958
  %v975 = vadd.f32 %v940, %v958
  %v976 = vadd.f32 %v941, %v958
  %v977 = vadd.f32 %v942, %v958
  %v978 = vadd.f32 %v943, %v958
  %v979 = vadd.f32 %v944, %v958
  %v980 = vadd.f32 %v945, %v958
  %v981 = vadd.f32 %v946, %v958
  %v982 = vadd.f32 %v947, %v958
  %v983 = vadd.f32 %v948, %v958
  %v984 = vadd.f32 %v949, %v958
  %v985 = vadd.f32 %v950, %v958
  %v986 = vadd.f32 %v951, %v958
  %v987 = vadd.f32 %v952, %v958
  %v988 = vadd.f32 %v953, %v958
  %v989 = vadd.f32 %v954, %v958
  %v990 = vadd.f32 %v955, %v958
  %v991 = vadd.f32 %v956, %v958
  %992 = vst.msk [vmem:[#allocation2 + $0x20] sm:$0xff] %vm35, %v960
  %993 = vst.msk [vmem:[#allocation2 + $0x28] sm:$0xff] %vm35, %v961
  %994 = vst.msk [vmem:[#allocation2 + $0x30] sm:$0xff] %vm35, %v962
  %995 = vst.msk [vmem:[#allocation2 + $0x38] sm:$0xff] %vm35, %v963
  %996 = vst.msk [vmem:[#allocation2 + $0x40] sm:$0xff] %vm35, %v964
  %997 = vst.msk [vmem:[#allocation2 + $0x48] sm:$0xff] %vm35, %v965
  %998 = vst.msk [vmem:[#allocation2 + $0x50] sm:$0xff] %vm35, %v966
  %999 = vst.msk [vmem:[#allocation2 + $0x58] sm:$0xff] %vm35, %v967
  %1000 = vst.msk [vmem:[#allocation2 + $0x60] sm:$0xff] %vm35, %v968
  %1001 = vst.msk [vmem:[#allocation2 + $0x68] sm:$0xff] %vm35, %v969
  %1002 = vst.msk [vmem:[#allocation2 + $0x70] sm:$0xff] %vm35, %v970
  %1003 = vst.msk [vmem:[#allocation2 + $0x78] sm:$0xff] %vm35, %v971
  %1004 = vst.msk [vmem:[#allocation2 + $0x80] sm:$0xff] %vm35, %v972
  %1005 = vst.msk [vmem:[#allocation2 + $0x88] sm:$0xff] %vm35, %v973
  %1006 = vst.msk [vmem:[#allocation2 + $0x90] sm:$0xff] %vm35, %v974
  %1007 = vst.msk [vmem:[#allocation2 + $0x98] sm:$0xff] %vm35, %v975
  %1008 = vst.msk [vmem:[#allocation2 + $0xa0] sm:$0xff] %vm35, %v976
  %1009 = vst.msk [vmem:[#allocation2 + $0xa8] sm:$0xff] %vm35, %v977
  %1010 = vst.msk [vmem:[#allocation2 + $0xb0] sm:$0xff] %vm35, %v978
  %1011 = vst.msk [vmem:[#allocation2 + $0xb8] sm:$0xff] %vm35, %v979
  %1012 = vst.msk [vmem:[#allocation2 + $0xc0] sm:$0xff] %vm35, %v980
  %1013 = vst.msk [vmem:[#allocation2 + $0xc8] sm:$0xff] %vm35, %v981
  %1014 = vst.msk [vmem:[#allocation2 + $0xd0] sm:$0xff] %vm35, %v982
  %1015 = vst.msk [vmem:[#allocation2 + $0xd8] sm:$0xff] %vm35, %v983
  %1016 = vst.msk [vmem:[#allocation2 + $0xe0] sm:$0xff] %vm35, %v984
  %1017 = vst.msk [vmem:[#allocation2 + $0xe8] sm:$0xff] %vm35, %v985
  %1018 = vst.msk [vmem:[#allocation2 + $0xf0] sm:$0xff] %vm35, %v986
  %1019 = vst.msk [vmem:[#allocation2 + $0xf8] sm:$0xff] %vm35, %v987
  %1020 = vst.msk [vmem:[#allocation2 + $0x100] sm:$0xff] %vm35, %v988
  %1021 = vst.msk [vmem:[#allocation2 + $0x108] sm:$0xff] %vm35, %v989
  %1022 = vst.msk [vmem:[#allocation2 + $0x110] sm:$0xff] %vm35, %v990
  %1023 = vst.msk [vmem:[#allocation2 + $0x118] sm:$0xff] %vm35, %v991
  %v1024 = vld [vmem:[#allocation2 + $0x40] sm:$0xff]
  %v1025 = vld [vmem:[#allocation2 + $0x48] sm:$0xff]
  %v1026 = vld [vmem:[#allocation2 + $0x50] sm:$0xff]
  %v1027 = vld [vmem:[#allocation2 + $0x58] sm:$0xff]
  %v1028 = vld [vmem:[#allocation2 + $0x60] sm:$0xff]
  %v1029 = vld [vmem:[#allocation2 + $0x68] sm:$0xff]
  %v1030 = vld [vmem:[#allocation2 + $0x70] sm:$0xff]
  %v1031 = vld [vmem:[#allocation2 + $0x78] sm:$0xff]
  %v1032 = vld [vmem:[#allocation2 + $0x80] sm:$0xff]
  %v1033 = vld [vmem:[#allocation2 + $0x88] sm:$0xff]
  %v1034 = vld [vmem:[#allocation2 + $0x90] sm:$0xff]
  %v1035 = vld [vmem:[#allocation2 + $0x98] sm:$0xff]
  %v1036 = vld [vmem:[#allocation2 + $0xa0] sm:$0xff]
  %v1037 = vld [vmem:[#allocation2 + $0xa8] sm:$0xff]
  %v1038 = vld [vmem:[#allocation2 + $0xb0] sm:$0xff]
  %v1039 = vld [vmem:[#allocation2 + $0xb8] sm:$0xff]
  %v1040 = vld [vmem:[#allocation2 + $0xc0] sm:$0xff]
  %v1041 = vld [vmem:[#allocation2 + $0xc8] sm:$0xff]
  %v1042 = vld [vmem:[#allocation2 + $0xd0] sm:$0xff]
  %v1043 = vld [vmem:[#allocation2 + $0xd8] sm:$0xff]
  %v1044 = vld [vmem:[#allocation2 + $0xe0] sm:$0xff]
  %v1045 = vld [vmem:[#allocation2 + $0xe8] sm:$0xff]
  %v1046 = vld [vmem:[#allocation2 + $0xf0] sm:$0xff]
  %v1047 = vld [vmem:[#allocation2 + $0xf8] sm:$0xff]
  %v1048 = vld [vmem:[#allocation2 + $0x100] sm:$0xff]
  %v1049 = vld [vmem:[#allocation2 + $0x108] sm:$0xff]
  %v1050 = vld [vmem:[#allocation2 + $0x110] sm:$0xff]
  %v1051 = vld [vmem:[#allocation2 + $0x118] sm:$0xff]
  %v1052 = vld [vmem:[#allocation2 + $0x120] sm:$0xff]
  %v1053 = vld [vmem:[#allocation2 + $0x128] sm:$0xff]
  %v1054 = vld [vmem:[#allocation2 + $0x130] sm:$0xff]
  %v1055 = vld [vmem:[#allocation2 + $0x138] sm:$0xff]
  %v1056 = vsel %vm70, 1, 0
  %vm1057 = vcmp.eq.s32.totalorder %v1056, 1
  %v1058 = vsel %vm1057, %v1024, 0.0
  %v1059 = vsel %vm1057, %v1025, 0.0
  %v1060 = vsel %vm1057, %v1026, 0.0
  %v1061 = vsel %vm1057, %v1027, 0.0
  %v1062 = vsel %vm1057, %v1028, 0.0
  %v1063 = vsel %vm1057, %v1029, 0.0
  %v1064 = vsel %vm1057, %v1030, 0.0
  %v1065 = vsel %vm1057, %v1031, 0.0
  %v1066 = vsel %vm1057, %v1032, 0.0
  %v1067 = vsel %vm1057, %v1033, 0.0
  %v1068 = vsel %vm1057, %v1034, 0.0
  %v1069 = vsel %vm1057, %v1035, 0.0
  %v1070 = vsel %vm1057, %v1036, 0.0
  %v1071 = vsel %vm1057, %v1037, 0.0
  %v1072 = vsel %vm1057, %v1038, 0.0
  %v1073 = vsel %vm1057, %v1039, 0.0
  %v1074 = vsel %vm1057, %v1040, 0.0
  %v1075 = vsel %vm1057, %v1041, 0.0
  %v1076 = vsel %vm1057, %v1042, 0.0
  %v1077 = vsel %vm1057, %v1043, 0.0
  %v1078 = vsel %vm1057, %v1044, 0.0
  %v1079 = vsel %vm1057, %v1045, 0.0
  %v1080 = vsel %vm1057, %v1046, 0.0
  %v1081 = vsel %vm1057, %v1047, 0.0
  %v1082 = vsel %vm1057, %v1048, 0.0
  %v1083 = vsel %vm1057, %v1049, 0.0
  %v1084 = vsel %vm1057, %v1050, 0.0
  %v1085 = vsel %vm1057, %v1051, 0.0
  %v1086 = vsel %vm1057, %v1052, 0.0
  %v1087 = vsel %vm1057, %v1053, 0.0
  %v1088 = vsel %vm1057, %v1054, 0.0
  %v1089 = vsel %vm1057, %v1055, 0.0
  %v1090 = vadd.f32 %v1058, 0.0
  %v1091 = vadd.f32 %v1059, 0.0
  %v1092 = vadd.f32 %v1060, 0.0
  %v1093 = vadd.f32 %v1061, 0.0
  %v1094 = vadd.f32 %v1062, 0.0
  %v1095 = vadd.f32 %v1063, 0.0
  %v1096 = vadd.f32 %v1064, 0.0
  %v1097 = vadd.f32 %v1065, 0.0
  %v1098 = vadd.f32 %v1066, 0.0
  %v1099 = vadd.f32 %v1067, 0.0
  %v1100 = vadd.f32 %v1068, 0.0
  %v1101 = vadd.f32 %v1069, 0.0
  %v1102 = vadd.f32 %v1070, 0.0
  %v1103 = vadd.f32 %v1071, 0.0
  %v1104 = vadd.f32 %v1072, 0.0
  %v1105 = vadd.f32 %v1073, 0.0
  %v1106 = vadd.f32 %v1074, 0.0
  %v1107 = vadd.f32 %v1075, 0.0
  %v1108 = vadd.f32 %v1076, 0.0
  %v1109 = vadd.f32 %v1077, 0.0
  %v1110 = vadd.f32 %v1078, 0.0
  %v1111 = vadd.f32 %v1079, 0.0
  %v1112 = vadd.f32 %v1080, 0.0
  %v1113 = vadd.f32 %v1081, 0.0
  %v1114 = vadd.f32 %v1082, 0.0
  %v1115 = vadd.f32 %v1083, 0.0
  %v1116 = vadd.f32 %v1084, 0.0
  %v1117 = vadd.f32 %v1085, 0.0
  %v1118 = vadd.f32 %v1086, 0.0
  %v1119 = vadd.f32 %v1087, 0.0
  %v1120 = vadd.f32 %v1088, 0.0
  %v1121 = vadd.f32 %v1089, 0.0
  %v1122 = vld [vmem:[#allocation2 + $0x30] sm:$0xff]
  %v1123 = vld [vmem:[#allocation2 + $0x38] sm:$0xff]
  %v1124 = vsel %vm73, 1, 0
  %vm1125 = vcmp.eq.s32.totalorder %v1124, 1
  %v1126 = vsel %vm1125, %v1122, 0.0
  %v1127 = vsel %vm1125, %v1123, 0.0
  %v1128 = vsel %vm1125, %v1024, 0.0
  %v1129 = vsel %vm1125, %v1025, 0.0
  %v1130 = vsel %vm1125, %v1026, 0.0
  %v1131 = vsel %vm1125, %v1027, 0.0
  %v1132 = vsel %vm1125, %v1028, 0.0
  %v1133 = vsel %vm1125, %v1029, 0.0
  %v1134 = vsel %vm1125, %v1030, 0.0
  %v1135 = vsel %vm1125, %v1031, 0.0
  %v1136 = vsel %vm1125, %v1032, 0.0
  %v1137 = vsel %vm1125, %v1033, 0.0
  %v1138 = vsel %vm1125, %v1034, 0.0
  %v1139 = vsel %vm1125, %v1035, 0.0
  %v1140 = vsel %vm1125, %v1036, 0.0
  %v1141 = vsel %vm1125, %v1037, 0.0
  %v1142 = vsel %vm1125, %v1038, 0.0
  %v1143 = vsel %vm1125, %v1039, 0.0
  %v1144 = vsel %vm1125, %v1040, 0.0
  %v1145 = vsel %vm1125, %v1041, 0.0
  %v1146 = vsel %vm1125, %v1042, 0.0
  %v1147 = vsel %vm1125, %v1043, 0.0
  %v1148 = vsel %vm1125, %v1044, 0.0
  %v1149 = vsel %vm1125, %v1045, 0.0
  %v1150 = vsel %vm1125, %v1046, 0.0
  %v1151 = vsel %vm1125, %v1047, 0.0
  %v1152 = vsel %vm1125, %v1048, 0.0
  %v1153 = vsel %vm1125, %v1049, 0.0
  %v1154 = vsel %vm1125, %v1050, 0.0
  %v1155 = vsel %vm1125, %v1051, 0.0
  %v1156 = vsel %vm1125, %v1052, 0.0
  %v1157 = vsel %vm1125, %v1053, 0.0
  %v1158 = vadd.f32 %v1090, %v1126
  %v1159 = vadd.f32 %v1091, %v1127
  %v1160 = vadd.f32 %v1092, %v1128
  %v1161 = vadd.f32 %v1093, %v1129
  %v1162 = vadd.f32 %v1094, %v1130
  %v1163 = vadd.f32 %v1095, %v1131
  %v1164 = vadd.f32 %v1096, %v1132
  %v1165 = vadd.f32 %v1097, %v1133
  %v1166 = vadd.f32 %v1098, %v1134
  %v1167 = vadd.f32 %v1099, %v1135
  %v1168 = vadd.f32 %v1100, %v1136
  %v1169 = vadd.f32 %v1101, %v1137
  %v1170 = vadd.f32 %v1102, %v1138
  %v1171 = vadd.f32 %v1103, %v1139
  %v1172 = vadd.f32 %v1104, %v1140
  %v1173 = vadd.f32 %v1105, %v1141
  %v1174 = vadd.f32 %v1106, %v1142
  %v1175 = vadd.f32 %v1107, %v1143
  %v1176 = vadd.f32 %v1108, %v1144
  %v1177 = vadd.f32 %v1109, %v1145
  %v1178 = vadd.f32 %v1110, %v1146
  %v1179 = vadd.f32 %v1111, %v1147
  %v1180 = vadd.f32 %v1112, %v1148
  %v1181 = vadd.f32 %v1113, %v1149
  %v1182 = vadd.f32 %v1114, %v1150
  %v1183 = vadd.f32 %v1115, %v1151
  %v1184 = vadd.f32 %v1116, %v1152
  %v1185 = vadd.f32 %v1117, %v1153
  %v1186 = vadd.f32 %v1118, %v1154
  %v1187 = vadd.f32 %v1119, %v1155
  %v1188 = vadd.f32 %v1120, %v1156
  %v1189 = vadd.f32 %v1121, %v1157
  %v1190 = vld [vmem:[#allocation2 + $0x20] sm:$0xff]
  %v1191 = vld [vmem:[#allocation2 + $0x28] sm:$0xff]
  %v1192 = vsel %vm76, 1, 0
  %vm1193 = vcmp.eq.s32.totalorder %v1192, 1
  %v1194 = vsel %vm1193, %v1190, 0.0
  %v1195 = vsel %vm1193, %v1191, 0.0
  %v1196 = vsel %vm1193, %v1122, 0.0
  %v1197 = vsel %vm1193, %v1123, 0.0
  %v1198 = vsel %vm1193, %v1024, 0.0
  %v1199 = vsel %vm1193, %v1025, 0.0
  %v1200 = vsel %vm1193, %v1026, 0.0
  %v1201 = vsel %vm1193, %v1027, 0.0
  %v1202 = vsel %vm1193, %v1028, 0.0
  %v1203 = vsel %vm1193, %v1029, 0.0
  %v1204 = vsel %vm1193, %v1030, 0.0
  %v1205 = vsel %vm1193, %v1031, 0.0
  %v1206 = vsel %vm1193, %v1032, 0.0
  %v1207 = vsel %vm1193, %v1033, 0.0
  %v1208 = vsel %vm1193, %v1034, 0.0
  %v1209 = vsel %vm1193, %v1035, 0.0
  %v1210 = vsel %vm1193, %v1036, 0.0
  %v1211 = vsel %vm1193, %v1037, 0.0
  %v1212 = vsel %vm1193, %v1038, 0.0
  %v1213 = vsel %vm1193, %v1039, 0.0
  %v1214 = vsel %vm1193, %v1040, 0.0
  %v1215 = vsel %vm1193, %v1041, 0.0
  %v1216 = vsel %vm1193, %v1042, 0.0
  %v1217 = vsel %vm1193, %v1043, 0.0
  %v1218 = vsel %vm1193, %v1044, 0.0
  %v1219 = vsel %vm1193, %v1045, 0.0
  %v1220 = vsel %vm1193, %v1046, 0.0
  %v1221 = vsel %vm1193, %v1047, 0.0
  %v1222 = vsel %vm1193, %v1048, 0.0
  %v1223 = vsel %vm1193, %v1049, 0.0
  %v1224 = vsel %vm1193, %v1050, 0.0
  %v1225 = vsel %vm1193, %v1051, 0.0
  %v1226 = vadd.f32 %v1158, %v1194
  %v1227 = vadd.f32 %v1159, %v1195
  %v1228 = vadd.f32 %v1160, %v1196
  %v1229 = vadd.f32 %v1161, %v1197
  %v1230 = vadd.f32 %v1162, %v1198
  %v1231 = vadd.f32 %v1163, %v1199
  %v1232 = vadd.f32 %v1164, %v1200
  %v1233 = vadd.f32 %v1165, %v1201
  %v1234 = vadd.f32 %v1166, %v1202
  %v1235 = vadd.f32 %v1167, %v1203
  %v1236 = vadd.f32 %v1168, %v1204
  %v1237 = vadd.f32 %v1169, %v1205
  %v1238 = vadd.f32 %v1170, %v1206
  %v1239 = vadd.f32 %v1171, %v1207
  %v1240 = vadd.f32 %v1172, %v1208
  %v1241 = vadd.f32 %v1173, %v1209
  %v1242 = vadd.f32 %v1174, %v1210
  %v1243 = vadd.f32 %v1175, %v1211
  %v1244 = vadd.f32 %v1176, %v1212
  %v1245 = vadd.f32 %v1177, %v1213
  %v1246 = vadd.f32 %v1178, %v1214
  %v1247 = vadd.f32 %v1179, %v1215
  %v1248 = vadd.f32 %v1180, %v1216
  %v1249 = vadd.f32 %v1181, %v1217
  %v1250 = vadd.f32 %v1182, %v1218
  %v1251 = vadd.f32 %v1183, %v1219
  %v1252 = vadd.f32 %v1184, %v1220
  %v1253 = vadd.f32 %v1185, %v1221
  %v1254 = vadd.f32 %v1186, %v1222
  %v1255 = vadd.f32 %v1187, %v1223
  %v1256 = vadd.f32 %v1188, %v1224
  %v1257 = vadd.f32 %v1189, %v1225
  %v1258 = vld [vmem:[#allocation2 + $0x10] sm:$0xff]
  %v1259 = vld [vmem:[#allocation2 + $0x18] sm:$0xff]
  %v1260 = vsel %vm79, 1, 0
  %vm1261 = vcmp.eq.s32.totalorder %v1260, 1
  %v1262 = vsel %vm1261, %v1258, 0.0
  %v1263 = vsel %vm1261, %v1259, 0.0
  %v1264 = vsel %vm1261, %v1190, 0.0
  %v1265 = vsel %vm1261, %v1191, 0.0
  %v1266 = vsel %vm1261, %v1122, 0.0
  %v1267 = vsel %vm1261, %v1123, 0.0
  %v1268 = vsel %vm1261, %v1024, 0.0
  %v1269 = vsel %vm1261, %v1025, 0.0
  %v1270 = vsel %vm1261, %v1026, 0.0
  %v1271 = vsel %vm1261, %v1027, 0.0
  %v1272 = vsel %vm1261, %v1028, 0.0
  %v1273 = vsel %vm1261, %v1029, 0.0
  %v1274 = vsel %vm1261, %v1030, 0.0
  %v1275 = vsel %vm1261, %v1031, 0.0
  %v1276 = vsel %vm1261, %v1032, 0.0
  %v1277 = vsel %vm1261, %v1033, 0.0
  %v1278 = vsel %vm1261, %v1034, 0.0
  %v1279 = vsel %vm1261, %v1035, 0.0
  %v1280 = vsel %vm1261, %v1036, 0.0
  %v1281 = vsel %vm1261, %v1037, 0.0
  %v1282 = vsel %vm1261, %v1038, 0.0
  %v1283 = vsel %vm1261, %v1039, 0.0
  %v1284 = vsel %vm1261, %v1040, 0.0
  %v1285 = vsel %vm1261, %v1041, 0.0
  %v1286 = vsel %vm1261, %v1042, 0.0
  %v1287 = vsel %vm1261, %v1043, 0.0
  %v1288 = vsel %vm1261, %v1044, 0.0
  %v1289 = vsel %vm1261, %v1045, 0.0
  %v1290 = vsel %vm1261, %v1046, 0.0
  %v1291 = vsel %vm1261, %v1047, 0.0
  %v1292 = vsel %vm1261, %v1048, 0.0
  %v1293 = vsel %vm1261, %v1049, 0.0
  %v1294 = vadd.f32 %v1226, %v1262
  %v1295 = vadd.f32 %v1227, %v1263
  %v1296 = vadd.f32 %v1228, %v1264
  %v1297 = vadd.f32 %v1229, %v1265
  %v1298 = vadd.f32 %v1230, %v1266
  %v1299 = vadd.f32 %v1231, %v1267
  %v1300 = vadd.f32 %v1232, %v1268
  %v1301 = vadd.f32 %v1233, %v1269
  %v1302 = vadd.f32 %v1234, %v1270
  %v1303 = vadd.f32 %v1235, %v1271
  %v1304 = vadd.f32 %v1236, %v1272
  %v1305 = vadd.f32 %v1237, %v1273
  %v1306 = vadd.f32 %v1238, %v1274
  %v1307 = vadd.f32 %v1239, %v1275
  %v1308 = vadd.f32 %v1240, %v1276
  %v1309 = vadd.f32 %v1241, %v1277
  %v1310 = vadd.f32 %v1242, %v1278
  %v1311 = vadd.f32 %v1243, %v1279
  %v1312 = vadd.f32 %v1244, %v1280
  %v1313 = vadd.f32 %v1245, %v1281
  %v1314 = vadd.f32 %v1246, %v1282
  %v1315 = vadd.f32 %v1247, %v1283
  %v1316 = vadd.f32 %v1248, %v1284
  %v1317 = vadd.f32 %v1249, %v1285
  %v1318 = vadd.f32 %v1250, %v1286
  %v1319 = vadd.f32 %v1251, %v1287
  %v1320 = vadd.f32 %v1252, %v1288
  %v1321 = vadd.f32 %v1253, %v1289
  %v1322 = vadd.f32 %v1254, %v1290
  %v1323 = vadd.f32 %v1255, %v1291
  %v1324 = vadd.f32 %v1256, %v1292
  %v1325 = vadd.f32 %v1257, %v1293
  %v1326 = vld [vmem:[#allocation2] sm:$0xff]
  %v1327 = vld [vmem:[#allocation2 + $0x8] sm:$0xff]
  %v1328 = vsel %vm82, 1, 0
  %vm1329 = vcmp.eq.s32.totalorder %v1328, 1
  %v1330 = vsel %vm1329, %v1326, 0.0
  %v1331 = vsel %vm1329, %v1327, 0.0
  %v1332 = vsel %vm1329, %v1258, 0.0
  %v1333 = vsel %vm1329, %v1259, 0.0
  %v1334 = vsel %vm1329, %v1190, 0.0
  %v1335 = vsel %vm1329, %v1191, 0.0
  %v1336 = vsel %vm1329, %v1122, 0.0
  %v1337 = vsel %vm1329, %v1123, 0.0
  %v1338 = vsel %vm1329, %v1024, 0.0
  %v1339 = vsel %vm1329, %v1025, 0.0
  %v1340 = vsel %vm1329, %v1026, 0.0
  %v1341 = vsel %vm1329, %v1027, 0.0
  %v1342 = vsel %vm1329, %v1028, 0.0
  %v1343 = vsel %vm1329, %v1029, 0.0
  %v1344 = vsel %vm1329, %v1030, 0.0
  %v1345 = vsel %vm1329, %v1031, 0.0
  %v1346 = vsel %vm1329, %v1032, 0.0
  %v1347 = vsel %vm1329, %v1033, 0.0
  %v1348 = vsel %vm1329, %v1034, 0.0
  %v1349 = vsel %vm1329, %v1035, 0.0
  %v1350 = vsel %vm1329, %v1036, 0.0
  %v1351 = vsel %vm1329, %v1037, 0.0
  %v1352 = vsel %vm1329, %v1038, 0.0
  %v1353 = vsel %vm1329, %v1039, 0.0
  %v1354 = vsel %vm1329, %v1040, 0.0
  %v1355 = vsel %vm1329, %v1041, 0.0
  %v1356 = vsel %vm1329, %v1042, 0.0
  %v1357 = vsel %vm1329, %v1043, 0.0
  %v1358 = vsel %vm1329, %v1044, 0.0
  %v1359 = vsel %vm1329, %v1045, 0.0
  %v1360 = vsel %vm1329, %v1046, 0.0
  %v1361 = vsel %vm1329, %v1047, 0.0
  %v1362 = vadd.f32 %v1294, %v1330
  %v1363 = vadd.f32 %v1295, %v1331
  %v1364 = vadd.f32 %v1296, %v1332
  %v1365 = vadd.f32 %v1297, %v1333
  %v1366 = vadd.f32 %v1298, %v1334
  %v1367 = vadd.f32 %v1299, %v1335
  %v1368 = vadd.f32 %v1300, %v1336
  %v1369 = vadd.f32 %v1301, %v1337
  %v1370 = vadd.f32 %v1302, %v1338
  %v1371 = vadd.f32 %v1303, %v1339
  %v1372 = vadd.f32 %v1304, %v1340
  %v1373 = vadd.f32 %v1305, %v1341
  %v1374 = vadd.f32 %v1306, %v1342
  %v1375 = vadd.f32 %v1307, %v1343
  %v1376 = vadd.f32 %v1308, %v1344
  %v1377 = vadd.f32 %v1309, %v1345
  %v1378 = vadd.f32 %v1310, %v1346
  %v1379 = vadd.f32 %v1311, %v1347
  %v1380 = vadd.f32 %v1312, %v1348
  %v1381 = vadd.f32 %v1313, %v1349
  %v1382 = vadd.f32 %v1314, %v1350
  %v1383 = vadd.f32 %v1315, %v1351
  %v1384 = vadd.f32 %v1316, %v1352
  %v1385 = vadd.f32 %v1317, %v1353
  %v1386 = vadd.f32 %v1318, %v1354
  %v1387 = vadd.f32 %v1319, %v1355
  %v1388 = vadd.f32 %v1320, %v1356
  %v1389 = vadd.f32 %v1321, %v1357
  %v1390 = vadd.f32 %v1322, %v1358
  %v1391 = vadd.f32 %v1323, %v1359
  %v1392 = vadd.f32 %v1324, %v1360
  %v1393 = vadd.f32 %v1325, %v1361
  %v1395 = vperm.slane %v46, 0
  %v1398 = vsel %vm35, %v1362, 0
  %v1401 = vsel %vm35, %v1363, 0
  %v1404 = vsel %vm35, %v1364, 0
  %v1407 = vsel %vm35, %v1365, 0
  %v1410 = vsel %vm35, %v1366, 0
  %v1413 = vsel %vm35, %v1367, 0
  %v1416 = vsel %vm35, %v1368, 0
  %v1419 = vsel %vm35, %v1369, 0
  %v1422 = vsel %vm35, %v1370, 0
  %v1425 = vsel %vm35, %v1371, 0
  %v1428 = vsel %vm35, %v1372, 0
  %v1431 = vsel %vm35, %v1373, 0
  %v1434 = vsel %vm35, %v1374, 0
  %v1437 = vsel %vm35, %v1375, 0
  %v1440 = vsel %vm35, %v1376, 0
  %v1443 = vsel %vm35, %v1377, 0
  %v1446 = vsel %vm35, %v1378, 0
  %v1449 = vsel %vm35, %v1379, 0
  %v1452 = vsel %vm35, %v1380, 0
  %v1455 = vsel %vm35, %v1381, 0
  %v1458 = vsel %vm35, %v1382, 0
  %v1461 = vsel %vm35, %v1383, 0
  %v1464 = vsel %vm35, %v1384, 0
  %v1467 = vsel %vm35, %v1385, 0
  %v1470 = vsel %vm35, %v1386, 0
  %v1473 = vsel %vm35, %v1387, 0
  %v1476 = vsel %vm35, %v1388, 0
  %v1479 = vsel %vm35, %v1389, 0
  %v1482 = vsel %vm35, %v1390, 0
  %v1485 = vsel %vm35, %v1391, 0
  %v1488 = vsel %vm35, %v1392, 0
  %v1491 = vsel %vm35, %v1393, 0
  %1493 = vmatpush.msra.mxu0 0.0
  %1494 = vmatpush.msra.mxu0 0.0
  %1495 = vmatpush.msra.mxu0 0.0
  %1496 = vmatpush.msra.mxu0 0.0
  %1497 = vmatpush.msra.mxu0 0.0
  %1498 = vmatpush.msra.mxu0 0.0
  %1499 = vmatpush.msra.mxu0 0.0
  %1500 = vmatpush.msra.mxu0 0.0
  %1501 = vmatpush.msra.mxu0 0.0
  %1502 = vmatpush.msra.mxu0 0.0
  %1503 = vmatpush.msra.mxu0 0.0
  %1504 = vmatpush.msra.mxu0 0.0
  %1505 = vmatpush.msra.mxu0 %v52
  %1506 = vmatpush.msra.mxu0 %v51
  %1507 = vmatpush.msra.mxu0 %v50
  %1508 = vmatpush.msra.mxu0 %v49
  %1509 = vmatmul.f32.gmra.mxu0 %v1398
  %v1510 = vpop.f32.mrf.mxu0
  %v1511 = vadd.f32 %v1395, %v1510
  %1512 = vmatmul.f32.gmra.mxu0 %v1401
  %v1513 = vpop.f32.mrf.mxu0
  %v1514 = vadd.f32 %v1395, %v1513
  %1515 = vmatmul.f32.gmra.mxu0 %v1404
  %v1516 = vpop.f32.mrf.mxu0
  %v1517 = vadd.f32 %v1395, %v1516
  %1518 = vmatmul.f32.gmra.mxu0 %v1407
  %v1519 = vpop.f32.mrf.mxu0
  %v1520 = vadd.f32 %v1395, %v1519
  %1521 = vmatmul.f32.gmra.mxu0 %v1410
  %v1522 = vpop.f32.mrf.mxu0
  %v1523 = vadd.f32 %v1395, %v1522
  %1524 = vmatmul.f32.gmra.mxu0 %v1413
  %v1525 = vpop.f32.mrf.mxu0
  %v1526 = vadd.f32 %v1395, %v1525
  %1527 = vmatmul.f32.gmra.mxu0 %v1416
  %v1528 = vpop.f32.mrf.mxu0
  %v1529 = vadd.f32 %v1395, %v1528
  %1530 = vmatmul.f32.gmra.mxu0 %v1419
  %v1531 = vpop.f32.mrf.mxu0
  %v1532 = vadd.f32 %v1395, %v1531
  %1533 = vmatmul.f32.gmra.mxu0 %v1422
  %v1534 = vpop.f32.mrf.mxu0
  %v1535 = vadd.f32 %v1395, %v1534
  %1536 = vmatmul.f32.gmra.mxu0 %v1425
  %v1537 = vpop.f32.mrf.mxu0
  %v1538 = vadd.f32 %v1395, %v1537
  %1539 = vmatmul.f32.gmra.mxu0 %v1428
  %v1540 = vpop.f32.mrf.mxu0
  %v1541 = vadd.f32 %v1395, %v1540
  %1542 = vmatmul.f32.gmra.mxu0 %v1431
  %v1543 = vpop.f32.mrf.mxu0
  %v1544 = vadd.f32 %v1395, %v1543
  %1545 = vmatmul.f32.gmra.mxu0 %v1434
  %v1546 = vpop.f32.mrf.mxu0
  %v1547 = vadd.f32 %v1395, %v1546
  %1548 = vmatmul.f32.gmra.mxu0 %v1437
  %v1549 = vpop.f32.mrf.mxu0
  %v1550 = vadd.f32 %v1395, %v1549
  %1551 = vmatmul.f32.gmra.mxu0 %v1440
  %v1552 = vpop.f32.mrf.mxu0
  %v1553 = vadd.f32 %v1395, %v1552
  %1554 = vmatmul.f32.gmra.mxu0 %v1443
  %v1555 = vpop.f32.mrf.mxu0
  %v1556 = vadd.f32 %v1395, %v1555
  %1557 = vmatmul.f32.gmra.mxu0 %v1446
  %v1558 = vpop.f32.mrf.mxu0
  %v1559 = vadd.f32 %v1395, %v1558
  %1560 = vmatmul.f32.gmra.mxu0 %v1449
  %v1561 = vpop.f32.mrf.mxu0
  %v1562 = vadd.f32 %v1395, %v1561
  %1563 = vmatmul.f32.gmra.mxu0 %v1452
  %v1564 = vpop.f32.mrf.mxu0
  %v1565 = vadd.f32 %v1395, %v1564
  %1566 = vmatmul.f32.gmra.mxu0 %v1455
  %v1567 = vpop.f32.mrf.mxu0
  %v1568 = vadd.f32 %v1395, %v1567
  %1569 = vmatmul.f32.gmra.mxu0 %v1458
  %v1570 = vpop.f32.mrf.mxu0
  %v1571 = vadd.f32 %v1395, %v1570
  %1572 = vmatmul.f32.gmra.mxu0 %v1461
  %v1573 = vpop.f32.mrf.mxu0
  %v1574 = vadd.f32 %v1395, %v1573
  %1575 = vmatmul.f32.gmra.mxu0 %v1464
  %v1576 = vpop.f32.mrf.mxu0
  %v1577 = vadd.f32 %v1395, %v1576
  %1578 = vmatmul.f32.gmra.mxu0 %v1467
  %v1579 = vpop.f32.mrf.mxu0
  %v1580 = vadd.f32 %v1395, %v1579
  %1581 = vmatmul.f32.gmra.mxu0 %v1470
  %v1582 = vpop.f32.mrf.mxu0
  %v1583 = vadd.f32 %v1395, %v1582
  %1584 = vmatmul.f32.gmra.mxu0 %v1473
  %v1585 = vpop.f32.mrf.mxu0
  %v1586 = vadd.f32 %v1395, %v1585
  %1587 = vmatmul.f32.gmra.mxu0 %v1476
  %v1588 = vpop.f32.mrf.mxu0
  %v1589 = vadd.f32 %v1395, %v1588
  %1590 = vmatmul.f32.gmra.mxu0 %v1479
  %v1591 = vpop.f32.mrf.mxu0
  %v1592 = vadd.f32 %v1395, %v1591
  %1593 = vmatmul.f32.gmra.mxu0 %v1482
  %v1594 = vpop.f32.mrf.mxu0
  %v1595 = vadd.f32 %v1395, %v1594
  %1596 = vmatmul.f32.gmra.mxu0 %v1485
  %v1597 = vpop.f32.mrf.mxu0
  %v1598 = vadd.f32 %v1395, %v1597
  %1599 = vmatmul.f32.gmra.mxu0 %v1488
  %v1600 = vpop.f32.mrf.mxu0
  %v1601 = vadd.f32 %v1395, %v1600
  %1602 = vmatmul.f32.gmra.mxu0 %v1491
  %v1603 = vpop.f32.mrf.mxu0
  %v1604 = vadd.f32 %v1395, %v1603
  %1605 = vdwg.mxu0
  %1606 = vst.msk [vmem:[#allocation2 + $0x20] sm:$0xff] %vm35, %v1511
  %1607 = vst.msk [vmem:[#allocation2 + $0x28] sm:$0xff] %vm35, %v1514
  %1608 = vst.msk [vmem:[#allocation2 + $0x30] sm:$0xff] %vm35, %v1517
  %1609 = vst.msk [vmem:[#allocation2 + $0x38] sm:$0xff] %vm35, %v1520
  %1610 = vst.msk [vmem:[#allocation2 + $0x40] sm:$0xff] %vm35, %v1523
  %1611 = vst.msk [vmem:[#allocation2 + $0x48] sm:$0xff] %vm35, %v1526
  %1612 = vst.msk [vmem:[#allocation2 + $0x50] sm:$0xff] %vm35, %v1529
  %1613 = vst.msk [vmem:[#allocation2 + $0x58] sm:$0xff] %vm35, %v1532
  %1614 = vst.msk [vmem:[#allocation2 + $0x60] sm:$0xff] %vm35, %v1535
  %1615 = vst.msk [vmem:[#allocation2 + $0x68] sm:$0xff] %vm35, %v1538
  %1616 = vst.msk [vmem:[#allocation2 + $0x70] sm:$0xff] %vm35, %v1541
  %1617 = vst.msk [vmem:[#allocation2 + $0x78] sm:$0xff] %vm35, %v1544
  %1618 = vst.msk [vmem:[#allocation2 + $0x80] sm:$0xff] %vm35, %v1547
  %1619 = vst.msk [vmem:[#allocation2 + $0x88] sm:$0xff] %vm35, %v1550
  %1620 = vst.msk [vmem:[#allocation2 + $0x90] sm:$0xff] %vm35, %v1553
  %1621 = vst.msk [vmem:[#allocation2 + $0x98] sm:$0xff] %vm35, %v1556
  %1622 = vst.msk [vmem:[#allocation2 + $0xa0] sm:$0xff] %vm35, %v1559
  %1623 = vst.msk [vmem:[#allocation2 + $0xa8] sm:$0xff] %vm35, %v1562
  %1624 = vst.msk [vmem:[#allocation2 + $0xb0] sm:$0xff] %vm35, %v1565
  %1625 = vst.msk [vmem:[#allocation2 + $0xb8] sm:$0xff] %vm35, %v1568
  %1626 = vst.msk [vmem:[#allocation2 + $0xc0] sm:$0xff] %vm35, %v1571
  %1627 = vst.msk [vmem:[#allocation2 + $0xc8] sm:$0xff] %vm35, %v1574
  %1628 = vst.msk [vmem:[#allocation2 + $0xd0] sm:$0xff] %vm35, %v1577
  %1629 = vst.msk [vmem:[#allocation2 + $0xd8] sm:$0xff] %vm35, %v1580
  %1630 = vst.msk [vmem:[#allocation2 + $0xe0] sm:$0xff] %vm35, %v1583
  %1631 = vst.msk [vmem:[#allocation2 + $0xe8] sm:$0xff] %vm35, %v1586
  %1632 = vst.msk [vmem:[#allocation2 + $0xf0] sm:$0xff] %vm35, %v1589
  %1633 = vst.msk [vmem:[#allocation2 + $0xf8] sm:$0xff] %vm35, %v1592
  %1634 = vst.msk [vmem:[#allocation2 + $0x100] sm:$0xff] %vm35, %v1595
  %1635 = vst.msk [vmem:[#allocation2 + $0x108] sm:$0xff] %vm35, %v1598
  %1636 = vst.msk [vmem:[#allocation2 + $0x110] sm:$0xff] %vm35, %v1601
  %1637 = vst.msk [vmem:[#allocation2 + $0x118] sm:$0xff] %vm35, %v1604
  %v1638 = vld [vmem:[#allocation2 + $0xf] sm:$0xff]
  %v1639 = vld [vmem:[#allocation2 + $0x17] sm:$0xff]
  %v1640 = vld [vmem:[#allocation2 + $0x1f] sm:$0xff]
  %v1641 = vld [vmem:[#allocation2 + $0x27] sm:$0xff]
  %v1642 = vld [vmem:[#allocation2 + $0x2f] sm:$0xff]
  %v1643 = vld [vmem:[#allocation2 + $0x37] sm:$0xff]
  %v1644 = vld [vmem:[#allocation2 + $0x3f] sm:$0xff]
  %v1645 = vld [vmem:[#allocation2 + $0x47] sm:$0xff]
  %v1646 = vld [vmem:[#allocation2 + $0x4f] sm:$0xff]
  %v1647 = vld [vmem:[#allocation2 + $0x57] sm:$0xff]
  %v1648 = vld [vmem:[#allocation2 + $0x5f] sm:$0xff]
  %v1649 = vld [vmem:[#allocation2 + $0x67] sm:$0xff]
  %v1650 = vld [vmem:[#allocation2 + $0x6f] sm:$0xff]
  %v1651 = vld [vmem:[#allocation2 + $0x77] sm:$0xff]
  %v1652 = vld [vmem:[#allocation2 + $0x7f] sm:$0xff]
  %v1653 = vld [vmem:[#allocation2 + $0x87] sm:$0xff]
  %v1654 = vld [vmem:[#allocation2 + $0x8f] sm:$0xff]
  %v1655 = vld [vmem:[#allocation2 + $0x97] sm:$0xff]
  %v1656 = vld [vmem:[#allocation2 + $0x9f] sm:$0xff]
  %v1657 = vld [vmem:[#allocation2 + $0xa7] sm:$0xff]
  %v1658 = vld [vmem:[#allocation2 + $0xaf] sm:$0xff]
  %v1659 = vld [vmem:[#allocation2 + $0xb7] sm:$0xff]
  %v1660 = vld [vmem:[#allocation2 + $0xbf] sm:$0xff]
  %v1661 = vld [vmem:[#allocation2 + $0xc7] sm:$0xff]
  %v1662 = vld [vmem:[#allocation2 + $0xcf] sm:$0xff]
  %v1663 = vld [vmem:[#allocation2 + $0xd7] sm:$0xff]
  %v1664 = vld [vmem:[#allocation2 + $0xdf] sm:$0xff]
  %v1665 = vld [vmem:[#allocation2 + $0xe7] sm:$0xff]
  %v1666 = vld [vmem:[#allocation2 + $0xef] sm:$0xff]
  %v1667 = vld [vmem:[#allocation2 + $0xf7] sm:$0xff]
  %v1668 = vld [vmem:[#allocation2 + $0xff] sm:$0xff]
  %v1669 = vld [vmem:[#allocation2 + $0x107] sm:$0xff]
  %v1670 = vperm.slane %v57, 0
  %v1671 = vmul.f32 %v1638, %v1670
  %v1672 = vmul.f32 %v1639, %v1670
  %v1673 = vmul.f32 %v1640, %v1670
  %v1674 = vmul.f32 %v1641, %v1670
  %v1675 = vmul.f32 %v1642, %v1670
  %v1676 = vmul.f32 %v1643, %v1670
  %v1677 = vmul.f32 %v1644, %v1670
  %v1678 = vmul.f32 %v1645, %v1670
  %v1679 = vmul.f32 %v1646, %v1670
  %v1680 = vmul.f32 %v1647, %v1670
  %v1681 = vmul.f32 %v1648, %v1670
  %v1682 = vmul.f32 %v1649, %v1670
  %v1683 = vmul.f32 %v1650, %v1670
  %v1684 = vmul.f32 %v1651, %v1670
  %v1685 = vmul.f32 %v1652, %v1670
  %v1686 = vmul.f32 %v1653, %v1670
  %v1687 = vmul.f32 %v1654, %v1670
  %v1688 = vmul.f32 %v1655, %v1670
  %v1689 = vmul.f32 %v1656, %v1670
  %v1690 = vmul.f32 %v1657, %v1670
  %v1691 = vmul.f32 %v1658, %v1670
  %v1692 = vmul.f32 %v1659, %v1670
  %v1693 = vmul.f32 %v1660, %v1670
  %v1694 = vmul.f32 %v1661, %v1670
  %v1695 = vmul.f32 %v1662, %v1670
  %v1696 = vmul.f32 %v1663, %v1670
  %v1697 = vmul.f32 %v1664, %v1670
  %v1698 = vmul.f32 %v1665, %v1670
  %v1699 = vmul.f32 %v1666, %v1670
  %v1700 = vmul.f32 %v1667, %v1670
  %v1701 = vmul.f32 %v1668, %v1670
  %v1702 = vmul.f32 %v1669, %v1670
  %v1703 = vadd.f32 %v1671, 0.0
  %v1704 = vadd.f32 %v1672, 0.0
  %v1705 = vadd.f32 %v1673, 0.0
  %v1706 = vadd.f32 %v1674, 0.0
  %v1707 = vadd.f32 %v1675, 0.0
  %v1708 = vadd.f32 %v1676, 0.0
  %v1709 = vadd.f32 %v1677, 0.0
  %v1710 = vadd.f32 %v1678, 0.0
  %v1711 = vadd.f32 %v1679, 0.0
  %v1712 = vadd.f32 %v1680, 0.0
  %v1713 = vadd.f32 %v1681, 0.0
  %v1714 = vadd.f32 %v1682, 0.0
  %v1715 = vadd.f32 %v1683, 0.0
  %v1716 = vadd.f32 %v1684, 0.0
  %v1717 = vadd.f32 %v1685, 0.0
  %v1718 = vadd.f32 %v1686, 0.0
  %v1719 = vadd.f32 %v1687, 0.0
  %v1720 = vadd.f32 %v1688, 0.0
  %v1721 = vadd.f32 %v1689, 0.0
  %v1722 = vadd.f32 %v1690, 0.0
  %v1723 = vadd.f32 %v1691, 0.0
  %v1724 = vadd.f32 %v1692, 0.0
  %v1725 = vadd.f32 %v1693, 0.0
  %v1726 = vadd.f32 %v1694, 0.0
  %v1727 = vadd.f32 %v1695, 0.0
  %v1728 = vadd.f32 %v1696, 0.0
  %v1729 = vadd.f32 %v1697, 0.0
  %v1730 = vadd.f32 %v1698, 0.0
  %v1731 = vadd.f32 %v1699, 0.0
  %v1732 = vadd.f32 %v1700, 0.0
  %v1733 = vadd.f32 %v1701, 0.0
  %v1734 = vadd.f32 %v1702, 0.0
  %v1735 = vld [vmem:[#allocation2 + $0x10f] sm:$0xff]
  %v1736 = vld [vmem:[#allocation2 + $0x117] sm:$0xff]
  %v1737 = vperm.slane %v60, 0
  %v1738 = vmul.f32 %v1640, %v1737
  %v1739 = vmul.f32 %v1641, %v1737
  %v1740 = vmul.f32 %v1642, %v1737
  %v1741 = vmul.f32 %v1643, %v1737
  %v1742 = vmul.f32 %v1644, %v1737
  %v1743 = vmul.f32 %v1645, %v1737
  %v1744 = vmul.f32 %v1646, %v1737
  %v1745 = vmul.f32 %v1647, %v1737
  %v1746 = vmul.f32 %v1648, %v1737
  %v1747 = vmul.f32 %v1649, %v1737
  %v1748 = vmul.f32 %v1650, %v1737
  %v1749 = vmul.f32 %v1651, %v1737
  %v1750 = vmul.f32 %v1652, %v1737
  %v1751 = vmul.f32 %v1653, %v1737
  %v1752 = vmul.f32 %v1654, %v1737
  %v1753 = vmul.f32 %v1655, %v1737
  %v1754 = vmul.f32 %v1656, %v1737
  %v1755 = vmul.f32 %v1657, %v1737
  %v1756 = vmul.f32 %v1658, %v1737
  %v1757 = vmul.f32 %v1659, %v1737
  %v1758 = vmul.f32 %v1660, %v1737
  %v1759 = vmul.f32 %v1661, %v1737
  %v1760 = vmul.f32 %v1662, %v1737
  %v1761 = vmul.f32 %v1663, %v1737
  %v1762 = vmul.f32 %v1664, %v1737
  %v1763 = vmul.f32 %v1665, %v1737
  %v1764 = vmul.f32 %v1666, %v1737
  %v1765 = vmul.f32 %v1667, %v1737
  %v1766 = vmul.f32 %v1668, %v1737
  %v1767 = vmul.f32 %v1669, %v1737
  %v1768 = vmul.f32 %v1735, %v1737
  %v1769 = vmul.f32 %v1736, %v1737
  %v1770 = vadd.f32 %v1703, %v1738
  %v1771 = vadd.f32 %v1704, %v1739
  %v1772 = vadd.f32 %v1705, %v1740
  %v1773 = vadd.f32 %v1706, %v1741
  %v1774 = vadd.f32 %v1707, %v1742
  %v1775 = vadd.f32 %v1708, %v1743
  %v1776 = vadd.f32 %v1709, %v1744
  %v1777 = vadd.f32 %v1710, %v1745
  %v1778 = vadd.f32 %v1711, %v1746
  %v1779 = vadd.f32 %v1712, %v1747
  %v1780 = vadd.f32 %v1713, %v1748
  %v1781 = vadd.f32 %v1714, %v1749
  %v1782 = vadd.f32 %v1715, %v1750
  %v1783 = vadd.f32 %v1716, %v1751
  %v1784 = vadd.f32 %v1717, %v1752
  %v1785 = vadd.f32 %v1718, %v1753
  %v1786 = vadd.f32 %v1719, %v1754
  %v1787 = vadd.f32 %v1720, %v1755
  %v1788 = vadd.f32 %v1721, %v1756
  %v1789 = vadd.f32 %v1722, %v1757
  %v1790 = vadd.f32 %v1723, %v1758
  %v1791 = vadd.f32 %v1724, %v1759
  %v1792 = vadd.f32 %v1725, %v1760
  %v1793 = vadd.f32 %v1726, %v1761
  %v1794 = vadd.f32 %v1727, %v1762
  %v1795 = vadd.f32 %v1728, %v1763
  %v1796 = vadd.f32 %v1729, %v1764
  %v1797 = vadd.f32 %v1730, %v1765
  %v1798 = vadd.f32 %v1731, %v1766
  %v1799 = vadd.f32 %v1732, %v1767
  %v1800 = vadd.f32 %v1733, %v1768
  %v1801 = vadd.f32 %v1734, %v1769
  %v1802 = vld [vmem:[#allocation2 + $0x11f] sm:$0xff]
  %v1803 = vld [vmem:[#allocation2 + $0x127] sm:$0xff]
  %v1804 = vperm.slane %v63, 0
  %v1805 = vmul.f32 %v1642, %v1804
  %v1806 = vmul.f32 %v1643, %v1804
  %v1807 = vmul.f32 %v1644, %v1804
  %v1808 = vmul.f32 %v1645, %v1804
  %v1809 = vmul.f32 %v1646, %v1804
  %v1810 = vmul.f32 %v1647, %v1804
  %v1811 = vmul.f32 %v1648, %v1804
  %v1812 = vmul.f32 %v1649, %v1804
  %v1813 = vmul.f32 %v1650, %v1804
  %v1814 = vmul.f32 %v1651, %v1804
  %v1815 = vmul.f32 %v1652, %v1804
  %v1816 = vmul.f32 %v1653, %v1804
  %v1817 = vmul.f32 %v1654, %v1804
  %v1818 = vmul.f32 %v1655, %v1804
  %v1819 = vmul.f32 %v1656, %v1804
  %v1820 = vmul.f32 %v1657, %v1804
  %v1821 = vmul.f32 %v1658, %v1804
  %v1822 = vmul.f32 %v1659, %v1804
  %v1823 = vmul.f32 %v1660, %v1804
  %v1824 = vmul.f32 %v1661, %v1804
  %v1825 = vmul.f32 %v1662, %v1804
  %v1826 = vmul.f32 %v1663, %v1804
  %v1827 = vmul.f32 %v1664, %v1804
  %v1828 = vmul.f32 %v1665, %v1804
  %v1829 = vmul.f32 %v1666, %v1804
  %v1830 = vmul.f32 %v1667, %v1804
  %v1831 = vmul.f32 %v1668, %v1804
  %v1832 = vmul.f32 %v1669, %v1804
  %v1833 = vmul.f32 %v1735, %v1804
  %v1834 = vmul.f32 %v1736, %v1804
  %v1835 = vmul.f32 %v1802, %v1804
  %v1836 = vmul.f32 %v1803, %v1804
  %v1837 = vadd.f32 %v1770, %v1805
  %v1838 = vadd.f32 %v1771, %v1806
  %v1839 = vadd.f32 %v1772, %v1807
  %v1840 = vadd.f32 %v1773, %v1808
  %v1841 = vadd.f32 %v1774, %v1809
  %v1842 = vadd.f32 %v1775, %v1810
  %v1843 = vadd.f32 %v1776, %v1811
  %v1844 = vadd.f32 %v1777, %v1812
  %v1845 = vadd.f32 %v1778, %v1813
  %v1846 = vadd.f32 %v1779, %v1814
  %v1847 = vadd.f32 %v1780, %v1815
  %v1848 = vadd.f32 %v1781, %v1816
  %v1849 = vadd.f32 %v1782, %v1817
  %v1850 = vadd.f32 %v1783, %v1818
  %v1851 = vadd.f32 %v1784, %v1819
  %v1852 = vadd.f32 %v1785, %v1820
  %v1853 = vadd.f32 %v1786, %v1821
  %v1854 = vadd.f32 %v1787, %v1822
  %v1855 = vadd.f32 %v1788, %v1823
  %v1856 = vadd.f32 %v1789, %v1824
  %v1857 = vadd.f32 %v1790, %v1825
  %v1858 = vadd.f32 %v1791, %v1826
  %v1859 = vadd.f32 %v1792, %v1827
  %v1860 = vadd.f32 %v1793, %v1828
  %v1861 = vadd.f32 %v1794, %v1829
  %v1862 = vadd.f32 %v1795, %v1830
  %v1863 = vadd.f32 %v1796, %v1831
  %v1864 = vadd.f32 %v1797, %v1832
  %v1865 = vadd.f32 %v1798, %v1833
  %v1866 = vadd.f32 %v1799, %v1834
  %v1867 = vadd.f32 %v1800, %v1835
  %v1868 = vadd.f32 %v1801, %v1836
  %v1869 = vsel %vm115, 1, 0
  %v1870 = vsel %vm116, 1, 0
  %v1871 = vsel %vm117, 1, 0
  %v1872 = vsel %vm118, 1, 0
  %v1873 = vsel %vm119, 1, 0
  %v1874 = vsel %vm120, 1, 0
  %v1875 = vsel %vm121, 1, 0
  %v1876 = vsel %vm122, 1, 0
  %v1877 = vsel %vm123, 1, 0
  %v1878 = vsel %vm124, 1, 0
  %v1879 = vsel %vm125, 1, 0
  %v1880 = vsel %vm126, 1, 0
  %v1881 = vsel %vm127, 1, 0
  %v1882 = vsel %vm128, 1, 0
  %v1883 = vsel %vm129, 1, 0
  %v1884 = vsel %vm130, 1, 0
  %v1885 = vsel %vm131, 1, 0
  %v1886 = vsel %vm132, 1, 0
  %v1887 = vsel %vm133, 1, 0
  %v1888 = vsel %vm134, 1, 0
  %v1889 = vsel %vm135, 1, 0
  %v1890 = vsel %vm136, 1, 0
  %v1891 = vsel %vm137, 1, 0
  %v1892 = vsel %vm138, 1, 0
  %v1893 = vsel %vm139, 1, 0
  %v1894 = vsel %vm140, 1, 0
  %v1895 = vsel %vm141, 1, 0
  %v1896 = vsel %vm142, 1, 0
  %v1897 = vsel %vm143, 1, 0
  %v1898 = vsel %vm144, 1, 0
  %v1899 = vsel %vm145, 1, 0
  %v1900 = vsel %vm146, 1, 0
  %1901 = vset.pattern.permute.xlu0 0
  %1902 = vperm.xlu0 %1901, %v1869
  %v1903 = vpop.permute.xlu0 %1902
  %1904 = vset.pattern.permute.xlu0 0
  %1905 = vperm.xlu0 %1904, %v1870
  %v1906 = vpop.permute.xlu0 %1905
  %1907 = vset.pattern.permute.xlu0 0
  %1908 = vperm.xlu0 %1907, %v1871
  %v1909 = vpop.permute.xlu0 %1908
  %1910 = vset.pattern.permute.xlu0 0
  %1911 = vperm.xlu0 %1910, %v1872
  %v1912 = vpop.permute.xlu0 %1911
  %1913 = vset.pattern.permute.xlu0 0
  %1914 = vperm.xlu0 %1913, %v1873
  %v1915 = vpop.permute.xlu0 %1914
  %1916 = vset.pattern.permute.xlu0 0
  %1917 = vperm.xlu0 %1916, %v1874
  %v1918 = vpop.permute.xlu0 %1917
  %1919 = vset.pattern.permute.xlu0 0
  %1920 = vperm.xlu0 %1919, %v1875
  %v1921 = vpop.permute.xlu0 %1920
  %1922 = vset.pattern.permute.xlu0 0
  %1923 = vperm.xlu0 %1922, %v1876
  %v1924 = vpop.permute.xlu0 %1923
  %1925 = vset.pattern.permute.xlu0 0
  %1926 = vperm.xlu0 %1925, %v1877
  %v1927 = vpop.permute.xlu0 %1926
  %1928 = vset.pattern.permute.xlu0 0
  %1929 = vperm.xlu0 %1928, %v1878
  %v1930 = vpop.permute.xlu0 %1929
  %1931 = vset.pattern.permute.xlu0 0
  %1932 = vperm.xlu0 %1931, %v1879
  %v1933 = vpop.permute.xlu0 %1932
  %1934 = vset.pattern.permute.xlu0 0
  %1935 = vperm.xlu0 %1934, %v1880
  %v1936 = vpop.permute.xlu0 %1935
  %1937 = vset.pattern.permute.xlu0 0
  %1938 = vperm.xlu0 %1937, %v1881
  %v1939 = vpop.permute.xlu0 %1938
  %1940 = vset.pattern.permute.xlu0 0
  %1941 = vperm.xlu0 %1940, %v1882
  %v1942 = vpop.permute.xlu0 %1941
  %1943 = vset.pattern.permute.xlu0 0
  %1944 = vperm.xlu0 %1943, %v1883
  %v1945 = vpop.permute.xlu0 %1944
  %1946 = vset.pattern.permute.xlu0 0
  %1947 = vperm.xlu0 %1946, %v1884
  %v1948 = vpop.permute.xlu0 %1947
  %1949 = vset.pattern.permute.xlu0 0
  %1950 = vperm.xlu0 %1949, %v1885
  %v1951 = vpop.permute.xlu0 %1950
  %1952 = vset.pattern.permute.xlu0 0
  %1953 = vperm.xlu0 %1952, %v1886
  %v1954 = vpop.permute.xlu0 %1953
  %1955 = vset.pattern.permute.xlu0 0
  %1956 = vperm.xlu0 %1955, %v1887
  %v1957 = vpop.permute.xlu0 %1956
  %1958 = vset.pattern.permute.xlu0 0
  %1959 = vperm.xlu0 %1958, %v1888
  %v1960 = vpop.permute.xlu0 %1959
  %1961 = vset.pattern.permute.xlu0 0
  %1962 = vperm.xlu0 %1961, %v1889
  %v1963 = vpop.permute.xlu0 %1962
  %1964 = vset.pattern.permute.xlu0 0
  %1965 = vperm.xlu0 %1964, %v1890
  %v1966 = vpop.permute.xlu0 %1965
  %1967 = vset.pattern.permute.xlu0 0
  %1968 = vperm.xlu0 %1967, %v1891
  %v1969 = vpop.permute.xlu0 %1968
  %1970 = vset.pattern.permute.xlu0 0
  %1971 = vperm.xlu0 %1970, %v1892
  %v1972 = vpop.permute.xlu0 %1971
  %1973 = vset.pattern.permute.xlu0 0
  %1974 = vperm.xlu0 %1973, %v1893
  %v1975 = vpop.permute.xlu0 %1974
  %1976 = vset.pattern.permute.xlu0 0
  %1977 = vperm.xlu0 %1976, %v1894
  %v1978 = vpop.permute.xlu0 %1977
  %1979 = vset.pattern.permute.xlu0 0
  %1980 = vperm.xlu0 %1979, %v1895
  %v1981 = vpop.permute.xlu0 %1980
  %1982 = vset.pattern.permute.xlu0 0
  %1983 = vperm.xlu0 %1982, %v1896
  %v1984 = vpop.permute.xlu0 %1983
  %1985 = vset.pattern.permute.xlu0 0
  %1986 = vperm.xlu0 %1985, %v1897
  %v1987 = vpop.permute.xlu0 %1986
  %1988 = vset.pattern.permute.xlu0 0
  %1989 = vperm.xlu0 %1988, %v1898
  %v1990 = vpop.permute.xlu0 %1989
  %1991 = vset.pattern.permute.xlu0 0
  %1992 = vperm.xlu0 %1991, %v1899
  %v1993 = vpop.permute.xlu0 %1992
  %1994 = vset.pattern.permute.xlu0 0
  %1995 = vperm.xlu0 %1994, %v1900
  %v1996 = vpop.permute.xlu0 %1995
  %vm1997 = vcmp.eq.s32.totalorder %v1903, 1
  %vm1998 = vcmp.eq.s32.totalorder %v1906, 1
  %vm1999 = vcmp.eq.s32.totalorder %v1909, 1
  %vm2000 = vcmp.eq.s32.totalorder %v1912, 1
  %vm2001 = vcmp.eq.s32.totalorder %v1915, 1
  %vm2002 = vcmp.eq.s32.totalorder %v1918, 1
  %vm2003 = vcmp.eq.s32.totalorder %v1921, 1
  %vm2004 = vcmp.eq.s32.totalorder %v1924, 1
  %vm2005 = vcmp.eq.s32.totalorder %v1927, 1
  %vm2006 = vcmp.eq.s32.totalorder %v1930, 1
  %vm2007 = vcmp.eq.s32.totalorder %v1933, 1
  %vm2008 = vcmp.eq.s32.totalorder %v1936, 1
  %vm2009 = vcmp.eq.s32.totalorder %v1939, 1
  %vm2010 = vcmp.eq.s32.totalorder %v1942, 1
  %vm2011 = vcmp.eq.s32.totalorder %v1945, 1
  %vm2012 = vcmp.eq.s32.totalorder %v1948, 1
  %vm2013 = vcmp.eq.s32.totalorder %v1951, 1
  %vm2014 = vcmp.eq.s32.totalorder %v1954, 1
  %vm2015 = vcmp.eq.s32.totalorder %v1957, 1
  %vm2016 = vcmp.eq.s32.totalorder %v1960, 1
  %vm2017 = vcmp.eq.s32.totalorder %v1963, 1
  %vm2018 = vcmp.eq.s32.totalorder %v1966, 1
  %vm2019 = vcmp.eq.s32.totalorder %v1969, 1
  %vm2020 = vcmp.eq.s32.totalorder %v1972, 1
  %vm2021 = vcmp.eq.s32.totalorder %v1975, 1
  %vm2022 = vcmp.eq.s32.totalorder %v1978, 1
  %vm2023 = vcmp.eq.s32.totalorder %v1981, 1
  %vm2024 = vcmp.eq.s32.totalorder %v1984, 1
  %vm2025 = vcmp.eq.s32.totalorder %v1987, 1
  %vm2026 = vcmp.eq.s32.totalorder %v1990, 1
  %vm2027 = vcmp.eq.s32.totalorder %v1993, 1
  %vm2028 = vcmp.eq.s32.totalorder %v1996, 1
  %v2029 = vsel %vm1997, %v1837, 0.0
  %v2030 = vsel %vm1998, %v1838, 0.0
  %v2031 = vsel %vm1999, %v1839, 0.0
  %v2032 = vsel %vm2000, %v1840, 0.0
  %v2033 = vsel %vm2001, %v1841, 0.0
  %v2034 = vsel %vm2002, %v1842, 0.0
  %v2035 = vsel %vm2003, %v1843, 0.0
  %v2036 = vsel %vm2004, %v1844, 0.0
  %v2037 = vsel %vm2005, %v1845, 0.0
  %v2038 = vsel %vm2006, %v1846, 0.0
  %v2039 = vsel %vm2007, %v1847, 0.0
  %v2040 = vsel %vm2008, %v1848, 0.0
  %v2041 = vsel %vm2009, %v1849, 0.0
  %v2042 = vsel %vm2010, %v1850, 0.0
  %v2043 = vsel %vm2011, %v1851, 0.0
  %v2044 = vsel %vm2012, %v1852, 0.0
  %v2045 = vsel %vm2013, %v1853, 0.0
  %v2046 = vsel %vm2014, %v1854, 0.0
  %v2047 = vsel %vm2015, %v1855, 0.0
  %v2048 = vsel %vm2016, %v1856, 0.0
  %v2049 = vsel %vm2017, %v1857, 0.0
  %v2050 = vsel %vm2018, %v1858, 0.0
  %v2051 = vsel %vm2019, %v1859, 0.0
  %v2052 = vsel %vm2020, %v1860, 0.0
  %v2053 = vsel %vm2021, %v1861, 0.0
  %v2054 = vsel %vm2022, %v1862, 0.0
  %v2055 = vsel %vm2023, %v1863, 0.0
  %v2056 = vsel %vm2024, %v1864, 0.0
  %v2057 = vsel %vm2025, %v1865, 0.0
  %v2058 = vsel %vm2026, %v1866, 0.0
  %v2059 = vsel %vm2027, %v1867, 0.0
  %v2060 = vsel %vm2028, %v1868, 0.0
  %v2061 = vadd.f32 %v2029, 0.0
  %v2062 = vadd.f32 %v2030, 0.0
  %v2063 = vadd.f32 %v2031, 0.0
  %v2064 = vadd.f32 %v2032, 0.0
  %v2065 = vadd.f32 %v2033, 0.0
  %v2066 = vadd.f32 %v2034, 0.0
  %v2067 = vadd.f32 %v2035, 0.0
  %v2068 = vadd.f32 %v2036, 0.0
  %v2069 = vadd.f32 %v2037, 0.0
  %v2070 = vadd.f32 %v2038, 0.0
  %v2071 = vadd.f32 %v2039, 0.0
  %v2072 = vadd.f32 %v2040, 0.0
  %v2073 = vadd.f32 %v2041, 0.0
  %v2074 = vadd.f32 %v2042, 0.0
  %v2075 = vadd.f32 %v2043, 0.0
  %v2076 = vadd.f32 %v2044, 0.0
  %v2077 = vadd.f32 %v2045, 0.0
  %v2078 = vadd.f32 %v2046, 0.0
  %v2079 = vadd.f32 %v2047, 0.0
  %v2080 = vadd.f32 %v2048, 0.0
  %v2081 = vadd.f32 %v2049, 0.0
  %v2082 = vadd.f32 %v2050, 0.0
  %v2083 = vadd.f32 %v2051, 0.0
  %v2084 = vadd.f32 %v2052, 0.0
  %v2085 = vadd.f32 %v2053, 0.0
  %v2086 = vadd.f32 %v2054, 0.0
  %v2087 = vadd.f32 %v2055, 0.0
  %v2088 = vadd.f32 %v2056, 0.0
  %v2089 = vadd.f32 %v2057, 0.0
  %v2090 = vadd.f32 %v2058, 0.0
  %v2091 = vadd.f32 %v2059, 0.0
  %v2092 = vadd.f32 %v2060, 0.0
  %v2093 = vld [vmem:[#allocation2 + $0x10] sm:$0xff]
  %v2094 = vld [vmem:[#allocation2 + $0x18] sm:$0xff]
  %v2095 = vld [vmem:[#allocation2 + $0x20] sm:$0xff]
  %v2096 = vld [vmem:[#allocation2 + $0x28] sm:$0xff]
  %v2097 = vld [vmem:[#allocation2 + $0x30] sm:$0xff]
  %v2098 = vld [vmem:[#allocation2 + $0x38] sm:$0xff]
  %v2099 = vld [vmem:[#allocation2 + $0x40] sm:$0xff]
  %v2100 = vld [vmem:[#allocation2 + $0x48] sm:$0xff]
  %v2101 = vld [vmem:[#allocation2 + $0x50] sm:$0xff]
  %v2102 = vld [vmem:[#allocation2 + $0x58] sm:$0xff]
  %v2103 = vld [vmem:[#allocation2 + $0x60] sm:$0xff]
  %v2104 = vld [vmem:[#allocation2 + $0x68] sm:$0xff]
  %v2105 = vld [vmem:[#allocation2 + $0x70] sm:$0xff]
  %v2106 = vld [vmem:[#allocation2 + $0x78] sm:$0xff]
  %v2107 = vld [vmem:[#allocation2 + $0x80] sm:$0xff]
  %v2108 = vld [vmem:[#allocation2 + $0x88] sm:$0xff]
  %v2109 = vld [vmem:[#allocation2 + $0x90] sm:$0xff]
  %v2110 = vld [vmem:[#allocation2 + $0x98] sm:$0xff]
  %v2111 = vld [vmem:[#allocation2 + $0xa0] sm:$0xff]
  %v2112 = vld [vmem:[#allocation2 + $0xa8] sm:$0xff]
  %v2113 = vld [vmem:[#allocation2 + $0xb0] sm:$0xff]
  %v2114 = vld [vmem:[#allocation2 + $0xb8] sm:$0xff]
  %v2115 = vld [vmem:[#allocation2 + $0xc0] sm:$0xff]
  %v2116 = vld [vmem:[#allocation2 + $0xc8] sm:$0xff]
  %v2117 = vld [vmem:[#allocation2 + $0xd0] sm:$0xff]
  %v2118 = vld [vmem:[#allocation2 + $0xd8] sm:$0xff]
  %v2119 = vld [vmem:[#allocation2 + $0xe0] sm:$0xff]
  %v2120 = vld [vmem:[#allocation2 + $0xe8] sm:$0xff]
  %v2121 = vld [vmem:[#allocation2 + $0xf0] sm:$0xff]
  %v2122 = vld [vmem:[#allocation2 + $0xf8] sm:$0xff]
  %v2123 = vld [vmem:[#allocation2 + $0x100] sm:$0xff]
  %v2124 = vld [vmem:[#allocation2 + $0x108] sm:$0xff]
  %v2125 = vperm.slane %v58, 0
  %v2126 = vmul.f32 %v2093, %v2125
  %v2127 = vmul.f32 %v2094, %v2125
  %v2128 = vmul.f32 %v2095, %v2125
  %v2129 = vmul.f32 %v2096, %v2125
  %v2130 = vmul.f32 %v2097, %v2125
  %v2131 = vmul.f32 %v2098, %v2125
  %v2132 = vmul.f32 %v2099, %v2125
  %v2133 = vmul.f32 %v2100, %v2125
  %v2134 = vmul.f32 %v2101, %v2125
  %v2135 = vmul.f32 %v2102, %v2125
  %v2136 = vmul.f32 %v2103, %v2125
  %v2137 = vmul.f32 %v2104, %v2125
  %v2138 = vmul.f32 %v2105, %v2125
  %v2139 = vmul.f32 %v2106, %v2125
  %v2140 = vmul.f32 %v2107, %v2125
  %v2141 = vmul.f32 %v2108, %v2125
  %v2142 = vmul.f32 %v2109, %v2125
  %v2143 = vmul.f32 %v2110, %v2125
  %v2144 = vmul.f32 %v2111, %v2125
  %v2145 = vmul.f32 %v2112, %v2125
  %v2146 = vmul.f32 %v2113, %v2125
  %v2147 = vmul.f32 %v2114, %v2125
  %v2148 = vmul.f32 %v2115, %v2125
  %v2149 = vmul.f32 %v2116, %v2125
  %v2150 = vmul.f32 %v2117, %v2125
  %v2151 = vmul.f32 %v2118, %v2125
  %v2152 = vmul.f32 %v2119, %v2125
  %v2153 = vmul.f32 %v2120, %v2125
  %v2154 = vmul.f32 %v2121, %v2125
  %v2155 = vmul.f32 %v2122, %v2125
  %v2156 = vmul.f32 %v2123, %v2125
  %v2157 = vmul.f32 %v2124, %v2125
  %v2158 = vadd.f32 %v2126, 0.0
  %v2159 = vadd.f32 %v2127, 0.0
  %v2160 = vadd.f32 %v2128, 0.0
  %v2161 = vadd.f32 %v2129, 0.0
  %v2162 = vadd.f32 %v2130, 0.0
  %v2163 = vadd.f32 %v2131, 0.0
  %v2164 = vadd.f32 %v2132, 0.0
  %v2165 = vadd.f32 %v2133, 0.0
  %v2166 = vadd.f32 %v2134, 0.0
  %v2167 = vadd.f32 %v2135, 0.0
  %v2168 = vadd.f32 %v2136, 0.0
  %v2169 = vadd.f32 %v2137, 0.0
  %v2170 = vadd.f32 %v2138, 0.0
  %v2171 = vadd.f32 %v2139, 0.0
  %v2172 = vadd.f32 %v2140, 0.0
  %v2173 = vadd.f32 %v2141, 0.0
  %v2174 = vadd.f32 %v2142, 0.0
  %v2175 = vadd.f32 %v2143, 0.0
  %v2176 = vadd.f32 %v2144, 0.0
  %v2177 = vadd.f32 %v2145, 0.0
  %v2178 = vadd.f32 %v2146, 0.0
  %v2179 = vadd.f32 %v2147, 0.0
  %v2180 = vadd.f32 %v2148, 0.0
  %v2181 = vadd.f32 %v2149, 0.0
  %v2182 = vadd.f32 %v2150, 0.0
  %v2183 = vadd.f32 %v2151, 0.0
  %v2184 = vadd.f32 %v2152, 0.0
  %v2185 = vadd.f32 %v2153, 0.0
  %v2186 = vadd.f32 %v2154, 0.0
  %v2187 = vadd.f32 %v2155, 0.0
  %v2188 = vadd.f32 %v2156, 0.0
  %v2189 = vadd.f32 %v2157, 0.0
  %v2190 = vld [vmem:[#allocation2 + $0x110] sm:$0xff]
  %v2191 = vld [vmem:[#allocation2 + $0x118] sm:$0xff]
  %v2192 = vperm.slane %v61, 0
  %v2193 = vmul.f32 %v2095, %v2192
  %v2194 = vmul.f32 %v2096, %v2192
  %v2195 = vmul.f32 %v2097, %v2192
  %v2196 = vmul.f32 %v2098, %v2192
  %v2197 = vmul.f32 %v2099, %v2192
  %v2198 = vmul.f32 %v2100, %v2192
  %v2199 = vmul.f32 %v2101, %v2192
  %v2200 = vmul.f32 %v2102, %v2192
  %v2201 = vmul.f32 %v2103, %v2192
  %v2202 = vmul.f32 %v2104, %v2192
  %v2203 = vmul.f32 %v2105, %v2192
  %v2204 = vmul.f32 %v2106, %v2192
  %v2205 = vmul.f32 %v2107, %v2192
  %v2206 = vmul.f32 %v2108, %v2192
  %v2207 = vmul.f32 %v2109, %v2192
  %v2208 = vmul.f32 %v2110, %v2192
  %v2209 = vmul.f32 %v2111, %v2192
  %v2210 = vmul.f32 %v2112, %v2192
  %v2211 = vmul.f32 %v2113, %v2192
  %v2212 = vmul.f32 %v2114, %v2192
  %v2213 = vmul.f32 %v2115, %v2192
  %v2214 = vmul.f32 %v2116, %v2192
  %v2215 = vmul.f32 %v2117, %v2192
  %v2216 = vmul.f32 %v2118, %v2192
  %v2217 = vmul.f32 %v2119, %v2192
  %v2218 = vmul.f32 %v2120, %v2192
  %v2219 = vmul.f32 %v2121, %v2192
  %v2220 = vmul.f32 %v2122, %v2192
  %v2221 = vmul.f32 %v2123, %v2192
  %v2222 = vmul.f32 %v2124, %v2192
  %v2223 = vmul.f32 %v2190, %v2192
  %v2224 = vmul.f32 %v2191, %v2192
  %v2225 = vadd.f32 %v2158, %v2193
  %v2226 = vadd.f32 %v2159, %v2194
  %v2227 = vadd.f32 %v2160, %v2195
  %v2228 = vadd.f32 %v2161, %v2196
  %v2229 = vadd.f32 %v2162, %v2197
  %v2230 = vadd.f32 %v2163, %v2198
  %v2231 = vadd.f32 %v2164, %v2199
  %v2232 = vadd.f32 %v2165, %v2200
  %v2233 = vadd.f32 %v2166, %v2201
  %v2234 = vadd.f32 %v2167, %v2202
  %v2235 = vadd.f32 %v2168, %v2203
  %v2236 = vadd.f32 %v2169, %v2204
  %v2237 = vadd.f32 %v2170, %v2205
  %v2238 = vadd.f32 %v2171, %v2206
  %v2239 = vadd.f32 %v2172, %v2207
  %v2240 = vadd.f32 %v2173, %v2208
  %v2241 = vadd.f32 %v2174, %v2209
  %v2242 = vadd.f32 %v2175, %v2210
  %v2243 = vadd.f32 %v2176, %v2211
  %v2244 = vadd.f32 %v2177, %v2212
  %v2245 = vadd.f32 %v2178, %v2213
  %v2246 = vadd.f32 %v2179, %v2214
  %v2247 = vadd.f32 %v2180, %v2215
  %v2248 = vadd.f32 %v2181, %v2216
  %v2249 = vadd.f32 %v2182, %v2217
  %v2250 = vadd.f32 %v2183, %v2218
  %v2251 = vadd.f32 %v2184, %v2219
  %v2252 = vadd.f32 %v2185, %v2220
  %v2253 = vadd.f32 %v2186, %v2221
  %v2254 = vadd.f32 %v2187, %v2222
  %v2255 = vadd.f32 %v2188, %v2223
  %v2256 = vadd.f32 %v2189, %v2224
  %v2257 = vld [vmem:[#allocation2 + $0x120] sm:$0xff]
  %v2258 = vld [vmem:[#allocation2 + $0x128] sm:$0xff]
  %v2259 = vperm.slane %v64, 0
  %v2260 = vmul.f32 %v2097, %v2259
  %v2261 = vmul.f32 %v2098, %v2259
  %v2262 = vmul.f32 %v2099, %v2259
  %v2263 = vmul.f32 %v2100, %v2259
  %v2264 = vmul.f32 %v2101, %v2259
  %v2265 = vmul.f32 %v2102, %v2259
  %v2266 = vmul.f32 %v2103, %v2259
  %v2267 = vmul.f32 %v2104, %v2259
  %v2268 = vmul.f32 %v2105, %v2259
  %v2269 = vmul.f32 %v2106, %v2259
  %v2270 = vmul.f32 %v2107, %v2259
  %v2271 = vmul.f32 %v2108, %v2259
  %v2272 = vmul.f32 %v2109, %v2259
  %v2273 = vmul.f32 %v2110, %v2259
  %v2274 = vmul.f32 %v2111, %v2259
  %v2275 = vmul.f32 %v2112, %v2259
  %v2276 = vmul.f32 %v2113, %v2259
  %v2277 = vmul.f32 %v2114, %v2259
  %v2278 = vmul.f32 %v2115, %v2259
  %v2279 = vmul.f32 %v2116, %v2259
  %v2280 = vmul.f32 %v2117, %v2259
  %v2281 = vmul.f32 %v2118, %v2259
  %v2282 = vmul.f32 %v2119, %v2259
  %v2283 = vmul.f32 %v2120, %v2259
  %v2284 = vmul.f32 %v2121, %v2259
  %v2285 = vmul.f32 %v2122, %v2259
  %v2286 = vmul.f32 %v2123, %v2259
  %v2287 = vmul.f32 %v2124, %v2259
  %v2288 = vmul.f32 %v2190, %v2259
  %v2289 = vmul.f32 %v2191, %v2259
  %v2290 = vmul.f32 %v2257, %v2259
  %v2291 = vmul.f32 %v2258, %v2259
  %v2292 = vadd.f32 %v2225, %v2260
  %v2293 = vadd.f32 %v2226, %v2261
  %v2294 = vadd.f32 %v2227, %v2262
  %v2295 = vadd.f32 %v2228, %v2263
  %v2296 = vadd.f32 %v2229, %v2264
  %v2297 = vadd.f32 %v2230, %v2265
  %v2298 = vadd.f32 %v2231, %v2266
  %v2299 = vadd.f32 %v2232, %v2267
  %v2300 = vadd.f32 %v2233, %v2268
  %v2301 = vadd.f32 %v2234, %v2269
  %v2302 = vadd.f32 %v2235, %v2270
  %v2303 = vadd.f32 %v2236, %v2271
  %v2304 = vadd.f32 %v2237, %v2272
  %v2305 = vadd.f32 %v2238, %v2273
  %v2306 = vadd.f32 %v2239, %v2274
  %v2307 = vadd.f32 %v2240, %v2275
  %v2308 = vadd.f32 %v2241, %v2276
  %v2309 = vadd.f32 %v2242, %v2277
  %v2310 = vadd.f32 %v2243, %v2278
  %v2311 = vadd.f32 %v2244, %v2279
  %v2312 = vadd.f32 %v2245, %v2280
  %v2313 = vadd.f32 %v2246, %v2281
  %v2314 = vadd.f32 %v2247, %v2282
  %v2315 = vadd.f32 %v2248, %v2283
  %v2316 = vadd.f32 %v2249, %v2284
  %v2317 = vadd.f32 %v2250, %v2285
  %v2318 = vadd.f32 %v2251, %v2286
  %v2319 = vadd.f32 %v2252, %v2287
  %v2320 = vadd.f32 %v2253, %v2288
  %v2321 = vadd.f32 %v2254, %v2289
  %v2322 = vadd.f32 %v2255, %v2290
  %v2323 = vadd.f32 %v2256, %v2291
  %v2324 = vadd.f32 %v2061, %v2292
  %v2325 = vadd.f32 %v2062, %v2293
  %v2326 = vadd.f32 %v2063, %v2294
  %v2327 = vadd.f32 %v2064, %v2295
  %v2328 = vadd.f32 %v2065, %v2296
  %v2329 = vadd.f32 %v2066, %v2297
  %v2330 = vadd.f32 %v2067, %v2298
  %v2331 = vadd.f32 %v2068, %v2299
  %v2332 = vadd.f32 %v2069, %v2300
  %v2333 = vadd.f32 %v2070, %v2301
  %v2334 = vadd.f32 %v2071, %v2302
  %v2335 = vadd.f32 %v2072, %v2303
  %v2336 = vadd.f32 %v2073, %v2304
  %v2337 = vadd.f32 %v2074, %v2305
  %v2338 = vadd.f32 %v2075, %v2306
  %v2339 = vadd.f32 %v2076, %v2307
  %v2340 = vadd.f32 %v2077, %v2308
  %v2341 = vadd.f32 %v2078, %v2309
  %v2342 = vadd.f32 %v2079, %v2310
  %v2343 = vadd.f32 %v2080, %v2311
  %v2344 = vadd.f32 %v2081, %v2312
  %v2345 = vadd.f32 %v2082, %v2313
  %v2346 = vadd.f32 %v2083, %v2314
  %v2347 = vadd.f32 %v2084, %v2315
  %v2348 = vadd.f32 %v2085, %v2316
  %v2349 = vadd.f32 %v2086, %v2317
  %v2350 = vadd.f32 %v2087, %v2318
  %v2351 = vadd.f32 %v2088, %v2319
  %v2352 = vadd.f32 %v2089, %v2320
  %v2353 = vadd.f32 %v2090, %v2321
  %v2354 = vadd.f32 %v2091, %v2322
  %v2355 = vadd.f32 %v2092, %v2323
  %v2356 = vld [vmem:[#allocation2 + $0x11] sm:$0xff]
  %v2357 = vld [vmem:[#allocation2 + $0x19] sm:$0xff]
  %v2358 = vld [vmem:[#allocation2 + $0x21] sm:$0xff]
  %v2359 = vld [vmem:[#allocation2 + $0x29] sm:$0xff]
  %v2360 = vld [vmem:[#allocation2 + $0x31] sm:$0xff]
  %v2361 = vld [vmem:[#allocation2 + $0x39] sm:$0xff]
  %v2362 = vld [vmem:[#allocation2 + $0x41] sm:$0xff]
  %v2363 = vld [vmem:[#allocation2 + $0x49] sm:$0xff]
  %v2364 = vld [vmem:[#allocation2 + $0x51] sm:$0xff]
  %v2365 = vld [vmem:[#allocation2 + $0x59] sm:$0xff]
  %v2366 = vld [vmem:[#allocation2 + $0x61] sm:$0xff]
  %v2367 = vld [vmem:[#allocation2 + $0x69] sm:$0xff]
  %v2368 = vld [vmem:[#allocation2 + $0x71] sm:$0xff]
  %v2369 = vld [vmem:[#allocation2 + $0x79] sm:$0xff]
  %v2370 = vld [vmem:[#allocation2 + $0x81] sm:$0xff]
  %v2371 = vld [vmem:[#allocation2 + $0x89] sm:$0xff]
  %v2372 = vld [vmem:[#allocation2 + $0x91] sm:$0xff]
  %v2373 = vld [vmem:[#allocation2 + $0x99] sm:$0xff]
  %v2374 = vld [vmem:[#allocation2 + $0xa1] sm:$0xff]
  %v2375 = vld [vmem:[#allocation2 + $0xa9] sm:$0xff]
  %v2376 = vld [vmem:[#allocation2 + $0xb1] sm:$0xff]
  %v2377 = vld [vmem:[#allocation2 + $0xb9] sm:$0xff]
  %v2378 = vld [vmem:[#allocation2 + $0xc1] sm:$0xff]
  %v2379 = vld [vmem:[#allocation2 + $0xc9] sm:$0xff]
  %v2380 = vld [vmem:[#allocation2 + $0xd1] sm:$0xff]
  %v2381 = vld [vmem:[#allocation2 + $0xd9] sm:$0xff]
  %v2382 = vld [vmem:[#allocation2 + $0xe1] sm:$0xff]
  %v2383 = vld [vmem:[#allocation2 + $0xe9] sm:$0xff]
  %v2384 = vld [vmem:[#allocation2 + $0xf1] sm:$0xff]
  %v2385 = vld [vmem:[#allocation2 + $0xf9] sm:$0xff]
  %v2386 = vld [vmem:[#allocation2 + $0x101] sm:$0xff]
  %v2387 = vld [vmem:[#allocation2 + $0x109] sm:$0xff]
  %v2388 = vperm.slane %v59, 0
  %v2389 = vmul.f32 %v2356, %v2388
  %v2390 = vmul.f32 %v2357, %v2388
  %v2391 = vmul.f32 %v2358, %v2388
  %v2392 = vmul.f32 %v2359, %v2388
  %v2393 = vmul.f32 %v2360, %v2388
  %v2394 = vmul.f32 %v2361, %v2388
  %v2395 = vmul.f32 %v2362, %v2388
  %v2396 = vmul.f32 %v2363, %v2388
  %v2397 = vmul.f32 %v2364, %v2388
  %v2398 = vmul.f32 %v2365, %v2388
  %v2399 = vmul.f32 %v2366, %v2388
  %v2400 = vmul.f32 %v2367, %v2388
  %v2401 = vmul.f32 %v2368, %v2388
  %v2402 = vmul.f32 %v2369, %v2388
  %v2403 = vmul.f32 %v2370, %v2388
  %v2404 = vmul.f32 %v2371, %v2388
  %v2405 = vmul.f32 %v2372, %v2388
  %v2406 = vmul.f32 %v2373, %v2388
  %v2407 = vmul.f32 %v2374, %v2388
  %v2408 = vmul.f32 %v2375, %v2388
  %v2409 = vmul.f32 %v2376, %v2388
  %v2410 = vmul.f32 %v2377, %v2388
  %v2411 = vmul.f32 %v2378, %v2388
  %v2412 = vmul.f32 %v2379, %v2388
  %v2413 = vmul.f32 %v2380, %v2388
  %v2414 = vmul.f32 %v2381, %v2388
  %v2415 = vmul.f32 %v2382, %v2388
  %v2416 = vmul.f32 %v2383, %v2388
  %v2417 = vmul.f32 %v2384, %v2388
  %v2418 = vmul.f32 %v2385, %v2388
  %v2419 = vmul.f32 %v2386, %v2388
  %v2420 = vmul.f32 %v2387, %v2388
  %v2421 = vadd.f32 %v2389, 0.0
  %v2422 = vadd.f32 %v2390, 0.0
  %v2423 = vadd.f32 %v2391, 0.0
  %v2424 = vadd.f32 %v2392, 0.0
  %v2425 = vadd.f32 %v2393, 0.0
  %v2426 = vadd.f32 %v2394, 0.0
  %v2427 = vadd.f32 %v2395, 0.0
  %v2428 = vadd.f32 %v2396, 0.0
  %v2429 = vadd.f32 %v2397, 0.0
  %v2430 = vadd.f32 %v2398, 0.0
  %v2431 = vadd.f32 %v2399, 0.0
  %v2432 = vadd.f32 %v2400, 0.0
  %v2433 = vadd.f32 %v2401, 0.0
  %v2434 = vadd.f32 %v2402, 0.0
  %v2435 = vadd.f32 %v2403, 0.0
  %v2436 = vadd.f32 %v2404, 0.0
  %v2437 = vadd.f32 %v2405, 0.0
  %v2438 = vadd.f32 %v2406, 0.0
  %v2439 = vadd.f32 %v2407, 0.0
  %v2440 = vadd.f32 %v2408, 0.0
  %v2441 = vadd.f32 %v2409, 0.0
  %v2442 = vadd.f32 %v2410, 0.0
  %v2443 = vadd.f32 %v2411, 0.0
  %v2444 = vadd.f32 %v2412, 0.0
  %v2445 = vadd.f32 %v2413, 0.0
  %v2446 = vadd.f32 %v2414, 0.0
  %v2447 = vadd.f32 %v2415, 0.0
  %v2448 = vadd.f32 %v2416, 0.0
  %v2449 = vadd.f32 %v2417, 0.0
  %v2450 = vadd.f32 %v2418, 0.0
  %v2451 = vadd.f32 %v2419, 0.0
  %v2452 = vadd.f32 %v2420, 0.0
  %v2453 = vld [vmem:[#allocation2 + $0x111] sm:$0xff]
  %v2454 = vld [vmem:[#allocation2 + $0x119] sm:$0xff]
  %v2455 = vperm.slane %v62, 0
  %v2456 = vmul.f32 %v2358, %v2455
  %v2457 = vmul.f32 %v2359, %v2455
  %v2458 = vmul.f32 %v2360, %v2455
  %v2459 = vmul.f32 %v2361, %v2455
  %v2460 = vmul.f32 %v2362, %v2455
  %v2461 = vmul.f32 %v2363, %v2455
  %v2462 = vmul.f32 %v2364, %v2455
  %v2463 = vmul.f32 %v2365, %v2455
  %v2464 = vmul.f32 %v2366, %v2455
  %v2465 = vmul.f32 %v2367, %v2455
  %v2466 = vmul.f32 %v2368, %v2455
  %v2467 = vmul.f32 %v2369, %v2455
  %v2468 = vmul.f32 %v2370, %v2455
  %v2469 = vmul.f32 %v2371, %v2455
  %v2470 = vmul.f32 %v2372, %v2455
  %v2471 = vmul.f32 %v2373, %v2455
  %v2472 = vmul.f32 %v2374, %v2455
  %v2473 = vmul.f32 %v2375, %v2455
  %v2474 = vmul.f32 %v2376, %v2455
  %v2475 = vmul.f32 %v2377, %v2455
  %v2476 = vmul.f32 %v2378, %v2455
  %v2477 = vmul.f32 %v2379, %v2455
  %v2478 = vmul.f32 %v2380, %v2455
  %v2479 = vmul.f32 %v2381, %v2455
  %v2480 = vmul.f32 %v2382, %v2455
  %v2481 = vmul.f32 %v2383, %v2455
  %v2482 = vmul.f32 %v2384, %v2455
  %v2483 = vmul.f32 %v2385, %v2455
  %v2484 = vmul.f32 %v2386, %v2455
  %v2485 = vmul.f32 %v2387, %v2455
  %v2486 = vmul.f32 %v2453, %v2455
  %v2487 = vmul.f32 %v2454, %v2455
  %v2488 = vadd.f32 %v2421, %v2456
  %v2489 = vadd.f32 %v2422, %v2457
  %v2490 = vadd.f32 %v2423, %v2458
  %v2491 = vadd.f32 %v2424, %v2459
  %v2492 = vadd.f32 %v2425, %v2460
  %v2493 = vadd.f32 %v2426, %v2461
  %v2494 = vadd.f32 %v2427, %v2462
  %v2495 = vadd.f32 %v2428, %v2463
  %v2496 = vadd.f32 %v2429, %v2464
  %v2497 = vadd.f32 %v2430, %v2465
  %v2498 = vadd.f32 %v2431, %v2466
  %v2499 = vadd.f32 %v2432, %v2467
  %v2500 = vadd.f32 %v2433, %v2468
  %v2501 = vadd.f32 %v2434, %v2469
  %v2502 = vadd.f32 %v2435, %v2470
  %v2503 = vadd.f32 %v2436, %v2471
  %v2504 = vadd.f32 %v2437, %v2472
  %v2505 = vadd.f32 %v2438, %v2473
  %v2506 = vadd.f32 %v2439, %v2474
  %v2507 = vadd.f32 %v2440, %v2475
  %v2508 = vadd.f32 %v2441, %v2476
  %v2509 = vadd.f32 %v2442, %v2477
  %v2510 = vadd.f32 %v2443, %v2478
  %v2511 = vadd.f32 %v2444, %v2479
  %v2512 = vadd.f32 %v2445, %v2480
  %v2513 = vadd.f32 %v2446, %v2481
  %v2514 = vadd.f32 %v2447, %v2482
  %v2515 = vadd.f32 %v2448, %v2483
  %v2516 = vadd.f32 %v2449, %v2484
  %v2517 = vadd.f32 %v2450, %v2485
  %v2518 = vadd.f32 %v2451, %v2486
  %v2519 = vadd.f32 %v2452, %v2487
  %v2520 = vld [vmem:[#allocation2 + $0x121] sm:$0xff]
  %v2521 = vld [vmem:[#allocation2 + $0x129] sm:$0xff]
  %v2522 = vperm.slane %v65, 0
  %v2523 = vmul.f32 %v2360, %v2522
  %v2524 = vmul.f32 %v2361, %v2522
  %v2525 = vmul.f32 %v2362, %v2522
  %v2526 = vmul.f32 %v2363, %v2522
  %v2527 = vmul.f32 %v2364, %v2522
  %v2528 = vmul.f32 %v2365, %v2522
  %v2529 = vmul.f32 %v2366, %v2522
  %v2530 = vmul.f32 %v2367, %v2522
  %v2531 = vmul.f32 %v2368, %v2522
  %v2532 = vmul.f32 %v2369, %v2522
  %v2533 = vmul.f32 %v2370, %v2522
  %v2534 = vmul.f32 %v2371, %v2522
  %v2535 = vmul.f32 %v2372, %v2522
  %v2536 = vmul.f32 %v2373, %v2522
  %v2537 = vmul.f32 %v2374, %v2522
  %v2538 = vmul.f32 %v2375, %v2522
  %v2539 = vmul.f32 %v2376, %v2522
  %v2540 = vmul.f32 %v2377, %v2522
  %v2541 = vmul.f32 %v2378, %v2522
  %v2542 = vmul.f32 %v2379, %v2522
  %v2543 = vmul.f32 %v2380, %v2522
  %v2544 = vmul.f32 %v2381, %v2522
  %v2545 = vmul.f32 %v2382, %v2522
  %v2546 = vmul.f32 %v2383, %v2522
  %v2547 = vmul.f32 %v2384, %v2522
  %v2548 = vmul.f32 %v2385, %v2522
  %v2549 = vmul.f32 %v2386, %v2522
  %v2550 = vmul.f32 %v2387, %v2522
  %v2551 = vmul.f32 %v2453, %v2522
  %v2552 = vmul.f32 %v2454, %v2522
  %v2553 = vmul.f32 %v2520, %v2522
  %v2554 = vmul.f32 %v2521, %v2522
  %v2555 = vadd.f32 %v2488, %v2523
  %v2556 = vadd.f32 %v2489, %v2524
  %v2557 = vadd.f32 %v2490, %v2525
  %v2558 = vadd.f32 %v2491, %v2526
  %v2559 = vadd.f32 %v2492, %v2527
  %v2560 = vadd.f32 %v2493, %v2528
  %v2561 = vadd.f32 %v2494, %v2529
  %v2562 = vadd.f32 %v2495, %v2530
  %v2563 = vadd.f32 %v2496, %v2531
  %v2564 = vadd.f32 %v2497, %v2532
  %v2565 = vadd.f32 %v2498, %v2533
  %v2566 = vadd.f32 %v2499, %v2534
  %v2567 = vadd.f32 %v2500, %v2535
  %v2568 = vadd.f32 %v2501, %v2536
  %v2569 = vadd.f32 %v2502, %v2537
  %v2570 = vadd.f32 %v2503, %v2538
  %v2571 = vadd.f32 %v2504, %v2539
  %v2572 = vadd.f32 %v2505, %v2540
  %v2573 = vadd.f32 %v2506, %v2541
  %v2574 = vadd.f32 %v2507, %v2542
  %v2575 = vadd.f32 %v2508, %v2543
  %v2576 = vadd.f32 %v2509, %v2544
  %v2577 = vadd.f32 %v2510, %v2545
  %v2578 = vadd.f32 %v2511, %v2546
  %v2579 = vadd.f32 %v2512, %v2547
  %v2580 = vadd.f32 %v2513, %v2548
  %v2581 = vadd.f32 %v2514, %v2549
  %v2582 = vadd.f32 %v2515, %v2550
  %v2583 = vadd.f32 %v2516, %v2551
  %v2584 = vadd.f32 %v2517, %v2552
  %v2585 = vadd.f32 %v2518, %v2553
  %v2586 = vadd.f32 %v2519, %v2554
  %v2587 = vsel %vm147, 1, 0
  %v2588 = vsel %vm148, 1, 0
  %v2589 = vsel %vm149, 1, 0
  %v2590 = vsel %vm150, 1, 0
  %v2591 = vsel %vm151, 1, 0
  %v2592 = vsel %vm152, 1, 0
  %v2593 = vsel %vm153, 1, 0
  %v2594 = vsel %vm154, 1, 0
  %v2595 = vsel %vm155, 1, 0
  %v2596 = vsel %vm156, 1, 0
  %v2597 = vsel %vm157, 1, 0
  %v2598 = vsel %vm158, 1, 0
  %v2599 = vsel %vm159, 1, 0
  %v2600 = vsel %vm160, 1, 0
  %v2601 = vsel %vm161, 1, 0
  %v2602 = vsel %vm162, 1, 0
  %v2603 = vsel %vm163, 1, 0
  %v2604 = vsel %vm164, 1, 0
  %v2605 = vsel %vm165, 1, 0
  %v2606 = vsel %vm166, 1, 0
  %v2607 = vsel %vm167, 1, 0
  %v2608 = vsel %vm168, 1, 0
  %v2609 = vsel %vm169, 1, 0
  %v2610 = vsel %vm170, 1, 0
  %v2611 = vsel %vm171, 1, 0
  %v2612 = vsel %vm172, 1, 0
  %v2613 = vsel %vm173, 1, 0
  %v2614 = vsel %vm174, 1, 0
  %v2615 = vsel %vm175, 1, 0
  %v2616 = vsel %vm176, 1, 0
  %v2617 = vsel %vm177, 1, 0
  %v2618 = vsel %vm178, 1, 0
  %2619 = vset.pattern.permute.xlu0 0
  %2620 = vperm.xlu0 %2619, %v2587
  %v2621 = vpop.permute.xlu0 %2620
  %2622 = vset.pattern.permute.xlu0 0
  %2623 = vperm.xlu0 %2622, %v2588
  %v2624 = vpop.permute.xlu0 %2623
  %2625 = vset.pattern.permute.xlu0 0
  %2626 = vperm.xlu0 %2625, %v2589
  %v2627 = vpop.permute.xlu0 %2626
  %2628 = vset.pattern.permute.xlu0 0
  %2629 = vperm.xlu0 %2628, %v2590
  %v2630 = vpop.permute.xlu0 %2629
  %2631 = vset.pattern.permute.xlu0 0
  %2632 = vperm.xlu0 %2631, %v2591
  %v2633 = vpop.permute.xlu0 %2632
  %2634 = vset.pattern.permute.xlu0 0
  %2635 = vperm.xlu0 %2634, %v2592
  %v2636 = vpop.permute.xlu0 %2635
  %2637 = vset.pattern.permute.xlu0 0
  %2638 = vperm.xlu0 %2637, %v2593
  %v2639 = vpop.permute.xlu0 %2638
  %2640 = vset.pattern.permute.xlu0 0
  %2641 = vperm.xlu0 %2640, %v2594
  %v2642 = vpop.permute.xlu0 %2641
  %2643 = vset.pattern.permute.xlu0 0
  %2644 = vperm.xlu0 %2643, %v2595
  %v2645 = vpop.permute.xlu0 %2644
  %2646 = vset.pattern.permute.xlu0 0
  %2647 = vperm.xlu0 %2646, %v2596
  %v2648 = vpop.permute.xlu0 %2647
  %2649 = vset.pattern.permute.xlu0 0
  %2650 = vperm.xlu0 %2649, %v2597
  %v2651 = vpop.permute.xlu0 %2650
  %2652 = vset.pattern.permute.xlu0 0
  %2653 = vperm.xlu0 %2652, %v2598
  %v2654 = vpop.permute.xlu0 %2653
  %2655 = vset.pattern.permute.xlu0 0
  %2656 = vperm.xlu0 %2655, %v2599
  %v2657 = vpop.permute.xlu0 %2656
  %2658 = vset.pattern.permute.xlu0 0
  %2659 = vperm.xlu0 %2658, %v2600
  %v2660 = vpop.permute.xlu0 %2659
  %2661 = vset.pattern.permute.xlu0 0
  %2662 = vperm.xlu0 %2661, %v2601
  %v2663 = vpop.permute.xlu0 %2662
  %2664 = vset.pattern.permute.xlu0 0
  %2665 = vperm.xlu0 %2664, %v2602
  %v2666 = vpop.permute.xlu0 %2665
  %2667 = vset.pattern.permute.xlu0 0
  %2668 = vperm.xlu0 %2667, %v2603
  %v2669 = vpop.permute.xlu0 %2668
  %2670 = vset.pattern.permute.xlu0 0
  %2671 = vperm.xlu0 %2670, %v2604
  %v2672 = vpop.permute.xlu0 %2671
  %2673 = vset.pattern.permute.xlu0 0
  %2674 = vperm.xlu0 %2673, %v2605
  %v2675 = vpop.permute.xlu0 %2674
  %2676 = vset.pattern.permute.xlu0 0
  %2677 = vperm.xlu0 %2676, %v2606
  %v2678 = vpop.permute.xlu0 %2677
  %2679 = vset.pattern.permute.xlu0 0
  %2680 = vperm.xlu0 %2679, %v2607
  %v2681 = vpop.permute.xlu0 %2680
  %2682 = vset.pattern.permute.xlu0 0
  %2683 = vperm.xlu0 %2682, %v2608
  %v2684 = vpop.permute.xlu0 %2683
  %2685 = vset.pattern.permute.xlu0 0
  %2686 = vperm.xlu0 %2685, %v2609
  %v2687 = vpop.permute.xlu0 %2686
  %2688 = vset.pattern.permute.xlu0 0
  %2689 = vperm.xlu0 %2688, %v2610
  %v2690 = vpop.permute.xlu0 %2689
  %2691 = vset.pattern.permute.xlu0 0
  %2692 = vperm.xlu0 %2691, %v2611
  %v2693 = vpop.permute.xlu0 %2692
  %2694 = vset.pattern.permute.xlu0 0
  %2695 = vperm.xlu0 %2694, %v2612
  %v2696 = vpop.permute.xlu0 %2695
  %2697 = vset.pattern.permute.xlu0 0
  %2698 = vperm.xlu0 %2697, %v2613
  %v2699 = vpop.permute.xlu0 %2698
  %2700 = vset.pattern.permute.xlu0 0
  %2701 = vperm.xlu0 %2700, %v2614
  %v2702 = vpop.permute.xlu0 %2701
  %2703 = vset.pattern.permute.xlu0 0
  %2704 = vperm.xlu0 %2703, %v2615
  %v2705 = vpop.permute.xlu0 %2704
  %2706 = vset.pattern.permute.xlu0 0
  %2707 = vperm.xlu0 %2706, %v2616
  %v2708 = vpop.permute.xlu0 %2707
  %2709 = vset.pattern.permute.xlu0 0
  %2710 = vperm.xlu0 %2709, %v2617
  %v2711 = vpop.permute.xlu0 %2710
  %2712 = vset.pattern.permute.xlu0 0
  %2713 = vperm.xlu0 %2712, %v2618
  %v2714 = vpop.permute.xlu0 %2713
  %vm2715 = vcmp.eq.s32.totalorder %v2621, 1
  %vm2716 = vcmp.eq.s32.totalorder %v2624, 1
  %vm2717 = vcmp.eq.s32.totalorder %v2627, 1
  %vm2718 = vcmp.eq.s32.totalorder %v2630, 1
  %vm2719 = vcmp.eq.s32.totalorder %v2633, 1
  %vm2720 = vcmp.eq.s32.totalorder %v2636, 1
  %vm2721 = vcmp.eq.s32.totalorder %v2639, 1
  %vm2722 = vcmp.eq.s32.totalorder %v2642, 1
  %vm2723 = vcmp.eq.s32.totalorder %v2645, 1
  %vm2724 = vcmp.eq.s32.totalorder %v2648, 1
  %vm2725 = vcmp.eq.s32.totalorder %v2651, 1
  %vm2726 = vcmp.eq.s32.totalorder %v2654, 1
  %vm2727 = vcmp.eq.s32.totalorder %v2657, 1
  %vm2728 = vcmp.eq.s32.totalorder %v2660, 1
  %vm2729 = vcmp.eq.s32.totalorder %v2663, 1
  %vm2730 = vcmp.eq.s32.totalorder %v2666, 1
  %vm2731 = vcmp.eq.s32.totalorder %v2669, 1
  %vm2732 = vcmp.eq.s32.totalorder %v2672, 1
  %vm2733 = vcmp.eq.s32.totalorder %v2675, 1
  %vm2734 = vcmp.eq.s32.totalorder %v2678, 1
  %vm2735 = vcmp.eq.s32.totalorder %v2681, 1
  %vm2736 = vcmp.eq.s32.totalorder %v2684, 1
  %vm2737 = vcmp.eq.s32.totalorder %v2687, 1
  %vm2738 = vcmp.eq.s32.totalorder %v2690, 1
  %vm2739 = vcmp.eq.s32.totalorder %v2693, 1
  %vm2740 = vcmp.eq.s32.totalorder %v2696, 1
  %vm2741 = vcmp.eq.s32.totalorder %v2699, 1
  %vm2742 = vcmp.eq.s32.totalorder %v2702, 1
  %vm2743 = vcmp.eq.s32.totalorder %v2705, 1
  %vm2744 = vcmp.eq.s32.totalorder %v2708, 1
  %vm2745 = vcmp.eq.s32.totalorder %v2711, 1
  %vm2746 = vcmp.eq.s32.totalorder %v2714, 1
  %v2747 = vsel %vm2715, %v2555, 0.0
  %v2748 = vsel %vm2716, %v2556, 0.0
  %v2749 = vsel %vm2717, %v2557, 0.0
  %v2750 = vsel %vm2718, %v2558, 0.0
  %v2751 = vsel %vm2719, %v2559, 0.0
  %v2752 = vsel %vm2720, %v2560, 0.0
  %v2753 = vsel %vm2721, %v2561, 0.0
  %v2754 = vsel %vm2722, %v2562, 0.0
  %v2755 = vsel %vm2723, %v2563, 0.0
  %v2756 = vsel %vm2724, %v2564, 0.0
  %v2757 = vsel %vm2725, %v2565, 0.0
  %v2758 = vsel %vm2726, %v2566, 0.0
  %v2759 = vsel %vm2727, %v2567, 0.0
  %v2760 = vsel %vm2728, %v2568, 0.0
  %v2761 = vsel %vm2729, %v2569, 0.0
  %v2762 = vsel %vm2730, %v2570, 0.0
  %v2763 = vsel %vm2731, %v2571, 0.0
  %v2764 = vsel %vm2732, %v2572, 0.0
  %v2765 = vsel %vm2733, %v2573, 0.0
  %v2766 = vsel %vm2734, %v2574, 0.0
  %v2767 = vsel %vm2735, %v2575, 0.0
  %v2768 = vsel %vm2736, %v2576, 0.0
  %v2769 = vsel %vm2737, %v2577, 0.0
  %v2770 = vsel %vm2738, %v2578, 0.0
  %v2771 = vsel %vm2739, %v2579, 0.0
  %v2772 = vsel %vm2740, %v2580, 0.0
  %v2773 = vsel %vm2741, %v2581, 0.0
  %v2774 = vsel %vm2742, %v2582, 0.0
  %v2775 = vsel %vm2743, %v2583, 0.0
  %v2776 = vsel %vm2744, %v2584, 0.0
  %v2777 = vsel %vm2745, %v2585, 0.0
  %v2778 = vsel %vm2746, %v2586, 0.0
  %v2779 = vadd.f32 %v2324, %v2747
  %v2780 = vadd.f32 %v2325, %v2748
  %v2781 = vadd.f32 %v2326, %v2749
  %v2782 = vadd.f32 %v2327, %v2750
  %v2783 = vadd.f32 %v2328, %v2751
  %v2784 = vadd.f32 %v2329, %v2752
  %v2785 = vadd.f32 %v2330, %v2753
  %v2786 = vadd.f32 %v2331, %v2754
  %v2787 = vadd.f32 %v2332, %v2755
  %v2788 = vadd.f32 %v2333, %v2756
  %v2789 = vadd.f32 %v2334, %v2757
  %v2790 = vadd.f32 %v2335, %v2758
  %v2791 = vadd.f32 %v2336, %v2759
  %v2792 = vadd.f32 %v2337, %v2760
  %v2793 = vadd.f32 %v2338, %v2761
  %v2794 = vadd.f32 %v2339, %v2762
  %v2795 = vadd.f32 %v2340, %v2763
  %v2796 = vadd.f32 %v2341, %v2764
  %v2797 = vadd.f32 %v2342, %v2765
  %v2798 = vadd.f32 %v2343, %v2766
  %v2799 = vadd.f32 %v2344, %v2767
  %v2800 = vadd.f32 %v2345, %v2768
  %v2801 = vadd.f32 %v2346, %v2769
  %v2802 = vadd.f32 %v2347, %v2770
  %v2803 = vadd.f32 %v2348, %v2771
  %v2804 = vadd.f32 %v2349, %v2772
  %v2805 = vadd.f32 %v2350, %v2773
  %v2806 = vadd.f32 %v2351, %v2774
  %v2807 = vadd.f32 %v2352, %v2775
  %v2808 = vadd.f32 %v2353, %v2776
  %v2809 = vadd.f32 %v2354, %v2777
  %v2810 = vadd.f32 %v2355, %v2778
  %v2812 = vperm.slane %v47, 0
  %v2814 = vadd.f32 %v2779, %v2812
  %v2815 = vadd.f32 %v2780, %v2812
  %v2816 = vadd.f32 %v2781, %v2812
  %v2817 = vadd.f32 %v2782, %v2812
  %v2818 = vadd.f32 %v2783, %v2812
  %v2819 = vadd.f32 %v2784, %v2812
  %v2820 = vadd.f32 %v2785, %v2812
  %v2821 = vadd.f32 %v2786, %v2812
  %v2822 = vadd.f32 %v2787, %v2812
  %v2823 = vadd.f32 %v2788, %v2812
  %v2824 = vadd.f32 %v2789, %v2812
  %v2825 = vadd.f32 %v2790, %v2812
  %v2826 = vadd.f32 %v2791, %v2812
  %v2827 = vadd.f32 %v2792, %v2812
  %v2828 = vadd.f32 %v2793, %v2812
  %v2829 = vadd.f32 %v2794, %v2812
  %v2830 = vadd.f32 %v2795, %v2812
  %v2831 = vadd.f32 %v2796, %v2812
  %v2832 = vadd.f32 %v2797, %v2812
  %v2833 = vadd.f32 %v2798, %v2812
  %v2834 = vadd.f32 %v2799, %v2812
  %v2835 = vadd.f32 %v2800, %v2812
  %v2836 = vadd.f32 %v2801, %v2812
  %v2837 = vadd.f32 %v2802, %v2812
  %v2838 = vadd.f32 %v2803, %v2812
  %v2839 = vadd.f32 %v2804, %v2812
  %v2840 = vadd.f32 %v2805, %v2812
  %v2841 = vadd.f32 %v2806, %v2812
  %v2842 = vadd.f32 %v2807, %v2812
  %v2843 = vadd.f32 %v2808, %v2812
  %v2844 = vadd.f32 %v2809, %v2812
  %v2845 = vadd.f32 %v2810, %v2812
  %v2846 = vmul.f32 %v2814, 0.5
  %v2847 = vmul.f32 %v2815, 0.5
  %v2848 = vmul.f32 %v2816, 0.5
  %v2849 = vmul.f32 %v2817, 0.5
  %v2850 = vmul.f32 %v2818, 0.5
  %v2851 = vmul.f32 %v2819, 0.5
  %v2852 = vmul.f32 %v2820, 0.5
  %v2853 = vmul.f32 %v2821, 0.5
  %v2854 = vmul.f32 %v2822, 0.5
  %v2855 = vmul.f32 %v2823, 0.5
  %v2856 = vmul.f32 %v2824, 0.5
  %v2857 = vmul.f32 %v2825, 0.5
  %v2858 = vmul.f32 %v2826, 0.5
  %v2859 = vmul.f32 %v2827, 0.5
  %v2860 = vmul.f32 %v2828, 0.5
  %v2861 = vmul.f32 %v2829, 0.5
  %v2862 = vmul.f32 %v2830, 0.5
  %v2863 = vmul.f32 %v2831, 0.5
  %v2864 = vmul.f32 %v2832, 0.5
  %v2865 = vmul.f32 %v2833, 0.5
  %v2866 = vmul.f32 %v2834, 0.5
  %v2867 = vmul.f32 %v2835, 0.5
  %v2868 = vmul.f32 %v2836, 0.5
  %v2869 = vmul.f32 %v2837, 0.5
  %v2870 = vmul.f32 %v2838, 0.5
  %v2871 = vmul.f32 %v2839, 0.5
  %v2872 = vmul.f32 %v2840, 0.5
  %v2873 = vmul.f32 %v2841, 0.5
  %v2874 = vmul.f32 %v2842, 0.5
  %v2875 = vmul.f32 %v2843, 0.5
  %v2876 = vmul.f32 %v2844, 0.5
  %v2877 = vmul.f32 %v2845, 0.5
  %v2878 = vmul.f32 %v2814, 0.70710677
  %v2879 = vmul.f32 %v2815, 0.70710677
  %v2880 = vmul.f32 %v2816, 0.70710677
  %v2881 = vmul.f32 %v2817, 0.70710677
  %v2882 = vmul.f32 %v2818, 0.70710677
  %v2883 = vmul.f32 %v2819, 0.70710677
  %v2884 = vmul.f32 %v2820, 0.70710677
  %v2885 = vmul.f32 %v2821, 0.70710677
  %v2886 = vmul.f32 %v2822, 0.70710677
  %v2887 = vmul.f32 %v2823, 0.70710677
  %v2888 = vmul.f32 %v2824, 0.70710677
  %v2889 = vmul.f32 %v2825, 0.70710677
  %v2890 = vmul.f32 %v2826, 0.70710677
  %v2891 = vmul.f32 %v2827, 0.70710677
  %v2892 = vmul.f32 %v2828, 0.70710677
  %v2893 = vmul.f32 %v2829, 0.70710677
  %v2894 = vmul.f32 %v2830, 0.70710677
  %v2895 = vmul.f32 %v2831, 0.70710677
  %v2896 = vmul.f32 %v2832, 0.70710677
  %v2897 = vmul.f32 %v2833, 0.70710677
  %v2898 = vmul.f32 %v2834, 0.70710677
  %v2899 = vmul.f32 %v2835, 0.70710677
  %v2900 = vmul.f32 %v2836, 0.70710677
  %v2901 = vmul.f32 %v2837, 0.70710677
  %v2902 = vmul.f32 %v2838, 0.70710677
  %v2903 = vmul.f32 %v2839, 0.70710677
  %v2904 = vmul.f32 %v2840, 0.70710677
  %v2905 = vmul.f32 %v2841, 0.70710677
  %v2906 = vmul.f32 %v2842, 0.70710677
  %v2907 = vmul.f32 %v2843, 0.70710677
  %v2908 = vmul.f32 %v2844, 0.70710677
  %v2909 = vmul.f32 %v2845, 0.70710677
  %vm2910 = vcmp.lt.f32.partialorder %v2878, 0.0
  %vm2911 = vcmp.lt.f32.partialorder %v2879, 0.0
  %vm2912 = vcmp.lt.f32.partialorder %v2880, 0.0
  %vm2913 = vcmp.lt.f32.partialorder %v2881, 0.0
  %vm2914 = vcmp.lt.f32.partialorder %v2882, 0.0
  %vm2915 = vcmp.lt.f32.partialorder %v2883, 0.0
  %vm2916 = vcmp.lt.f32.partialorder %v2884, 0.0
  %vm2917 = vcmp.lt.f32.partialorder %v2885, 0.0
  %vm2918 = vcmp.lt.f32.partialorder %v2886, 0.0
  %vm2919 = vcmp.lt.f32.partialorder %v2887, 0.0
  %vm2920 = vcmp.lt.f32.partialorder %v2888, 0.0
  %vm2921 = vcmp.lt.f32.partialorder %v2889, 0.0
  %vm2922 = vcmp.lt.f32.partialorder %v2890, 0.0
  %vm2923 = vcmp.lt.f32.partialorder %v2891, 0.0
  %vm2924 = vcmp.lt.f32.partialorder %v2892, 0.0
  %vm2925 = vcmp.lt.f32.partialorder %v2893, 0.0
  %vm2926 = vcmp.lt.f32.partialorder %v2894, 0.0
  %vm2927 = vcmp.lt.f32.partialorder %v2895, 0.0
  %vm2928 = vcmp.lt.f32.partialorder %v2896, 0.0
  %vm2929 = vcmp.lt.f32.partialorder %v2897, 0.0
  %vm2930 = vcmp.lt.f32.partialorder %v2898, 0.0
  %vm2931 = vcmp.lt.f32.partialorder %v2899, 0.0
  %vm2932 = vcmp.lt.f32.partialorder %v2900, 0.0
  %vm2933 = vcmp.lt.f32.partialorder %v2901, 0.0
  %vm2934 = vcmp.lt.f32.partialorder %v2902, 0.0
  %vm2935 = vcmp.lt.f32.partialorder %v2903, 0.0
  %vm2936 = vcmp.lt.f32.partialorder %v2904, 0.0
  %vm2937 = vcmp.lt.f32.partialorder %v2905, 0.0
  %vm2938 = vcmp.lt.f32.partialorder %v2906, 0.0
  %vm2939 = vcmp.lt.f32.partialorder %v2907, 0.0
  %vm2940 = vcmp.lt.f32.partialorder %v2908, 0.0
  %vm2941 = vcmp.lt.f32.partialorder %v2909, 0.0
  %v2942 = vsel %vm2910, -1.0, 1.0
  %v2943 = vsel %vm2911, -1.0, 1.0
  %v2944 = vsel %vm2912, -1.0, 1.0
  %v2945 = vsel %vm2913, -1.0, 1.0
  %v2946 = vsel %vm2914, -1.0, 1.0
  %v2947 = vsel %vm2915, -1.0, 1.0
  %v2948 = vsel %vm2916, -1.0, 1.0
  %v2949 = vsel %vm2917, -1.0, 1.0
  %v2950 = vsel %vm2918, -1.0, 1.0
  %v2951 = vsel %vm2919, -1.0, 1.0
  %v2952 = vsel %vm2920, -1.0, 1.0
  %v2953 = vsel %vm2921, -1.0, 1.0
  %v2954 = vsel %vm2922, -1.0, 1.0
  %v2955 = vsel %vm2923, -1.0, 1.0
  %v2956 = vsel %vm2924, -1.0, 1.0
  %v2957 = vsel %vm2925, -1.0, 1.0
  %v2958 = vsel %vm2926, -1.0, 1.0
  %v2959 = vsel %vm2927, -1.0, 1.0
  %v2960 = vsel %vm2928, -1.0, 1.0
  %v2961 = vsel %vm2929, -1.0, 1.0
  %v2962 = vsel %vm2930, -1.0, 1.0
  %v2963 = vsel %vm2931, -1.0, 1.0
  %v2964 = vsel %vm2932, -1.0, 1.0
  %v2965 = vsel %vm2933, -1.0, 1.0
  %v2966 = vsel %vm2934, -1.0, 1.0
  %v2967 = vsel %vm2935, -1.0, 1.0
  %v2968 = vsel %vm2936, -1.0, 1.0
  %v2969 = vsel %vm2937, -1.0, 1.0
  %v2970 = vsel %vm2938, -1.0, 1.0
  %v2971 = vsel %vm2939, -1.0, 1.0
  %v2972 = vsel %vm2940, -1.0, 1.0
  %v2973 = vsel %vm2941, -1.0, 1.0
  %v2974 = vand.u32 2147483647, %v2878
  %v2975 = vand.u32 2147483647, %v2879
  %v2976 = vand.u32 2147483647, %v2880
  %v2977 = vand.u32 2147483647, %v2881
  %v2978 = vand.u32 2147483647, %v2882
  %v2979 = vand.u32 2147483647, %v2883
  %v2980 = vand.u32 2147483647, %v2884
  %v2981 = vand.u32 2147483647, %v2885
  %v2982 = vand.u32 2147483647, %v2886
  %v2983 = vand.u32 2147483647, %v2887
  %v2984 = vand.u32 2147483647, %v2888
  %v2985 = vand.u32 2147483647, %v2889
  %v2986 = vand.u32 2147483647, %v2890
  %v2987 = vand.u32 2147483647, %v2891
  %v2988 = vand.u32 2147483647, %v2892
  %v2989 = vand.u32 2147483647, %v2893
  %v2990 = vand.u32 2147483647, %v2894
  %v2991 = vand.u32 2147483647, %v2895
  %v2992 = vand.u32 2147483647, %v2896
  %v2993 = vand.u32 2147483647, %v2897
  %v2994 = vand.u32 2147483647, %v2898
  %v2995 = vand.u32 2147483647, %v2899
  %v2996 = vand.u32 2147483647, %v2900
  %v2997 = vand.u32 2147483647, %v2901
  %v2998 = vand.u32 2147483647, %v2902
  %v2999 = vand.u32 2147483647, %v2903
  %v3000 = vand.u32 2147483647, %v2904
  %v3001 = vand.u32 2147483647, %v2905
  %v3002 = vand.u32 2147483647, %v2906
  %v3003 = vand.u32 2147483647, %v2907
  %v3004 = vand.u32 2147483647, %v2908
  %v3005 = vand.u32 2147483647, %v2909
  %v3006 = vmul.f32 %v2974, 0.3275911
  %v3007 = vmul.f32 %v2975, 0.3275911
  %v3008 = vmul.f32 %v2976, 0.3275911
  %v3009 = vmul.f32 %v2977, 0.3275911
  %v3010 = vmul.f32 %v2978, 0.3275911
  %v3011 = vmul.f32 %v2979, 0.3275911
  %v3012 = vmul.f32 %v2980, 0.3275911
  %v3013 = vmul.f32 %v2981, 0.3275911
  %v3014 = vmul.f32 %v2982, 0.3275911
  %v3015 = vmul.f32 %v2983, 0.3275911
  %v3016 = vmul.f32 %v2984, 0.3275911
  %v3017 = vmul.f32 %v2985, 0.3275911
  %v3018 = vmul.f32 %v2986, 0.3275911
  %v3019 = vmul.f32 %v2987, 0.3275911
  %v3020 = vmul.f32 %v2988, 0.3275911
  %v3021 = vmul.f32 %v2989, 0.3275911
  %v3022 = vmul.f32 %v2990, 0.3275911
  %v3023 = vmul.f32 %v2991, 0.3275911
  %v3024 = vmul.f32 %v2992, 0.3275911
  %v3025 = vmul.f32 %v2993, 0.3275911
  %v3026 = vmul.f32 %v2994, 0.3275911
  %v3027 = vmul.f32 %v2995, 0.3275911
  %v3028 = vmul.f32 %v2996, 0.3275911
  %v3029 = vmul.f32 %v2997, 0.3275911
  %v3030 = vmul.f32 %v2998, 0.3275911
  %v3031 = vmul.f32 %v2999, 0.3275911
  %v3032 = vmul.f32 %v3000, 0.3275911
  %v3033 = vmul.f32 %v3001, 0.3275911
  %v3034 = vmul.f32 %v3002, 0.3275911
  %v3035 = vmul.f32 %v3003, 0.3275911
  %v3036 = vmul.f32 %v3004, 0.3275911
  %v3037 = vmul.f32 %v3005, 0.3275911
  %v3038 = vadd.f32 %v3006, 1.0
  %v3039 = vadd.f32 %v3007, 1.0
  %v3040 = vadd.f32 %v3008, 1.0
  %v3041 = vadd.f32 %v3009, 1.0
  %v3042 = vadd.f32 %v3010, 1.0
  %v3043 = vadd.f32 %v3011, 1.0
  %v3044 = vadd.f32 %v3012, 1.0
  %v3045 = vadd.f32 %v3013, 1.0
  %v3046 = vadd.f32 %v3014, 1.0
  %v3047 = vadd.f32 %v3015, 1.0
  %v3048 = vadd.f32 %v3016, 1.0
  %v3049 = vadd.f32 %v3017, 1.0
  %v3050 = vadd.f32 %v3018, 1.0
  %v3051 = vadd.f32 %v3019, 1.0
  %v3052 = vadd.f32 %v3020, 1.0
  %v3053 = vadd.f32 %v3021, 1.0
  %v3054 = vadd.f32 %v3022, 1.0
  %v3055 = vadd.f32 %v3023, 1.0
  %v3056 = vadd.f32 %v3024, 1.0
  %v3057 = vadd.f32 %v3025, 1.0
  %v3058 = vadd.f32 %v3026, 1.0
  %v3059 = vadd.f32 %v3027, 1.0
  %v3060 = vadd.f32 %v3028, 1.0
  %v3061 = vadd.f32 %v3029, 1.0
  %v3062 = vadd.f32 %v3030, 1.0
  %v3063 = vadd.f32 %v3031, 1.0
  %v3064 = vadd.f32 %v3032, 1.0
  %v3065 = vadd.f32 %v3033, 1.0
  %v3066 = vadd.f32 %v3034, 1.0
  %v3067 = vadd.f32 %v3035, 1.0
  %v3068 = vadd.f32 %v3036, 1.0
  %v3069 = vadd.f32 %v3037, 1.0
  %v3070 = vrcp.pop %v3038
  %v3071 = vmul.f32 %v3038, %v3070
  %v3072 = vsub.f32 1.0, %v3071
  %v3073 = vmul.f32 %v3070, %v3072
  %v3074 = vadd.f32 %v3070, %v3073
  %vm3075 = vweird.f32 %v3038
  %vm3076 = vweird.f32 %v3070
  %vm3077 = vmor %vm3075, %vm3076
  %v3078 = vsel %vm3077, %v3070, %v3074
  %v3079 = vand.u32 2147483647, %v3038
  %vm3080 = vcmp.eq.f32.partialorder %v3079, 8.507059e+37
  %v3081 = vand.u32 %v3038, 2147483648
  %v3082 = vor.u32 1.1754944e-38, %v3081
  %v3083 = vsel %vm3080, %v3082, %v3078
  %v3084 = vmul.f32 1.0, %v3083
  %v3085 = vrcp.pop %v3039
  %v3086 = vmul.f32 %v3039, %v3085
  %v3087 = vsub.f32 1.0, %v3086
  %v3088 = vmul.f32 %v3085, %v3087
  %v3089 = vadd.f32 %v3085, %v3088
  %vm3090 = vweird.f32 %v3039
  %vm3091 = vweird.f32 %v3085
  %vm3092 = vmor %vm3090, %vm3091
  %v3093 = vsel %vm3092, %v3085, %v3089
  %v3094 = vand.u32 2147483647, %v3039
  %vm3095 = vcmp.eq.f32.partialorder %v3094, 8.507059e+37
  %v3096 = vand.u32 %v3039, 2147483648
  %v3097 = vor.u32 1.1754944e-38, %v3096
  %v3098 = vsel %vm3095, %v3097, %v3093
  %v3099 = vmul.f32 1.0, %v3098
  %v3100 = vrcp.pop %v3040
  %v3101 = vmul.f32 %v3040, %v3100
  %v3102 = vsub.f32 1.0, %v3101
  %v3103 = vmul.f32 %v3100, %v3102
  %v3104 = vadd.f32 %v3100, %v3103
  %vm3105 = vweird.f32 %v3040
  %vm3106 = vweird.f32 %v3100
  %vm3107 = vmor %vm3105, %vm3106
  %v3108 = vsel %vm3107, %v3100, %v3104
  %v3109 = vand.u32 2147483647, %v3040
  %vm3110 = vcmp.eq.f32.partialorder %v3109, 8.507059e+37
  %v3111 = vand.u32 %v3040, 2147483648
  %v3112 = vor.u32 1.1754944e-38, %v3111
  %v3113 = vsel %vm3110, %v3112, %v3108
  %v3114 = vmul.f32 1.0, %v3113
  %v3115 = vrcp.pop %v3041
  %v3116 = vmul.f32 %v3041, %v3115
  %v3117 = vsub.f32 1.0, %v3116
  %v3118 = vmul.f32 %v3115, %v3117
  %v3119 = vadd.f32 %v3115, %v3118
  %vm3120 = vweird.f32 %v3041
  %vm3121 = vweird.f32 %v3115
  %vm3122 = vmor %vm3120, %vm3121
  %v3123 = vsel %vm3122, %v3115, %v3119
  %v3124 = vand.u32 2147483647, %v3041
  %vm3125 = vcmp.eq.f32.partialorder %v3124, 8.507059e+37
  %v3126 = vand.u32 %v3041, 2147483648
  %v3127 = vor.u32 1.1754944e-38, %v3126
  %v3128 = vsel %vm3125, %v3127, %v3123
  %v3129 = vmul.f32 1.0, %v3128
  %v3130 = vrcp.pop %v3042
  %v3131 = vmul.f32 %v3042, %v3130
  %v3132 = vsub.f32 1.0, %v3131
  %v3133 = vmul.f32 %v3130, %v3132
  %v3134 = vadd.f32 %v3130, %v3133
  %vm3135 = vweird.f32 %v3042
  %vm3136 = vweird.f32 %v3130
  %vm3137 = vmor %vm3135, %vm3136
  %v3138 = vsel %vm3137, %v3130, %v3134
  %v3139 = vand.u32 2147483647, %v3042
  %vm3140 = vcmp.eq.f32.partialorder %v3139, 8.507059e+37
  %v3141 = vand.u32 %v3042, 2147483648
  %v3142 = vor.u32 1.1754944e-38, %v3141
  %v3143 = vsel %vm3140, %v3142, %v3138
  %v3144 = vmul.f32 1.0, %v3143
  %v3145 = vrcp.pop %v3043
  %v3146 = vmul.f32 %v3043, %v3145
  %v3147 = vsub.f32 1.0, %v3146
  %v3148 = vmul.f32 %v3145, %v3147
  %v3149 = vadd.f32 %v3145, %v3148
  %vm3150 = vweird.f32 %v3043
  %vm3151 = vweird.f32 %v3145
  %vm3152 = vmor %vm3150, %vm3151
  %v3153 = vsel %vm3152, %v3145, %v3149
  %v3154 = vand.u32 2147483647, %v3043
  %vm3155 = vcmp.eq.f32.partialorder %v3154, 8.507059e+37
  %v3156 = vand.u32 %v3043, 2147483648
  %v3157 = vor.u32 1.1754944e-38, %v3156
  %v3158 = vsel %vm3155, %v3157, %v3153
  %v3159 = vmul.f32 1.0, %v3158
  %v3160 = vrcp.pop %v3044
  %v3161 = vmul.f32 %v3044, %v3160
  %v3162 = vsub.f32 1.0, %v3161
  %v3163 = vmul.f32 %v3160, %v3162
  %v3164 = vadd.f32 %v3160, %v3163
  %vm3165 = vweird.f32 %v3044
  %vm3166 = vweird.f32 %v3160
  %vm3167 = vmor %vm3165, %vm3166
  %v3168 = vsel %vm3167, %v3160, %v3164
  %v3169 = vand.u32 2147483647, %v3044
  %vm3170 = vcmp.eq.f32.partialorder %v3169, 8.507059e+37
  %v3171 = vand.u32 %v3044, 2147483648
  %v3172 = vor.u32 1.1754944e-38, %v3171
  %v3173 = vsel %vm3170, %v3172, %v3168
  %v3174 = vmul.f32 1.0, %v3173
  %v3175 = vrcp.pop %v3045
  %v3176 = vmul.f32 %v3045, %v3175
  %v3177 = vsub.f32 1.0, %v3176
  %v3178 = vmul.f32 %v3175, %v3177
  %v3179 = vadd.f32 %v3175, %v3178
  %vm3180 = vweird.f32 %v3045
  %vm3181 = vweird.f32 %v3175
  %vm3182 = vmor %vm3180, %vm3181
  %v3183 = vsel %vm3182, %v3175, %v3179
  %v3184 = vand.u32 2147483647, %v3045
  %vm3185 = vcmp.eq.f32.partialorder %v3184, 8.507059e+37
  %v3186 = vand.u32 %v3045, 2147483648
  %v3187 = vor.u32 1.1754944e-38, %v3186
  %v3188 = vsel %vm3185, %v3187, %v3183
  %v3189 = vmul.f32 1.0, %v3188
  %v3190 = vrcp.pop %v3046
  %v3191 = vmul.f32 %v3046, %v3190
  %v3192 = vsub.f32 1.0, %v3191
  %v3193 = vmul.f32 %v3190, %v3192
  %v3194 = vadd.f32 %v3190, %v3193
  %vm3195 = vweird.f32 %v3046
  %vm3196 = vweird.f32 %v3190
  %vm3197 = vmor %vm3195, %vm3196
  %v3198 = vsel %vm3197, %v3190, %v3194
  %v3199 = vand.u32 2147483647, %v3046
  %vm3200 = vcmp.eq.f32.partialorder %v3199, 8.507059e+37
  %v3201 = vand.u32 %v3046, 2147483648
  %v3202 = vor.u32 1.1754944e-38, %v3201
  %v3203 = vsel %vm3200, %v3202, %v3198
  %v3204 = vmul.f32 1.0, %v3203
  %v3205 = vrcp.pop %v3047
  %v3206 = vmul.f32 %v3047, %v3205
  %v3207 = vsub.f32 1.0, %v3206
  %v3208 = vmul.f32 %v3205, %v3207
  %v3209 = vadd.f32 %v3205, %v3208
  %vm3210 = vweird.f32 %v3047
  %vm3211 = vweird.f32 %v3205
  %vm3212 = vmor %vm3210, %vm3211
  %v3213 = vsel %vm3212, %v3205, %v3209
  %v3214 = vand.u32 2147483647, %v3047
  %vm3215 = vcmp.eq.f32.partialorder %v3214, 8.507059e+37
  %v3216 = vand.u32 %v3047, 2147483648
  %v3217 = vor.u32 1.1754944e-38, %v3216
  %v3218 = vsel %vm3215, %v3217, %v3213
  %v3219 = vmul.f32 1.0, %v3218
  %v3220 = vrcp.pop %v3048
  %v3221 = vmul.f32 %v3048, %v3220
  %v3222 = vsub.f32 1.0, %v3221
  %v3223 = vmul.f32 %v3220, %v3222
  %v3224 = vadd.f32 %v3220, %v3223
  %vm3225 = vweird.f32 %v3048
  %vm3226 = vweird.f32 %v3220
  %vm3227 = vmor %vm3225, %vm3226
  %v3228 = vsel %vm3227, %v3220, %v3224
  %v3229 = vand.u32 2147483647, %v3048
  %vm3230 = vcmp.eq.f32.partialorder %v3229, 8.507059e+37
  %v3231 = vand.u32 %v3048, 2147483648
  %v3232 = vor.u32 1.1754944e-38, %v3231
  %v3233 = vsel %vm3230, %v3232, %v3228
  %v3234 = vmul.f32 1.0, %v3233
  %v3235 = vrcp.pop %v3049
  %v3236 = vmul.f32 %v3049, %v3235
  %v3237 = vsub.f32 1.0, %v3236
  %v3238 = vmul.f32 %v3235, %v3237
  %v3239 = vadd.f32 %v3235, %v3238
  %vm3240 = vweird.f32 %v3049
  %vm3241 = vweird.f32 %v3235
  %vm3242 = vmor %vm3240, %vm3241
  %v3243 = vsel %vm3242, %v3235, %v3239
  %v3244 = vand.u32 2147483647, %v3049
  %vm3245 = vcmp.eq.f32.partialorder %v3244, 8.507059e+37
  %v3246 = vand.u32 %v3049, 2147483648
  %v3247 = vor.u32 1.1754944e-38, %v3246
  %v3248 = vsel %vm3245, %v3247, %v3243
  %v3249 = vmul.f32 1.0, %v3248
  %v3250 = vrcp.pop %v3050
  %v3251 = vmul.f32 %v3050, %v3250
  %v3252 = vsub.f32 1.0, %v3251
  %v3253 = vmul.f32 %v3250, %v3252
  %v3254 = vadd.f32 %v3250, %v3253
  %vm3255 = vweird.f32 %v3050
  %vm3256 = vweird.f32 %v3250
  %vm3257 = vmor %vm3255, %vm3256
  %v3258 = vsel %vm3257, %v3250, %v3254
  %v3259 = vand.u32 2147483647, %v3050
  %vm3260 = vcmp.eq.f32.partialorder %v3259, 8.507059e+37
  %v3261 = vand.u32 %v3050, 2147483648
  %v3262 = vor.u32 1.1754944e-38, %v3261
  %v3263 = vsel %vm3260, %v3262, %v3258
  %v3264 = vmul.f32 1.0, %v3263
  %v3265 = vrcp.pop %v3051
  %v3266 = vmul.f32 %v3051, %v3265
  %v3267 = vsub.f32 1.0, %v3266
  %v3268 = vmul.f32 %v3265, %v3267
  %v3269 = vadd.f32 %v3265, %v3268
  %vm3270 = vweird.f32 %v3051
  %vm3271 = vweird.f32 %v3265
  %vm3272 = vmor %vm3270, %vm3271
  %v3273 = vsel %vm3272, %v3265, %v3269
  %v3274 = vand.u32 2147483647, %v3051
  %vm3275 = vcmp.eq.f32.partialorder %v3274, 8.507059e+37
  %v3276 = vand.u32 %v3051, 2147483648
  %v3277 = vor.u32 1.1754944e-38, %v3276
  %v3278 = vsel %vm3275, %v3277, %v3273
  %v3279 = vmul.f32 1.0, %v3278
  %v3280 = vrcp.pop %v3052
  %v3281 = vmul.f32 %v3052, %v3280
  %v3282 = vsub.f32 1.0, %v3281
  %v3283 = vmul.f32 %v3280, %v3282
  %v3284 = vadd.f32 %v3280, %v3283
  %vm3285 = vweird.f32 %v3052
  %vm3286 = vweird.f32 %v3280
  %vm3287 = vmor %vm3285, %vm3286
  %v3288 = vsel %vm3287, %v3280, %v3284
  %v3289 = vand.u32 2147483647, %v3052
  %vm3290 = vcmp.eq.f32.partialorder %v3289, 8.507059e+37
  %v3291 = vand.u32 %v3052, 2147483648
  %v3292 = vor.u32 1.1754944e-38, %v3291
  %v3293 = vsel %vm3290, %v3292, %v3288
  %v3294 = vmul.f32 1.0, %v3293
  %v3295 = vrcp.pop %v3053
  %v3296 = vmul.f32 %v3053, %v3295
  %v3297 = vsub.f32 1.0, %v3296
  %v3298 = vmul.f32 %v3295, %v3297
  %v3299 = vadd.f32 %v3295, %v3298
  %vm3300 = vweird.f32 %v3053
  %vm3301 = vweird.f32 %v3295
  %vm3302 = vmor %vm3300, %vm3301
  %v3303 = vsel %vm3302, %v3295, %v3299
  %v3304 = vand.u32 2147483647, %v3053
  %vm3305 = vcmp.eq.f32.partialorder %v3304, 8.507059e+37
  %v3306 = vand.u32 %v3053, 2147483648
  %v3307 = vor.u32 1.1754944e-38, %v3306
  %v3308 = vsel %vm3305, %v3307, %v3303
  %v3309 = vmul.f32 1.0, %v3308
  %v3310 = vrcp.pop %v3054
  %v3311 = vmul.f32 %v3054, %v3310
  %v3312 = vsub.f32 1.0, %v3311
  %v3313 = vmul.f32 %v3310, %v3312
  %v3314 = vadd.f32 %v3310, %v3313
  %vm3315 = vweird.f32 %v3054
  %vm3316 = vweird.f32 %v3310
  %vm3317 = vmor %vm3315, %vm3316
  %v3318 = vsel %vm3317, %v3310, %v3314
  %v3319 = vand.u32 2147483647, %v3054
  %vm3320 = vcmp.eq.f32.partialorder %v3319, 8.507059e+37
  %v3321 = vand.u32 %v3054, 2147483648
  %v3322 = vor.u32 1.1754944e-38, %v3321
  %v3323 = vsel %vm3320, %v3322, %v3318
  %v3324 = vmul.f32 1.0, %v3323
  %v3325 = vrcp.pop %v3055
  %v3326 = vmul.f32 %v3055, %v3325
  %v3327 = vsub.f32 1.0, %v3326
  %v3328 = vmul.f32 %v3325, %v3327
  %v3329 = vadd.f32 %v3325, %v3328
  %vm3330 = vweird.f32 %v3055
  %vm3331 = vweird.f32 %v3325
  %vm3332 = vmor %vm3330, %vm3331
  %v3333 = vsel %vm3332, %v3325, %v3329
  %v3334 = vand.u32 2147483647, %v3055
  %vm3335 = vcmp.eq.f32.partialorder %v3334, 8.507059e+37
  %v3336 = vand.u32 %v3055, 2147483648
  %v3337 = vor.u32 1.1754944e-38, %v3336
  %v3338 = vsel %vm3335, %v3337, %v3333
  %v3339 = vmul.f32 1.0, %v3338
  %v3340 = vrcp.pop %v3056
  %v3341 = vmul.f32 %v3056, %v3340
  %v3342 = vsub.f32 1.0, %v3341
  %v3343 = vmul.f32 %v3340, %v3342
  %v3344 = vadd.f32 %v3340, %v3343
  %vm3345 = vweird.f32 %v3056
  %vm3346 = vweird.f32 %v3340
  %vm3347 = vmor %vm3345, %vm3346
  %v3348 = vsel %vm3347, %v3340, %v3344
  %v3349 = vand.u32 2147483647, %v3056
  %vm3350 = vcmp.eq.f32.partialorder %v3349, 8.507059e+37
  %v3351 = vand.u32 %v3056, 2147483648
  %v3352 = vor.u32 1.1754944e-38, %v3351
  %v3353 = vsel %vm3350, %v3352, %v3348
  %v3354 = vmul.f32 1.0, %v3353
  %v3355 = vrcp.pop %v3057
  %v3356 = vmul.f32 %v3057, %v3355
  %v3357 = vsub.f32 1.0, %v3356
  %v3358 = vmul.f32 %v3355, %v3357
  %v3359 = vadd.f32 %v3355, %v3358
  %vm3360 = vweird.f32 %v3057
  %vm3361 = vweird.f32 %v3355
  %vm3362 = vmor %vm3360, %vm3361
  %v3363 = vsel %vm3362, %v3355, %v3359
  %v3364 = vand.u32 2147483647, %v3057
  %vm3365 = vcmp.eq.f32.partialorder %v3364, 8.507059e+37
  %v3366 = vand.u32 %v3057, 2147483648
  %v3367 = vor.u32 1.1754944e-38, %v3366
  %v3368 = vsel %vm3365, %v3367, %v3363
  %v3369 = vmul.f32 1.0, %v3368
  %v3370 = vrcp.pop %v3058
  %v3371 = vmul.f32 %v3058, %v3370
  %v3372 = vsub.f32 1.0, %v3371
  %v3373 = vmul.f32 %v3370, %v3372
  %v3374 = vadd.f32 %v3370, %v3373
  %vm3375 = vweird.f32 %v3058
  %vm3376 = vweird.f32 %v3370
  %vm3377 = vmor %vm3375, %vm3376
  %v3378 = vsel %vm3377, %v3370, %v3374
  %v3379 = vand.u32 2147483647, %v3058
  %vm3380 = vcmp.eq.f32.partialorder %v3379, 8.507059e+37
  %v3381 = vand.u32 %v3058, 2147483648
  %v3382 = vor.u32 1.1754944e-38, %v3381
  %v3383 = vsel %vm3380, %v3382, %v3378
  %v3384 = vmul.f32 1.0, %v3383
  %v3385 = vrcp.pop %v3059
  %v3386 = vmul.f32 %v3059, %v3385
  %v3387 = vsub.f32 1.0, %v3386
  %v3388 = vmul.f32 %v3385, %v3387
  %v3389 = vadd.f32 %v3385, %v3388
  %vm3390 = vweird.f32 %v3059
  %vm3391 = vweird.f32 %v3385
  %vm3392 = vmor %vm3390, %vm3391
  %v3393 = vsel %vm3392, %v3385, %v3389
  %v3394 = vand.u32 2147483647, %v3059
  %vm3395 = vcmp.eq.f32.partialorder %v3394, 8.507059e+37
  %v3396 = vand.u32 %v3059, 2147483648
  %v3397 = vor.u32 1.1754944e-38, %v3396
  %v3398 = vsel %vm3395, %v3397, %v3393
  %v3399 = vmul.f32 1.0, %v3398
  %v3400 = vrcp.pop %v3060
  %v3401 = vmul.f32 %v3060, %v3400
  %v3402 = vsub.f32 1.0, %v3401
  %v3403 = vmul.f32 %v3400, %v3402
  %v3404 = vadd.f32 %v3400, %v3403
  %vm3405 = vweird.f32 %v3060
  %vm3406 = vweird.f32 %v3400
  %vm3407 = vmor %vm3405, %vm3406
  %v3408 = vsel %vm3407, %v3400, %v3404
  %v3409 = vand.u32 2147483647, %v3060
  %vm3410 = vcmp.eq.f32.partialorder %v3409, 8.507059e+37
  %v3411 = vand.u32 %v3060, 2147483648
  %v3412 = vor.u32 1.1754944e-38, %v3411
  %v3413 = vsel %vm3410, %v3412, %v3408
  %v3414 = vmul.f32 1.0, %v3413
  %v3415 = vrcp.pop %v3061
  %v3416 = vmul.f32 %v3061, %v3415
  %v3417 = vsub.f32 1.0, %v3416
  %v3418 = vmul.f32 %v3415, %v3417
  %v3419 = vadd.f32 %v3415, %v3418
  %vm3420 = vweird.f32 %v3061
  %vm3421 = vweird.f32 %v3415
  %vm3422 = vmor %vm3420, %vm3421
  %v3423 = vsel %vm3422, %v3415, %v3419
  %v3424 = vand.u32 2147483647, %v3061
  %vm3425 = vcmp.eq.f32.partialorder %v3424, 8.507059e+37
  %v3426 = vand.u32 %v3061, 2147483648
  %v3427 = vor.u32 1.1754944e-38, %v3426
  %v3428 = vsel %vm3425, %v3427, %v3423
  %v3429 = vmul.f32 1.0, %v3428
  %v3430 = vrcp.pop %v3062
  %v3431 = vmul.f32 %v3062, %v3430
  %v3432 = vsub.f32 1.0, %v3431
  %v3433 = vmul.f32 %v3430, %v3432
  %v3434 = vadd.f32 %v3430, %v3433
  %vm3435 = vweird.f32 %v3062
  %vm3436 = vweird.f32 %v3430
  %vm3437 = vmor %vm3435, %vm3436
  %v3438 = vsel %vm3437, %v3430, %v3434
  %v3439 = vand.u32 2147483647, %v3062
  %vm3440 = vcmp.eq.f32.partialorder %v3439, 8.507059e+37
  %v3441 = vand.u32 %v3062, 2147483648
  %v3442 = vor.u32 1.1754944e-38, %v3441
  %v3443 = vsel %vm3440, %v3442, %v3438
  %v3444 = vmul.f32 1.0, %v3443
  %v3445 = vrcp.pop %v3063
  %v3446 = vmul.f32 %v3063, %v3445
  %v3447 = vsub.f32 1.0, %v3446
  %v3448 = vmul.f32 %v3445, %v3447
  %v3449 = vadd.f32 %v3445, %v3448
  %vm3450 = vweird.f32 %v3063
  %vm3451 = vweird.f32 %v3445
  %vm3452 = vmor %vm3450, %vm3451
  %v3453 = vsel %vm3452, %v3445, %v3449
  %v3454 = vand.u32 2147483647, %v3063
  %vm3455 = vcmp.eq.f32.partialorder %v3454, 8.507059e+37
  %v3456 = vand.u32 %v3063, 2147483648
  %v3457 = vor.u32 1.1754944e-38, %v3456
  %v3458 = vsel %vm3455, %v3457, %v3453
  %v3459 = vmul.f32 1.0, %v3458
  %v3460 = vrcp.pop %v3064
  %v3461 = vmul.f32 %v3064, %v3460
  %v3462 = vsub.f32 1.0, %v3461
  %v3463 = vmul.f32 %v3460, %v3462
  %v3464 = vadd.f32 %v3460, %v3463
  %vm3465 = vweird.f32 %v3064
  %vm3466 = vweird.f32 %v3460
  %vm3467 = vmor %vm3465, %vm3466
  %v3468 = vsel %vm3467, %v3460, %v3464
  %v3469 = vand.u32 2147483647, %v3064
  %vm3470 = vcmp.eq.f32.partialorder %v3469, 8.507059e+37
  %v3471 = vand.u32 %v3064, 2147483648
  %v3472 = vor.u32 1.1754944e-38, %v3471
  %v3473 = vsel %vm3470, %v3472, %v3468
  %v3474 = vmul.f32 1.0, %v3473
  %v3475 = vrcp.pop %v3065
  %v3476 = vmul.f32 %v3065, %v3475
  %v3477 = vsub.f32 1.0, %v3476
  %v3478 = vmul.f32 %v3475, %v3477
  %v3479 = vadd.f32 %v3475, %v3478
  %vm3480 = vweird.f32 %v3065
  %vm3481 = vweird.f32 %v3475
  %vm3482 = vmor %vm3480, %vm3481
  %v3483 = vsel %vm3482, %v3475, %v3479
  %v3484 = vand.u32 2147483647, %v3065
  %vm3485 = vcmp.eq.f32.partialorder %v3484, 8.507059e+37
  %v3486 = vand.u32 %v3065, 2147483648
  %v3487 = vor.u32 1.1754944e-38, %v3486
  %v3488 = vsel %vm3485, %v3487, %v3483
  %v3489 = vmul.f32 1.0, %v3488
  %v3490 = vrcp.pop %v3066
  %v3491 = vmul.f32 %v3066, %v3490
  %v3492 = vsub.f32 1.0, %v3491
  %v3493 = vmul.f32 %v3490, %v3492
  %v3494 = vadd.f32 %v3490, %v3493
  %vm3495 = vweird.f32 %v3066
  %vm3496 = vweird.f32 %v3490
  %vm3497 = vmor %vm3495, %vm3496
  %v3498 = vsel %vm3497, %v3490, %v3494
  %v3499 = vand.u32 2147483647, %v3066
  %vm3500 = vcmp.eq.f32.partialorder %v3499, 8.507059e+37
  %v3501 = vand.u32 %v3066, 2147483648
  %v3502 = vor.u32 1.1754944e-38, %v3501
  %v3503 = vsel %vm3500, %v3502, %v3498
  %v3504 = vmul.f32 1.0, %v3503
  %v3505 = vrcp.pop %v3067
  %v3506 = vmul.f32 %v3067, %v3505
  %v3507 = vsub.f32 1.0, %v3506
  %v3508 = vmul.f32 %v3505, %v3507
  %v3509 = vadd.f32 %v3505, %v3508
  %vm3510 = vweird.f32 %v3067
  %vm3511 = vweird.f32 %v3505
  %vm3512 = vmor %vm3510, %vm3511
  %v3513 = vsel %vm3512, %v3505, %v3509
  %v3514 = vand.u32 2147483647, %v3067
  %vm3515 = vcmp.eq.f32.partialorder %v3514, 8.507059e+37
  %v3516 = vand.u32 %v3067, 2147483648
  %v3517 = vor.u32 1.1754944e-38, %v3516
  %v3518 = vsel %vm3515, %v3517, %v3513
  %v3519 = vmul.f32 1.0, %v3518
  %v3520 = vrcp.pop %v3068
  %v3521 = vmul.f32 %v3068, %v3520
  %v3522 = vsub.f32 1.0, %v3521
  %v3523 = vmul.f32 %v3520, %v3522
  %v3524 = vadd.f32 %v3520, %v3523
  %vm3525 = vweird.f32 %v3068
  %vm3526 = vweird.f32 %v3520
  %vm3527 = vmor %vm3525, %vm3526
  %v3528 = vsel %vm3527, %v3520, %v3524
  %v3529 = vand.u32 2147483647, %v3068
  %vm3530 = vcmp.eq.f32.partialorder %v3529, 8.507059e+37
  %v3531 = vand.u32 %v3068, 2147483648
  %v3532 = vor.u32 1.1754944e-38, %v3531
  %v3533 = vsel %vm3530, %v3532, %v3528
  %v3534 = vmul.f32 1.0, %v3533
  %v3535 = vrcp.pop %v3069
  %v3536 = vmul.f32 %v3069, %v3535
  %v3537 = vsub.f32 1.0, %v3536
  %v3538 = vmul.f32 %v3535, %v3537
  %v3539 = vadd.f32 %v3535, %v3538
  %vm3540 = vweird.f32 %v3069
  %vm3541 = vweird.f32 %v3535
  %vm3542 = vmor %vm3540, %vm3541
  %v3543 = vsel %vm3542, %v3535, %v3539
  %v3544 = vand.u32 2147483647, %v3069
  %vm3545 = vcmp.eq.f32.partialorder %v3544, 8.507059e+37
  %v3546 = vand.u32 %v3069, 2147483648
  %v3547 = vor.u32 1.1754944e-38, %v3546
  %v3548 = vsel %vm3545, %v3547, %v3543
  %v3549 = vmul.f32 1.0, %v3548
  %v3550 = vmul.f32 %v3084, 1.0614054
  %v3551 = vmul.f32 %v3099, 1.0614054
  %v3552 = vmul.f32 %v3114, 1.0614054
  %v3553 = vmul.f32 %v3129, 1.0614054
  %v3554 = vmul.f32 %v3144, 1.0614054
  %v3555 = vmul.f32 %v3159, 1.0614054
  %v3556 = vmul.f32 %v3174, 1.0614054
  %v3557 = vmul.f32 %v3189, 1.0614054
  %v3558 = vmul.f32 %v3204, 1.0614054
  %v3559 = vmul.f32 %v3219, 1.0614054
  %v3560 = vmul.f32 %v3234, 1.0614054
  %v3561 = vmul.f32 %v3249, 1.0614054
  %v3562 = vmul.f32 %v3264, 1.0614054
  %v3563 = vmul.f32 %v3279, 1.0614054
  %v3564 = vmul.f32 %v3294, 1.0614054
  %v3565 = vmul.f32 %v3309, 1.0614054
  %v3566 = vmul.f32 %v3324, 1.0614054
  %v3567 = vmul.f32 %v3339, 1.0614054
  %v3568 = vmul.f32 %v3354, 1.0614054
  %v3569 = vmul.f32 %v3369, 1.0614054
  %v3570 = vmul.f32 %v3384, 1.0614054
  %v3571 = vmul.f32 %v3399, 1.0614054
  %v3572 = vmul.f32 %v3414, 1.0614054
  %v3573 = vmul.f32 %v3429, 1.0614054
  %v3574 = vmul.f32 %v3444, 1.0614054
  %v3575 = vmul.f32 %v3459, 1.0614054
  %v3576 = vmul.f32 %v3474, 1.0614054
  %v3577 = vmul.f32 %v3489, 1.0614054
  %v3578 = vmul.f32 %v3504, 1.0614054
  %v3579 = vmul.f32 %v3519, 1.0614054
  %v3580 = vmul.f32 %v3534, 1.0614054
  %v3581 = vmul.f32 %v3549, 1.0614054
  %v3582 = vadd.f32 %v3550, -1.4531521
  %v3583 = vadd.f32 %v3551, -1.4531521
  %v3584 = vadd.f32 %v3552, -1.4531521
  %v3585 = vadd.f32 %v3553, -1.4531521
  %v3586 = vadd.f32 %v3554, -1.4531521
  %v3587 = vadd.f32 %v3555, -1.4531521
  %v3588 = vadd.f32 %v3556, -1.4531521
  %v3589 = vadd.f32 %v3557, -1.4531521
  %v3590 = vadd.f32 %v3558, -1.4531521
  %v3591 = vadd.f32 %v3559, -1.4531521
  %v3592 = vadd.f32 %v3560, -1.4531521
  %v3593 = vadd.f32 %v3561, -1.4531521
  %v3594 = vadd.f32 %v3562, -1.4531521
  %v3595 = vadd.f32 %v3563, -1.4531521
  %v3596 = vadd.f32 %v3564, -1.4531521
  %v3597 = vadd.f32 %v3565, -1.4531521
  %v3598 = vadd.f32 %v3566, -1.4531521
  %v3599 = vadd.f32 %v3567, -1.4531521
  %v3600 = vadd.f32 %v3568, -1.4531521
  %v3601 = vadd.f32 %v3569, -1.4531521
  %v3602 = vadd.f32 %v3570, -1.4531521
  %v3603 = vadd.f32 %v3571, -1.4531521
  %v3604 = vadd.f32 %v3572, -1.4531521
  %v3605 = vadd.f32 %v3573, -1.4531521
  %v3606 = vadd.f32 %v3574, -1.4531521
  %v3607 = vadd.f32 %v3575, -1.4531521
  %v3608 = vadd.f32 %v3576, -1.4531521
  %v3609 = vadd.f32 %v3577, -1.4531521
  %v3610 = vadd.f32 %v3578, -1.4531521
  %v3611 = vadd.f32 %v3579, -1.4531521
  %v3612 = vadd.f32 %v3580, -1.4531521
  %v3613 = vadd.f32 %v3581, -1.4531521
  %v3614 = vmul.f32 %v3582, %v3084
  %v3615 = vmul.f32 %v3583, %v3099
  %v3616 = vmul.f32 %v3584, %v3114
  %v3617 = vmul.f32 %v3585, %v3129
  %v3618 = vmul.f32 %v3586, %v3144
  %v3619 = vmul.f32 %v3587, %v3159
  %v3620 = vmul.f32 %v3588, %v3174
  %v3621 = vmul.f32 %v3589, %v3189
  %v3622 = vmul.f32 %v3590, %v3204
  %v3623 = vmul.f32 %v3591, %v3219
  %v3624 = vmul.f32 %v3592, %v3234
  %v3625 = vmul.f32 %v3593, %v3249
  %v3626 = vmul.f32 %v3594, %v3264
  %v3627 = vmul.f32 %v3595, %v3279
  %v3628 = vmul.f32 %v3596, %v3294
  %v3629 = vmul.f32 %v3597, %v3309
  %v3630 = vmul.f32 %v3598, %v3324
  %v3631 = vmul.f32 %v3599, %v3339
  %v3632 = vmul.f32 %v3600, %v3354
  %v3633 = vmul.f32 %v3601, %v3369
  %v3634 = vmul.f32 %v3602, %v3384
  %v3635 = vmul.f32 %v3603, %v3399
  %v3636 = vmul.f32 %v3604, %v3414
  %v3637 = vmul.f32 %v3605, %v3429
  %v3638 = vmul.f32 %v3606, %v3444
  %v3639 = vmul.f32 %v3607, %v3459
  %v3640 = vmul.f32 %v3608, %v3474
  %v3641 = vmul.f32 %v3609, %v3489
  %v3642 = vmul.f32 %v3610, %v3504
  %v3643 = vmul.f32 %v3611, %v3519
  %v3644 = vmul.f32 %v3612, %v3534
  %v3645 = vmul.f32 %v3613, %v3549
  %v3646 = vadd.f32 %v3614, 1.4214138
  %v3647 = vadd.f32 %v3615, 1.4214138
  %v3648 = vadd.f32 %v3616, 1.4214138
  %v3649 = vadd.f32 %v3617, 1.4214138
  %v3650 = vadd.f32 %v3618, 1.4214138
  %v3651 = vadd.f32 %v3619, 1.4214138
  %v3652 = vadd.f32 %v3620, 1.4214138
  %v3653 = vadd.f32 %v3621, 1.4214138
  %v3654 = vadd.f32 %v3622, 1.4214138
  %v3655 = vadd.f32 %v3623, 1.4214138
  %v3656 = vadd.f32 %v3624, 1.4214138
  %v3657 = vadd.f32 %v3625, 1.4214138
  %v3658 = vadd.f32 %v3626, 1.4214138
  %v3659 = vadd.f32 %v3627, 1.4214138
  %v3660 = vadd.f32 %v3628, 1.4214138
  %v3661 = vadd.f32 %v3629, 1.4214138
  %v3662 = vadd.f32 %v3630, 1.4214138
  %v3663 = vadd.f32 %v3631, 1.4214138
  %v3664 = vadd.f32 %v3632, 1.4214138
  %v3665 = vadd.f32 %v3633, 1.4214138
  %v3666 = vadd.f32 %v3634, 1.4214138
  %v3667 = vadd.f32 %v3635, 1.4214138
  %v3668 = vadd.f32 %v3636, 1.4214138
  %v3669 = vadd.f32 %v3637, 1.4214138
  %v3670 = vadd.f32 %v3638, 1.4214138
  %v3671 = vadd.f32 %v3639, 1.4214138
  %v3672 = vadd.f32 %v3640, 1.4214138
  %v3673 = vadd.f32 %v3641, 1.4214138
  %v3674 = vadd.f32 %v3642, 1.4214138
  %v3675 = vadd.f32 %v3643, 1.4214138
  %v3676 = vadd.f32 %v3644, 1.4214138
  %v3677 = vadd.f32 %v3645, 1.4214138
  %v3678 = vmul.f32 %v3646, %v3084
  %v3679 = vmul.f32 %v3647, %v3099
  %v3680 = vmul.f32 %v3648, %v3114
  %v3681 = vmul.f32 %v3649, %v3129
  %v3682 = vmul.f32 %v3650, %v3144
  %v3683 = vmul.f32 %v3651, %v3159
  %v3684 = vmul.f32 %v3652, %v3174
  %v3685 = vmul.f32 %v3653, %v3189
  %v3686 = vmul.f32 %v3654, %v3204
  %v3687 = vmul.f32 %v3655, %v3219
  %v3688 = vmul.f32 %v3656, %v3234
  %v3689 = vmul.f32 %v3657, %v3249
  %v3690 = vmul.f32 %v3658, %v3264
  %v3691 = vmul.f32 %v3659, %v3279
  %v3692 = vmul.f32 %v3660, %v3294
  %v3693 = vmul.f32 %v3661, %v3309
  %v3694 = vmul.f32 %v3662, %v3324
  %v3695 = vmul.f32 %v3663, %v3339
  %v3696 = vmul.f32 %v3664, %v3354
  %v3697 = vmul.f32 %v3665, %v3369
  %v3698 = vmul.f32 %v3666, %v3384
  %v3699 = vmul.f32 %v3667, %v3399
  %v3700 = vmul.f32 %v3668, %v3414
  %v3701 = vmul.f32 %v3669, %v3429
  %v3702 = vmul.f32 %v3670, %v3444
  %v3703 = vmul.f32 %v3671, %v3459
  %v3704 = vmul.f32 %v3672, %v3474
  %v3705 = vmul.f32 %v3673, %v3489
  %v3706 = vmul.f32 %v3674, %v3504
  %v3707 = vmul.f32 %v3675, %v3519
  %v3708 = vmul.f32 %v3676, %v3534
  %v3709 = vmul.f32 %v3677, %v3549
  %v3710 = vadd.f32 %v3678, -0.28449672
  %v3711 = vadd.f32 %v3679, -0.28449672
  %v3712 = vadd.f32 %v3680, -0.28449672
  %v3713 = vadd.f32 %v3681, -0.28449672
  %v3714 = vadd.f32 %v3682, -0.28449672
  %v3715 = vadd.f32 %v3683, -0.28449672
  %v3716 = vadd.f32 %v3684, -0.28449672
  %v3717 = vadd.f32 %v3685, -0.28449672
  %v3718 = vadd.f32 %v3686, -0.28449672
  %v3719 = vadd.f32 %v3687, -0.28449672
  %v3720 = vadd.f32 %v3688, -0.28449672
  %v3721 = vadd.f32 %v3689, -0.28449672
  %v3722 = vadd.f32 %v3690, -0.28449672
  %v3723 = vadd.f32 %v3691, -0.28449672
  %v3724 = vadd.f32 %v3692, -0.28449672
  %v3725 = vadd.f32 %v3693, -0.28449672
  %v3726 = vadd.f32 %v3694, -0.28449672
  %v3727 = vadd.f32 %v3695, -0.28449672
  %v3728 = vadd.f32 %v3696, -0.28449672
  %v3729 = vadd.f32 %v3697, -0.28449672
  %v3730 = vadd.f32 %v3698, -0.28449672
  %v3731 = vadd.f32 %v3699, -0.28449672
  %v3732 = vadd.f32 %v3700, -0.28449672
  %v3733 = vadd.f32 %v3701, -0.28449672
  %v3734 = vadd.f32 %v3702, -0.28449672
  %v3735 = vadd.f32 %v3703, -0.28449672
  %v3736 = vadd.f32 %v3704, -0.28449672
  %v3737 = vadd.f32 %v3705, -0.28449672
  %v3738 = vadd.f32 %v3706, -0.28449672
  %v3739 = vadd.f32 %v3707, -0.28449672
  %v3740 = vadd.f32 %v3708, -0.28449672
  %v3741 = vadd.f32 %v3709, -0.28449672
  %v3742 = vmul.f32 %v3710, %v3084
  %v3743 = vmul.f32 %v3711, %v3099
  %v3744 = vmul.f32 %v3712, %v3114
  %v3745 = vmul.f32 %v3713, %v3129
  %v3746 = vmul.f32 %v3714, %v3144
  %v3747 = vmul.f32 %v3715, %v3159
  %v3748 = vmul.f32 %v3716, %v3174
  %v3749 = vmul.f32 %v3717, %v3189
  %v3750 = vmul.f32 %v3718, %v3204
  %v3751 = vmul.f32 %v3719, %v3219
  %v3752 = vmul.f32 %v3720, %v3234
  %v3753 = vmul.f32 %v3721, %v3249
  %v3754 = vmul.f32 %v3722, %v3264
  %v3755 = vmul.f32 %v3723, %v3279
  %v3756 = vmul.f32 %v3724, %v3294
  %v3757 = vmul.f32 %v3725, %v3309
  %v3758 = vmul.f32 %v3726, %v3324
  %v3759 = vmul.f32 %v3727, %v3339
  %v3760 = vmul.f32 %v3728, %v3354
  %v3761 = vmul.f32 %v3729, %v3369
  %v3762 = vmul.f32 %v3730, %v3384
  %v3763 = vmul.f32 %v3731, %v3399
  %v3764 = vmul.f32 %v3732, %v3414
  %v3765 = vmul.f32 %v3733, %v3429
  %v3766 = vmul.f32 %v3734, %v3444
  %v3767 = vmul.f32 %v3735, %v3459
  %v3768 = vmul.f32 %v3736, %v3474
  %v3769 = vmul.f32 %v3737, %v3489
  %v3770 = vmul.f32 %v3738, %v3504
  %v3771 = vmul.f32 %v3739, %v3519
  %v3772 = vmul.f32 %v3740, %v3534
  %v3773 = vmul.f32 %v3741, %v3549
  %v3774 = vadd.f32 %v3742, 0.2548296
  %v3775 = vadd.f32 %v3743, 0.2548296
  %v3776 = vadd.f32 %v3744, 0.2548296
  %v3777 = vadd.f32 %v3745, 0.2548296
  %v3778 = vadd.f32 %v3746, 0.2548296
  %v3779 = vadd.f32 %v3747, 0.2548296
  %v3780 = vadd.f32 %v3748, 0.2548296
  %v3781 = vadd.f32 %v3749, 0.2548296
  %v3782 = vadd.f32 %v3750, 0.2548296
  %v3783 = vadd.f32 %v3751, 0.2548296
  %v3784 = vadd.f32 %v3752, 0.2548296
  %v3785 = vadd.f32 %v3753, 0.2548296
  %v3786 = vadd.f32 %v3754, 0.2548296
  %v3787 = vadd.f32 %v3755, 0.2548296
  %v3788 = vadd.f32 %v3756, 0.2548296
  %v3789 = vadd.f32 %v3757, 0.2548296
  %v3790 = vadd.f32 %v3758, 0.2548296
  %v3791 = vadd.f32 %v3759, 0.2548296
  %v3792 = vadd.f32 %v3760, 0.2548296
  %v3793 = vadd.f32 %v3761, 0.2548296
  %v3794 = vadd.f32 %v3762, 0.2548296
  %v3795 = vadd.f32 %v3763, 0.2548296
  %v3796 = vadd.f32 %v3764, 0.2548296
  %v3797 = vadd.f32 %v3765, 0.2548296
  %v3798 = vadd.f32 %v3766, 0.2548296
  %v3799 = vadd.f32 %v3767, 0.2548296
  %v3800 = vadd.f32 %v3768, 0.2548296
  %v3801 = vadd.f32 %v3769, 0.2548296
  %v3802 = vadd.f32 %v3770, 0.2548296
  %v3803 = vadd.f32 %v3771, 0.2548296
  %v3804 = vadd.f32 %v3772, 0.2548296
  %v3805 = vadd.f32 %v3773, 0.2548296
  %v3806 = vmul.f32 %v3774, %v3084
  %v3807 = vmul.f32 %v3775, %v3099
  %v3808 = vmul.f32 %v3776, %v3114
  %v3809 = vmul.f32 %v3777, %v3129
  %v3810 = vmul.f32 %v3778, %v3144
  %v3811 = vmul.f32 %v3779, %v3159
  %v3812 = vmul.f32 %v3780, %v3174
  %v3813 = vmul.f32 %v3781, %v3189
  %v3814 = vmul.f32 %v3782, %v3204
  %v3815 = vmul.f32 %v3783, %v3219
  %v3816 = vmul.f32 %v3784, %v3234
  %v3817 = vmul.f32 %v3785, %v3249
  %v3818 = vmul.f32 %v3786, %v3264
  %v3819 = vmul.f32 %v3787, %v3279
  %v3820 = vmul.f32 %v3788, %v3294
  %v3821 = vmul.f32 %v3789, %v3309
  %v3822 = vmul.f32 %v3790, %v3324
  %v3823 = vmul.f32 %v3791, %v3339
  %v3824 = vmul.f32 %v3792, %v3354
  %v3825 = vmul.f32 %v3793, %v3369
  %v3826 = vmul.f32 %v3794, %v3384
  %v3827 = vmul.f32 %v3795, %v3399
  %v3828 = vmul.f32 %v3796, %v3414
  %v3829 = vmul.f32 %v3797, %v3429
  %v3830 = vmul.f32 %v3798, %v3444
  %v3831 = vmul.f32 %v3799, %v3459
  %v3832 = vmul.f32 %v3800, %v3474
  %v3833 = vmul.f32 %v3801, %v3489
  %v3834 = vmul.f32 %v3802, %v3504
  %v3835 = vmul.f32 %v3803, %v3519
  %v3836 = vmul.f32 %v3804, %v3534
  %v3837 = vmul.f32 %v3805, %v3549
  %v3838 = vsub.f32 0.0, %v2974
  %v3839 = vsub.f32 0.0, %v2975
  %v3840 = vsub.f32 0.0, %v2976
  %v3841 = vsub.f32 0.0, %v2977
  %v3842 = vsub.f32 0.0, %v2978
  %v3843 = vsub.f32 0.0, %v2979
  %v3844 = vsub.f32 0.0, %v2980
  %v3845 = vsub.f32 0.0, %v2981
  %v3846 = vsub.f32 0.0, %v2982
  %v3847 = vsub.f32 0.0, %v2983
  %v3848 = vsub.f32 0.0, %v2984
  %v3849 = vsub.f32 0.0, %v2985
  %v3850 = vsub.f32 0.0, %v2986
  %v3851 = vsub.f32 0.0, %v2987
  %v3852 = vsub.f32 0.0, %v2988
  %v3853 = vsub.f32 0.0, %v2989
  %v3854 = vsub.f32 0.0, %v2990
  %v3855 = vsub.f32 0.0, %v2991
  %v3856 = vsub.f32 0.0, %v2992
  %v3857 = vsub.f32 0.0, %v2993
  %v3858 = vsub.f32 0.0, %v2994
  %v3859 = vsub.f32 0.0, %v2995
  %v3860 = vsub.f32 0.0, %v2996
  %v3861 = vsub.f32 0.0, %v2997
  %v3862 = vsub.f32 0.0, %v2998
  %v3863 = vsub.f32 0.0, %v2999
  %v3864 = vsub.f32 0.0, %v3000
  %v3865 = vsub.f32 0.0, %v3001
  %v3866 = vsub.f32 0.0, %v3002
  %v3867 = vsub.f32 0.0, %v3003
  %v3868 = vsub.f32 0.0, %v3004
  %v3869 = vsub.f32 0.0, %v3005
  %v3870 = vmul.f32 %v3838, %v2974
  %v3871 = vmul.f32 %v3839, %v2975
  %v3872 = vmul.f32 %v3840, %v2976
  %v3873 = vmul.f32 %v3841, %v2977
  %v3874 = vmul.f32 %v3842, %v2978
  %v3875 = vmul.f32 %v3843, %v2979
  %v3876 = vmul.f32 %v3844, %v2980
  %v3877 = vmul.f32 %v3845, %v2981
  %v3878 = vmul.f32 %v3846, %v2982
  %v3879 = vmul.f32 %v3847, %v2983
  %v3880 = vmul.f32 %v3848, %v2984
  %v3881 = vmul.f32 %v3849, %v2985
  %v3882 = vmul.f32 %v3850, %v2986
  %v3883 = vmul.f32 %v3851, %v2987
  %v3884 = vmul.f32 %v3852, %v2988
  %v3885 = vmul.f32 %v3853, %v2989
  %v3886 = vmul.f32 %v3854, %v2990
  %v3887 = vmul.f32 %v3855, %v2991
  %v3888 = vmul.f32 %v3856, %v2992
  %v3889 = vmul.f32 %v3857, %v2993
  %v3890 = vmul.f32 %v3858, %v2994
  %v3891 = vmul.f32 %v3859, %v2995
  %v3892 = vmul.f32 %v3860, %v2996
  %v3893 = vmul.f32 %v3861, %v2997
  %v3894 = vmul.f32 %v3862, %v2998
  %v3895 = vmul.f32 %v3863, %v2999
  %v3896 = vmul.f32 %v3864, %v3000
  %v3897 = vmul.f32 %v3865, %v3001
  %v3898 = vmul.f32 %v3866, %v3002
  %v3899 = vmul.f32 %v3867, %v3003
  %v3900 = vmul.f32 %v3868, %v3004
  %v3901 = vmul.f32 %v3869, %v3005
  %v3902 = vmul.f32 %v3870, 1.442695
  %v3903 = vpow.pop %v3902
  %v3904 = vmul.f32 %v3871, 1.442695
  %v3905 = vpow.pop %v3904
  %v3906 = vmul.f32 %v3872, 1.442695
  %v3907 = vpow.pop %v3906
  %v3908 = vmul.f32 %v3873, 1.442695
  %v3909 = vpow.pop %v3908
  %v3910 = vmul.f32 %v3874, 1.442695
  %v3911 = vpow.pop %v3910
  %v3912 = vmul.f32 %v3875, 1.442695
  %v3913 = vpow.pop %v3912
  %v3914 = vmul.f32 %v3876, 1.442695
  %v3915 = vpow.pop %v3914
  %v3916 = vmul.f32 %v3877, 1.442695
  %v3917 = vpow.pop %v3916
  %v3918 = vmul.f32 %v3878, 1.442695
  %v3919 = vpow.pop %v3918
  %v3920 = vmul.f32 %v3879, 1.442695
  %v3921 = vpow.pop %v3920
  %v3922 = vmul.f32 %v3880, 1.442695
  %v3923 = vpow.pop %v3922
  %v3924 = vmul.f32 %v3881, 1.442695
  %v3925 = vpow.pop %v3924
  %v3926 = vmul.f32 %v3882, 1.442695
  %v3927 = vpow.pop %v3926
  %v3928 = vmul.f32 %v3883, 1.442695
  %v3929 = vpow.pop %v3928
  %v3930 = vmul.f32 %v3884, 1.442695
  %v3931 = vpow.pop %v3930
  %v3932 = vmul.f32 %v3885, 1.442695
  %v3933 = vpow.pop %v3932
  %v3934 = vmul.f32 %v3886, 1.442695
  %v3935 = vpow.pop %v3934
  %v3936 = vmul.f32 %v3887, 1.442695
  %v3937 = vpow.pop %v3936
  %v3938 = vmul.f32 %v3888, 1.442695
  %v3939 = vpow.pop %v3938
  %v3940 = vmul.f32 %v3889, 1.442695
  %v3941 = vpow.pop %v3940
  %v3942 = vmul.f32 %v3890, 1.442695
  %v3943 = vpow.pop %v3942
  %v3944 = vmul.f32 %v3891, 1.442695
  %v3945 = vpow.pop %v3944
  %v3946 = vmul.f32 %v3892, 1.442695
  %v3947 = vpow.pop %v3946
  %v3948 = vmul.f32 %v3893, 1.442695
  %v3949 = vpow.pop %v3948
  %v3950 = vmul.f32 %v3894, 1.442695
  %v3951 = vpow.pop %v3950
  %v3952 = vmul.f32 %v3895, 1.442695
  %v3953 = vpow.pop %v3952
  %v3954 = vmul.f32 %v3896, 1.442695
  %v3955 = vpow.pop %v3954
  %v3956 = vmul.f32 %v3897, 1.442695
  %v3957 = vpow.pop %v3956
  %v3958 = vmul.f32 %v3898, 1.442695
  %v3959 = vpow.pop %v3958
  %v3960 = vmul.f32 %v3899, 1.442695
  %v3961 = vpow.pop %v3960
  %v3962 = vmul.f32 %v3900, 1.442695
  %v3963 = vpow.pop %v3962
  %v3964 = vmul.f32 %v3901, 1.442695
  %v3965 = vpow.pop %v3964
  %v3966 = vmul.f32 %v3806, %v3903
  %v3967 = vmul.f32 %v3807, %v3905
  %v3968 = vmul.f32 %v3808, %v3907
  %v3969 = vmul.f32 %v3809, %v3909
  %v3970 = vmul.f32 %v3810, %v3911
  %v3971 = vmul.f32 %v3811, %v3913
  %v3972 = vmul.f32 %v3812, %v3915
  %v3973 = vmul.f32 %v3813, %v3917
  %v3974 = vmul.f32 %v3814, %v3919
  %v3975 = vmul.f32 %v3815, %v3921
  %v3976 = vmul.f32 %v3816, %v3923
  %v3977 = vmul.f32 %v3817, %v3925
  %v3978 = vmul.f32 %v3818, %v3927
  %v3979 = vmul.f32 %v3819, %v3929
  %v3980 = vmul.f32 %v3820, %v3931
  %v3981 = vmul.f32 %v3821, %v3933
  %v3982 = vmul.f32 %v3822, %v3935
  %v3983 = vmul.f32 %v3823, %v3937
  %v3984 = vmul.f32 %v3824, %v3939
  %v3985 = vmul.f32 %v3825, %v3941
  %v3986 = vmul.f32 %v3826, %v3943
  %v3987 = vmul.f32 %v3827, %v3945
  %v3988 = vmul.f32 %v3828, %v3947
  %v3989 = vmul.f32 %v3829, %v3949
  %v3990 = vmul.f32 %v3830, %v3951
  %v3991 = vmul.f32 %v3831, %v3953
  %v3992 = vmul.f32 %v3832, %v3955
  %v3993 = vmul.f32 %v3833, %v3957
  %v3994 = vmul.f32 %v3834, %v3959
  %v3995 = vmul.f32 %v3835, %v3961
  %v3996 = vmul.f32 %v3836, %v3963
  %v3997 = vmul.f32 %v3837, %v3965
  %v3998 = vsub.f32 1.0, %v3966
  %v3999 = vsub.f32 1.0, %v3967
  %v4000 = vsub.f32 1.0, %v3968
  %v4001 = vsub.f32 1.0, %v3969
  %v4002 = vsub.f32 1.0, %v3970
  %v4003 = vsub.f32 1.0, %v3971
  %v4004 = vsub.f32 1.0, %v3972
  %v4005 = vsub.f32 1.0, %v3973
  %v4006 = vsub.f32 1.0, %v3974
  %v4007 = vsub.f32 1.0, %v3975
  %v4008 = vsub.f32 1.0, %v3976
  %v4009 = vsub.f32 1.0, %v3977
  %v4010 = vsub.f32 1.0, %v3978
  %v4011 = vsub.f32 1.0, %v3979
  %v4012 = vsub.f32 1.0, %v3980
  %v4013 = vsub.f32 1.0, %v3981
  %v4014 = vsub.f32 1.0, %v3982
  %v4015 = vsub.f32 1.0, %v3983
  %v4016 = vsub.f32 1.0, %v3984
  %v4017 = vsub.f32 1.0, %v3985
  %v4018 = vsub.f32 1.0, %v3986
  %v4019 = vsub.f32 1.0, %v3987
  %v4020 = vsub.f32 1.0, %v3988
  %v4021 = vsub.f32 1.0, %v3989
  %v4022 = vsub.f32 1.0, %v3990
  %v4023 = vsub.f32 1.0, %v3991
  %v4024 = vsub.f32 1.0, %v3992
  %v4025 = vsub.f32 1.0, %v3993
  %v4026 = vsub.f32 1.0, %v3994
  %v4027 = vsub.f32 1.0, %v3995
  %v4028 = vsub.f32 1.0, %v3996
  %v4029 = vsub.f32 1.0, %v3997
  %v4030 = vmul.f32 %v2942, %v3998
  %v4031 = vmul.f32 %v2943, %v3999
  %v4032 = vmul.f32 %v2944, %v4000
  %v4033 = vmul.f32 %v2945, %v4001
  %v4034 = vmul.f32 %v2946, %v4002
  %v4035 = vmul.f32 %v2947, %v4003
  %v4036 = vmul.f32 %v2948, %v4004
  %v4037 = vmul.f32 %v2949, %v4005
  %v4038 = vmul.f32 %v2950, %v4006
  %v4039 = vmul.f32 %v2951, %v4007
  %v4040 = vmul.f32 %v2952, %v4008
  %v4041 = vmul.f32 %v2953, %v4009
  %v4042 = vmul.f32 %v2954, %v4010
  %v4043 = vmul.f32 %v2955, %v4011
  %v4044 = vmul.f32 %v2956, %v4012
  %v4045 = vmul.f32 %v2957, %v4013
  %v4046 = vmul.f32 %v2958, %v4014
  %v4047 = vmul.f32 %v2959, %v4015
  %v4048 = vmul.f32 %v2960, %v4016
  %v4049 = vmul.f32 %v2961, %v4017
  %v4050 = vmul.f32 %v2962, %v4018
  %v4051 = vmul.f32 %v2963, %v4019
  %v4052 = vmul.f32 %v2964, %v4020
  %v4053 = vmul.f32 %v2965, %v4021
  %v4054 = vmul.f32 %v2966, %v4022
  %v4055 = vmul.f32 %v2967, %v4023
  %v4056 = vmul.f32 %v2968, %v4024
  %v4057 = vmul.f32 %v2969, %v4025
  %v4058 = vmul.f32 %v2970, %v4026
  %v4059 = vmul.f32 %v2971, %v4027
  %v4060 = vmul.f32 %v2972, %v4028
  %v4061 = vmul.f32 %v2973, %v4029
  %v4062 = vadd.f32 %v4030, 1.0
  %v4063 = vadd.f32 %v4031, 1.0
  %v4064 = vadd.f32 %v4032, 1.0
  %v4065 = vadd.f32 %v4033, 1.0
  %v4066 = vadd.f32 %v4034, 1.0
  %v4067 = vadd.f32 %v4035, 1.0
  %v4068 = vadd.f32 %v4036, 1.0
  %v4069 = vadd.f32 %v4037, 1.0
  %v4070 = vadd.f32 %v4038, 1.0
  %v4071 = vadd.f32 %v4039, 1.0
  %v4072 = vadd.f32 %v4040, 1.0
  %v4073 = vadd.f32 %v4041, 1.0
  %v4074 = vadd.f32 %v4042, 1.0
  %v4075 = vadd.f32 %v4043, 1.0
  %v4076 = vadd.f32 %v4044, 1.0
  %v4077 = vadd.f32 %v4045, 1.0
  %v4078 = vadd.f32 %v4046, 1.0
  %v4079 = vadd.f32 %v4047, 1.0
  %v4080 = vadd.f32 %v4048, 1.0
  %v4081 = vadd.f32 %v4049, 1.0
  %v4082 = vadd.f32 %v4050, 1.0
  %v4083 = vadd.f32 %v4051, 1.0
  %v4084 = vadd.f32 %v4052, 1.0
  %v4085 = vadd.f32 %v4053, 1.0
  %v4086 = vadd.f32 %v4054, 1.0
  %v4087 = vadd.f32 %v4055, 1.0
  %v4088 = vadd.f32 %v4056, 1.0
  %v4089 = vadd.f32 %v4057, 1.0
  %v4090 = vadd.f32 %v4058, 1.0
  %v4091 = vadd.f32 %v4059, 1.0
  %v4092 = vadd.f32 %v4060, 1.0
  %v4093 = vadd.f32 %v4061, 1.0
  %v4094 = vmul.f32 %v2846, %v4062
  %v4095 = vmul.f32 %v2847, %v4063
  %v4096 = vmul.f32 %v2848, %v4064
  %v4097 = vmul.f32 %v2849, %v4065
  %v4098 = vmul.f32 %v2850, %v4066
  %v4099 = vmul.f32 %v2851, %v4067
  %v4100 = vmul.f32 %v2852, %v4068
  %v4101 = vmul.f32 %v2853, %v4069
  %v4102 = vmul.f32 %v2854, %v4070
  %v4103 = vmul.f32 %v2855, %v4071
  %v4104 = vmul.f32 %v2856, %v4072
  %v4105 = vmul.f32 %v2857, %v4073
  %v4106 = vmul.f32 %v2858, %v4074
  %v4107 = vmul.f32 %v2859, %v4075
  %v4108 = vmul.f32 %v2860, %v4076
  %v4109 = vmul.f32 %v2861, %v4077
  %v4110 = vmul.f32 %v2862, %v4078
  %v4111 = vmul.f32 %v2863, %v4079
  %v4112 = vmul.f32 %v2864, %v4080
  %v4113 = vmul.f32 %v2865, %v4081
  %v4114 = vmul.f32 %v2866, %v4082
  %v4115 = vmul.f32 %v2867, %v4083
  %v4116 = vmul.f32 %v2868, %v4084
  %v4117 = vmul.f32 %v2869, %v4085
  %v4118 = vmul.f32 %v2870, %v4086
  %v4119 = vmul.f32 %v2871, %v4087
  %v4120 = vmul.f32 %v2872, %v4088
  %v4121 = vmul.f32 %v2873, %v4089
  %v4122 = vmul.f32 %v2874, %v4090
  %v4123 = vmul.f32 %v2875, %v4091
  %v4124 = vmul.f32 %v2876, %v4092
  %v4125 = vmul.f32 %v2877, %v4093
  %4126 = vst.msk [vmem:[#allocation2 + $0x20] sm:$0xff] %vm35, %v4094
  %4127 = vst.msk [vmem:[#allocation2 + $0x28] sm:$0xff] %vm35, %v4095
  %4128 = vst.msk [vmem:[#allocation2 + $0x30] sm:$0xff] %vm35, %v4096
  %4129 = vst.msk [vmem:[#allocation2 + $0x38] sm:$0xff] %vm35, %v4097
  %4130 = vst.msk [vmem:[#allocation2 + $0x40] sm:$0xff] %vm35, %v4098
  %4131 = vst.msk [vmem:[#allocation2 + $0x48] sm:$0xff] %vm35, %v4099
  %4132 = vst.msk [vmem:[#allocation2 + $0x50] sm:$0xff] %vm35, %v4100
  %4133 = vst.msk [vmem:[#allocation2 + $0x58] sm:$0xff] %vm35, %v4101
  %4134 = vst.msk [vmem:[#allocation2 + $0x60] sm:$0xff] %vm35, %v4102
  %4135 = vst.msk [vmem:[#allocation2 + $0x68] sm:$0xff] %vm35, %v4103
  %4136 = vst.msk [vmem:[#allocation2 + $0x70] sm:$0xff] %vm35, %v4104
  %4137 = vst.msk [vmem:[#allocation2 + $0x78] sm:$0xff] %vm35, %v4105
  %4138 = vst.msk [vmem:[#allocation2 + $0x80] sm:$0xff] %vm35, %v4106
  %4139 = vst.msk [vmem:[#allocation2 + $0x88] sm:$0xff] %vm35, %v4107
  %4140 = vst.msk [vmem:[#allocation2 + $0x90] sm:$0xff] %vm35, %v4108
  %4141 = vst.msk [vmem:[#allocation2 + $0x98] sm:$0xff] %vm35, %v4109
  %4142 = vst.msk [vmem:[#allocation2 + $0xa0] sm:$0xff] %vm35, %v4110
  %4143 = vst.msk [vmem:[#allocation2 + $0xa8] sm:$0xff] %vm35, %v4111
  %4144 = vst.msk [vmem:[#allocation2 + $0xb0] sm:$0xff] %vm35, %v4112
  %4145 = vst.msk [vmem:[#allocation2 + $0xb8] sm:$0xff] %vm35, %v4113
  %4146 = vst.msk [vmem:[#allocation2 + $0xc0] sm:$0xff] %vm35, %v4114
  %4147 = vst.msk [vmem:[#allocation2 + $0xc8] sm:$0xff] %vm35, %v4115
  %4148 = vst.msk [vmem:[#allocation2 + $0xd0] sm:$0xff] %vm35, %v4116
  %4149 = vst.msk [vmem:[#allocation2 + $0xd8] sm:$0xff] %vm35, %v4117
  %4150 = vst.msk [vmem:[#allocation2 + $0xe0] sm:$0xff] %vm35, %v4118
  %4151 = vst.msk [vmem:[#allocation2 + $0xe8] sm:$0xff] %vm35, %v4119
  %4152 = vst.msk [vmem:[#allocation2 + $0xf0] sm:$0xff] %vm35, %v4120
  %4153 = vst.msk [vmem:[#allocation2 + $0xf8] sm:$0xff] %vm35, %v4121
  %4154 = vst.msk [vmem:[#allocation2 + $0x100] sm:$0xff] %vm35, %v4122
  %4155 = vst.msk [vmem:[#allocation2 + $0x108] sm:$0xff] %vm35, %v4123
  %4156 = vst.msk [vmem:[#allocation2 + $0x110] sm:$0xff] %vm35, %v4124
  %4157 = vst.msk [vmem:[#allocation2 + $0x118] sm:$0xff] %vm35, %v4125
  %v4158 = vld [vmem:[#allocation2 + $0x22] sm:$0xff]
  %v4159 = vld [vmem:[#allocation2 + $0x2a] sm:$0xff]
  %v4160 = vld [vmem:[#allocation2 + $0x32] sm:$0xff]
  %v4161 = vld [vmem:[#allocation2 + $0x3a] sm:$0xff]
  %v4162 = vld [vmem:[#allocation2 + $0x42] sm:$0xff]
  %v4163 = vld [vmem:[#allocation2 + $0x4a] sm:$0xff]
  %v4164 = vld [vmem:[#allocation2 + $0x52] sm:$0xff]
  %v4165 = vld [vmem:[#allocation2 + $0x5a] sm:$0xff]
  %v4166 = vld [vmem:[#allocation2 + $0x62] sm:$0xff]
  %v4167 = vld [vmem:[#allocation2 + $0x6a] sm:$0xff]
  %v4168 = vld [vmem:[#allocation2 + $0x72] sm:$0xff]
  %v4169 = vld [vmem:[#allocation2 + $0x7a] sm:$0xff]
  %v4170 = vld [vmem:[#allocation2 + $0x82] sm:$0xff]
  %v4171 = vld [vmem:[#allocation2 + $0x8a] sm:$0xff]
  %v4172 = vld [vmem:[#allocation2 + $0x92] sm:$0xff]
  %v4173 = vld [vmem:[#allocation2 + $0x9a] sm:$0xff]
  %v4174 = vld [vmem:[#allocation2 + $0xa2] sm:$0xff]
  %v4175 = vld [vmem:[#allocation2 + $0xaa] sm:$0xff]
  %v4176 = vld [vmem:[#allocation2 + $0xb2] sm:$0xff]
  %v4177 = vld [vmem:[#allocation2 + $0xba] sm:$0xff]
  %v4178 = vld [vmem:[#allocation2 + $0xc2] sm:$0xff]
  %v4179 = vld [vmem:[#allocation2 + $0xca] sm:$0xff]
  %v4180 = vld [vmem:[#allocation2 + $0xd2] sm:$0xff]
  %v4181 = vld [vmem:[#allocation2 + $0xda] sm:$0xff]
  %v4182 = vld [vmem:[#allocation2 + $0xe2] sm:$0xff]
  %v4183 = vld [vmem:[#allocation2 + $0xea] sm:$0xff]
  %v4184 = vld [vmem:[#allocation2 + $0xf2] sm:$0xff]
  %v4185 = vld [vmem:[#allocation2 + $0xfa] sm:$0xff]
  %v4186 = vld [vmem:[#allocation2 + $0x102] sm:$0xff]
  %v4187 = vld [vmem:[#allocation2 + $0x10a] sm:$0xff]
  %v4188 = vld [vmem:[#allocation2 + $0x112] sm:$0xff]
  %v4189 = vld [vmem:[#allocation2 + $0x11a] sm:$0xff]
  %vm4190 = vcmp.le.s32.totalorder %v83, 13
  %vm4191 = vcmp.le.s32.totalorder %v84, 13
  %vm4192 = vcmp.le.s32.totalorder %v85, 13
  %vm4193 = vcmp.le.s32.totalorder %v86, 13
  %vm4194 = vcmp.le.s32.totalorder %v87, 13
  %vm4195 = vcmp.le.s32.totalorder %v88, 13
  %vm4196 = vcmp.le.s32.totalorder %v89, 13
  %vm4197 = vcmp.le.s32.totalorder %v90, 13
  %vm4198 = vcmp.le.s32.totalorder %v91, 13
  %vm4199 = vcmp.le.s32.totalorder %v92, 13
  %vm4200 = vcmp.le.s32.totalorder %v93, 13
  %vm4201 = vcmp.le.s32.totalorder %v94, 13
  %vm4202 = vcmp.le.s32.totalorder %v95, 13
  %vm4203 = vcmp.le.s32.totalorder %v96, 13
  %vm4204 = vcmp.le.s32.totalorder %v97, 13
  %vm4205 = vcmp.le.s32.totalorder %v98, 13
  %vm4206 = vcmp.le.s32.totalorder %v99, 13
  %vm4207 = vcmp.le.s32.totalorder %v100, 13
  %vm4208 = vcmp.le.s32.totalorder %v101, 13
  %vm4209 = vcmp.le.s32.totalorder %v102, 13
  %vm4210 = vcmp.le.s32.totalorder %v103, 13
  %vm4211 = vcmp.le.s32.totalorder %v104, 13
  %vm4212 = vcmp.le.s32.totalorder %v105, 13
  %vm4213 = vcmp.le.s32.totalorder %v106, 13
  %vm4214 = vcmp.le.s32.totalorder %v107, 13
  %vm4215 = vcmp.le.s32.totalorder %v108, 13
  %vm4216 = vcmp.le.s32.totalorder %v109, 13
  %vm4217 = vcmp.le.s32.totalorder %v110, 13
  %vm4218 = vcmp.le.s32.totalorder %v111, 13
  %vm4219 = vcmp.le.s32.totalorder %v112, 13
  %vm4220 = vcmp.le.s32.totalorder %v113, 13
  %vm4221 = vcmp.le.s32.totalorder %v114, 13
  %v4222 = vsel %vm4190, 1, 0
  %v4223 = vsel %vm4191, 1, 0
  %v4224 = vsel %vm4192, 1, 0
  %v4225 = vsel %vm4193, 1, 0
  %v4226 = vsel %vm4194, 1, 0
  %v4227 = vsel %vm4195, 1, 0
  %v4228 = vsel %vm4196, 1, 0
  %v4229 = vsel %vm4197, 1, 0
  %v4230 = vsel %vm4198, 1, 0
  %v4231 = vsel %vm4199, 1, 0
  %v4232 = vsel %vm4200, 1, 0
  %v4233 = vsel %vm4201, 1, 0
  %v4234 = vsel %vm4202, 1, 0
  %v4235 = vsel %vm4203, 1, 0
  %v4236 = vsel %vm4204, 1, 0
  %v4237 = vsel %vm4205, 1, 0
  %v4238 = vsel %vm4206, 1, 0
  %v4239 = vsel %vm4207, 1, 0
  %v4240 = vsel %vm4208, 1, 0
  %v4241 = vsel %vm4209, 1, 0
  %v4242 = vsel %vm4210, 1, 0
  %v4243 = vsel %vm4211, 1, 0
  %v4244 = vsel %vm4212, 1, 0
  %v4245 = vsel %vm4213, 1, 0
  %v4246 = vsel %vm4214, 1, 0
  %v4247 = vsel %vm4215, 1, 0
  %v4248 = vsel %vm4216, 1, 0
  %v4249 = vsel %vm4217, 1, 0
  %v4250 = vsel %vm4218, 1, 0
  %v4251 = vsel %vm4219, 1, 0
  %v4252 = vsel %vm4220, 1, 0
  %v4253 = vsel %vm4221, 1, 0
  %4254 = vset.pattern.permute.xlu0 0
  %4255 = vperm.xlu0 %4254, %v4222
  %v4256 = vpop.permute.xlu0 %4255
  %4257 = vset.pattern.permute.xlu0 0
  %4258 = vperm.xlu0 %4257, %v4223
  %v4259 = vpop.permute.xlu0 %4258
  %4260 = vset.pattern.permute.xlu0 0
  %4261 = vperm.xlu0 %4260, %v4224
  %v4262 = vpop.permute.xlu0 %4261
  %4263 = vset.pattern.permute.xlu0 0
  %4264 = vperm.xlu0 %4263, %v4225
  %v4265 = vpop.permute.xlu0 %4264
  %4266 = vset.pattern.permute.xlu0 0
  %4267 = vperm.xlu0 %4266, %v4226
  %v4268 = vpop.permute.xlu0 %4267
  %4269 = vset.pattern.permute.xlu0 0
  %4270 = vperm.xlu0 %4269, %v4227
  %v4271 = vpop.permute.xlu0 %4270
  %4272 = vset.pattern.permute.xlu0 0
  %4273 = vperm.xlu0 %4272, %v4228
  %v4274 = vpop.permute.xlu0 %4273
  %4275 = vset.pattern.permute.xlu0 0
  %4276 = vperm.xlu0 %4275, %v4229
  %v4277 = vpop.permute.xlu0 %4276
  %4278 = vset.pattern.permute.xlu0 0
  %4279 = vperm.xlu0 %4278, %v4230
  %v4280 = vpop.permute.xlu0 %4279
  %4281 = vset.pattern.permute.xlu0 0
  %4282 = vperm.xlu0 %4281, %v4231
  %v4283 = vpop.permute.xlu0 %4282
  %4284 = vset.pattern.permute.xlu0 0
  %4285 = vperm.xlu0 %4284, %v4232
  %v4286 = vpop.permute.xlu0 %4285
  %4287 = vset.pattern.permute.xlu0 0
  %4288 = vperm.xlu0 %4287, %v4233
  %v4289 = vpop.permute.xlu0 %4288
  %4290 = vset.pattern.permute.xlu0 0
  %4291 = vperm.xlu0 %4290, %v4234
  %v4292 = vpop.permute.xlu0 %4291
  %4293 = vset.pattern.permute.xlu0 0
  %4294 = vperm.xlu0 %4293, %v4235
  %v4295 = vpop.permute.xlu0 %4294
  %4296 = vset.pattern.permute.xlu0 0
  %4297 = vperm.xlu0 %4296, %v4236
  %v4298 = vpop.permute.xlu0 %4297
  %4299 = vset.pattern.permute.xlu0 0
  %4300 = vperm.xlu0 %4299, %v4237
  %v4301 = vpop.permute.xlu0 %4300
  %4302 = vset.pattern.permute.xlu0 0
  %4303 = vperm.xlu0 %4302, %v4238
  %v4304 = vpop.permute.xlu0 %4303
  %4305 = vset.pattern.permute.xlu0 0
  %4306 = vperm.xlu0 %4305, %v4239
  %v4307 = vpop.permute.xlu0 %4306
  %4308 = vset.pattern.permute.xlu0 0
  %4309 = vperm.xlu0 %4308, %v4240
  %v4310 = vpop.permute.xlu0 %4309
  %4311 = vset.pattern.permute.xlu0 0
  %4312 = vperm.xlu0 %4311, %v4241
  %v4313 = vpop.permute.xlu0 %4312
  %4314 = vset.pattern.permute.xlu0 0
  %4315 = vperm.xlu0 %4314, %v4242
  %v4316 = vpop.permute.xlu0 %4315
  %4317 = vset.pattern.permute.xlu0 0
  %4318 = vperm.xlu0 %4317, %v4243
  %v4319 = vpop.permute.xlu0 %4318
  %4320 = vset.pattern.permute.xlu0 0
  %4321 = vperm.xlu0 %4320, %v4244
  %v4322 = vpop.permute.xlu0 %4321
  %4323 = vset.pattern.permute.xlu0 0
  %4324 = vperm.xlu0 %4323, %v4245
  %v4325 = vpop.permute.xlu0 %4324
  %4326 = vset.pattern.permute.xlu0 0
  %4327 = vperm.xlu0 %4326, %v4246
  %v4328 = vpop.permute.xlu0 %4327
  %4329 = vset.pattern.permute.xlu0 0
  %4330 = vperm.xlu0 %4329, %v4247
  %v4331 = vpop.permute.xlu0 %4330
  %4332 = vset.pattern.permute.xlu0 0
  %4333 = vperm.xlu0 %4332, %v4248
  %v4334 = vpop.permute.xlu0 %4333
  %4335 = vset.pattern.permute.xlu0 0
  %4336 = vperm.xlu0 %4335, %v4249
  %v4337 = vpop.permute.xlu0 %4336
  %4338 = vset.pattern.permute.xlu0 0
  %4339 = vperm.xlu0 %4338, %v4250
  %v4340 = vpop.permute.xlu0 %4339
  %4341 = vset.pattern.permute.xlu0 0
  %4342 = vperm.xlu0 %4341, %v4251
  %v4343 = vpop.permute.xlu0 %4342
  %4344 = vset.pattern.permute.xlu0 0
  %4345 = vperm.xlu0 %4344, %v4252
  %v4346 = vpop.permute.xlu0 %4345
  %4347 = vset.pattern.permute.xlu0 0
  %4348 = vperm.xlu0 %4347, %v4253
  %v4349 = vpop.permute.xlu0 %4348
  %vm4350 = vcmp.eq.s32.totalorder %v4256, 1
  %vm4351 = vcmp.eq.s32.totalorder %v4259, 1
  %vm4352 = vcmp.eq.s32.totalorder %v4262, 1
  %vm4353 = vcmp.eq.s32.totalorder %v4265, 1
  %vm4354 = vcmp.eq.s32.totalorder %v4268, 1
  %vm4355 = vcmp.eq.s32.totalorder %v4271, 1
  %vm4356 = vcmp.eq.s32.totalorder %v4274, 1
  %vm4357 = vcmp.eq.s32.totalorder %v4277, 1
  %vm4358 = vcmp.eq.s32.totalorder %v4280, 1
  %vm4359 = vcmp.eq.s32.totalorder %v4283, 1
  %vm4360 = vcmp.eq.s32.totalorder %v4286, 1
  %vm4361 = vcmp.eq.s32.totalorder %v4289, 1
  %vm4362 = vcmp.eq.s32.totalorder %v4292, 1
  %vm4363 = vcmp.eq.s32.totalorder %v4295, 1
  %vm4364 = vcmp.eq.s32.totalorder %v4298, 1
  %vm4365 = vcmp.eq.s32.totalorder %v4301, 1
  %vm4366 = vcmp.eq.s32.totalorder %v4304, 1
  %vm4367 = vcmp.eq.s32.totalorder %v4307, 1
  %vm4368 = vcmp.eq.s32.totalorder %v4310, 1
  %vm4369 = vcmp.eq.s32.totalorder %v4313, 1
  %vm4370 = vcmp.eq.s32.totalorder %v4316, 1
  %vm4371 = vcmp.eq.s32.totalorder %v4319, 1
  %vm4372 = vcmp.eq.s32.totalorder %v4322, 1
  %vm4373 = vcmp.eq.s32.totalorder %v4325, 1
  %vm4374 = vcmp.eq.s32.totalorder %v4328, 1
  %vm4375 = vcmp.eq.s32.totalorder %v4331, 1
  %vm4376 = vcmp.eq.s32.totalorder %v4334, 1
  %vm4377 = vcmp.eq.s32.totalorder %v4337, 1
  %vm4378 = vcmp.eq.s32.totalorder %v4340, 1
  %vm4379 = vcmp.eq.s32.totalorder %v4343, 1
  %vm4380 = vcmp.eq.s32.totalorder %v4346, 1
  %vm4381 = vcmp.eq.s32.totalorder %v4349, 1
  %vm4382 = vmand %vm1057, %vm4350
  %vm4383 = vmand %vm1057, %vm4351
  %vm4384 = vmand %vm1057, %vm4352
  %vm4385 = vmand %vm1057, %vm4353
  %vm4386 = vmand %vm1057, %vm4354
  %vm4387 = vmand %vm1057, %vm4355
  %vm4388 = vmand %vm1057, %vm4356
  %vm4389 = vmand %vm1057, %vm4357
  %vm4390 = vmand %vm1057, %vm4358
  %vm4391 = vmand %vm1057, %vm4359
  %vm4392 = vmand %vm1057, %vm4360
  %vm4393 = vmand %vm1057, %vm4361
  %vm4394 = vmand %vm1057, %vm4362
  %vm4395 = vmand %vm1057, %vm4363
  %vm4396 = vmand %vm1057, %vm4364
  %vm4397 = vmand %vm1057, %vm4365
  %vm4398 = vmand %vm1057, %vm4366
  %vm4399 = vmand %vm1057, %vm4367
  %vm4400 = vmand %vm1057, %vm4368
  %vm4401 = vmand %vm1057, %vm4369
  %vm4402 = vmand %vm1057, %vm4370
  %vm4403 = vmand %vm1057, %vm4371
  %vm4404 = vmand %vm1057, %vm4372
  %vm4405 = vmand %vm1057, %vm4373
  %vm4406 = vmand %vm1057, %vm4374
  %vm4407 = vmand %vm1057, %vm4375
  %vm4408 = vmand %vm1057, %vm4376
  %vm4409 = vmand %vm1057, %vm4377
  %vm4410 = vmand %vm1057, %vm4378
  %vm4411 = vmand %vm1057, %vm4379
  %vm4412 = vmand %vm1057, %vm4380
  %vm4413 = vmand %vm1057, %vm4381
  %v4414 = vsel %vm4382, %v4158, 0.0
  %v4415 = vsel %vm4383, %v4159, 0.0
  %v4416 = vsel %vm4384, %v4160, 0.0
  %v4417 = vsel %vm4385, %v4161, 0.0
  %v4418 = vsel %vm4386, %v4162, 0.0
  %v4419 = vsel %vm4387, %v4163, 0.0
  %v4420 = vsel %vm4388, %v4164, 0.0
  %v4421 = vsel %vm4389, %v4165, 0.0
  %v4422 = vsel %vm4390, %v4166, 0.0
  %v4423 = vsel %vm4391, %v4167, 0.0
  %v4424 = vsel %vm4392, %v4168, 0.0
  %v4425 = vsel %vm4393, %v4169, 0.0
  %v4426 = vsel %vm4394, %v4170, 0.0
  %v4427 = vsel %vm4395, %v4171, 0.0
  %v4428 = vsel %vm4396, %v4172, 0.0
  %v4429 = vsel %vm4397, %v4173, 0.0
  %v4430 = vsel %vm4398, %v4174, 0.0
  %v4431 = vsel %vm4399, %v4175, 0.0
  %v4432 = vsel %vm4400, %v4176, 0.0
  %v4433 = vsel %vm4401, %v4177, 0.0
  %v4434 = vsel %vm4402, %v4178, 0.0
  %v4435 = vsel %vm4403, %v4179, 0.0
  %v4436 = vsel %vm4404, %v4180, 0.0
  %v4437 = vsel %vm4405, %v4181, 0.0
  %v4438 = vsel %vm4406, %v4182, 0.0
  %v4439 = vsel %vm4407, %v4183, 0.0
  %v4440 = vsel %vm4408, %v4184, 0.0
  %v4441 = vsel %vm4409, %v4185, 0.0
  %v4442 = vsel %vm4410, %v4186, 0.0
  %v4443 = vsel %vm4411, %v4187, 0.0
  %v4444 = vsel %vm4412, %v4188, 0.0
  %v4445 = vsel %vm4413, %v4189, 0.0
  %v4446 = vadd.f32 %v4414, 0.0
  %v4447 = vadd.f32 %v4415, 0.0
  %v4448 = vadd.f32 %v4416, 0.0
  %v4449 = vadd.f32 %v4417, 0.0
  %v4450 = vadd.f32 %v4418, 0.0
  %v4451 = vadd.f32 %v4419, 0.0
  %v4452 = vadd.f32 %v4420, 0.0
  %v4453 = vadd.f32 %v4421, 0.0
  %v4454 = vadd.f32 %v4422, 0.0
  %v4455 = vadd.f32 %v4423, 0.0
  %v4456 = vadd.f32 %v4424, 0.0
  %v4457 = vadd.f32 %v4425, 0.0
  %v4458 = vadd.f32 %v4426, 0.0
  %v4459 = vadd.f32 %v4427, 0.0
  %v4460 = vadd.f32 %v4428, 0.0
  %v4461 = vadd.f32 %v4429, 0.0
  %v4462 = vadd.f32 %v4430, 0.0
  %v4463 = vadd.f32 %v4431, 0.0
  %v4464 = vadd.f32 %v4432, 0.0
  %v4465 = vadd.f32 %v4433, 0.0
  %v4466 = vadd.f32 %v4434, 0.0
  %v4467 = vadd.f32 %v4435, 0.0
  %v4468 = vadd.f32 %v4436, 0.0
  %v4469 = vadd.f32 %v4437, 0.0
  %v4470 = vadd.f32 %v4438, 0.0
  %v4471 = vadd.f32 %v4439, 0.0
  %v4472 = vadd.f32 %v4440, 0.0
  %v4473 = vadd.f32 %v4441, 0.0
  %v4474 = vadd.f32 %v4442, 0.0
  %v4475 = vadd.f32 %v4443, 0.0
  %v4476 = vadd.f32 %v4444, 0.0
  %v4477 = vadd.f32 %v4445, 0.0
  %v4478 = vld [vmem:[#allocation2 + $0x21] sm:$0xff]
  %v4479 = vld [vmem:[#allocation2 + $0x29] sm:$0xff]
  %v4480 = vld [vmem:[#allocation2 + $0x31] sm:$0xff]
  %v4481 = vld [vmem:[#allocation2 + $0x39] sm:$0xff]
  %v4482 = vld [vmem:[#allocation2 + $0x41] sm:$0xff]
  %v4483 = vld [vmem:[#allocation2 + $0x49] sm:$0xff]
  %v4484 = vld [vmem:[#allocation2 + $0x51] sm:$0xff]
  %v4485 = vld [vmem:[#allocation2 + $0x59] sm:$0xff]
  %v4486 = vld [vmem:[#allocation2 + $0x61] sm:$0xff]
  %v4487 = vld [vmem:[#allocation2 + $0x69] sm:$0xff]
  %v4488 = vld [vmem:[#allocation2 + $0x71] sm:$0xff]
  %v4489 = vld [vmem:[#allocation2 + $0x79] sm:$0xff]
  %v4490 = vld [vmem:[#allocation2 + $0x81] sm:$0xff]
  %v4491 = vld [vmem:[#allocation2 + $0x89] sm:$0xff]
  %v4492 = vld [vmem:[#allocation2 + $0x91] sm:$0xff]
  %v4493 = vld [vmem:[#allocation2 + $0x99] sm:$0xff]
  %v4494 = vld [vmem:[#allocation2 + $0xa1] sm:$0xff]
  %v4495 = vld [vmem:[#allocation2 + $0xa9] sm:$0xff]
  %v4496 = vld [vmem:[#allocation2 + $0xb1] sm:$0xff]
  %v4497 = vld [vmem:[#allocation2 + $0xb9] sm:$0xff]
  %v4498 = vld [vmem:[#allocation2 + $0xc1] sm:$0xff]
  %v4499 = vld [vmem:[#allocation2 + $0xc9] sm:$0xff]
  %v4500 = vld [vmem:[#allocation2 + $0xd1] sm:$0xff]
  %v4501 = vld [vmem:[#allocation2 + $0xd9] sm:$0xff]
  %v4502 = vld [vmem:[#allocation2 + $0xe1] sm:$0xff]
  %v4503 = vld [vmem:[#allocation2 + $0xe9] sm:$0xff]
  %v4504 = vld [vmem:[#allocation2 + $0xf1] sm:$0xff]
  %v4505 = vld [vmem:[#allocation2 + $0xf9] sm:$0xff]
  %v4506 = vld [vmem:[#allocation2 + $0x101] sm:$0xff]
  %v4507 = vld [vmem:[#allocation2 + $0x109] sm:$0xff]
  %v4508 = vld [vmem:[#allocation2 + $0x111] sm:$0xff]
  %v4509 = vld [vmem:[#allocation2 + $0x119] sm:$0xff]
  %vm4510 = vmand %vm1125, %vm2715
  %vm4511 = vmand %vm1125, %vm2716
  %vm4512 = vmand %vm1125, %vm2717
  %vm4513 = vmand %vm1125, %vm2718
  %vm4514 = vmand %vm1125, %vm2719
  %vm4515 = vmand %vm1125, %vm2720
  %vm4516 = vmand %vm1125, %vm2721
  %vm4517 = vmand %vm1125, %vm2722
  %vm4518 = vmand %vm1125, %vm2723
  %vm4519 = vmand %vm1125, %vm2724
  %vm4520 = vmand %vm1125, %vm2725
  %vm4521 = vmand %vm1125, %vm2726
  %vm4522 = vmand %vm1125, %vm2727
  %vm4523 = vmand %vm1125, %vm2728
  %vm4524 = vmand %vm1125, %vm2729
  %vm4525 = vmand %vm1125, %vm2730
  %vm4526 = vmand %vm1125, %vm2731
  %vm4527 = vmand %vm1125, %vm2732
  %vm4528 = vmand %vm1125, %vm2733
  %vm4529 = vmand %vm1125, %vm2734
  %vm4530 = vmand %vm1125, %vm2735
  %vm4531 = vmand %vm1125, %vm2736
  %vm4532 = vmand %vm1125, %vm2737
  %vm4533 = vmand %vm1125, %vm2738
  %vm4534 = vmand %vm1125, %vm2739
  %vm4535 = vmand %vm1125, %vm2740
  %vm4536 = vmand %vm1125, %vm2741
  %vm4537 = vmand %vm1125, %vm2742
  %vm4538 = vmand %vm1125, %vm2743
  %vm4539 = vmand %vm1125, %vm2744
  %vm4540 = vmand %vm1125, %vm2745
  %vm4541 = vmand %vm1125, %vm2746
  %v4542 = vsel %vm4510, %v4478, 0.0
  %v4543 = vsel %vm4511, %v4479, 0.0
  %v4544 = vsel %vm4512, %v4480, 0.0
  %v4545 = vsel %vm4513, %v4481, 0.0
  %v4546 = vsel %vm4514, %v4482, 0.0
  %v4547 = vsel %vm4515, %v4483, 0.0
  %v4548 = vsel %vm4516, %v4484, 0.0
  %v4549 = vsel %vm4517, %v4485, 0.0
  %v4550 = vsel %vm4518, %v4486, 0.0
  %v4551 = vsel %vm4519, %v4487, 0.0
  %v4552 = vsel %vm4520, %v4488, 0.0
  %v4553 = vsel %vm4521, %v4489, 0.0
  %v4554 = vsel %vm4522, %v4490, 0.0
  %v4555 = vsel %vm4523, %v4491, 0.0
  %v4556 = vsel %vm4524, %v4492, 0.0
  %v4557 = vsel %vm4525, %v4493, 0.0
  %v4558 = vsel %vm4526, %v4494, 0.0
  %v4559 = vsel %vm4527, %v4495, 0.0
  %v4560 = vsel %vm4528, %v4496, 0.0
  %v4561 = vsel %vm4529, %v4497, 0.0
  %v4562 = vsel %vm4530, %v4498, 0.0
  %v4563 = vsel %vm4531, %v4499, 0.0
  %v4564 = vsel %vm4532, %v4500, 0.0
  %v4565 = vsel %vm4533, %v4501, 0.0
  %v4566 = vsel %vm4534, %v4502, 0.0
  %v4567 = vsel %vm4535, %v4503, 0.0
  %v4568 = vsel %vm4536, %v4504, 0.0
  %v4569 = vsel %vm4537, %v4505, 0.0
  %v4570 = vsel %vm4538, %v4506, 0.0
  %v4571 = vsel %vm4539, %v4507, 0.0
  %v4572 = vsel %vm4540, %v4508, 0.0
  %v4573 = vsel %vm4541, %v4509, 0.0
  %v4574 = vadd.f32 %v4446, %v4542
  %v4575 = vadd.f32 %v4447, %v4543
  %v4576 = vadd.f32 %v4448, %v4544
  %v4577 = vadd.f32 %v4449, %v4545
  %v4578 = vadd.f32 %v4450, %v4546
  %v4579 = vadd.f32 %v4451, %v4547
  %v4580 = vadd.f32 %v4452, %v4548
  %v4581 = vadd.f32 %v4453, %v4549
  %v4582 = vadd.f32 %v4454, %v4550
  %v4583 = vadd.f32 %v4455, %v4551
  %v4584 = vadd.f32 %v4456, %v4552
  %v4585 = vadd.f32 %v4457, %v4553
  %v4586 = vadd.f32 %v4458, %v4554
  %v4587 = vadd.f32 %v4459, %v4555
  %v4588 = vadd.f32 %v4460, %v4556
  %v4589 = vadd.f32 %v4461, %v4557
  %v4590 = vadd.f32 %v4462, %v4558
  %v4591 = vadd.f32 %v4463, %v4559
  %v4592 = vadd.f32 %v4464, %v4560
  %v4593 = vadd.f32 %v4465, %v4561
  %v4594 = vadd.f32 %v4466, %v4562
  %v4595 = vadd.f32 %v4467, %v4563
  %v4596 = vadd.f32 %v4468, %v4564
  %v4597 = vadd.f32 %v4469, %v4565
  %v4598 = vadd.f32 %v4470, %v4566
  %v4599 = vadd.f32 %v4471, %v4567
  %v4600 = vadd.f32 %v4472, %v4568
  %v4601 = vadd.f32 %v4473, %v4569
  %v4602 = vadd.f32 %v4474, %v4570
  %v4603 = vadd.f32 %v4475, %v4571
  %v4604 = vadd.f32 %v4476, %v4572
  %v4605 = vadd.f32 %v4477, %v4573
  %v4606 = vld [vmem:[#allocation2 + $0x20] sm:$0xff]
  %v4607 = vld [vmem:[#allocation2 + $0x28] sm:$0xff]
  %v4608 = vld [vmem:[#allocation2 + $0x30] sm:$0xff]
  %v4609 = vld [vmem:[#allocation2 + $0x38] sm:$0xff]
  %v4610 = vld [vmem:[#allocation2 + $0x40] sm:$0xff]
  %v4611 = vld [vmem:[#allocation2 + $0x48] sm:$0xff]
  %v4612 = vld [vmem:[#allocation2 + $0x50] sm:$0xff]
  %v4613 = vld [vmem:[#allocation2 + $0x58] sm:$0xff]
  %v4614 = vld [vmem:[#allocation2 + $0x60] sm:$0xff]
  %v4615 = vld [vmem:[#allocation2 + $0x68] sm:$0xff]
  %v4616 = vld [vmem:[#allocation2 + $0x70] sm:$0xff]
  %v4617 = vld [vmem:[#allocation2 + $0x78] sm:$0xff]
  %v4618 = vld [vmem:[#allocation2 + $0x80] sm:$0xff]
  %v4619 = vld [vmem:[#allocation2 + $0x88] sm:$0xff]
  %v4620 = vld [vmem:[#allocation2 + $0x90] sm:$0xff]
  %v4621 = vld [vmem:[#allocation2 + $0x98] sm:$0xff]
  %v4622 = vld [vmem:[#allocation2 + $0xa0] sm:$0xff]
  %v4623 = vld [vmem:[#allocation2 + $0xa8] sm:$0xff]
  %v4624 = vld [vmem:[#allocation2 + $0xb0] sm:$0xff]
  %v4625 = vld [vmem:[#allocation2 + $0xb8] sm:$0xff]
  %v4626 = vld [vmem:[#allocation2 + $0xc0] sm:$0xff]
  %v4627 = vld [vmem:[#allocation2 + $0xc8] sm:$0xff]
  %v4628 = vld [vmem:[#allocation2 + $0xd0] sm:$0xff]
  %v4629 = vld [vmem:[#allocation2 + $0xd8] sm:$0xff]
  %v4630 = vld [vmem:[#allocation2 + $0xe0] sm:$0xff]
  %v4631 = vld [vmem:[#allocation2 + $0xe8] sm:$0xff]
  %v4632 = vld [vmem:[#allocation2 + $0xf0] sm:$0xff]
  %v4633 = vld [vmem:[#allocation2 + $0xf8] sm:$0xff]
  %v4634 = vld [vmem:[#allocation2 + $0x100] sm:$0xff]
  %v4635 = vld [vmem:[#allocation2 + $0x108] sm:$0xff]
  %v4636 = vld [vmem:[#allocation2 + $0x110] sm:$0xff]
  %v4637 = vld [vmem:[#allocation2 + $0x118] sm:$0xff]
  %v4638 = vsel %vm1193, %v4606, 0.0
  %v4639 = vsel %vm1193, %v4607, 0.0
  %v4640 = vsel %vm1193, %v4608, 0.0
  %v4641 = vsel %vm1193, %v4609, 0.0
  %v4642 = vsel %vm1193, %v4610, 0.0
  %v4643 = vsel %vm1193, %v4611, 0.0
  %v4644 = vsel %vm1193, %v4612, 0.0
  %v4645 = vsel %vm1193, %v4613, 0.0
  %v4646 = vsel %vm1193, %v4614, 0.0
  %v4647 = vsel %vm1193, %v4615, 0.0
  %v4648 = vsel %vm1193, %v4616, 0.0
  %v4649 = vsel %vm1193, %v4617, 0.0
  %v4650 = vsel %vm1193, %v4618, 0.0
  %v4651 = vsel %vm1193, %v4619, 0.0
  %v4652 = vsel %vm1193, %v4620, 0.0
  %v4653 = vsel %vm1193, %v4621, 0.0
  %v4654 = vsel %vm1193, %v4622, 0.0
  %v4655 = vsel %vm1193, %v4623, 0.0
  %v4656 = vsel %vm1193, %v4624, 0.0
  %v4657 = vsel %vm1193, %v4625, 0.0
  %v4658 = vsel %vm1193, %v4626, 0.0
  %v4659 = vsel %vm1193, %v4627, 0.0
  %v4660 = vsel %vm1193, %v4628, 0.0
  %v4661 = vsel %vm1193, %v4629, 0.0
  %v4662 = vsel %vm1193, %v4630, 0.0
  %v4663 = vsel %vm1193, %v4631, 0.0
  %v4664 = vsel %vm1193, %v4632, 0.0
  %v4665 = vsel %vm1193, %v4633, 0.0
  %v4666 = vsel %vm1193, %v4634, 0.0
  %v4667 = vsel %vm1193, %v4635, 0.0
  %v4668 = vsel %vm1193, %v4636, 0.0
  %v4669 = vsel %vm1193, %v4637, 0.0
  %v4670 = vadd.f32 %v4574, %v4638
  %v4671 = vadd.f32 %v4575, %v4639
  %v4672 = vadd.f32 %v4576, %v4640
  %v4673 = vadd.f32 %v4577, %v4641
  %v4674 = vadd.f32 %v4578, %v4642
  %v4675 = vadd.f32 %v4579, %v4643
  %v4676 = vadd.f32 %v4580, %v4644
  %v4677 = vadd.f32 %v4581, %v4645
  %v4678 = vadd.f32 %v4582, %v4646
  %v4679 = vadd.f32 %v4583, %v4647
  %v4680 = vadd.f32 %v4584, %v4648
  %v4681 = vadd.f32 %v4585, %v4649
  %v4682 = vadd.f32 %v4586, %v4650
  %v4683 = vadd.f32 %v4587, %v4651
  %v4684 = vadd.f32 %v4588, %v4652
  %v4685 = vadd.f32 %v4589, %v4653
  %v4686 = vadd.f32 %v4590, %v4654
  %v4687 = vadd.f32 %v4591, %v4655
  %v4688 = vadd.f32 %v4592, %v4656
  %v4689 = vadd.f32 %v4593, %v4657
  %v4690 = vadd.f32 %v4594, %v4658
  %v4691 = vadd.f32 %v4595, %v4659
  %v4692 = vadd.f32 %v4596, %v4660
  %v4693 = vadd.f32 %v4597, %v4661
  %v4694 = vadd.f32 %v4598, %v4662
  %v4695 = vadd.f32 %v4599, %v4663
  %v4696 = vadd.f32 %v4600, %v4664
  %v4697 = vadd.f32 %v4601, %v4665
  %v4698 = vadd.f32 %v4602, %v4666
  %v4699 = vadd.f32 %v4603, %v4667
  %v4700 = vadd.f32 %v4604, %v4668
  %v4701 = vadd.f32 %v4605, %v4669
  %v4702 = vld [vmem:[#allocation2 + $0x1f] sm:$0xff]
  %v4703 = vld [vmem:[#allocation2 + $0x27] sm:$0xff]
  %v4704 = vld [vmem:[#allocation2 + $0x2f] sm:$0xff]
  %v4705 = vld [vmem:[#allocation2 + $0x37] sm:$0xff]
  %v4706 = vld [vmem:[#allocation2 + $0x3f] sm:$0xff]
  %v4707 = vld [vmem:[#allocation2 + $0x47] sm:$0xff]
  %v4708 = vld [vmem:[#allocation2 + $0x4f] sm:$0xff]
  %v4709 = vld [vmem:[#allocation2 + $0x57] sm:$0xff]
  %v4710 = vld [vmem:[#allocation2 + $0x5f] sm:$0xff]
  %v4711 = vld [vmem:[#allocation2 + $0x67] sm:$0xff]
  %v4712 = vld [vmem:[#allocation2 + $0x6f] sm:$0xff]
  %v4713 = vld [vmem:[#allocation2 + $0x77] sm:$0xff]
  %v4714 = vld [vmem:[#allocation2 + $0x7f] sm:$0xff]
  %v4715 = vld [vmem:[#allocation2 + $0x87] sm:$0xff]
  %v4716 = vld [vmem:[#allocation2 + $0x8f] sm:$0xff]
  %v4717 = vld [vmem:[#allocation2 + $0x97] sm:$0xff]
  %v4718 = vld [vmem:[#allocation2 + $0x9f] sm:$0xff]
  %v4719 = vld [vmem:[#allocation2 + $0xa7] sm:$0xff]
  %v4720 = vld [vmem:[#allocation2 + $0xaf] sm:$0xff]
  %v4721 = vld [vmem:[#allocation2 + $0xb7] sm:$0xff]
  %v4722 = vld [vmem:[#allocation2 + $0xbf] sm:$0xff]
  %v4723 = vld [vmem:[#allocation2 + $0xc7] sm:$0xff]
  %v4724 = vld [vmem:[#allocation2 + $0xcf] sm:$0xff]
  %v4725 = vld [vmem:[#allocation2 + $0xd7] sm:$0xff]
  %v4726 = vld [vmem:[#allocation2 + $0xdf] sm:$0xff]
  %v4727 = vld [vmem:[#allocation2 + $0xe7] sm:$0xff]
  %v4728 = vld [vmem:[#allocation2 + $0xef] sm:$0xff]
  %v4729 = vld [vmem:[#allocation2 + $0xf7] sm:$0xff]
  %v4730 = vld [vmem:[#allocation2 + $0xff] sm:$0xff]
  %v4731 = vld [vmem:[#allocation2 + $0x107] sm:$0xff]
  %v4732 = vld [vmem:[#allocation2 + $0x10f] sm:$0xff]
  %v4733 = vld [vmem:[#allocation2 + $0x117] sm:$0xff]
  %vm4734 = vmand %vm1261, %vm1997
  %vm4735 = vmand %vm1261, %vm1998
  %vm4736 = vmand %vm1261, %vm1999
  %vm4737 = vmand %vm1261, %vm2000
  %vm4738 = vmand %vm1261, %vm2001
  %vm4739 = vmand %vm1261, %vm2002
  %vm4740 = vmand %vm1261, %vm2003
  %vm4741 = vmand %vm1261, %vm2004
  %vm4742 = vmand %vm1261, %vm2005
  %vm4743 = vmand %vm1261, %vm2006
  %vm4744 = vmand %vm1261, %vm2007
  %vm4745 = vmand %vm1261, %vm2008
  %vm4746 = vmand %vm1261, %vm2009
  %vm4747 = vmand %vm1261, %vm2010
  %vm4748 = vmand %vm1261, %vm2011
  %vm4749 = vmand %vm1261, %vm2012
  %vm4750 = vmand %vm1261, %vm2013
  %vm4751 = vmand %vm1261, %vm2014
  %vm4752 = vmand %vm1261, %vm2015
  %vm4753 = vmand %vm1261, %vm2016
  %vm4754 = vmand %vm1261, %vm2017
  %vm4755 = vmand %vm1261, %vm2018
  %vm4756 = vmand %vm1261, %vm2019
  %vm4757 = vmand %vm1261, %vm2020
  %vm4758 = vmand %vm1261, %vm2021
  %vm4759 = vmand %vm1261, %vm2022
  %vm4760 = vmand %vm1261, %vm2023
  %vm4761 = vmand %vm1261, %vm2024
  %vm4762 = vmand %vm1261, %vm2025
  %vm4763 = vmand %vm1261, %vm2026
  %vm4764 = vmand %vm1261, %vm2027
  %vm4765 = vmand %vm1261, %vm2028
  %v4766 = vsel %vm4734, %v4702, 0.0
  %v4767 = vsel %vm4735, %v4703, 0.0
  %v4768 = vsel %vm4736, %v4704, 0.0
  %v4769 = vsel %vm4737, %v4705, 0.0
  %v4770 = vsel %vm4738, %v4706, 0.0
  %v4771 = vsel %vm4739, %v4707, 0.0
  %v4772 = vsel %vm4740, %v4708, 0.0
  %v4773 = vsel %vm4741, %v4709, 0.0
  %v4774 = vsel %vm4742, %v4710, 0.0
  %v4775 = vsel %vm4743, %v4711, 0.0
  %v4776 = vsel %vm4744, %v4712, 0.0
  %v4777 = vsel %vm4745, %v4713, 0.0
  %v4778 = vsel %vm4746, %v4714, 0.0
  %v4779 = vsel %vm4747, %v4715, 0.0
  %v4780 = vsel %vm4748, %v4716, 0.0
  %v4781 = vsel %vm4749, %v4717, 0.0
  %v4782 = vsel %vm4750, %v4718, 0.0
  %v4783 = vsel %vm4751, %v4719, 0.0
  %v4784 = vsel %vm4752, %v4720, 0.0
  %v4785 = vsel %vm4753, %v4721, 0.0
  %v4786 = vsel %vm4754, %v4722, 0.0
  %v4787 = vsel %vm4755, %v4723, 0.0
  %v4788 = vsel %vm4756, %v4724, 0.0
  %v4789 = vsel %vm4757, %v4725, 0.0
  %v4790 = vsel %vm4758, %v4726, 0.0
  %v4791 = vsel %vm4759, %v4727, 0.0
  %v4792 = vsel %vm4760, %v4728, 0.0
  %v4793 = vsel %vm4761, %v4729, 0.0
  %v4794 = vsel %vm4762, %v4730, 0.0
  %v4795 = vsel %vm4763, %v4731, 0.0
  %v4796 = vsel %vm4764, %v4732, 0.0
  %v4797 = vsel %vm4765, %v4733, 0.0
  %v4798 = vadd.f32 %v4670, %v4766
  %v4799 = vadd.f32 %v4671, %v4767
  %v4800 = vadd.f32 %v4672, %v4768
  %v4801 = vadd.f32 %v4673, %v4769
  %v4802 = vadd.f32 %v4674, %v4770
  %v4803 = vadd.f32 %v4675, %v4771
  %v4804 = vadd.f32 %v4676, %v4772
  %v4805 = vadd.f32 %v4677, %v4773
  %v4806 = vadd.f32 %v4678, %v4774
  %v4807 = vadd.f32 %v4679, %v4775
  %v4808 = vadd.f32 %v4680, %v4776
  %v4809 = vadd.f32 %v4681, %v4777
  %v4810 = vadd.f32 %v4682, %v4778
  %v4811 = vadd.f32 %v4683, %v4779
  %v4812 = vadd.f32 %v4684, %v4780
  %v4813 = vadd.f32 %v4685, %v4781
  %v4814 = vadd.f32 %v4686, %v4782
  %v4815 = vadd.f32 %v4687, %v4783
  %v4816 = vadd.f32 %v4688, %v4784
  %v4817 = vadd.f32 %v4689, %v4785
  %v4818 = vadd.f32 %v4690, %v4786
  %v4819 = vadd.f32 %v4691, %v4787
  %v4820 = vadd.f32 %v4692, %v4788
  %v4821 = vadd.f32 %v4693, %v4789
  %v4822 = vadd.f32 %v4694, %v4790
  %v4823 = vadd.f32 %v4695, %v4791
  %v4824 = vadd.f32 %v4696, %v4792
  %v4825 = vadd.f32 %v4697, %v4793
  %v4826 = vadd.f32 %v4698, %v4794
  %v4827 = vadd.f32 %v4699, %v4795
  %v4828 = vadd.f32 %v4700, %v4796
  %v4829 = vadd.f32 %v4701, %v4797
  %v4830 = vld [vmem:[#allocation2 + $0x1e] sm:$0xff]
  %v4831 = vld [vmem:[#allocation2 + $0x26] sm:$0xff]
  %v4832 = vld [vmem:[#allocation2 + $0x2e] sm:$0xff]
  %v4833 = vld [vmem:[#allocation2 + $0x36] sm:$0xff]
  %v4834 = vld [vmem:[#allocation2 + $0x3e] sm:$0xff]
  %v4835 = vld [vmem:[#allocation2 + $0x46] sm:$0xff]
  %v4836 = vld [vmem:[#allocation2 + $0x4e] sm:$0xff]
  %v4837 = vld [vmem:[#allocation2 + $0x56] sm:$0xff]
  %v4838 = vld [vmem:[#allocation2 + $0x5e] sm:$0xff]
  %v4839 = vld [vmem:[#allocation2 + $0x66] sm:$0xff]
  %v4840 = vld [vmem:[#allocation2 + $0x6e] sm:$0xff]
  %v4841 = vld [vmem:[#allocation2 + $0x76] sm:$0xff]
  %v4842 = vld [vmem:[#allocation2 + $0x7e] sm:$0xff]
  %v4843 = vld [vmem:[#allocation2 + $0x86] sm:$0xff]
  %v4844 = vld [vmem:[#allocation2 + $0x8e] sm:$0xff]
  %v4845 = vld [vmem:[#allocation2 + $0x96] sm:$0xff]
  %v4846 = vld [vmem:[#allocation2 + $0x9e] sm:$0xff]
  %v4847 = vld [vmem:[#allocation2 + $0xa6] sm:$0xff]
  %v4848 = vld [vmem:[#allocation2 + $0xae] sm:$0xff]
  %v4849 = vld [vmem:[#allocation2 + $0xb6] sm:$0xff]
  %v4850 = vld [vmem:[#allocation2 + $0xbe] sm:$0xff]
  %v4851 = vld [vmem:[#allocation2 + $0xc6] sm:$0xff]
  %v4852 = vld [vmem:[#allocation2 + $0xce] sm:$0xff]
  %v4853 = vld [vmem:[#allocation2 + $0xd6] sm:$0xff]
  %v4854 = vld [vmem:[#allocation2 + $0xde] sm:$0xff]
  %v4855 = vld [vmem:[#allocation2 + $0xe6] sm:$0xff]
  %v4856 = vld [vmem:[#allocation2 + $0xee] sm:$0xff]
  %v4857 = vld [vmem:[#allocation2 + $0xf6] sm:$0xff]
  %v4858 = vld [vmem:[#allocation2 + $0xfe] sm:$0xff]
  %v4859 = vld [vmem:[#allocation2 + $0x106] sm:$0xff]
  %v4860 = vld [vmem:[#allocation2 + $0x10e] sm:$0xff]
  %v4861 = vld [vmem:[#allocation2 + $0x116] sm:$0xff]
  %vm4862 = vcmp.ge.s32.totalorder %v83, 2
  %vm4863 = vcmp.ge.s32.totalorder %v84, 2
  %vm4864 = vcmp.ge.s32.totalorder %v85, 2
  %vm4865 = vcmp.ge.s32.totalorder %v86, 2
  %vm4866 = vcmp.ge.s32.totalorder %v87, 2
  %vm4867 = vcmp.ge.s32.totalorder %v88, 2
  %vm4868 = vcmp.ge.s32.totalorder %v89, 2
  %vm4869 = vcmp.ge.s32.totalorder %v90, 2
  %vm4870 = vcmp.ge.s32.totalorder %v91, 2
  %vm4871 = vcmp.ge.s32.totalorder %v92, 2
  %vm4872 = vcmp.ge.s32.totalorder %v93, 2
  %vm4873 = vcmp.ge.s32.totalorder %v94, 2
  %vm4874 = vcmp.ge.s32.totalorder %v95, 2
  %vm4875 = vcmp.ge.s32.totalorder %v96, 2
  %vm4876 = vcmp.ge.s32.totalorder %v97, 2
  %vm4877 = vcmp.ge.s32.totalorder %v98, 2
  %vm4878 = vcmp.ge.s32.totalorder %v99, 2
  %vm4879 = vcmp.ge.s32.totalorder %v100, 2
  %vm4880 = vcmp.ge.s32.totalorder %v101, 2
  %vm4881 = vcmp.ge.s32.totalorder %v102, 2
  %vm4882 = vcmp.ge.s32.totalorder %v103, 2
  %vm4883 = vcmp.ge.s32.totalorder %v104, 2
  %vm4884 = vcmp.ge.s32.totalorder %v105, 2
  %vm4885 = vcmp.ge.s32.totalorder %v106, 2
  %vm4886 = vcmp.ge.s32.totalorder %v107, 2
  %vm4887 = vcmp.ge.s32.totalorder %v108, 2
  %vm4888 = vcmp.ge.s32.totalorder %v109, 2
  %vm4889 = vcmp.ge.s32.totalorder %v110, 2
  %vm4890 = vcmp.ge.s32.totalorder %v111, 2
  %vm4891 = vcmp.ge.s32.totalorder %v112, 2
  %vm4892 = vcmp.ge.s32.totalorder %v113, 2
  %vm4893 = vcmp.ge.s32.totalorder %v114, 2
  %v4894 = vsel %vm4862, 1, 0
  %v4895 = vsel %vm4863, 1, 0
  %v4896 = vsel %vm4864, 1, 0
  %v4897 = vsel %vm4865, 1, 0
  %v4898 = vsel %vm4866, 1, 0
  %v4899 = vsel %vm4867, 1, 0
  %v4900 = vsel %vm4868, 1, 0
  %v4901 = vsel %vm4869, 1, 0
  %v4902 = vsel %vm4870, 1, 0
  %v4903 = vsel %vm4871, 1, 0
  %v4904 = vsel %vm4872, 1, 0
  %v4905 = vsel %vm4873, 1, 0
  %v4906 = vsel %vm4874, 1, 0
  %v4907 = vsel %vm4875, 1, 0
  %v4908 = vsel %vm4876, 1, 0
  %v4909 = vsel %vm4877, 1, 0
  %v4910 = vsel %vm4878, 1, 0
  %v4911 = vsel %vm4879, 1, 0
  %v4912 = vsel %vm4880, 1, 0
  %v4913 = vsel %vm4881, 1, 0
  %v4914 = vsel %vm4882, 1, 0
  %v4915 = vsel %vm4883, 1, 0
  %v4916 = vsel %vm4884, 1, 0
  %v4917 = vsel %vm4885, 1, 0
  %v4918 = vsel %vm4886, 1, 0
  %v4919 = vsel %vm4887, 1, 0
  %v4920 = vsel %vm4888, 1, 0
  %v4921 = vsel %vm4889, 1, 0
  %v4922 = vsel %vm4890, 1, 0
  %v4923 = vsel %vm4891, 1, 0
  %v4924 = vsel %vm4892, 1, 0
  %v4925 = vsel %vm4893, 1, 0
  %4926 = vset.pattern.permute.xlu0 0
  %4927 = vperm.xlu0 %4926, %v4894
  %v4928 = vpop.permute.xlu0 %4927
  %4929 = vset.pattern.permute.xlu0 0
  %4930 = vperm.xlu0 %4929, %v4895
  %v4931 = vpop.permute.xlu0 %4930
  %4932 = vset.pattern.permute.xlu0 0
  %4933 = vperm.xlu0 %4932, %v4896
  %v4934 = vpop.permute.xlu0 %4933
  %4935 = vset.pattern.permute.xlu0 0
  %4936 = vperm.xlu0 %4935, %v4897
  %v4937 = vpop.permute.xlu0 %4936
  %4938 = vset.pattern.permute.xlu0 0
  %4939 = vperm.xlu0 %4938, %v4898
  %v4940 = vpop.permute.xlu0 %4939
  %4941 = vset.pattern.permute.xlu0 0
  %4942 = vperm.xlu0 %4941, %v4899
  %v4943 = vpop.permute.xlu0 %4942
  %4944 = vset.pattern.permute.xlu0 0
  %4945 = vperm.xlu0 %4944, %v4900
  %v4946 = vpop.permute.xlu0 %4945
  %4947 = vset.pattern.permute.xlu0 0
  %4948 = vperm.xlu0 %4947, %v4901
  %v4949 = vpop.permute.xlu0 %4948
  %4950 = vset.pattern.permute.xlu0 0
  %4951 = vperm.xlu0 %4950, %v4902
  %v4952 = vpop.permute.xlu0 %4951
  %4953 = vset.pattern.permute.xlu0 0
  %4954 = vperm.xlu0 %4953, %v4903
  %v4955 = vpop.permute.xlu0 %4954
  %4956 = vset.pattern.permute.xlu0 0
  %4957 = vperm.xlu0 %4956, %v4904
  %v4958 = vpop.permute.xlu0 %4957
  %4959 = vset.pattern.permute.xlu0 0
  %4960 = vperm.xlu0 %4959, %v4905
  %v4961 = vpop.permute.xlu0 %4960
  %4962 = vset.pattern.permute.xlu0 0
  %4963 = vperm.xlu0 %4962, %v4906
  %v4964 = vpop.permute.xlu0 %4963
  %4965 = vset.pattern.permute.xlu0 0
  %4966 = vperm.xlu0 %4965, %v4907
  %v4967 = vpop.permute.xlu0 %4966
  %4968 = vset.pattern.permute.xlu0 0
  %4969 = vperm.xlu0 %4968, %v4908
  %v4970 = vpop.permute.xlu0 %4969
  %4971 = vset.pattern.permute.xlu0 0
  %4972 = vperm.xlu0 %4971, %v4909
  %v4973 = vpop.permute.xlu0 %4972
  %4974 = vset.pattern.permute.xlu0 0
  %4975 = vperm.xlu0 %4974, %v4910
  %v4976 = vpop.permute.xlu0 %4975
  %4977 = vset.pattern.permute.xlu0 0
  %4978 = vperm.xlu0 %4977, %v4911
  %v4979 = vpop.permute.xlu0 %4978
  %4980 = vset.pattern.permute.xlu0 0
  %4981 = vperm.xlu0 %4980, %v4912
  %v4982 = vpop.permute.xlu0 %4981
  %4983 = vset.pattern.permute.xlu0 0
  %4984 = vperm.xlu0 %4983, %v4913
  %v4985 = vpop.permute.xlu0 %4984
  %4986 = vset.pattern.permute.xlu0 0
  %4987 = vperm.xlu0 %4986, %v4914
  %v4988 = vpop.permute.xlu0 %4987
  %4989 = vset.pattern.permute.xlu0 0
  %4990 = vperm.xlu0 %4989, %v4915
  %v4991 = vpop.permute.xlu0 %4990
  %4992 = vset.pattern.permute.xlu0 0
  %4993 = vperm.xlu0 %4992, %v4916
  %v4994 = vpop.permute.xlu0 %4993
  %4995 = vset.pattern.permute.xlu0 0
  %4996 = vperm.xlu0 %4995, %v4917
  %v4997 = vpop.permute.xlu0 %4996
  %4998 = vset.pattern.permute.xlu0 0
  %4999 = vperm.xlu0 %4998, %v4918
  %v5000 = vpop.permute.xlu0 %4999
  %5001 = vset.pattern.permute.xlu0 0
  %5002 = vperm.xlu0 %5001, %v4919
  %v5003 = vpop.permute.xlu0 %5002
  %5004 = vset.pattern.permute.xlu0 0
  %5005 = vperm.xlu0 %5004, %v4920
  %v5006 = vpop.permute.xlu0 %5005
  %5007 = vset.pattern.permute.xlu0 0
  %5008 = vperm.xlu0 %5007, %v4921
  %v5009 = vpop.permute.xlu0 %5008
  %5010 = vset.pattern.permute.xlu0 0
  %5011 = vperm.xlu0 %5010, %v4922
  %v5012 = vpop.permute.xlu0 %5011
  %5013 = vset.pattern.permute.xlu0 0
  %5014 = vperm.xlu0 %5013, %v4923
  %v5015 = vpop.permute.xlu0 %5014
  %5016 = vset.pattern.permute.xlu0 0
  %5017 = vperm.xlu0 %5016, %v4924
  %v5018 = vpop.permute.xlu0 %5017
  %5019 = vset.pattern.permute.xlu0 0
  %5020 = vperm.xlu0 %5019, %v4925
  %v5021 = vpop.permute.xlu0 %5020
  %vm5022 = vcmp.eq.s32.totalorder %v4928, 1
  %vm5023 = vcmp.eq.s32.totalorder %v4931, 1
  %vm5024 = vcmp.eq.s32.totalorder %v4934, 1
  %vm5025 = vcmp.eq.s32.totalorder %v4937, 1
  %vm5026 = vcmp.eq.s32.totalorder %v4940, 1
  %vm5027 = vcmp.eq.s32.totalorder %v4943, 1
  %vm5028 = vcmp.eq.s32.totalorder %v4946, 1
  %vm5029 = vcmp.eq.s32.totalorder %v4949, 1
  %vm5030 = vcmp.eq.s32.totalorder %v4952, 1
  %vm5031 = vcmp.eq.s32.totalorder %v4955, 1
  %vm5032 = vcmp.eq.s32.totalorder %v4958, 1
  %vm5033 = vcmp.eq.s32.totalorder %v4961, 1
  %vm5034 = vcmp.eq.s32.totalorder %v4964, 1
  %vm5035 = vcmp.eq.s32.totalorder %v4967, 1
  %vm5036 = vcmp.eq.s32.totalorder %v4970, 1
  %vm5037 = vcmp.eq.s32.totalorder %v4973, 1
  %vm5038 = vcmp.eq.s32.totalorder %v4976, 1
  %vm5039 = vcmp.eq.s32.totalorder %v4979, 1
  %vm5040 = vcmp.eq.s32.totalorder %v4982, 1
  %vm5041 = vcmp.eq.s32.totalorder %v4985, 1
  %vm5042 = vcmp.eq.s32.totalorder %v4988, 1
  %vm5043 = vcmp.eq.s32.totalorder %v4991, 1
  %vm5044 = vcmp.eq.s32.totalorder %v4994, 1
  %vm5045 = vcmp.eq.s32.totalorder %v4997, 1
  %vm5046 = vcmp.eq.s32.totalorder %v5000, 1
  %vm5047 = vcmp.eq.s32.totalorder %v5003, 1
  %vm5048 = vcmp.eq.s32.totalorder %v5006, 1
  %vm5049 = vcmp.eq.s32.totalorder %v5009, 1
  %vm5050 = vcmp.eq.s32.totalorder %v5012, 1
  %vm5051 = vcmp.eq.s32.totalorder %v5015, 1
  %vm5052 = vcmp.eq.s32.totalorder %v5018, 1
  %vm5053 = vcmp.eq.s32.totalorder %v5021, 1
  %vm5054 = vmand %vm1329, %vm5022
  %vm5055 = vmand %vm1329, %vm5023
  %vm5056 = vmand %vm1329, %vm5024
  %vm5057 = vmand %vm1329, %vm5025
  %vm5058 = vmand %vm1329, %vm5026
  %vm5059 = vmand %vm1329, %vm5027
  %vm5060 = vmand %vm1329, %vm5028
  %vm5061 = vmand %vm1329, %vm5029
  %vm5062 = vmand %vm1329, %vm5030
  %vm5063 = vmand %vm1329, %vm5031
  %vm5064 = vmand %vm1329, %vm5032
  %vm5065 = vmand %vm1329, %vm5033
  %vm5066 = vmand %vm1329, %vm5034
  %vm5067 = vmand %vm1329, %vm5035
  %vm5068 = vmand %vm1329, %vm5036
  %vm5069 = vmand %vm1329, %vm5037
  %vm5070 = vmand %vm1329, %vm5038
  %vm5071 = vmand %vm1329, %vm5039
  %vm5072 = vmand %vm1329, %vm5040
  %vm5073 = vmand %vm1329, %vm5041
  %vm5074 = vmand %vm1329, %vm5042
  %vm5075 = vmand %vm1329, %vm5043
  %vm5076 = vmand %vm1329, %vm5044
  %vm5077 = vmand %vm1329, %vm5045
  %vm5078 = vmand %vm1329, %vm5046
  %vm5079 = vmand %vm1329, %vm5047
  %vm5080 = vmand %vm1329, %vm5048
  %vm5081 = vmand %vm1329, %vm5049
  %vm5082 = vmand %vm1329, %vm5050
  %vm5083 = vmand %vm1329, %vm5051
  %vm5084 = vmand %vm1329, %vm5052
  %vm5085 = vmand %vm1329, %vm5053
  %v5086 = vsel %vm5054, %v4830, 0.0
  %v5087 = vsel %vm5055, %v4831, 0.0
  %v5088 = vsel %vm5056, %v4832, 0.0
  %v5089 = vsel %vm5057, %v4833, 0.0
  %v5090 = vsel %vm5058, %v4834, 0.0
  %v5091 = vsel %vm5059, %v4835, 0.0
  %v5092 = vsel %vm5060, %v4836, 0.0
  %v5093 = vsel %vm5061, %v4837, 0.0
  %v5094 = vsel %vm5062, %v4838, 0.0
  %v5095 = vsel %vm5063, %v4839, 0.0
  %v5096 = vsel %vm5064, %v4840, 0.0
  %v5097 = vsel %vm5065, %v4841, 0.0
  %v5098 = vsel %vm5066, %v4842, 0.0
  %v5099 = vsel %vm5067, %v4843, 0.0
  %v5100 = vsel %vm5068, %v4844, 0.0
  %v5101 = vsel %vm5069, %v4845, 0.0
  %v5102 = vsel %vm5070, %v4846, 0.0
  %v5103 = vsel %vm5071, %v4847, 0.0
  %v5104 = vsel %vm5072, %v4848, 0.0
  %v5105 = vsel %vm5073, %v4849, 0.0
  %v5106 = vsel %vm5074, %v4850, 0.0
  %v5107 = vsel %vm5075, %v4851, 0.0
  %v5108 = vsel %vm5076, %v4852, 0.0
  %v5109 = vsel %vm5077, %v4853, 0.0
  %v5110 = vsel %vm5078, %v4854, 0.0
  %v5111 = vsel %vm5079, %v4855, 0.0
  %v5112 = vsel %vm5080, %v4856, 0.0
  %v5113 = vsel %vm5081, %v4857, 0.0
  %v5114 = vsel %vm5082, %v4858, 0.0
  %v5115 = vsel %vm5083, %v4859, 0.0
  %v5116 = vsel %vm5084, %v4860, 0.0
  %v5117 = vsel %vm5085, %v4861, 0.0
  %v5118 = vadd.f32 %v4798, %v5086
  %v5119 = vadd.f32 %v4799, %v5087
  %v5120 = vadd.f32 %v4800, %v5088
  %v5121 = vadd.f32 %v4801, %v5089
  %v5122 = vadd.f32 %v4802, %v5090
  %v5123 = vadd.f32 %v4803, %v5091
  %v5124 = vadd.f32 %v4804, %v5092
  %v5125 = vadd.f32 %v4805, %v5093
  %v5126 = vadd.f32 %v4806, %v5094
  %v5127 = vadd.f32 %v4807, %v5095
  %v5128 = vadd.f32 %v4808, %v5096
  %v5129 = vadd.f32 %v4809, %v5097
  %v5130 = vadd.f32 %v4810, %v5098
  %v5131 = vadd.f32 %v4811, %v5099
  %v5132 = vadd.f32 %v4812, %v5100
  %v5133 = vadd.f32 %v4813, %v5101
  %v5134 = vadd.f32 %v4814, %v5102
  %v5135 = vadd.f32 %v4815, %v5103
  %v5136 = vadd.f32 %v4816, %v5104
  %v5137 = vadd.f32 %v4817, %v5105
  %v5138 = vadd.f32 %v4818, %v5106
  %v5139 = vadd.f32 %v4819, %v5107
  %v5140 = vadd.f32 %v4820, %v5108
  %v5141 = vadd.f32 %v4821, %v5109
  %v5142 = vadd.f32 %v4822, %v5110
  %v5143 = vadd.f32 %v4823, %v5111
  %v5144 = vadd.f32 %v4824, %v5112
  %v5145 = vadd.f32 %v4825, %v5113
  %v5146 = vadd.f32 %v4826, %v5114
  %v5147 = vadd.f32 %v4827, %v5115
  %v5148 = vadd.f32 %v4828, %v5116
  %v5149 = vadd.f32 %v4829, %v5117
  %v5151 = vperm.slane %v48, 0
  %v5154 = vsel %vm35, %v5118, 0
  %v5157 = vsel %vm35, %v5119, 0
  %v5160 = vsel %vm35, %v5120, 0
  %v5163 = vsel %vm35, %v5121, 0
  %v5166 = vsel %vm35, %v5122, 0
  %v5169 = vsel %vm35, %v5123, 0
  %v5172 = vsel %vm35, %v5124, 0
  %v5175 = vsel %vm35, %v5125, 0
  %v5178 = vsel %vm35, %v5126, 0
  %v5181 = vsel %vm35, %v5127, 0
  %v5184 = vsel %vm35, %v5128, 0
  %v5187 = vsel %vm35, %v5129, 0
  %v5190 = vsel %vm35, %v5130, 0
  %v5193 = vsel %vm35, %v5131, 0
  %v5196 = vsel %vm35, %v5132, 0
  %v5199 = vsel %vm35, %v5133, 0
  %v5202 = vsel %vm35, %v5134, 0
  %v5205 = vsel %vm35, %v5135, 0
  %v5208 = vsel %vm35, %v5136, 0
  %v5211 = vsel %vm35, %v5137, 0
  %v5214 = vsel %vm35, %v5138, 0
  %v5217 = vsel %vm35, %v5139, 0
  %v5220 = vsel %vm35, %v5140, 0
  %v5223 = vsel %vm35, %v5141, 0
  %v5226 = vsel %vm35, %v5142, 0
  %v5229 = vsel %vm35, %v5143, 0
  %v5232 = vsel %vm35, %v5144, 0
  %v5235 = vsel %vm35, %v5145, 0
  %v5238 = vsel %vm35, %v5146, 0
  %v5241 = vsel %vm35, %v5147, 0
  %v5244 = vsel %vm35, %v5148, 0
  %v5247 = vsel %vm35, %v5149, 0
  %5249 = vmatpush.msra.mxu0 0.0
  %5250 = vmatpush.msra.mxu0 0.0
  %5251 = vmatpush.msra.mxu0 0.0
  %5252 = vmatpush.msra.mxu0 0.0
  %5253 = vmatpush.msra.mxu0 0.0
  %5254 = vmatpush.msra.mxu0 0.0
  %5255 = vmatpush.msra.mxu0 0.0
  %5256 = vmatpush.msra.mxu0 0.0
  %5257 = vmatpush.msra.mxu0 0.0
  %5258 = vmatpush.msra.mxu0 0.0
  %5259 = vmatpush.msra.mxu0 0.0
  %5260 = vmatpush.msra.mxu0 0.0
  %5261 = vmatpush.msra.mxu0 %v56
  %5262 = vmatpush.msra.mxu0 %v55
  %5263 = vmatpush.msra.mxu0 %v54
  %5264 = vmatpush.msra.mxu0 %v53
  %5265 = vmatmul.f32.gmra.mxu0 %v5154
  %v5266 = vpop.f32.mrf.mxu0
  %v5267 = vadd.f32 %v5151, %v5266
  %5268 = vmatmul.f32.gmra.mxu0 %v5157
  %v5269 = vpop.f32.mrf.mxu0
  %v5270 = vadd.f32 %v5151, %v5269
  %5271 = vmatmul.f32.gmra.mxu0 %v5160
  %v5272 = vpop.f32.mrf.mxu0
  %v5273 = vadd.f32 %v5151, %v5272
  %5274 = vmatmul.f32.gmra.mxu0 %v5163
  %v5275 = vpop.f32.mrf.mxu0
  %v5276 = vadd.f32 %v5151, %v5275
  %5277 = vmatmul.f32.gmra.mxu0 %v5166
  %v5278 = vpop.f32.mrf.mxu0
  %v5279 = vadd.f32 %v5151, %v5278
  %5280 = vmatmul.f32.gmra.mxu0 %v5169
  %v5281 = vpop.f32.mrf.mxu0
  %v5282 = vadd.f32 %v5151, %v5281
  %5283 = vmatmul.f32.gmra.mxu0 %v5172
  %v5284 = vpop.f32.mrf.mxu0
  %v5285 = vadd.f32 %v5151, %v5284
  %5286 = vmatmul.f32.gmra.mxu0 %v5175
  %v5287 = vpop.f32.mrf.mxu0
  %v5288 = vadd.f32 %v5151, %v5287
  %5289 = vmatmul.f32.gmra.mxu0 %v5178
  %v5290 = vpop.f32.mrf.mxu0
  %v5291 = vadd.f32 %v5151, %v5290
  %5292 = vmatmul.f32.gmra.mxu0 %v5181
  %v5293 = vpop.f32.mrf.mxu0
  %v5294 = vadd.f32 %v5151, %v5293
  %5295 = vmatmul.f32.gmra.mxu0 %v5184
  %v5296 = vpop.f32.mrf.mxu0
  %v5297 = vadd.f32 %v5151, %v5296
  %5298 = vmatmul.f32.gmra.mxu0 %v5187
  %v5299 = vpop.f32.mrf.mxu0
  %v5300 = vadd.f32 %v5151, %v5299
  %5301 = vmatmul.f32.gmra.mxu0 %v5190
  %v5302 = vpop.f32.mrf.mxu0
  %v5303 = vadd.f32 %v5151, %v5302
  %5304 = vmatmul.f32.gmra.mxu0 %v5193
  %v5305 = vpop.f32.mrf.mxu0
  %v5306 = vadd.f32 %v5151, %v5305
  %5307 = vmatmul.f32.gmra.mxu0 %v5196
  %v5308 = vpop.f32.mrf.mxu0
  %v5309 = vadd.f32 %v5151, %v5308
  %5310 = vmatmul.f32.gmra.mxu0 %v5199
  %v5311 = vpop.f32.mrf.mxu0
  %v5312 = vadd.f32 %v5151, %v5311
  %5313 = vmatmul.f32.gmra.mxu0 %v5202
  %v5314 = vpop.f32.mrf.mxu0
  %v5315 = vadd.f32 %v5151, %v5314
  %5316 = vmatmul.f32.gmra.mxu0 %v5205
  %v5317 = vpop.f32.mrf.mxu0
  %v5318 = vadd.f32 %v5151, %v5317
  %5319 = vmatmul.f32.gmra.mxu0 %v5208
  %v5320 = vpop.f32.mrf.mxu0
  %v5321 = vadd.f32 %v5151, %v5320
  %5322 = vmatmul.f32.gmra.mxu0 %v5211
  %v5323 = vpop.f32.mrf.mxu0
  %v5324 = vadd.f32 %v5151, %v5323
  %5325 = vmatmul.f32.gmra.mxu0 %v5214
  %v5326 = vpop.f32.mrf.mxu0
  %v5327 = vadd.f32 %v5151, %v5326
  %5328 = vmatmul.f32.gmra.mxu0 %v5217
  %v5329 = vpop.f32.mrf.mxu0
  %v5330 = vadd.f32 %v5151, %v5329
  %5331 = vmatmul.f32.gmra.mxu0 %v5220
  %v5332 = vpop.f32.mrf.mxu0
  %v5333 = vadd.f32 %v5151, %v5332
  %5334 = vmatmul.f32.gmra.mxu0 %v5223
  %v5335 = vpop.f32.mrf.mxu0
  %v5336 = vadd.f32 %v5151, %v5335
  %5337 = vmatmul.f32.gmra.mxu0 %v5226
  %v5338 = vpop.f32.mrf.mxu0
  %v5339 = vadd.f32 %v5151, %v5338
  %5340 = vmatmul.f32.gmra.mxu0 %v5229
  %v5341 = vpop.f32.mrf.mxu0
  %v5342 = vadd.f32 %v5151, %v5341
  %5343 = vmatmul.f32.gmra.mxu0 %v5232
  %v5344 = vpop.f32.mrf.mxu0
  %v5345 = vadd.f32 %v5151, %v5344
  %5346 = vmatmul.f32.gmra.mxu0 %v5235
  %v5347 = vpop.f32.mrf.mxu0
  %v5348 = vadd.f32 %v5151, %v5347
  %5349 = vmatmul.f32.gmra.mxu0 %v5238
  %v5350 = vpop.f32.mrf.mxu0
  %v5351 = vadd.f32 %v5151, %v5350
  %5352 = vmatmul.f32.gmra.mxu0 %v5241
  %v5353 = vpop.f32.mrf.mxu0
  %v5354 = vadd.f32 %v5151, %v5353
  %5355 = vmatmul.f32.gmra.mxu0 %v5244
  %v5356 = vpop.f32.mrf.mxu0
  %v5357 = vadd.f32 %v5151, %v5356
  %5358 = vmatmul.f32.gmra.mxu0 %v5247
  %v5359 = vpop.f32.mrf.mxu0
  %v5360 = vadd.f32 %v5151, %v5359
  %5361 = vdwg.mxu0
  %v5362 = vld [vmem:[%s0] sm:$0xff]
  %v5363 = vld [vmem:[%s0 + $0x8] sm:$0xff]
  %v5364 = vld [vmem:[%s0 + $0x10] sm:$0xff]
  %v5365 = vld [vmem:[%s0 + $0x18] sm:$0xff]
  %v5366 = vld [vmem:[%s0 + $0x20] sm:$0xff]
  %v5367 = vld [vmem:[%s0 + $0x28] sm:$0xff]
  %v5368 = vld [vmem:[%s0 + $0x30] sm:$0xff]
  %v5369 = vld [vmem:[%s0 + $0x38] sm:$0xff]
  %v5370 = vld [vmem:[%s0 + $0x40] sm:$0xff]
  %v5371 = vld [vmem:[%s0 + $0x48] sm:$0xff]
  %v5372 = vld [vmem:[%s0 + $0x50] sm:$0xff]
  %v5373 = vld [vmem:[%s0 + $0x58] sm:$0xff]
  %v5374 = vld [vmem:[%s0 + $0x60] sm:$0xff]
  %v5375 = vld [vmem:[%s0 + $0x68] sm:$0xff]
  %v5376 = vld [vmem:[%s0 + $0x70] sm:$0xff]
  %v5377 = vld [vmem:[%s0 + $0x78] sm:$0xff]
  %v5378 = vld [vmem:[%s0 + $0x80] sm:$0xff]
  %v5379 = vld [vmem:[%s0 + $0x88] sm:$0xff]
  %v5380 = vld [vmem:[%s0 + $0x90] sm:$0xff]
  %v5381 = vld [vmem:[%s0 + $0x98] sm:$0xff]
  %v5382 = vld [vmem:[%s0 + $0xa0] sm:$0xff]
  %v5383 = vld [vmem:[%s0 + $0xa8] sm:$0xff]
  %v5384 = vld [vmem:[%s0 + $0xb0] sm:$0xff]
  %v5385 = vld [vmem:[%s0 + $0xb8] sm:$0xff]
  %v5386 = vld [vmem:[%s0 + $0xc0] sm:$0xff]
  %v5387 = vld [vmem:[%s0 + $0xc8] sm:$0xff]
  %v5388 = vld [vmem:[%s0 + $0xd0] sm:$0xff]
  %v5389 = vld [vmem:[%s0 + $0xd8] sm:$0xff]
  %v5390 = vld [vmem:[%s0 + $0xe0] sm:$0xff]
  %v5391 = vld [vmem:[%s0 + $0xe8] sm:$0xff]
  %v5392 = vld [vmem:[%s0 + $0xf0] sm:$0xff]
  %v5393 = vld [vmem:[%s0 + $0xf8] sm:$0xff]
  %v5394 = vadd.f32 %v5267, %v5362
  %v5395 = vadd.f32 %v5270, %v5363
  %v5396 = vadd.f32 %v5273, %v5364
  %v5397 = vadd.f32 %v5276, %v5365
  %v5398 = vadd.f32 %v5279, %v5366
  %v5399 = vadd.f32 %v5282, %v5367
  %v5400 = vadd.f32 %v5285, %v5368
  %v5401 = vadd.f32 %v5288, %v5369
  %v5402 = vadd.f32 %v5291, %v5370
  %v5403 = vadd.f32 %v5294, %v5371
  %v5404 = vadd.f32 %v5297, %v5372
  %v5405 = vadd.f32 %v5300, %v5373
  %v5406 = vadd.f32 %v5303, %v5374
  %v5407 = vadd.f32 %v5306, %v5375
  %v5408 = vadd.f32 %v5309, %v5376
  %v5409 = vadd.f32 %v5312, %v5377
  %v5410 = vadd.f32 %v5315, %v5378
  %v5411 = vadd.f32 %v5318, %v5379
  %v5412 = vadd.f32 %v5321, %v5380
  %v5413 = vadd.f32 %v5324, %v5381
  %v5414 = vadd.f32 %v5327, %v5382
  %v5415 = vadd.f32 %v5330, %v5383
  %v5416 = vadd.f32 %v5333, %v5384
  %v5417 = vadd.f32 %v5336, %v5385
  %v5418 = vadd.f32 %v5339, %v5386
  %v5419 = vadd.f32 %v5342, %v5387
  %v5420 = vadd.f32 %v5345, %v5388
  %v5421 = vadd.f32 %v5348, %v5389
  %v5422 = vadd.f32 %v5351, %v5390
  %v5423 = vadd.f32 %v5354, %v5391
  %v5424 = vadd.f32 %v5357, %v5392
  %v5425 = vadd.f32 %v5360, %v5393
  %5426 = vst.msk [vmem:[%s10] sm:$0xff] %vm35, %v5394
  %5427 = vst.msk [vmem:[%s10 + $0x8] sm:$0xff] %vm35, %v5395
  %5428 = vst.msk [vmem:[%s10 + $0x10] sm:$0xff] %vm35, %v5396
  %5429 = vst.msk [vmem:[%s10 + $0x18] sm:$0xff] %vm35, %v5397
  %5430 = vst.msk [vmem:[%s10 + $0x20] sm:$0xff] %vm35, %v5398
  %5431 = vst.msk [vmem:[%s10 + $0x28] sm:$0xff] %vm35, %v5399
  %5432 = vst.msk [vmem:[%s10 + $0x30] sm:$0xff] %vm35, %v5400
  %5433 = vst.msk [vmem:[%s10 + $0x38] sm:$0xff] %vm35, %v5401
  %5434 = vst.msk [vmem:[%s10 + $0x40] sm:$0xff] %vm35, %v5402
  %5435 = vst.msk [vmem:[%s10 + $0x48] sm:$0xff] %vm35, %v5403
  %5436 = vst.msk [vmem:[%s10 + $0x50] sm:$0xff] %vm35, %v5404
  %5437 = vst.msk [vmem:[%s10 + $0x58] sm:$0xff] %vm35, %v5405
  %5438 = vst.msk [vmem:[%s10 + $0x60] sm:$0xff] %vm35, %v5406
  %5439 = vst.msk [vmem:[%s10 + $0x68] sm:$0xff] %vm35, %v5407
  %5440 = vst.msk [vmem:[%s10 + $0x70] sm:$0xff] %vm35, %v5408
  %5441 = vst.msk [vmem:[%s10 + $0x78] sm:$0xff] %vm35, %v5409
  %5442 = vst.msk [vmem:[%s10 + $0x80] sm:$0xff] %vm35, %v5410
  %5443 = vst.msk [vmem:[%s10 + $0x88] sm:$0xff] %vm35, %v5411
  %5444 = vst.msk [vmem:[%s10 + $0x90] sm:$0xff] %vm35, %v5412
  %5445 = vst.msk [vmem:[%s10 + $0x98] sm:$0xff] %vm35, %v5413
  %5446 = vst.msk [vmem:[%s10 + $0xa0] sm:$0xff] %vm35, %v5414
  %5447 = vst.msk [vmem:[%s10 + $0xa8] sm:$0xff] %vm35, %v5415
  %5448 = vst.msk [vmem:[%s10 + $0xb0] sm:$0xff] %vm35, %v5416
  %5449 = vst.msk [vmem:[%s10 + $0xb8] sm:$0xff] %vm35, %v5417
  %5450 = vst.msk [vmem:[%s10 + $0xc0] sm:$0xff] %vm35, %v5418
  %5451 = vst.msk [vmem:[%s10 + $0xc8] sm:$0xff] %vm35, %v5419
  %5452 = vst.msk [vmem:[%s10 + $0xd0] sm:$0xff] %vm35, %v5420
  %5453 = vst.msk [vmem:[%s10 + $0xd8] sm:$0xff] %vm35, %v5421
  %5454 = vst.msk [vmem:[%s10 + $0xe0] sm:$0xff] %vm35, %v5422
  %5455 = vst.msk [vmem:[%s10 + $0xe8] sm:$0xff] %vm35, %v5423
  %5456 = vst.msk [vmem:[%s10 + $0xf0] sm:$0xff] %vm35, %v5424
  %5457 = vst.msk [vmem:[%s10 + $0xf8] sm:$0xff] %vm35, %v5425
  %s5458 = scalar_lea.vmem %s0, 256
  %v5459 = vld [vmem:[%s5458] sm:$0xff]
  %v5460 = vld [vmem:[%s5458 + $0x8] sm:$0xff]
  %v5461 = vld [vmem:[%s5458 + $0x10] sm:$0xff]
  %v5462 = vld [vmem:[%s5458 + $0x18] sm:$0xff]
  %v5463 = vld [vmem:[%s5458 + $0x20] sm:$0xff]
  %v5464 = vld [vmem:[%s5458 + $0x28] sm:$0xff]
  %v5465 = vld [vmem:[%s5458 + $0x30] sm:$0xff]
  %v5466 = vld [vmem:[%s5458 + $0x38] sm:$0xff]
  %v5467 = vld [vmem:[%s5458 + $0x40] sm:$0xff]
  %v5468 = vld [vmem:[%s5458 + $0x48] sm:$0xff]
  %v5469 = vld [vmem:[%s5458 + $0x50] sm:$0xff]
  %v5470 = vld [vmem:[%s5458 + $0x58] sm:$0xff]
  %v5471 = vld [vmem:[%s5458 + $0x60] sm:$0xff]
  %v5472 = vld [vmem:[%s5458 + $0x68] sm:$0xff]
  %v5473 = vld [vmem:[%s5458 + $0x70] sm:$0xff]
  %v5474 = vld [vmem:[%s5458 + $0x78] sm:$0xff]
  %v5475 = vld [vmem:[%s5458 + $0x80] sm:$0xff]
  %v5476 = vld [vmem:[%s5458 + $0x88] sm:$0xff]
  %v5477 = vld [vmem:[%s5458 + $0x90] sm:$0xff]
  %v5478 = vld [vmem:[%s5458 + $0x98] sm:$0xff]
  %v5479 = vld [vmem:[%s5458 + $0xa0] sm:$0xff]
  %v5480 = vld [vmem:[%s5458 + $0xa8] sm:$0xff]
  %v5481 = vld [vmem:[%s5458 + $0xb0] sm:$0xff]
  %v5482 = vld [vmem:[%s5458 + $0xb8] sm:$0xff]
  %v5483 = vld [vmem:[%s5458 + $0xc0] sm:$0xff]
  %v5484 = vld [vmem:[%s5458 + $0xc8] sm:$0xff]
  %v5485 = vld [vmem:[%s5458 + $0xd0] sm:$0xff]
  %v5486 = vld [vmem:[%s5458 + $0xd8] sm:$0xff]
  %v5487 = vld [vmem:[%s5458 + $0xe0] sm:$0xff]
  %v5488 = vld [vmem:[%s5458 + $0xe8] sm:$0xff]
  %v5489 = vld [vmem:[%s5458 + $0xf0] sm:$0xff]
  %v5490 = vld [vmem:[%s5458 + $0xf8] sm:$0xff]
  %v5491 = vsel %vm35, %v5459, 0.0
  %5492 = vadd.xlane.f32.xlu0 %v5491
  %v5493 = vpop.xlane.xlu0 %5492
  %v5494 = vsel %vm35, %v5460, 0.0
  %5495 = vadd.xlane.f32.xlu0 %v5494
  %v5496 = vpop.xlane.xlu0 %5495
  %v5497 = vsel %vm35, %v5461, 0.0
  %5498 = vadd.xlane.f32.xlu0 %v5497
  %v5499 = vpop.xlane.xlu0 %5498
  %v5500 = vsel %vm35, %v5462, 0.0
  %5501 = vadd.xlane.f32.xlu0 %v5500
  %v5502 = vpop.xlane.xlu0 %5501
  %v5503 = vsel %vm35, %v5463, 0.0
  %5504 = vadd.xlane.f32.xlu0 %v5503
  %v5505 = vpop.xlane.xlu0 %5504
  %v5506 = vsel %vm35, %v5464, 0.0
  %5507 = vadd.xlane.f32.xlu0 %v5506
  %v5508 = vpop.xlane.xlu0 %5507
  %v5509 = vsel %vm35, %v5465, 0.0
  %5510 = vadd.xlane.f32.xlu0 %v5509
  %v5511 = vpop.xlane.xlu0 %5510
  %v5512 = vsel %vm35, %v5466, 0.0
  %5513 = vadd.xlane.f32.xlu0 %v5512
  %v5514 = vpop.xlane.xlu0 %5513
  %v5515 = vsel %vm35, %v5467, 0.0
  %5516 = vadd.xlane.f32.xlu0 %v5515
  %v5517 = vpop.xlane.xlu0 %5516
  %v5518 = vsel %vm35, %v5468, 0.0
  %5519 = vadd.xlane.f32.xlu0 %v5518
  %v5520 = vpop.xlane.xlu0 %5519
  %v5521 = vsel %vm35, %v5469, 0.0
  %5522 = vadd.xlane.f32.xlu0 %v5521
  %v5523 = vpop.xlane.xlu0 %5522
  %v5524 = vsel %vm35, %v5470, 0.0
  %5525 = vadd.xlane.f32.xlu0 %v5524
  %v5526 = vpop.xlane.xlu0 %5525
  %v5527 = vsel %vm35, %v5471, 0.0
  %5528 = vadd.xlane.f32.xlu0 %v5527
  %v5529 = vpop.xlane.xlu0 %5528
  %v5530 = vsel %vm35, %v5472, 0.0
  %5531 = vadd.xlane.f32.xlu0 %v5530
  %v5532 = vpop.xlane.xlu0 %5531
  %v5533 = vsel %vm35, %v5473, 0.0
  %5534 = vadd.xlane.f32.xlu0 %v5533
  %v5535 = vpop.xlane.xlu0 %5534
  %v5536 = vsel %vm35, %v5474, 0.0
  %5537 = vadd.xlane.f32.xlu0 %v5536
  %v5538 = vpop.xlane.xlu0 %5537
  %v5539 = vsel %vm35, %v5475, 0.0
  %5540 = vadd.xlane.f32.xlu0 %v5539
  %v5541 = vpop.xlane.xlu0 %5540
  %v5542 = vsel %vm35, %v5476, 0.0
  %5543 = vadd.xlane.f32.xlu0 %v5542
  %v5544 = vpop.xlane.xlu0 %5543
  %v5545 = vsel %vm35, %v5477, 0.0
  %5546 = vadd.xlane.f32.xlu0 %v5545
  %v5547 = vpop.xlane.xlu0 %5546
  %v5548 = vsel %vm35, %v5478, 0.0
  %5549 = vadd.xlane.f32.xlu0 %v5548
  %v5550 = vpop.xlane.xlu0 %5549
  %v5551 = vsel %vm35, %v5479, 0.0
  %5552 = vadd.xlane.f32.xlu0 %v5551
  %v5553 = vpop.xlane.xlu0 %5552
  %v5554 = vsel %vm35, %v5480, 0.0
  %5555 = vadd.xlane.f32.xlu0 %v5554
  %v5556 = vpop.xlane.xlu0 %5555
  %v5557 = vsel %vm35, %v5481, 0.0
  %5558 = vadd.xlane.f32.xlu0 %v5557
  %v5559 = vpop.xlane.xlu0 %5558
  %v5560 = vsel %vm35, %v5482, 0.0
  %5561 = vadd.xlane.f32.xlu0 %v5560
  %v5562 = vpop.xlane.xlu0 %5561
  %v5563 = vsel %vm35, %v5483, 0.0
  %5564 = vadd.xlane.f32.xlu0 %v5563
  %v5565 = vpop.xlane.xlu0 %5564
  %v5566 = vsel %vm35, %v5484, 0.0
  %5567 = vadd.xlane.f32.xlu0 %v5566
  %v5568 = vpop.xlane.xlu0 %5567
  %v5569 = vsel %vm35, %v5485, 0.0
  %5570 = vadd.xlane.f32.xlu0 %v5569
  %v5571 = vpop.xlane.xlu0 %5570
  %v5572 = vsel %vm35, %v5486, 0.0
  %5573 = vadd.xlane.f32.xlu0 %v5572
  %v5574 = vpop.xlane.xlu0 %5573
  %v5575 = vsel %vm35, %v5487, 0.0
  %5576 = vadd.xlane.f32.xlu0 %v5575
  %v5577 = vpop.xlane.xlu0 %5576
  %v5578 = vsel %vm35, %v5488, 0.0
  %5579 = vadd.xlane.f32.xlu0 %v5578
  %v5580 = vpop.xlane.xlu0 %5579
  %v5581 = vsel %vm35, %v5489, 0.0
  %5582 = vadd.xlane.f32.xlu0 %v5581
  %v5583 = vpop.xlane.xlu0 %5582
  %v5584 = vsel %vm35, %v5490, 0.0
  %5585 = vadd.xlane.f32.xlu0 %v5584
  %v5586 = vpop.xlane.xlu0 %5585
  %v5587 = vmul.f32 %v5493, %v313
  %v5588 = vmul.f32 %v5496, %v313
  %v5589 = vmul.f32 %v5499, %v313
  %v5590 = vmul.f32 %v5502, %v313
  %v5591 = vmul.f32 %v5505, %v313
  %v5592 = vmul.f32 %v5508, %v313
  %v5593 = vmul.f32 %v5511, %v313
  %v5594 = vmul.f32 %v5514, %v313
  %v5595 = vmul.f32 %v5517, %v313
  %v5596 = vmul.f32 %v5520, %v313
  %v5597 = vmul.f32 %v5523, %v313
  %v5598 = vmul.f32 %v5526, %v313
  %v5599 = vmul.f32 %v5529, %v313
  %v5600 = vmul.f32 %v5532, %v313
  %v5601 = vmul.f32 %v5535, %v313
  %v5602 = vmul.f32 %v5538, %v313
  %v5603 = vmul.f32 %v5541, %v313
  %v5604 = vmul.f32 %v5544, %v313
  %v5605 = vmul.f32 %v5547, %v313
  %v5606 = vmul.f32 %v5550, %v313
  %v5607 = vmul.f32 %v5553, %v313
  %v5608 = vmul.f32 %v5556, %v313
  %v5609 = vmul.f32 %v5559, %v313
  %v5610 = vmul.f32 %v5562, %v313
  %v5611 = vmul.f32 %v5565, %v313
  %v5612 = vmul.f32 %v5568, %v313
  %v5613 = vmul.f32 %v5571, %v313
  %v5614 = vmul.f32 %v5574, %v313
  %v5615 = vmul.f32 %v5577, %v313
  %v5616 = vmul.f32 %v5580, %v313
  %v5617 = vmul.f32 %v5583, %v313
  %v5618 = vmul.f32 %v5586, %v313
  %v5619 = vsub.f32 %v5459, %v5587
  %v5620 = vsub.f32 %v5460, %v5588
  %v5621 = vsub.f32 %v5461, %v5589
  %v5622 = vsub.f32 %v5462, %v5590
  %v5623 = vsub.f32 %v5463, %v5591
  %v5624 = vsub.f32 %v5464, %v5592
  %v5625 = vsub.f32 %v5465, %v5593
  %v5626 = vsub.f32 %v5466, %v5594
  %v5627 = vsub.f32 %v5467, %v5595
  %v5628 = vsub.f32 %v5468, %v5596
  %v5629 = vsub.f32 %v5469, %v5597
  %v5630 = vsub.f32 %v5470, %v5598
  %v5631 = vsub.f32 %v5471, %v5599
  %v5632 = vsub.f32 %v5472, %v5600
  %v5633 = vsub.f32 %v5473, %v5601
  %v5634 = vsub.f32 %v5474, %v5602
  %v5635 = vsub.f32 %v5475, %v5603
  %v5636 = vsub.f32 %v5476, %v5604
  %v5637 = vsub.f32 %v5477, %v5605
  %v5638 = vsub.f32 %v5478, %v5606
  %v5639 = vsub.f32 %v5479, %v5607
  %v5640 = vsub.f32 %v5480, %v5608
  %v5641 = vsub.f32 %v5481, %v5609
  %v5642 = vsub.f32 %v5482, %v5610
  %v5643 = vsub.f32 %v5483, %v5611
  %v5644 = vsub.f32 %v5484, %v5612
  %v5645 = vsub.f32 %v5485, %v5613
  %v5646 = vsub.f32 %v5486, %v5614
  %v5647 = vsub.f32 %v5487, %v5615
  %v5648 = vsub.f32 %v5488, %v5616
  %v5649 = vsub.f32 %v5489, %v5617
  %v5650 = vsub.f32 %v5490, %v5618
  %v5651 = vmul.f32 %v5619, %v5619
  %v5652 = vmul.f32 %v5620, %v5620
  %v5653 = vmul.f32 %v5621, %v5621
  %v5654 = vmul.f32 %v5622, %v5622
  %v5655 = vmul.f32 %v5623, %v5623
  %v5656 = vmul.f32 %v5624, %v5624
  %v5657 = vmul.f32 %v5625, %v5625
  %v5658 = vmul.f32 %v5626, %v5626
  %v5659 = vmul.f32 %v5627, %v5627
  %v5660 = vmul.f32 %v5628, %v5628
  %v5661 = vmul.f32 %v5629, %v5629
  %v5662 = vmul.f32 %v5630, %v5630
  %v5663 = vmul.f32 %v5631, %v5631
  %v5664 = vmul.f32 %v5632, %v5632
  %v5665 = vmul.f32 %v5633, %v5633
  %v5666 = vmul.f32 %v5634, %v5634
  %v5667 = vmul.f32 %v5635, %v5635
  %v5668 = vmul.f32 %v5636, %v5636
  %v5669 = vmul.f32 %v5637, %v5637
  %v5670 = vmul.f32 %v5638, %v5638
  %v5671 = vmul.f32 %v5639, %v5639
  %v5672 = vmul.f32 %v5640, %v5640
  %v5673 = vmul.f32 %v5641, %v5641
  %v5674 = vmul.f32 %v5642, %v5642
  %v5675 = vmul.f32 %v5643, %v5643
  %v5676 = vmul.f32 %v5644, %v5644
  %v5677 = vmul.f32 %v5645, %v5645
  %v5678 = vmul.f32 %v5646, %v5646
  %v5679 = vmul.f32 %v5647, %v5647
  %v5680 = vmul.f32 %v5648, %v5648
  %v5681 = vmul.f32 %v5649, %v5649
  %v5682 = vmul.f32 %v5650, %v5650
  %v5683 = vsel %vm35, %v5651, 0.0
  %5684 = vadd.xlane.f32.xlu0 %v5683
  %v5685 = vpop.xlane.xlu0 %5684
  %v5686 = vsel %vm35, %v5652, 0.0
  %5687 = vadd.xlane.f32.xlu0 %v5686
  %v5688 = vpop.xlane.xlu0 %5687
  %v5689 = vsel %vm35, %v5653, 0.0
  %5690 = vadd.xlane.f32.xlu0 %v5689
  %v5691 = vpop.xlane.xlu0 %5690
  %v5692 = vsel %vm35, %v5654, 0.0
  %5693 = vadd.xlane.f32.xlu0 %v5692
  %v5694 = vpop.xlane.xlu0 %5693
  %v5695 = vsel %vm35, %v5655, 0.0
  %5696 = vadd.xlane.f32.xlu0 %v5695
  %v5697 = vpop.xlane.xlu0 %5696
  %v5698 = vsel %vm35, %v5656, 0.0
  %5699 = vadd.xlane.f32.xlu0 %v5698
  %v5700 = vpop.xlane.xlu0 %5699
  %v5701 = vsel %vm35, %v5657, 0.0
  %5702 = vadd.xlane.f32.xlu0 %v5701
  %v5703 = vpop.xlane.xlu0 %5702
  %v5704 = vsel %vm35, %v5658, 0.0
  %5705 = vadd.xlane.f32.xlu0 %v5704
  %v5706 = vpop.xlane.xlu0 %5705
  %v5707 = vsel %vm35, %v5659, 0.0
  %5708 = vadd.xlane.f32.xlu0 %v5707
  %v5709 = vpop.xlane.xlu0 %5708
  %v5710 = vsel %vm35, %v5660, 0.0
  %5711 = vadd.xlane.f32.xlu0 %v5710
  %v5712 = vpop.xlane.xlu0 %5711
  %v5713 = vsel %vm35, %v5661, 0.0
  %5714 = vadd.xlane.f32.xlu0 %v5713
  %v5715 = vpop.xlane.xlu0 %5714
  %v5716 = vsel %vm35, %v5662, 0.0
  %5717 = vadd.xlane.f32.xlu0 %v5716
  %v5718 = vpop.xlane.xlu0 %5717
  %v5719 = vsel %vm35, %v5663, 0.0
  %5720 = vadd.xlane.f32.xlu0 %v5719
  %v5721 = vpop.xlane.xlu0 %5720
  %v5722 = vsel %vm35, %v5664, 0.0
  %5723 = vadd.xlane.f32.xlu0 %v5722
  %v5724 = vpop.xlane.xlu0 %5723
  %v5725 = vsel %vm35, %v5665, 0.0
  %5726 = vadd.xlane.f32.xlu0 %v5725
  %v5727 = vpop.xlane.xlu0 %5726
  %v5728 = vsel %vm35, %v5666, 0.0
  %5729 = vadd.xlane.f32.xlu0 %v5728
  %v5730 = vpop.xlane.xlu0 %5729
  %v5731 = vsel %vm35, %v5667, 0.0
  %5732 = vadd.xlane.f32.xlu0 %v5731
  %v5733 = vpop.xlane.xlu0 %5732
  %v5734 = vsel %vm35, %v5668, 0.0
  %5735 = vadd.xlane.f32.xlu0 %v5734
  %v5736 = vpop.xlane.xlu0 %5735
  %v5737 = vsel %vm35, %v5669, 0.0
  %5738 = vadd.xlane.f32.xlu0 %v5737
  %v5739 = vpop.xlane.xlu0 %5738
  %v5740 = vsel %vm35, %v5670, 0.0
  %5741 = vadd.xlane.f32.xlu0 %v5740
  %v5742 = vpop.xlane.xlu0 %5741
  %v5743 = vsel %vm35, %v5671, 0.0
  %5744 = vadd.xlane.f32.xlu0 %v5743
  %v5745 = vpop.xlane.xlu0 %5744
  %v5746 = vsel %vm35, %v5672, 0.0
  %5747 = vadd.xlane.f32.xlu0 %v5746
  %v5748 = vpop.xlane.xlu0 %5747
  %v5749 = vsel %vm35, %v5673, 0.0
  %5750 = vadd.xlane.f32.xlu0 %v5749
  %v5751 = vpop.xlane.xlu0 %5750
  %v5752 = vsel %vm35, %v5674, 0.0
  %5753 = vadd.xlane.f32.xlu0 %v5752
  %v5754 = vpop.xlane.xlu0 %5753
  %v5755 = vsel %vm35, %v5675, 0.0
  %5756 = vadd.xlane.f32.xlu0 %v5755
  %v5757 = vpop.xlane.xlu0 %5756
  %v5758 = vsel %vm35, %v5676, 0.0
  %5759 = vadd.xlane.f32.xlu0 %v5758
  %v5760 = vpop.xlane.xlu0 %5759
  %v5761 = vsel %vm35, %v5677, 0.0
  %5762 = vadd.xlane.f32.xlu0 %v5761
  %v5763 = vpop.xlane.xlu0 %5762
  %v5764 = vsel %vm35, %v5678, 0.0
  %5765 = vadd.xlane.f32.xlu0 %v5764
  %v5766 = vpop.xlane.xlu0 %5765
  %v5767 = vsel %vm35, %v5679, 0.0
  %5768 = vadd.xlane.f32.xlu0 %v5767
  %v5769 = vpop.xlane.xlu0 %5768
  %v5770 = vsel %vm35, %v5680, 0.0
  %5771 = vadd.xlane.f32.xlu0 %v5770
  %v5772 = vpop.xlane.xlu0 %5771
  %v5773 = vsel %vm35, %v5681, 0.0
  %5774 = vadd.xlane.f32.xlu0 %v5773
  %v5775 = vpop.xlane.xlu0 %5774
  %v5776 = vsel %vm35, %v5682, 0.0
  %5777 = vadd.xlane.f32.xlu0 %v5776
  %v5778 = vpop.xlane.xlu0 %5777
  %v5779 = vmul.f32 %v5685, %v313
  %v5780 = vmul.f32 %v5688, %v313
  %v5781 = vmul.f32 %v5691, %v313
  %v5782 = vmul.f32 %v5694, %v313
  %v5783 = vmul.f32 %v5697, %v313
  %v5784 = vmul.f32 %v5700, %v313
  %v5785 = vmul.f32 %v5703, %v313
  %v5786 = vmul.f32 %v5706, %v313
  %v5787 = vmul.f32 %v5709, %v313
  %v5788 = vmul.f32 %v5712, %v313
  %v5789 = vmul.f32 %v5715, %v313
  %v5790 = vmul.f32 %v5718, %v313
  %v5791 = vmul.f32 %v5721, %v313
  %v5792 = vmul.f32 %v5724, %v313
  %v5793 = vmul.f32 %v5727, %v313
  %v5794 = vmul.f32 %v5730, %v313
  %v5795 = vmul.f32 %v5733, %v313
  %v5796 = vmul.f32 %v5736, %v313
  %v5797 = vmul.f32 %v5739, %v313
  %v5798 = vmul.f32 %v5742, %v313
  %v5799 = vmul.f32 %v5745, %v313
  %v5800 = vmul.f32 %v5748, %v313
  %v5801 = vmul.f32 %v5751, %v313
  %v5802 = vmul.f32 %v5754, %v313
  %v5803 = vmul.f32 %v5757, %v313
  %v5804 = vmul.f32 %v5760, %v313
  %v5805 = vmul.f32 %v5763, %v313
  %v5806 = vmul.f32 %v5766, %v313
  %v5807 = vmul.f32 %v5769, %v313
  %v5808 = vmul.f32 %v5772, %v313
  %v5809 = vmul.f32 %v5775, %v313
  %v5810 = vmul.f32 %v5778, %v313
  %v5811 = vadd.f32 %v5779, 1e-05
  %v5812 = vadd.f32 %v5780, 1e-05
  %v5813 = vadd.f32 %v5781, 1e-05
  %v5814 = vadd.f32 %v5782, 1e-05
  %v5815 = vadd.f32 %v5783, 1e-05
  %v5816 = vadd.f32 %v5784, 1e-05
  %v5817 = vadd.f32 %v5785, 1e-05
  %v5818 = vadd.f32 %v5786, 1e-05
  %v5819 = vadd.f32 %v5787, 1e-05
  %v5820 = vadd.f32 %v5788, 1e-05
  %v5821 = vadd.f32 %v5789, 1e-05
  %v5822 = vadd.f32 %v5790, 1e-05
  %v5823 = vadd.f32 %v5791, 1e-05
  %v5824 = vadd.f32 %v5792, 1e-05
  %v5825 = vadd.f32 %v5793, 1e-05
  %v5826 = vadd.f32 %v5794, 1e-05
  %v5827 = vadd.f32 %v5795, 1e-05
  %v5828 = vadd.f32 %v5796, 1e-05
  %v5829 = vadd.f32 %v5797, 1e-05
  %v5830 = vadd.f32 %v5798, 1e-05
  %v5831 = vadd.f32 %v5799, 1e-05
  %v5832 = vadd.f32 %v5800, 1e-05
  %v5833 = vadd.f32 %v5801, 1e-05
  %v5834 = vadd.f32 %v5802, 1e-05
  %v5835 = vadd.f32 %v5803, 1e-05
  %v5836 = vadd.f32 %v5804, 1e-05
  %v5837 = vadd.f32 %v5805, 1e-05
  %v5838 = vadd.f32 %v5806, 1e-05
  %v5839 = vadd.f32 %v5807, 1e-05
  %v5840 = vadd.f32 %v5808, 1e-05
  %v5841 = vadd.f32 %v5809, 1e-05
  %v5842 = vadd.f32 %v5810, 1e-05
  %v5843 = vrsqrt.pop %v5811
  %v5844 = vmul.f32 %v5843, %v5811
  %v5845 = vmul.f32 %v5844, %v5843
  %v5846 = vmul.f32 0.5, %v5845
  %v5847 = vsub.f32 1.5, %v5846
  %v5848 = vmul.f32 %v5843, %v5847
  %vm5849 = vweird.f32 %v5811
  %vm5850 = vweird.f32 %v5843
  %vm5851 = vmor %vm5849, %vm5850
  %v5852 = vsel %vm5851, %v5843, %v5848
  %v5853 = vrsqrt.pop %v5812
  %v5854 = vmul.f32 %v5853, %v5812
  %v5855 = vmul.f32 %v5854, %v5853
  %v5856 = vmul.f32 0.5, %v5855
  %v5857 = vsub.f32 1.5, %v5856
  %v5858 = vmul.f32 %v5853, %v5857
  %vm5859 = vweird.f32 %v5812
  %vm5860 = vweird.f32 %v5853
  %vm5861 = vmor %vm5859, %vm5860
  %v5862 = vsel %vm5861, %v5853, %v5858
  %v5863 = vrsqrt.pop %v5813
  %v5864 = vmul.f32 %v5863, %v5813
  %v5865 = vmul.f32 %v5864, %v5863
  %v5866 = vmul.f32 0.5, %v5865
  %v5867 = vsub.f32 1.5, %v5866
  %v5868 = vmul.f32 %v5863, %v5867
  %vm5869 = vweird.f32 %v5813
  %vm5870 = vweird.f32 %v5863
  %vm5871 = vmor %vm5869, %vm5870
  %v5872 = vsel %vm5871, %v5863, %v5868
  %v5873 = vrsqrt.pop %v5814
  %v5874 = vmul.f32 %v5873, %v5814
  %v5875 = vmul.f32 %v5874, %v5873
  %v5876 = vmul.f32 0.5, %v5875
  %v5877 = vsub.f32 1.5, %v5876
  %v5878 = vmul.f32 %v5873, %v5877
  %vm5879 = vweird.f32 %v5814
  %vm5880 = vweird.f32 %v5873
  %vm5881 = vmor %vm5879, %vm5880
  %v5882 = vsel %vm5881, %v5873, %v5878
  %v5883 = vrsqrt.pop %v5815
  %v5884 = vmul.f32 %v5883, %v5815
  %v5885 = vmul.f32 %v5884, %v5883
  %v5886 = vmul.f32 0.5, %v5885
  %v5887 = vsub.f32 1.5, %v5886
  %v5888 = vmul.f32 %v5883, %v5887
  %vm5889 = vweird.f32 %v5815
  %vm5890 = vweird.f32 %v5883
  %vm5891 = vmor %vm5889, %vm5890
  %v5892 = vsel %vm5891, %v5883, %v5888
  %v5893 = vrsqrt.pop %v5816
  %v5894 = vmul.f32 %v5893, %v5816
  %v5895 = vmul.f32 %v5894, %v5893
  %v5896 = vmul.f32 0.5, %v5895
  %v5897 = vsub.f32 1.5, %v5896
  %v5898 = vmul.f32 %v5893, %v5897
  %vm5899 = vweird.f32 %v5816
  %vm5900 = vweird.f32 %v5893
  %vm5901 = vmor %vm5899, %vm5900
  %v5902 = vsel %vm5901, %v5893, %v5898
  %v5903 = vrsqrt.pop %v5817
  %v5904 = vmul.f32 %v5903, %v5817
  %v5905 = vmul.f32 %v5904, %v5903
  %v5906 = vmul.f32 0.5, %v5905
  %v5907 = vsub.f32 1.5, %v5906
  %v5908 = vmul.f32 %v5903, %v5907
  %vm5909 = vweird.f32 %v5817
  %vm5910 = vweird.f32 %v5903
  %vm5911 = vmor %vm5909, %vm5910
  %v5912 = vsel %vm5911, %v5903, %v5908
  %v5913 = vrsqrt.pop %v5818
  %v5914 = vmul.f32 %v5913, %v5818
  %v5915 = vmul.f32 %v5914, %v5913
  %v5916 = vmul.f32 0.5, %v5915
  %v5917 = vsub.f32 1.5, %v5916
  %v5918 = vmul.f32 %v5913, %v5917
  %vm5919 = vweird.f32 %v5818
  %vm5920 = vweird.f32 %v5913
  %vm5921 = vmor %vm5919, %vm5920
  %v5922 = vsel %vm5921, %v5913, %v5918
  %v5923 = vrsqrt.pop %v5819
  %v5924 = vmul.f32 %v5923, %v5819
  %v5925 = vmul.f32 %v5924, %v5923
  %v5926 = vmul.f32 0.5, %v5925
  %v5927 = vsub.f32 1.5, %v5926
  %v5928 = vmul.f32 %v5923, %v5927
  %vm5929 = vweird.f32 %v5819
  %vm5930 = vweird.f32 %v5923
  %vm5931 = vmor %vm5929, %vm5930
  %v5932 = vsel %vm5931, %v5923, %v5928
  %v5933 = vrsqrt.pop %v5820
  %v5934 = vmul.f32 %v5933, %v5820
  %v5935 = vmul.f32 %v5934, %v5933
  %v5936 = vmul.f32 0.5, %v5935
  %v5937 = vsub.f32 1.5, %v5936
  %v5938 = vmul.f32 %v5933, %v5937
  %vm5939 = vweird.f32 %v5820
  %vm5940 = vweird.f32 %v5933
  %vm5941 = vmor %vm5939, %vm5940
  %v5942 = vsel %vm5941, %v5933, %v5938
  %v5943 = vrsqrt.pop %v5821
  %v5944 = vmul.f32 %v5943, %v5821
  %v5945 = vmul.f32 %v5944, %v5943
  %v5946 = vmul.f32 0.5, %v5945
  %v5947 = vsub.f32 1.5, %v5946
  %v5948 = vmul.f32 %v5943, %v5947
  %vm5949 = vweird.f32 %v5821
  %vm5950 = vweird.f32 %v5943
  %vm5951 = vmor %vm5949, %vm5950
  %v5952 = vsel %vm5951, %v5943, %v5948
  %v5953 = vrsqrt.pop %v5822
  %v5954 = vmul.f32 %v5953, %v5822
  %v5955 = vmul.f32 %v5954, %v5953
  %v5956 = vmul.f32 0.5, %v5955
  %v5957 = vsub.f32 1.5, %v5956
  %v5958 = vmul.f32 %v5953, %v5957
  %vm5959 = vweird.f32 %v5822
  %vm5960 = vweird.f32 %v5953
  %vm5961 = vmor %vm5959, %vm5960
  %v5962 = vsel %vm5961, %v5953, %v5958
  %v5963 = vrsqrt.pop %v5823
  %v5964 = vmul.f32 %v5963, %v5823
  %v5965 = vmul.f32 %v5964, %v5963
  %v5966 = vmul.f32 0.5, %v5965
  %v5967 = vsub.f32 1.5, %v5966
  %v5968 = vmul.f32 %v5963, %v5967
  %vm5969 = vweird.f32 %v5823
  %vm5970 = vweird.f32 %v5963
  %vm5971 = vmor %vm5969, %vm5970
  %v5972 = vsel %vm5971, %v5963, %v5968
  %v5973 = vrsqrt.pop %v5824
  %v5974 = vmul.f32 %v5973, %v5824
  %v5975 = vmul.f32 %v5974, %v5973
  %v5976 = vmul.f32 0.5, %v5975
  %v5977 = vsub.f32 1.5, %v5976
  %v5978 = vmul.f32 %v5973, %v5977
  %vm5979 = vweird.f32 %v5824
  %vm5980 = vweird.f32 %v5973
  %vm5981 = vmor %vm5979, %vm5980
  %v5982 = vsel %vm5981, %v5973, %v5978
  %v5983 = vrsqrt.pop %v5825
  %v5984 = vmul.f32 %v5983, %v5825
  %v5985 = vmul.f32 %v5984, %v5983
  %v5986 = vmul.f32 0.5, %v5985
  %v5987 = vsub.f32 1.5, %v5986
  %v5988 = vmul.f32 %v5983, %v5987
  %vm5989 = vweird.f32 %v5825
  %vm5990 = vweird.f32 %v5983
  %vm5991 = vmor %vm5989, %vm5990
  %v5992 = vsel %vm5991, %v5983, %v5988
  %v5993 = vrsqrt.pop %v5826
  %v5994 = vmul.f32 %v5993, %v5826
  %v5995 = vmul.f32 %v5994, %v5993
  %v5996 = vmul.f32 0.5, %v5995
  %v5997 = vsub.f32 1.5, %v5996
  %v5998 = vmul.f32 %v5993, %v5997
  %vm5999 = vweird.f32 %v5826
  %vm6000 = vweird.f32 %v5993
  %vm6001 = vmor %vm5999, %vm6000
  %v6002 = vsel %vm6001, %v5993, %v5998
  %v6003 = vrsqrt.pop %v5827
  %v6004 = vmul.f32 %v6003, %v5827
  %v6005 = vmul.f32 %v6004, %v6003
  %v6006 = vmul.f32 0.5, %v6005
  %v6007 = vsub.f32 1.5, %v6006
  %v6008 = vmul.f32 %v6003, %v6007
  %vm6009 = vweird.f32 %v5827
  %vm6010 = vweird.f32 %v6003
  %vm6011 = vmor %vm6009, %vm6010
  %v6012 = vsel %vm6011, %v6003, %v6008
  %v6013 = vrsqrt.pop %v5828
  %v6014 = vmul.f32 %v6013, %v5828
  %v6015 = vmul.f32 %v6014, %v6013
  %v6016 = vmul.f32 0.5, %v6015
  %v6017 = vsub.f32 1.5, %v6016
  %v6018 = vmul.f32 %v6013, %v6017
  %vm6019 = vweird.f32 %v5828
  %vm6020 = vweird.f32 %v6013
  %vm6021 = vmor %vm6019, %vm6020
  %v6022 = vsel %vm6021, %v6013, %v6018
  %v6023 = vrsqrt.pop %v5829
  %v6024 = vmul.f32 %v6023, %v5829
  %v6025 = vmul.f32 %v6024, %v6023
  %v6026 = vmul.f32 0.5, %v6025
  %v6027 = vsub.f32 1.5, %v6026
  %v6028 = vmul.f32 %v6023, %v6027
  %vm6029 = vweird.f32 %v5829
  %vm6030 = vweird.f32 %v6023
  %vm6031 = vmor %vm6029, %vm6030
  %v6032 = vsel %vm6031, %v6023, %v6028
  %v6033 = vrsqrt.pop %v5830
  %v6034 = vmul.f32 %v6033, %v5830
  %v6035 = vmul.f32 %v6034, %v6033
  %v6036 = vmul.f32 0.5, %v6035
  %v6037 = vsub.f32 1.5, %v6036
  %v6038 = vmul.f32 %v6033, %v6037
  %vm6039 = vweird.f32 %v5830
  %vm6040 = vweird.f32 %v6033
  %vm6041 = vmor %vm6039, %vm6040
  %v6042 = vsel %vm6041, %v6033, %v6038
  %v6043 = vrsqrt.pop %v5831
  %v6044 = vmul.f32 %v6043, %v5831
  %v6045 = vmul.f32 %v6044, %v6043
  %v6046 = vmul.f32 0.5, %v6045
  %v6047 = vsub.f32 1.5, %v6046
  %v6048 = vmul.f32 %v6043, %v6047
  %vm6049 = vweird.f32 %v5831
  %vm6050 = vweird.f32 %v6043
  %vm6051 = vmor %vm6049, %vm6050
  %v6052 = vsel %vm6051, %v6043, %v6048
  %v6053 = vrsqrt.pop %v5832
  %v6054 = vmul.f32 %v6053, %v5832
  %v6055 = vmul.f32 %v6054, %v6053
  %v6056 = vmul.f32 0.5, %v6055
  %v6057 = vsub.f32 1.5, %v6056
  %v6058 = vmul.f32 %v6053, %v6057
  %vm6059 = vweird.f32 %v5832
  %vm6060 = vweird.f32 %v6053
  %vm6061 = vmor %vm6059, %vm6060
  %v6062 = vsel %vm6061, %v6053, %v6058
  %v6063 = vrsqrt.pop %v5833
  %v6064 = vmul.f32 %v6063, %v5833
  %v6065 = vmul.f32 %v6064, %v6063
  %v6066 = vmul.f32 0.5, %v6065
  %v6067 = vsub.f32 1.5, %v6066
  %v6068 = vmul.f32 %v6063, %v6067
  %vm6069 = vweird.f32 %v5833
  %vm6070 = vweird.f32 %v6063
  %vm6071 = vmor %vm6069, %vm6070
  %v6072 = vsel %vm6071, %v6063, %v6068
  %v6073 = vrsqrt.pop %v5834
  %v6074 = vmul.f32 %v6073, %v5834
  %v6075 = vmul.f32 %v6074, %v6073
  %v6076 = vmul.f32 0.5, %v6075
  %v6077 = vsub.f32 1.5, %v6076
  %v6078 = vmul.f32 %v6073, %v6077
  %vm6079 = vweird.f32 %v5834
  %vm6080 = vweird.f32 %v6073
  %vm6081 = vmor %vm6079, %vm6080
  %v6082 = vsel %vm6081, %v6073, %v6078
  %v6083 = vrsqrt.pop %v5835
  %v6084 = vmul.f32 %v6083, %v5835
  %v6085 = vmul.f32 %v6084, %v6083
  %v6086 = vmul.f32 0.5, %v6085
  %v6087 = vsub.f32 1.5, %v6086
  %v6088 = vmul.f32 %v6083, %v6087
  %vm6089 = vweird.f32 %v5835
  %vm6090 = vweird.f32 %v6083
  %vm6091 = vmor %vm6089, %vm6090
  %v6092 = vsel %vm6091, %v6083, %v6088
  %v6093 = vrsqrt.pop %v5836
  %v6094 = vmul.f32 %v6093, %v5836
  %v6095 = vmul.f32 %v6094, %v6093
  %v6096 = vmul.f32 0.5, %v6095
  %v6097 = vsub.f32 1.5, %v6096
  %v6098 = vmul.f32 %v6093, %v6097
  %vm6099 = vweird.f32 %v5836
  %vm6100 = vweird.f32 %v6093
  %vm6101 = vmor %vm6099, %vm6100
  %v6102 = vsel %vm6101, %v6093, %v6098
  %v6103 = vrsqrt.pop %v5837
  %v6104 = vmul.f32 %v6103, %v5837
  %v6105 = vmul.f32 %v6104, %v6103
  %v6106 = vmul.f32 0.5, %v6105
  %v6107 = vsub.f32 1.5, %v6106
  %v6108 = vmul.f32 %v6103, %v6107
  %vm6109 = vweird.f32 %v5837
  %vm6110 = vweird.f32 %v6103
  %vm6111 = vmor %vm6109, %vm6110
  %v6112 = vsel %vm6111, %v6103, %v6108
  %v6113 = vrsqrt.pop %v5838
  %v6114 = vmul.f32 %v6113, %v5838
  %v6115 = vmul.f32 %v6114, %v6113
  %v6116 = vmul.f32 0.5, %v6115
  %v6117 = vsub.f32 1.5, %v6116
  %v6118 = vmul.f32 %v6113, %v6117
  %vm6119 = vweird.f32 %v5838
  %vm6120 = vweird.f32 %v6113
  %vm6121 = vmor %vm6119, %vm6120
  %v6122 = vsel %vm6121, %v6113, %v6118
  %v6123 = vrsqrt.pop %v5839
  %v6124 = vmul.f32 %v6123, %v5839
  %v6125 = vmul.f32 %v6124, %v6123
  %v6126 = vmul.f32 0.5, %v6125
  %v6127 = vsub.f32 1.5, %v6126
  %v6128 = vmul.f32 %v6123, %v6127
  %vm6129 = vweird.f32 %v5839
  %vm6130 = vweird.f32 %v6123
  %vm6131 = vmor %vm6129, %vm6130
  %v6132 = vsel %vm6131, %v6123, %v6128
  %v6133 = vrsqrt.pop %v5840
  %v6134 = vmul.f32 %v6133, %v5840
  %v6135 = vmul.f32 %v6134, %v6133
  %v6136 = vmul.f32 0.5, %v6135
  %v6137 = vsub.f32 1.5, %v6136
  %v6138 = vmul.f32 %v6133, %v6137
  %vm6139 = vweird.f32 %v5840
  %vm6140 = vweird.f32 %v6133
  %vm6141 = vmor %vm6139, %vm6140
  %v6142 = vsel %vm6141, %v6133, %v6138
  %v6143 = vrsqrt.pop %v5841
  %v6144 = vmul.f32 %v6143, %v5841
  %v6145 = vmul.f32 %v6144, %v6143
  %v6146 = vmul.f32 0.5, %v6145
  %v6147 = vsub.f32 1.5, %v6146
  %v6148 = vmul.f32 %v6143, %v6147
  %vm6149 = vweird.f32 %v5841
  %vm6150 = vweird.f32 %v6143
  %vm6151 = vmor %vm6149, %vm6150
  %v6152 = vsel %vm6151, %v6143, %v6148
  %v6153 = vrsqrt.pop %v5842
  %v6154 = vmul.f32 %v6153, %v5842
  %v6155 = vmul.f32 %v6154, %v6153
  %v6156 = vmul.f32 0.5, %v6155
  %v6157 = vsub.f32 1.5, %v6156
  %v6158 = vmul.f32 %v6153, %v6157
  %vm6159 = vweird.f32 %v5842
  %vm6160 = vweird.f32 %v6153
  %vm6161 = vmor %vm6159, %vm6160
  %v6162 = vsel %vm6161, %v6153, %v6158
  %v6163 = vmul.f32 %v5619, %v5852
  %v6164 = vmul.f32 %v5620, %v5862
  %v6165 = vmul.f32 %v5621, %v5872
  %v6166 = vmul.f32 %v5622, %v5882
  %v6167 = vmul.f32 %v5623, %v5892
  %v6168 = vmul.f32 %v5624, %v5902
  %v6169 = vmul.f32 %v5625, %v5912
  %v6170 = vmul.f32 %v5626, %v5922
  %v6171 = vmul.f32 %v5627, %v5932
  %v6172 = vmul.f32 %v5628, %v5942
  %v6173 = vmul.f32 %v5629, %v5952
  %v6174 = vmul.f32 %v5630, %v5962
  %v6175 = vmul.f32 %v5631, %v5972
  %v6176 = vmul.f32 %v5632, %v5982
  %v6177 = vmul.f32 %v5633, %v5992
  %v6178 = vmul.f32 %v5634, %v6002
  %v6179 = vmul.f32 %v5635, %v6012
  %v6180 = vmul.f32 %v5636, %v6022
  %v6181 = vmul.f32 %v5637, %v6032
  %v6182 = vmul.f32 %v5638, %v6042
  %v6183 = vmul.f32 %v5639, %v6052
  %v6184 = vmul.f32 %v5640, %v6062
  %v6185 = vmul.f32 %v5641, %v6072
  %v6186 = vmul.f32 %v5642, %v6082
  %v6187 = vmul.f32 %v5643, %v6092
  %v6188 = vmul.f32 %v5644, %v6102
  %v6189 = vmul.f32 %v5645, %v6112
  %v6190 = vmul.f32 %v5646, %v6122
  %v6191 = vmul.f32 %v5647, %v6132
  %v6192 = vmul.f32 %v5648, %v6142
  %v6193 = vmul.f32 %v5649, %v6152
  %v6194 = vmul.f32 %v5650, %v6162
  %v6195 = vmul.f32 %v6163, %v923
  %v6196 = vmul.f32 %v6164, %v923
  %v6197 = vmul.f32 %v6165, %v923
  %v6198 = vmul.f32 %v6166, %v923
  %v6199 = vmul.f32 %v6167, %v923
  %v6200 = vmul.f32 %v6168, %v923
  %v6201 = vmul.f32 %v6169, %v923
  %v6202 = vmul.f32 %v6170, %v923
  %v6203 = vmul.f32 %v6171, %v923
  %v6204 = vmul.f32 %v6172, %v923
  %v6205 = vmul.f32 %v6173, %v923
  %v6206 = vmul.f32 %v6174, %v923
  %v6207 = vmul.f32 %v6175, %v923
  %v6208 = vmul.f32 %v6176, %v923
  %v6209 = vmul.f32 %v6177, %v923
  %v6210 = vmul.f32 %v6178, %v923
  %v6211 = vmul.f32 %v6179, %v923
  %v6212 = vmul.f32 %v6180, %v923
  %v6213 = vmul.f32 %v6181, %v923
  %v6214 = vmul.f32 %v6182, %v923
  %v6215 = vmul.f32 %v6183, %v923
  %v6216 = vmul.f32 %v6184, %v923
  %v6217 = vmul.f32 %v6185, %v923
  %v6218 = vmul.f32 %v6186, %v923
  %v6219 = vmul.f32 %v6187, %v923
  %v6220 = vmul.f32 %v6188, %v923
  %v6221 = vmul.f32 %v6189, %v923
  %v6222 = vmul.f32 %v6190, %v923
  %v6223 = vmul.f32 %v6191, %v923
  %v6224 = vmul.f32 %v6192, %v923
  %v6225 = vmul.f32 %v6193, %v923
  %v6226 = vmul.f32 %v6194, %v923
  %v6227 = vadd.f32 %v6195, %v958
  %v6228 = vadd.f32 %v6196, %v958
  %v6229 = vadd.f32 %v6197, %v958
  %v6230 = vadd.f32 %v6198, %v958
  %v6231 = vadd.f32 %v6199, %v958
  %v6232 = vadd.f32 %v6200, %v958
  %v6233 = vadd.f32 %v6201, %v958
  %v6234 = vadd.f32 %v6202, %v958
  %v6235 = vadd.f32 %v6203, %v958
  %v6236 = vadd.f32 %v6204, %v958
  %v6237 = vadd.f32 %v6205, %v958
  %v6238 = vadd.f32 %v6206, %v958
  %v6239 = vadd.f32 %v6207, %v958
  %v6240 = vadd.f32 %v6208, %v958
  %v6241 = vadd.f32 %v6209, %v958
  %v6242 = vadd.f32 %v6210, %v958
  %v6243 = vadd.f32 %v6211, %v958
  %v6244 = vadd.f32 %v6212, %v958
  %v6245 = vadd.f32 %v6213, %v958
  %v6246 = vadd.f32 %v6214, %v958
  %v6247 = vadd.f32 %v6215, %v958
  %v6248 = vadd.f32 %v6216, %v958
  %v6249 = vadd.f32 %v6217, %v958
  %v6250 = vadd.f32 %v6218, %v958
  %v6251 = vadd.f32 %v6219, %v958
  %v6252 = vadd.f32 %v6220, %v958
  %v6253 = vadd.f32 %v6221, %v958
  %v6254 = vadd.f32 %v6222, %v958
  %v6255 = vadd.f32 %v6223, %v958
  %v6256 = vadd.f32 %v6224, %v958
  %v6257 = vadd.f32 %v6225, %v958
  %v6258 = vadd.f32 %v6226, %v958
  %6259 = vst.msk [vmem:[#allocation2 + $0x20] sm:$0xff] %vm35, %v6227
  %6260 = vst.msk [vmem:[#allocation2 + $0x28] sm:$0xff] %vm35, %v6228
  %6261 = vst.msk [vmem:[#allocation2 + $0x30] sm:$0xff] %vm35, %v6229
  %6262 = vst.msk [vmem:[#allocation2 + $0x38] sm:$0xff] %vm35, %v6230
  %6263 = vst.msk [vmem:[#allocation2 + $0x40] sm:$0xff] %vm35, %v6231
  %6264 = vst.msk [vmem:[#allocation2 + $0x48] sm:$0xff] %vm35, %v6232
  %6265 = vst.msk [vmem:[#allocation2 + $0x50] sm:$0xff] %vm35, %v6233
  %6266 = vst.msk [vmem:[#allocation2 + $0x58] sm:$0xff] %vm35, %v6234
  %6267 = vst.msk [vmem:[#allocation2 + $0x60] sm:$0xff] %vm35, %v6235
  %6268 = vst.msk [vmem:[#allocation2 + $0x68] sm:$0xff] %vm35, %v6236
  %6269 = vst.msk [vmem:[#allocation2 + $0x70] sm:$0xff] %vm35, %v6237
  %6270 = vst.msk [vmem:[#allocation2 + $0x78] sm:$0xff] %vm35, %v6238
  %6271 = vst.msk [vmem:[#allocation2 + $0x80] sm:$0xff] %vm35, %v6239
  %6272 = vst.msk [vmem:[#allocation2 + $0x88] sm:$0xff] %vm35, %v6240
  %6273 = vst.msk [vmem:[#allocation2 + $0x90] sm:$0xff] %vm35, %v6241
  %6274 = vst.msk [vmem:[#allocation2 + $0x98] sm:$0xff] %vm35, %v6242
  %6275 = vst.msk [vmem:[#allocation2 + $0xa0] sm:$0xff] %vm35, %v6243
  %6276 = vst.msk [vmem:[#allocation2 + $0xa8] sm:$0xff] %vm35, %v6244
  %6277 = vst.msk [vmem:[#allocation2 + $0xb0] sm:$0xff] %vm35, %v6245
  %6278 = vst.msk [vmem:[#allocation2 + $0xb8] sm:$0xff] %vm35, %v6246
  %6279 = vst.msk [vmem:[#allocation2 + $0xc0] sm:$0xff] %vm35, %v6247
  %6280 = vst.msk [vmem:[#allocation2 + $0xc8] sm:$0xff] %vm35, %v6248
  %6281 = vst.msk [vmem:[#allocation2 + $0xd0] sm:$0xff] %vm35, %v6249
  %6282 = vst.msk [vmem:[#allocation2 + $0xd8] sm:$0xff] %vm35, %v6250
  %6283 = vst.msk [vmem:[#allocation2 + $0xe0] sm:$0xff] %vm35, %v6251
  %6284 = vst.msk [vmem:[#allocation2 + $0xe8] sm:$0xff] %vm35, %v6252
  %6285 = vst.msk [vmem:[#allocation2 + $0xf0] sm:$0xff] %vm35, %v6253
  %6286 = vst.msk [vmem:[#allocation2 + $0xf8] sm:$0xff] %vm35, %v6254
  %6287 = vst.msk [vmem:[#allocation2 + $0x100] sm:$0xff] %vm35, %v6255
  %6288 = vst.msk [vmem:[#allocation2 + $0x108] sm:$0xff] %vm35, %v6256
  %6289 = vst.msk [vmem:[#allocation2 + $0x110] sm:$0xff] %vm35, %v6257
  %6290 = vst.msk [vmem:[#allocation2 + $0x118] sm:$0xff] %vm35, %v6258
  %v6291 = vld [vmem:[#allocation2 + $0x40] sm:$0xff]
  %v6292 = vld [vmem:[#allocation2 + $0x48] sm:$0xff]
  %v6293 = vld [vmem:[#allocation2 + $0x50] sm:$0xff]
  %v6294 = vld [vmem:[#allocation2 + $0x58] sm:$0xff]
  %v6295 = vld [vmem:[#allocation2 + $0x60] sm:$0xff]
  %v6296 = vld [vmem:[#allocation2 + $0x68] sm:$0xff]
  %v6297 = vld [vmem:[#allocation2 + $0x70] sm:$0xff]
  %v6298 = vld [vmem:[#allocation2 + $0x78] sm:$0xff]
  %v6299 = vld [vmem:[#allocation2 + $0x80] sm:$0xff]
  %v6300 = vld [vmem:[#allocation2 + $0x88] sm:$0xff]
  %v6301 = vld [vmem:[#allocation2 + $0x90] sm:$0xff]
  %v6302 = vld [vmem:[#allocation2 + $0x98] sm:$0xff]
  %v6303 = vld [vmem:[#allocation2 + $0xa0] sm:$0xff]
  %v6304 = vld [vmem:[#allocation2 + $0xa8] sm:$0xff]
  %v6305 = vld [vmem:[#allocation2 + $0xb0] sm:$0xff]
  %v6306 = vld [vmem:[#allocation2 + $0xb8] sm:$0xff]
  %v6307 = vld [vmem:[#allocation2 + $0xc0] sm:$0xff]
  %v6308 = vld [vmem:[#allocation2 + $0xc8] sm:$0xff]
  %v6309 = vld [vmem:[#allocation2 + $0xd0] sm:$0xff]
  %v6310 = vld [vmem:[#allocation2 + $0xd8] sm:$0xff]
  %v6311 = vld [vmem:[#allocation2 + $0xe0] sm:$0xff]
  %v6312 = vld [vmem:[#allocation2 + $0xe8] sm:$0xff]
  %v6313 = vld [vmem:[#allocation2 + $0xf0] sm:$0xff]
  %v6314 = vld [vmem:[#allocation2 + $0xf8] sm:$0xff]
  %v6315 = vld [vmem:[#allocation2 + $0x100] sm:$0xff]
  %v6316 = vld [vmem:[#allocation2 + $0x108] sm:$0xff]
  %v6317 = vld [vmem:[#allocation2 + $0x110] sm:$0xff]
  %v6318 = vld [vmem:[#allocation2 + $0x118] sm:$0xff]
  %v6319 = vld [vmem:[#allocation2 + $0x120] sm:$0xff]
  %v6320 = vld [vmem:[#allocation2 + $0x128] sm:$0xff]
  %v6321 = vld [vmem:[#allocation2 + $0x130] sm:$0xff]
  %v6322 = vld [vmem:[#allocation2 + $0x138] sm:$0xff]
  %v6323 = vsel %vm1057, %v6291, 0.0
  %v6324 = vsel %vm1057, %v6292, 0.0
  %v6325 = vsel %vm1057, %v6293, 0.0
  %v6326 = vsel %vm1057, %v6294, 0.0
  %v6327 = vsel %vm1057, %v6295, 0.0
  %v6328 = vsel %vm1057, %v6296, 0.0
  %v6329 = vsel %vm1057, %v6297, 0.0
  %v6330 = vsel %vm1057, %v6298, 0.0
  %v6331 = vsel %vm1057, %v6299, 0.0
  %v6332 = vsel %vm1057, %v6300, 0.0
  %v6333 = vsel %vm1057, %v6301, 0.0
  %v6334 = vsel %vm1057, %v6302, 0.0
  %v6335 = vsel %vm1057, %v6303, 0.0
  %v6336 = vsel %vm1057, %v6304, 0.0
  %v6337 = vsel %vm1057, %v6305, 0.0
  %v6338 = vsel %vm1057, %v6306, 0.0
  %v6339 = vsel %vm1057, %v6307, 0.0
  %v6340 = vsel %vm1057, %v6308, 0.0
  %v6341 = vsel %vm1057, %v6309, 0.0
  %v6342 = vsel %vm1057, %v6310, 0.0
  %v6343 = vsel %vm1057, %v6311, 0.0
  %v6344 = vsel %vm1057, %v6312, 0.0
  %v6345 = vsel %vm1057, %v6313, 0.0
  %v6346 = vsel %vm1057, %v6314, 0.0
  %v6347 = vsel %vm1057, %v6315, 0.0
  %v6348 = vsel %vm1057, %v6316, 0.0
  %v6349 = vsel %vm1057, %v6317, 0.0
  %v6350 = vsel %vm1057, %v6318, 0.0
  %v6351 = vsel %vm1057, %v6319, 0.0
  %v6352 = vsel %vm1057, %v6320, 0.0
  %v6353 = vsel %vm1057, %v6321, 0.0
  %v6354 = vsel %vm1057, %v6322, 0.0
  %v6355 = vadd.f32 %v6323, 0.0
  %v6356 = vadd.f32 %v6324, 0.0
  %v6357 = vadd.f32 %v6325, 0.0
  %v6358 = vadd.f32 %v6326, 0.0
  %v6359 = vadd.f32 %v6327, 0.0
  %v6360 = vadd.f32 %v6328, 0.0
  %v6361 = vadd.f32 %v6329, 0.0
  %v6362 = vadd.f32 %v6330, 0.0
  %v6363 = vadd.f32 %v6331, 0.0
  %v6364 = vadd.f32 %v6332, 0.0
  %v6365 = vadd.f32 %v6333, 0.0
  %v6366 = vadd.f32 %v6334, 0.0
  %v6367 = vadd.f32 %v6335, 0.0
  %v6368 = vadd.f32 %v6336, 0.0
  %v6369 = vadd.f32 %v6337, 0.0
  %v6370 = vadd.f32 %v6338, 0.0
  %v6371 = vadd.f32 %v6339, 0.0
  %v6372 = vadd.f32 %v6340, 0.0
  %v6373 = vadd.f32 %v6341, 0.0
  %v6374 = vadd.f32 %v6342, 0.0
  %v6375 = vadd.f32 %v6343, 0.0
  %v6376 = vadd.f32 %v6344, 0.0
  %v6377 = vadd.f32 %v6345, 0.0
  %v6378 = vadd.f32 %v6346, 0.0
  %v6379 = vadd.f32 %v6347, 0.0
  %v6380 = vadd.f32 %v6348, 0.0
  %v6381 = vadd.f32 %v6349, 0.0
  %v6382 = vadd.f32 %v6350, 0.0
  %v6383 = vadd.f32 %v6351, 0.0
  %v6384 = vadd.f32 %v6352, 0.0
  %v6385 = vadd.f32 %v6353, 0.0
  %v6386 = vadd.f32 %v6354, 0.0
  %v6387 = vld [vmem:[#allocation2 + $0x30] sm:$0xff]
  %v6388 = vld [vmem:[#allocation2 + $0x38] sm:$0xff]
  %v6389 = vsel %vm1125, %v6387, 0.0
  %v6390 = vsel %vm1125, %v6388, 0.0
  %v6391 = vsel %vm1125, %v6291, 0.0
  %v6392 = vsel %vm1125, %v6292, 0.0
  %v6393 = vsel %vm1125, %v6293, 0.0
  %v6394 = vsel %vm1125, %v6294, 0.0
  %v6395 = vsel %vm1125, %v6295, 0.0
  %v6396 = vsel %vm1125, %v6296, 0.0
  %v6397 = vsel %vm1125, %v6297, 0.0
  %v6398 = vsel %vm1125, %v6298, 0.0
  %v6399 = vsel %vm1125, %v6299, 0.0
  %v6400 = vsel %vm1125, %v6300, 0.0
  %v6401 = vsel %vm1125, %v6301, 0.0
  %v6402 = vsel %vm1125, %v6302, 0.0
  %v6403 = vsel %vm1125, %v6303, 0.0
  %v6404 = vsel %vm1125, %v6304, 0.0
  %v6405 = vsel %vm1125, %v6305, 0.0
  %v6406 = vsel %vm1125, %v6306, 0.0
  %v6407 = vsel %vm1125, %v6307, 0.0
  %v6408 = vsel %vm1125, %v6308, 0.0
  %v6409 = vsel %vm1125, %v6309, 0.0
  %v6410 = vsel %vm1125, %v6310, 0.0
  %v6411 = vsel %vm1125, %v6311, 0.0
  %v6412 = vsel %vm1125, %v6312, 0.0
  %v6413 = vsel %vm1125, %v6313, 0.0
  %v6414 = vsel %vm1125, %v6314, 0.0
  %v6415 = vsel %vm1125, %v6315, 0.0
  %v6416 = vsel %vm1125, %v6316, 0.0
  %v6417 = vsel %vm1125, %v6317, 0.0
  %v6418 = vsel %vm1125, %v6318, 0.0
  %v6419 = vsel %vm1125, %v6319, 0.0
  %v6420 = vsel %vm1125, %v6320, 0.0
  %v6421 = vadd.f32 %v6355, %v6389
  %v6422 = vadd.f32 %v6356, %v6390
  %v6423 = vadd.f32 %v6357, %v6391
  %v6424 = vadd.f32 %v6358, %v6392
  %v6425 = vadd.f32 %v6359, %v6393
  %v6426 = vadd.f32 %v6360, %v6394
  %v6427 = vadd.f32 %v6361, %v6395
  %v6428 = vadd.f32 %v6362, %v6396
  %v6429 = vadd.f32 %v6363, %v6397
  %v6430 = vadd.f32 %v6364, %v6398
  %v6431 = vadd.f32 %v6365, %v6399
  %v6432 = vadd.f32 %v6366, %v6400
  %v6433 = vadd.f32 %v6367, %v6401
  %v6434 = vadd.f32 %v6368, %v6402
  %v6435 = vadd.f32 %v6369, %v6403
  %v6436 = vadd.f32 %v6370, %v6404
  %v6437 = vadd.f32 %v6371, %v6405
  %v6438 = vadd.f32 %v6372, %v6406
  %v6439 = vadd.f32 %v6373, %v6407
  %v6440 = vadd.f32 %v6374, %v6408
  %v6441 = vadd.f32 %v6375, %v6409
  %v6442 = vadd.f32 %v6376, %v6410
  %v6443 = vadd.f32 %v6377, %v6411
  %v6444 = vadd.f32 %v6378, %v6412
  %v6445 = vadd.f32 %v6379, %v6413
  %v6446 = vadd.f32 %v6380, %v6414
  %v6447 = vadd.f32 %v6381, %v6415
  %v6448 = vadd.f32 %v6382, %v6416
  %v6449 = vadd.f32 %v6383, %v6417
  %v6450 = vadd.f32 %v6384, %v6418
  %v6451 = vadd.f32 %v6385, %v6419
  %v6452 = vadd.f32 %v6386, %v6420
  %v6453 = vld [vmem:[#allocation2 + $0x20] sm:$0xff]
  %v6454 = vld [vmem:[#allocation2 + $0x28] sm:$0xff]
  %v6455 = vsel %vm1193, %v6453, 0.0
  %v6456 = vsel %vm1193, %v6454, 0.0
  %v6457 = vsel %vm1193, %v6387, 0.0
  %v6458 = vsel %vm1193, %v6388, 0.0
  %v6459 = vsel %vm1193, %v6291, 0.0
  %v6460 = vsel %vm1193, %v6292, 0.0
  %v6461 = vsel %vm1193, %v6293, 0.0
  %v6462 = vsel %vm1193, %v6294, 0.0
  %v6463 = vsel %vm1193, %v6295, 0.0
  %v6464 = vsel %vm1193, %v6296, 0.0
  %v6465 = vsel %vm1193, %v6297, 0.0
  %v6466 = vsel %vm1193, %v6298, 0.0
  %v6467 = vsel %vm1193, %v6299, 0.0
  %v6468 = vsel %vm1193, %v6300, 0.0
  %v6469 = vsel %vm1193, %v6301, 0.0
  %v6470 = vsel %vm1193, %v6302, 0.0
  %v6471 = vsel %vm1193, %v6303, 0.0
  %v6472 = vsel %vm1193, %v6304, 0.0
  %v6473 = vsel %vm1193, %v6305, 0.0
  %v6474 = vsel %vm1193, %v6306, 0.0
  %v6475 = vsel %vm1193, %v6307, 0.0
  %v6476 = vsel %vm1193, %v6308, 0.0
  %v6477 = vsel %vm1193, %v6309, 0.0
  %v6478 = vsel %vm1193, %v6310, 0.0
  %v6479 = vsel %vm1193, %v6311, 0.0
  %v6480 = vsel %vm1193, %v6312, 0.0
  %v6481 = vsel %vm1193, %v6313, 0.0
  %v6482 = vsel %vm1193, %v6314, 0.0
  %v6483 = vsel %vm1193, %v6315, 0.0
  %v6484 = vsel %vm1193, %v6316, 0.0
  %v6485 = vsel %vm1193, %v6317, 0.0
  %v6486 = vsel %vm1193, %v6318, 0.0
  %v6487 = vadd.f32 %v6421, %v6455
  %v6488 = vadd.f32 %v6422, %v6456
  %v6489 = vadd.f32 %v6423, %v6457
  %v6490 = vadd.f32 %v6424, %v6458
  %v6491 = vadd.f32 %v6425, %v6459
  %v6492 = vadd.f32 %v6426, %v6460
  %v6493 = vadd.f32 %v6427, %v6461
  %v6494 = vadd.f32 %v6428, %v6462
  %v6495 = vadd.f32 %v6429, %v6463
  %v6496 = vadd.f32 %v6430, %v6464
  %v6497 = vadd.f32 %v6431, %v6465
  %v6498 = vadd.f32 %v6432, %v6466
  %v6499 = vadd.f32 %v6433, %v6467
  %v6500 = vadd.f32 %v6434, %v6468
  %v6501 = vadd.f32 %v6435, %v6469
  %v6502 = vadd.f32 %v6436, %v6470
  %v6503 = vadd.f32 %v6437, %v6471
  %v6504 = vadd.f32 %v6438, %v6472
  %v6505 = vadd.f32 %v6439, %v6473
  %v6506 = vadd.f32 %v6440, %v6474
  %v6507 = vadd.f32 %v6441, %v6475
  %v6508 = vadd.f32 %v6442, %v6476
  %v6509 = vadd.f32 %v6443, %v6477
  %v6510 = vadd.f32 %v6444, %v6478
  %v6511 = vadd.f32 %v6445, %v6479
  %v6512 = vadd.f32 %v6446, %v6480
  %v6513 = vadd.f32 %v6447, %v6481
  %v6514 = vadd.f32 %v6448, %v6482
  %v6515 = vadd.f32 %v6449, %v6483
  %v6516 = vadd.f32 %v6450, %v6484
  %v6517 = vadd.f32 %v6451, %v6485
  %v6518 = vadd.f32 %v6452, %v6486
  %v6519 = vld [vmem:[#allocation2 + $0x10] sm:$0xff]
  %v6520 = vld [vmem:[#allocation2 + $0x18] sm:$0xff]
  %v6521 = vsel %vm1261, %v6519, 0.0
  %v6522 = vsel %vm1261, %v6520, 0.0
  %v6523 = vsel %vm1261, %v6453, 0.0
  %v6524 = vsel %vm1261, %v6454, 0.0
  %v6525 = vsel %vm1261, %v6387, 0.0
  %v6526 = vsel %vm1261, %v6388, 0.0
  %v6527 = vsel %vm1261, %v6291, 0.0
  %v6528 = vsel %vm1261, %v6292, 0.0
  %v6529 = vsel %vm1261, %v6293, 0.0
  %v6530 = vsel %vm1261, %v6294, 0.0
  %v6531 = vsel %vm1261, %v6295, 0.0
  %v6532 = vsel %vm1261, %v6296, 0.0
  %v6533 = vsel %vm1261, %v6297, 0.0
  %v6534 = vsel %vm1261, %v6298, 0.0
  %v6535 = vsel %vm1261, %v6299, 0.0
  %v6536 = vsel %vm1261, %v6300, 0.0
  %v6537 = vsel %vm1261, %v6301, 0.0
  %v6538 = vsel %vm1261, %v6302, 0.0
  %v6539 = vsel %vm1261, %v6303, 0.0
  %v6540 = vsel %vm1261, %v6304, 0.0
  %v6541 = vsel %vm1261, %v6305, 0.0
  %v6542 = vsel %vm1261, %v6306, 0.0
  %v6543 = vsel %vm1261, %v6307, 0.0
  %v6544 = vsel %vm1261, %v6308, 0.0
  %v6545 = vsel %vm1261, %v6309, 0.0
  %v6546 = vsel %vm1261, %v6310, 0.0
  %v6547 = vsel %vm1261, %v6311, 0.0
  %v6548 = vsel %vm1261, %v6312, 0.0
  %v6549 = vsel %vm1261, %v6313, 0.0
  %v6550 = vsel %vm1261, %v6314, 0.0
  %v6551 = vsel %vm1261, %v6315, 0.0
  %v6552 = vsel %vm1261, %v6316, 0.0
  %v6553 = vadd.f32 %v6487, %v6521
  %v6554 = vadd.f32 %v6488, %v6522
  %v6555 = vadd.f32 %v6489, %v6523
  %v6556 = vadd.f32 %v6490, %v6524
  %v6557 = vadd.f32 %v6491, %v6525
  %v6558 = vadd.f32 %v6492, %v6526
  %v6559 = vadd.f32 %v6493, %v6527
  %v6560 = vadd.f32 %v6494, %v6528
  %v6561 = vadd.f32 %v6495, %v6529
  %v6562 = vadd.f32 %v6496, %v6530
  %v6563 = vadd.f32 %v6497, %v6531
  %v6564 = vadd.f32 %v6498, %v6532
  %v6565 = vadd.f32 %v6499, %v6533
  %v6566 = vadd.f32 %v6500, %v6534
  %v6567 = vadd.f32 %v6501, %v6535
  %v6568 = vadd.f32 %v6502, %v6536
  %v6569 = vadd.f32 %v6503, %v6537
  %v6570 = vadd.f32 %v6504, %v6538
  %v6571 = vadd.f32 %v6505, %v6539
  %v6572 = vadd.f32 %v6506, %v6540
  %v6573 = vadd.f32 %v6507, %v6541
  %v6574 = vadd.f32 %v6508, %v6542
  %v6575 = vadd.f32 %v6509, %v6543
  %v6576 = vadd.f32 %v6510, %v6544
  %v6577 = vadd.f32 %v6511, %v6545
  %v6578 = vadd.f32 %v6512, %v6546
  %v6579 = vadd.f32 %v6513, %v6547
  %v6580 = vadd.f32 %v6514, %v6548
  %v6581 = vadd.f32 %v6515, %v6549
  %v6582 = vadd.f32 %v6516, %v6550
  %v6583 = vadd.f32 %v6517, %v6551
  %v6584 = vadd.f32 %v6518, %v6552
  %v6585 = vld [vmem:[#allocation2] sm:$0xff]
  %v6586 = vld [vmem:[#allocation2 + $0x8] sm:$0xff]
  %v6587 = vsel %vm1329, %v6585, 0.0
  %v6588 = vsel %vm1329, %v6586, 0.0
  %v6589 = vsel %vm1329, %v6519, 0.0
  %v6590 = vsel %vm1329, %v6520, 0.0
  %v6591 = vsel %vm1329, %v6453, 0.0
  %v6592 = vsel %vm1329, %v6454, 0.0
  %v6593 = vsel %vm1329, %v6387, 0.0
  %v6594 = vsel %vm1329, %v6388, 0.0
  %v6595 = vsel %vm1329, %v6291, 0.0
  %v6596 = vsel %vm1329, %v6292, 0.0
  %v6597 = vsel %vm1329, %v6293, 0.0
  %v6598 = vsel %vm1329, %v6294, 0.0
  %v6599 = vsel %vm1329, %v6295, 0.0
  %v6600 = vsel %vm1329, %v6296, 0.0
  %v6601 = vsel %vm1329, %v6297, 0.0
  %v6602 = vsel %vm1329, %v6298, 0.0
  %v6603 = vsel %vm1329, %v6299, 0.0
  %v6604 = vsel %vm1329, %v6300, 0.0
  %v6605 = vsel %vm1329, %v6301, 0.0
  %v6606 = vsel %vm1329, %v6302, 0.0
  %v6607 = vsel %vm1329, %v6303, 0.0
  %v6608 = vsel %vm1329, %v6304, 0.0
  %v6609 = vsel %vm1329, %v6305, 0.0
  %v6610 = vsel %vm1329, %v6306, 0.0
  %v6611 = vsel %vm1329, %v6307, 0.0
  %v6612 = vsel %vm1329, %v6308, 0.0
  %v6613 = vsel %vm1329, %v6309, 0.0
  %v6614 = vsel %vm1329, %v6310, 0.0
  %v6615 = vsel %vm1329, %v6311, 0.0
  %v6616 = vsel %vm1329, %v6312, 0.0
  %v6617 = vsel %vm1329, %v6313, 0.0
  %v6618 = vsel %vm1329, %v6314, 0.0
  %v6619 = vadd.f32 %v6553, %v6587
  %v6620 = vadd.f32 %v6554, %v6588
  %v6621 = vadd.f32 %v6555, %v6589
  %v6622 = vadd.f32 %v6556, %v6590
  %v6623 = vadd.f32 %v6557, %v6591
  %v6624 = vadd.f32 %v6558, %v6592
  %v6625 = vadd.f32 %v6559, %v6593
  %v6626 = vadd.f32 %v6560, %v6594
  %v6627 = vadd.f32 %v6561, %v6595
  %v6628 = vadd.f32 %v6562, %v6596
  %v6629 = vadd.f32 %v6563, %v6597
  %v6630 = vadd.f32 %v6564, %v6598
  %v6631 = vadd.f32 %v6565, %v6599
  %v6632 = vadd.f32 %v6566, %v6600
  %v6633 = vadd.f32 %v6567, %v6601
  %v6634 = vadd.f32 %v6568, %v6602
  %v6635 = vadd.f32 %v6569, %v6603
  %v6636 = vadd.f32 %v6570, %v6604
  %v6637 = vadd.f32 %v6571, %v6605
  %v6638 = vadd.f32 %v6572, %v6606
  %v6639 = vadd.f32 %v6573, %v6607
  %v6640 = vadd.f32 %v6574, %v6608
  %v6641 = vadd.f32 %v6575, %v6609
  %v6642 = vadd.f32 %v6576, %v6610
  %v6643 = vadd.f32 %v6577, %v6611
  %v6644 = vadd.f32 %v6578, %v6612
  %v6645 = vadd.f32 %v6579, %v6613
  %v6646 = vadd.f32 %v6580, %v6614
  %v6647 = vadd.f32 %v6581, %v6615
  %v6648 = vadd.f32 %v6582, %v6616
  %v6649 = vadd.f32 %v6583, %v6617
  %v6650 = vadd.f32 %v6584, %v6618
  %v6652 = vsel %vm35, %v6619, 0
  %v6655 = vsel %vm35, %v6620, 0
  %v6658 = vsel %vm35, %v6621, 0
  %v6661 = vsel %vm35, %v6622, 0
  %v6664 = vsel %vm35, %v6623, 0
  %v6667 = vsel %vm35, %v6624, 0
  %v6670 = vsel %vm35, %v6625, 0
  %v6673 = vsel %vm35, %v6626, 0
  %v6676 = vsel %vm35, %v6627, 0
  %v6679 = vsel %vm35, %v6628, 0
  %v6682 = vsel %vm35, %v6629, 0
  %v6685 = vsel %vm35, %v6630, 0
  %v6688 = vsel %vm35, %v6631, 0
  %v6691 = vsel %vm35, %v6632, 0
  %v6694 = vsel %vm35, %v6633, 0
  %v6697 = vsel %vm35, %v6634, 0
  %v6700 = vsel %vm35, %v6635, 0
  %v6703 = vsel %vm35, %v6636, 0
  %v6706 = vsel %vm35, %v6637, 0
  %v6709 = vsel %vm35, %v6638, 0
  %v6712 = vsel %vm35, %v6639, 0
  %v6715 = vsel %vm35, %v6640, 0
  %v6718 = vsel %vm35, %v6641, 0
  %v6721 = vsel %vm35, %v6642, 0
  %v6724 = vsel %vm35, %v6643, 0
  %v6727 = vsel %vm35, %v6644, 0
  %v6730 = vsel %vm35, %v6645, 0
  %v6733 = vsel %vm35, %v6646, 0
  %v6736 = vsel %vm35, %v6647, 0
  %v6739 = vsel %vm35, %v6648, 0
  %v6742 = vsel %vm35, %v6649, 0
  %v6745 = vsel %vm35, %v6650, 0
  %6747 = vmatpush.msra.mxu0 0.0
  %6748 = vmatpush.msra.mxu0 0.0
  %6749 = vmatpush.msra.mxu0 0.0
  %6750 = vmatpush.msra.mxu0 0.0
  %6751 = vmatpush.msra.mxu0 0.0
  %6752 = vmatpush.msra.mxu0 0.0
  %6753 = vmatpush.msra.mxu0 0.0
  %6754 = vmatpush.msra.mxu0 0.0
  %6755 = vmatpush.msra.mxu0 0.0
  %6756 = vmatpush.msra.mxu0 0.0
  %6757 = vmatpush.msra.mxu0 0.0
  %6758 = vmatpush.msra.mxu0 0.0
  %6759 = vmatpush.msra.mxu0 %v52
  %6760 = vmatpush.msra.mxu0 %v51
  %6761 = vmatpush.msra.mxu0 %v50
  %6762 = vmatpush.msra.mxu0 %v49
  %6763 = vmatmul.f32.gmra.mxu0 %v6652
  %v6764 = vpop.f32.mrf.mxu0
  %v6765 = vadd.f32 %v1395, %v6764
  %6766 = vmatmul.f32.gmra.mxu0 %v6655
  %v6767 = vpop.f32.mrf.mxu0
  %v6768 = vadd.f32 %v1395, %v6767
  %6769 = vmatmul.f32.gmra.mxu0 %v6658
  %v6770 = vpop.f32.mrf.mxu0
  %v6771 = vadd.f32 %v1395, %v6770
  %6772 = vmatmul.f32.gmra.mxu0 %v6661
  %v6773 = vpop.f32.mrf.mxu0
  %v6774 = vadd.f32 %v1395, %v6773
  %6775 = vmatmul.f32.gmra.mxu0 %v6664
  %v6776 = vpop.f32.mrf.mxu0
  %v6777 = vadd.f32 %v1395, %v6776
  %6778 = vmatmul.f32.gmra.mxu0 %v6667
  %v6779 = vpop.f32.mrf.mxu0
  %v6780 = vadd.f32 %v1395, %v6779
  %6781 = vmatmul.f32.gmra.mxu0 %v6670
  %v6782 = vpop.f32.mrf.mxu0
  %v6783 = vadd.f32 %v1395, %v6782
  %6784 = vmatmul.f32.gmra.mxu0 %v6673
  %v6785 = vpop.f32.mrf.mxu0
  %v6786 = vadd.f32 %v1395, %v6785
  %6787 = vmatmul.f32.gmra.mxu0 %v6676
  %v6788 = vpop.f32.mrf.mxu0
  %v6789 = vadd.f32 %v1395, %v6788
  %6790 = vmatmul.f32.gmra.mxu0 %v6679
  %v6791 = vpop.f32.mrf.mxu0
  %v6792 = vadd.f32 %v1395, %v6791
  %6793 = vmatmul.f32.gmra.mxu0 %v6682
  %v6794 = vpop.f32.mrf.mxu0
  %v6795 = vadd.f32 %v1395, %v6794
  %6796 = vmatmul.f32.gmra.mxu0 %v6685
  %v6797 = vpop.f32.mrf.mxu0
  %v6798 = vadd.f32 %v1395, %v6797
  %6799 = vmatmul.f32.gmra.mxu0 %v6688
  %v6800 = vpop.f32.mrf.mxu0
  %v6801 = vadd.f32 %v1395, %v6800
  %6802 = vmatmul.f32.gmra.mxu0 %v6691
  %v6803 = vpop.f32.mrf.mxu0
  %v6804 = vadd.f32 %v1395, %v6803
  %6805 = vmatmul.f32.gmra.mxu0 %v6694
  %v6806 = vpop.f32.mrf.mxu0
  %v6807 = vadd.f32 %v1395, %v6806
  %6808 = vmatmul.f32.gmra.mxu0 %v6697
  %v6809 = vpop.f32.mrf.mxu0
  %v6810 = vadd.f32 %v1395, %v6809
  %6811 = vmatmul.f32.gmra.mxu0 %v6700
  %v6812 = vpop.f32.mrf.mxu0
  %v6813 = vadd.f32 %v1395, %v6812
  %6814 = vmatmul.f32.gmra.mxu0 %v6703
  %v6815 = vpop.f32.mrf.mxu0
  %v6816 = vadd.f32 %v1395, %v6815
  %6817 = vmatmul.f32.gmra.mxu0 %v6706
  %v6818 = vpop.f32.mrf.mxu0
  %v6819 = vadd.f32 %v1395, %v6818
  %6820 = vmatmul.f32.gmra.mxu0 %v6709
  %v6821 = vpop.f32.mrf.mxu0
  %v6822 = vadd.f32 %v1395, %v6821
  %6823 = vmatmul.f32.gmra.mxu0 %v6712
  %v6824 = vpop.f32.mrf.mxu0
  %v6825 = vadd.f32 %v1395, %v6824
  %6826 = vmatmul.f32.gmra.mxu0 %v6715
  %v6827 = vpop.f32.mrf.mxu0
  %v6828 = vadd.f32 %v1395, %v6827
  %6829 = vmatmul.f32.gmra.mxu0 %v6718
  %v6830 = vpop.f32.mrf.mxu0
  %v6831 = vadd.f32 %v1395, %v6830
  %6832 = vmatmul.f32.gmra.mxu0 %v6721
  %v6833 = vpop.f32.mrf.mxu0
  %v6834 = vadd.f32 %v1395, %v6833
  %6835 = vmatmul.f32.gmra.mxu0 %v6724
  %v6836 = vpop.f32.mrf.mxu0
  %v6837 = vadd.f32 %v1395, %v6836
  %6838 = vmatmul.f32.gmra.mxu0 %v6727
  %v6839 = vpop.f32.mrf.mxu0
  %v6840 = vadd.f32 %v1395, %v6839
  %6841 = vmatmul.f32.gmra.mxu0 %v6730
  %v6842 = vpop.f32.mrf.mxu0
  %v6843 = vadd.f32 %v1395, %v6842
  %6844 = vmatmul.f32.gmra.mxu0 %v6733
  %v6845 = vpop.f32.mrf.mxu0
  %v6846 = vadd.f32 %v1395, %v6845
  %6847 = vmatmul.f32.gmra.mxu0 %v6736
  %v6848 = vpop.f32.mrf.mxu0
  %v6849 = vadd.f32 %v1395, %v6848
  %6850 = vmatmul.f32.gmra.mxu0 %v6739
  %v6851 = vpop.f32.mrf.mxu0
  %v6852 = vadd.f32 %v1395, %v6851
  %6853 = vmatmul.f32.gmra.mxu0 %v6742
  %v6854 = vpop.f32.mrf.mxu0
  %v6855 = vadd.f32 %v1395, %v6854
  %6856 = vmatmul.f32.gmra.mxu0 %v6745
  %v6857 = vpop.f32.mrf.mxu0
  %v6858 = vadd.f32 %v1395, %v6857
  %6859 = vdwg.mxu0
  %6860 = vst.msk [vmem:[#allocation2 + $0x20] sm:$0xff] %vm35, %v6765
  %6861 = vst.msk [vmem:[#allocation2 + $0x28] sm:$0xff] %vm35, %v6768
  %6862 = vst.msk [vmem:[#allocation2 + $0x30] sm:$0xff] %vm35, %v6771
  %6863 = vst.msk [vmem:[#allocation2 + $0x38] sm:$0xff] %vm35, %v6774
  %6864 = vst.msk [vmem:[#allocation2 + $0x40] sm:$0xff] %vm35, %v6777
  %6865 = vst.msk [vmem:[#allocation2 + $0x48] sm:$0xff] %vm35, %v6780
  %6866 = vst.msk [vmem:[#allocation2 + $0x50] sm:$0xff] %vm35, %v6783
  %6867 = vst.msk [vmem:[#allocation2 + $0x58] sm:$0xff] %vm35, %v6786
  %6868 = vst.msk [vmem:[#allocation2 + $0x60] sm:$0xff] %vm35, %v6789
  %6869 = vst.msk [vmem:[#allocation2 + $0x68] sm:$0xff] %vm35, %v6792
  %6870 = vst.msk [vmem:[#allocation2 + $0x70] sm:$0xff] %vm35, %v6795
  %6871 = vst.msk [vmem:[#allocation2 + $0x78] sm:$0xff] %vm35, %v6798
  %6872 = vst.msk [vmem:[#allocation2 + $0x80] sm:$0xff] %vm35, %v6801
  %6873 = vst.msk [vmem:[#allocation2 + $0x88] sm:$0xff] %vm35, %v6804
  %6874 = vst.msk [vmem:[#allocation2 + $0x90] sm:$0xff] %vm35, %v6807
  %6875 = vst.msk [vmem:[#allocation2 + $0x98] sm:$0xff] %vm35, %v6810
  %6876 = vst.msk [vmem:[#allocation2 + $0xa0] sm:$0xff] %vm35, %v6813
  %6877 = vst.msk [vmem:[#allocation2 + $0xa8] sm:$0xff] %vm35, %v6816
  %6878 = vst.msk [vmem:[#allocation2 + $0xb0] sm:$0xff] %vm35, %v6819
  %6879 = vst.msk [vmem:[#allocation2 + $0xb8] sm:$0xff] %vm35, %v6822
  %6880 = vst.msk [vmem:[#allocation2 + $0xc0] sm:$0xff] %vm35, %v6825
  %6881 = vst.msk [vmem:[#allocation2 + $0xc8] sm:$0xff] %vm35, %v6828
  %6882 = vst.msk [vmem:[#allocation2 + $0xd0] sm:$0xff] %vm35, %v6831
  %6883 = vst.msk [vmem:[#allocation2 + $0xd8] sm:$0xff] %vm35, %v6834
  %6884 = vst.msk [vmem:[#allocation2 + $0xe0] sm:$0xff] %vm35, %v6837
  %6885 = vst.msk [vmem:[#allocation2 + $0xe8] sm:$0xff] %vm35, %v6840
  %6886 = vst.msk [vmem:[#allocation2 + $0xf0] sm:$0xff] %vm35, %v6843
  %6887 = vst.msk [vmem:[#allocation2 + $0xf8] sm:$0xff] %vm35, %v6846
  %6888 = vst.msk [vmem:[#allocation2 + $0x100] sm:$0xff] %vm35, %v6849
  %6889 = vst.msk [vmem:[#allocation2 + $0x108] sm:$0xff] %vm35, %v6852
  %6890 = vst.msk [vmem:[#allocation2 + $0x110] sm:$0xff] %vm35, %v6855
  %6891 = vst.msk [vmem:[#allocation2 + $0x118] sm:$0xff] %vm35, %v6858
  %v6892 = vld [vmem:[#allocation2 + $0xf] sm:$0xff]
  %v6893 = vld [vmem:[#allocation2 + $0x17] sm:$0xff]
  %v6894 = vld [vmem:[#allocation2 + $0x1f] sm:$0xff]
  %v6895 = vld [vmem:[#allocation2 + $0x27] sm:$0xff]
  %v6896 = vld [vmem:[#allocation2 + $0x2f] sm:$0xff]
  %v6897 = vld [vmem:[#allocation2 + $0x37] sm:$0xff]
  %v6898 = vld [vmem:[#allocation2 + $0x3f] sm:$0xff]
  %v6899 = vld [vmem:[#allocation2 + $0x47] sm:$0xff]
  %v6900 = vld [vmem:[#allocation2 + $0x4f] sm:$0xff]
  %v6901 = vld [vmem:[#allocation2 + $0x57] sm:$0xff]
  %v6902 = vld [vmem:[#allocation2 + $0x5f] sm:$0xff]
  %v6903 = vld [vmem:[#allocation2 + $0x67] sm:$0xff]
  %v6904 = vld [vmem:[#allocation2 + $0x6f] sm:$0xff]
  %v6905 = vld [vmem:[#allocation2 + $0x77] sm:$0xff]
  %v6906 = vld [vmem:[#allocation2 + $0x7f] sm:$0xff]
  %v6907 = vld [vmem:[#allocation2 + $0x87] sm:$0xff]
  %v6908 = vld [vmem:[#allocation2 + $0x8f] sm:$0xff]
  %v6909 = vld [vmem:[#allocation2 + $0x97] sm:$0xff]
  %v6910 = vld [vmem:[#allocation2 + $0x9f] sm:$0xff]
  %v6911 = vld [vmem:[#allocation2 + $0xa7] sm:$0xff]
  %v6912 = vld [vmem:[#allocation2 + $0xaf] sm:$0xff]
  %v6913 = vld [vmem:[#allocation2 + $0xb7] sm:$0xff]
  %v6914 = vld [vmem:[#allocation2 + $0xbf] sm:$0xff]
  %v6915 = vld [vmem:[#allocation2 + $0xc7] sm:$0xff]
  %v6916 = vld [vmem:[#allocation2 + $0xcf] sm:$0xff]
  %v6917 = vld [vmem:[#allocation2 + $0xd7] sm:$0xff]
  %v6918 = vld [vmem:[#allocation2 + $0xdf] sm:$0xff]
  %v6919 = vld [vmem:[#allocation2 + $0xe7] sm:$0xff]
  %v6920 = vld [vmem:[#allocation2 + $0xef] sm:$0xff]
  %v6921 = vld [vmem:[#allocation2 + $0xf7] sm:$0xff]
  %v6922 = vld [vmem:[#allocation2 + $0xff] sm:$0xff]
  %v6923 = vld [vmem:[#allocation2 + $0x107] sm:$0xff]
  %v6924 = vmul.f32 %v6892, %v1670
  %v6925 = vmul.f32 %v6893, %v1670
  %v6926 = vmul.f32 %v6894, %v1670
  %v6927 = vmul.f32 %v6895, %v1670
  %v6928 = vmul.f32 %v6896, %v1670
  %v6929 = vmul.f32 %v6897, %v1670
  %v6930 = vmul.f32 %v6898, %v1670
  %v6931 = vmul.f32 %v6899, %v1670
  %v6932 = vmul.f32 %v6900, %v1670
  %v6933 = vmul.f32 %v6901, %v1670
  %v6934 = vmul.f32 %v6902, %v1670
  %v6935 = vmul.f32 %v6903, %v1670
  %v6936 = vmul.f32 %v6904, %v1670
  %v6937 = vmul.f32 %v6905, %v1670
  %v6938 = vmul.f32 %v6906, %v1670
  %v6939 = vmul.f32 %v6907, %v1670
  %v6940 = vmul.f32 %v6908, %v1670
  %v6941 = vmul.f32 %v6909, %v1670
  %v6942 = vmul.f32 %v6910, %v1670
  %v6943 = vmul.f32 %v6911, %v1670
  %v6944 = vmul.f32 %v6912, %v1670
  %v6945 = vmul.f32 %v6913, %v1670
  %v6946 = vmul.f32 %v6914, %v1670
  %v6947 = vmul.f32 %v6915, %v1670
  %v6948 = vmul.f32 %v6916, %v1670
  %v6949 = vmul.f32 %v6917, %v1670
  %v6950 = vmul.f32 %v6918, %v1670
  %v6951 = vmul.f32 %v6919, %v1670
  %v6952 = vmul.f32 %v6920, %v1670
  %v6953 = vmul.f32 %v6921, %v1670
  %v6954 = vmul.f32 %v6922, %v1670
  %v6955 = vmul.f32 %v6923, %v1670
  %v6956 = vadd.f32 %v6924, 0.0
  %v6957 = vadd.f32 %v6925, 0.0
  %v6958 = vadd.f32 %v6926, 0.0
  %v6959 = vadd.f32 %v6927, 0.0
  %v6960 = vadd.f32 %v6928, 0.0
  %v6961 = vadd.f32 %v6929, 0.0
  %v6962 = vadd.f32 %v6930, 0.0
  %v6963 = vadd.f32 %v6931, 0.0
  %v6964 = vadd.f32 %v6932, 0.0
  %v6965 = vadd.f32 %v6933, 0.0
  %v6966 = vadd.f32 %v6934, 0.0
  %v6967 = vadd.f32 %v6935, 0.0
  %v6968 = vadd.f32 %v6936, 0.0
  %v6969 = vadd.f32 %v6937, 0.0
  %v6970 = vadd.f32 %v6938, 0.0
  %v6971 = vadd.f32 %v6939, 0.0
  %v6972 = vadd.f32 %v6940, 0.0
  %v6973 = vadd.f32 %v6941, 0.0
  %v6974 = vadd.f32 %v6942, 0.0
  %v6975 = vadd.f32 %v6943, 0.0
  %v6976 = vadd.f32 %v6944, 0.0
  %v6977 = vadd.f32 %v6945, 0.0
  %v6978 = vadd.f32 %v6946, 0.0
  %v6979 = vadd.f32 %v6947, 0.0
  %v6980 = vadd.f32 %v6948, 0.0
  %v6981 = vadd.f32 %v6949, 0.0
  %v6982 = vadd.f32 %v6950, 0.0
  %v6983 = vadd.f32 %v6951, 0.0
  %v6984 = vadd.f32 %v6952, 0.0
  %v6985 = vadd.f32 %v6953, 0.0
  %v6986 = vadd.f32 %v6954, 0.0
  %v6987 = vadd.f32 %v6955, 0.0
  %v6988 = vld [vmem:[#allocation2 + $0x10f] sm:$0xff]
  %v6989 = vld [vmem:[#allocation2 + $0x117] sm:$0xff]
  %v6990 = vmul.f32 %v6894, %v1737
  %v6991 = vmul.f32 %v6895, %v1737
  %v6992 = vmul.f32 %v6896, %v1737
  %v6993 = vmul.f32 %v6897, %v1737
  %v6994 = vmul.f32 %v6898, %v1737
  %v6995 = vmul.f32 %v6899, %v1737
  %v6996 = vmul.f32 %v6900, %v1737
  %v6997 = vmul.f32 %v6901, %v1737
  %v6998 = vmul.f32 %v6902, %v1737
  %v6999 = vmul.f32 %v6903, %v1737
  %v7000 = vmul.f32 %v6904, %v1737
  %v7001 = vmul.f32 %v6905, %v1737
  %v7002 = vmul.f32 %v6906, %v1737
  %v7003 = vmul.f32 %v6907, %v1737
  %v7004 = vmul.f32 %v6908, %v1737
  %v7005 = vmul.f32 %v6909, %v1737
  %v7006 = vmul.f32 %v6910, %v1737
  %v7007 = vmul.f32 %v6911, %v1737
  %v7008 = vmul.f32 %v6912, %v1737
  %v7009 = vmul.f32 %v6913, %v1737
  %v7010 = vmul.f32 %v6914, %v1737
  %v7011 = vmul.f32 %v6915, %v1737
  %v7012 = vmul.f32 %v6916, %v1737
  %v7013 = vmul.f32 %v6917, %v1737
  %v7014 = vmul.f32 %v6918, %v1737
  %v7015 = vmul.f32 %v6919, %v1737
  %v7016 = vmul.f32 %v6920, %v1737
  %v7017 = vmul.f32 %v6921, %v1737
  %v7018 = vmul.f32 %v6922, %v1737
  %v7019 = vmul.f32 %v6923, %v1737
  %v7020 = vmul.f32 %v6988, %v1737
  %v7021 = vmul.f32 %v6989, %v1737
  %v7022 = vadd.f32 %v6956, %v6990
  %v7023 = vadd.f32 %v6957, %v6991
  %v7024 = vadd.f32 %v6958, %v6992
  %v7025 = vadd.f32 %v6959, %v6993
  %v7026 = vadd.f32 %v6960, %v6994
  %v7027 = vadd.f32 %v6961, %v6995
  %v7028 = vadd.f32 %v6962, %v6996
  %v7029 = vadd.f32 %v6963, %v6997
  %v7030 = vadd.f32 %v6964, %v6998
  %v7031 = vadd.f32 %v6965, %v6999
  %v7032 = vadd.f32 %v6966, %v7000
  %v7033 = vadd.f32 %v6967, %v7001
  %v7034 = vadd.f32 %v6968, %v7002
  %v7035 = vadd.f32 %v6969, %v7003
  %v7036 = vadd.f32 %v6970, %v7004
  %v7037 = vadd.f32 %v6971, %v7005
  %v7038 = vadd.f32 %v6972, %v7006
  %v7039 = vadd.f32 %v6973, %v7007
  %v7040 = vadd.f32 %v6974, %v7008
  %v7041 = vadd.f32 %v6975, %v7009
  %v7042 = vadd.f32 %v6976, %v7010
  %v7043 = vadd.f32 %v6977, %v7011
  %v7044 = vadd.f32 %v6978, %v7012
  %v7045 = vadd.f32 %v6979, %v7013
  %v7046 = vadd.f32 %v6980, %v7014
  %v7047 = vadd.f32 %v6981, %v7015
  %v7048 = vadd.f32 %v6982, %v7016
  %v7049 = vadd.f32 %v6983, %v7017
  %v7050 = vadd.f32 %v6984, %v7018
  %v7051 = vadd.f32 %v6985, %v7019
  %v7052 = vadd.f32 %v6986, %v7020
  %v7053 = vadd.f32 %v6987, %v7021
  %v7054 = vld [vmem:[#allocation2 + $0x11f] sm:$0xff]
  %v7055 = vld [vmem:[#allocation2 + $0x127] sm:$0xff]
  %v7056 = vmul.f32 %v6896, %v1804
  %v7057 = vmul.f32 %v6897, %v1804
  %v7058 = vmul.f32 %v6898, %v1804
  %v7059 = vmul.f32 %v6899, %v1804
  %v7060 = vmul.f32 %v6900, %v1804
  %v7061 = vmul.f32 %v6901, %v1804
  %v7062 = vmul.f32 %v6902, %v1804
  %v7063 = vmul.f32 %v6903, %v1804
  %v7064 = vmul.f32 %v6904, %v1804
  %v7065 = vmul.f32 %v6905, %v1804
  %v7066 = vmul.f32 %v6906, %v1804
  %v7067 = vmul.f32 %v6907, %v1804
  %v7068 = vmul.f32 %v6908, %v1804
  %v7069 = vmul.f32 %v6909, %v1804
  %v7070 = vmul.f32 %v6910, %v1804
  %v7071 = vmul.f32 %v6911, %v1804
  %v7072 = vmul.f32 %v6912, %v1804
  %v7073 = vmul.f32 %v6913, %v1804
  %v7074 = vmul.f32 %v6914, %v1804
  %v7075 = vmul.f32 %v6915, %v1804
  %v7076 = vmul.f32 %v6916, %v1804
  %v7077 = vmul.f32 %v6917, %v1804
  %v7078 = vmul.f32 %v6918, %v1804
  %v7079 = vmul.f32 %v6919, %v1804
  %v7080 = vmul.f32 %v6920, %v1804
  %v7081 = vmul.f32 %v6921, %v1804
  %v7082 = vmul.f32 %v6922, %v1804
  %v7083 = vmul.f32 %v6923, %v1804
  %v7084 = vmul.f32 %v6988, %v1804
  %v7085 = vmul.f32 %v6989, %v1804
  %v7086 = vmul.f32 %v7054, %v1804
  %v7087 = vmul.f32 %v7055, %v1804
  %v7088 = vadd.f32 %v7022, %v7056
  %v7089 = vadd.f32 %v7023, %v7057
  %v7090 = vadd.f32 %v7024, %v7058
  %v7091 = vadd.f32 %v7025, %v7059
  %v7092 = vadd.f32 %v7026, %v7060
  %v7093 = vadd.f32 %v7027, %v7061
  %v7094 = vadd.f32 %v7028, %v7062
  %v7095 = vadd.f32 %v7029, %v7063
  %v7096 = vadd.f32 %v7030, %v7064
  %v7097 = vadd.f32 %v7031, %v7065
  %v7098 = vadd.f32 %v7032, %v7066
  %v7099 = vadd.f32 %v7033, %v7067
  %v7100 = vadd.f32 %v7034, %v7068
  %v7101 = vadd.f32 %v7035, %v7069
  %v7102 = vadd.f32 %v7036, %v7070
  %v7103 = vadd.f32 %v7037, %v7071
  %v7104 = vadd.f32 %v7038, %v7072
  %v7105 = vadd.f32 %v7039, %v7073
  %v7106 = vadd.f32 %v7040, %v7074
  %v7107 = vadd.f32 %v7041, %v7075
  %v7108 = vadd.f32 %v7042, %v7076
  %v7109 = vadd.f32 %v7043, %v7077
  %v7110 = vadd.f32 %v7044, %v7078
  %v7111 = vadd.f32 %v7045, %v7079
  %v7112 = vadd.f32 %v7046, %v7080
  %v7113 = vadd.f32 %v7047, %v7081
  %v7114 = vadd.f32 %v7048, %v7082
  %v7115 = vadd.f32 %v7049, %v7083
  %v7116 = vadd.f32 %v7050, %v7084
  %v7117 = vadd.f32 %v7051, %v7085
  %v7118 = vadd.f32 %v7052, %v7086
  %v7119 = vadd.f32 %v7053, %v7087
  %v7120 = vsel %vm1997, %v7088, 0.0
  %v7121 = vsel %vm1998, %v7089, 0.0
  %v7122 = vsel %vm1999, %v7090, 0.0
  %v7123 = vsel %vm2000, %v7091, 0.0
  %v7124 = vsel %vm2001, %v7092, 0.0
  %v7125 = vsel %vm2002, %v7093, 0.0
  %v7126 = vsel %vm2003, %v7094, 0.0
  %v7127 = vsel %vm2004, %v7095, 0.0
  %v7128 = vsel %vm2005, %v7096, 0.0
  %v7129 = vsel %vm2006, %v7097, 0.0
  %v7130 = vsel %vm2007, %v7098, 0.0
  %v7131 = vsel %vm2008, %v7099, 0.0
  %v7132 = vsel %vm2009, %v7100, 0.0
  %v7133 = vsel %vm2010, %v7101, 0.0
  %v7134 = vsel %vm2011, %v7102, 0.0
  %v7135 = vsel %vm2012, %v7103, 0.0
  %v7136 = vsel %vm2013, %v7104, 0.0
  %v7137 = vsel %vm2014, %v7105, 0.0
  %v7138 = vsel %vm2015, %v7106, 0.0
  %v7139 = vsel %vm2016, %v7107, 0.0
  %v7140 = vsel %vm2017, %v7108, 0.0
  %v7141 = vsel %vm2018, %v7109, 0.0
  %v7142 = vsel %vm2019, %v7110, 0.0
  %v7143 = vsel %vm2020, %v7111, 0.0
  %v7144 = vsel %vm2021, %v7112, 0.0
  %v7145 = vsel %vm2022, %v7113, 0.0
  %v7146 = vsel %vm2023, %v7114, 0.0
  %v7147 = vsel %vm2024, %v7115, 0.0
  %v7148 = vsel %vm2025, %v7116, 0.0
  %v7149 = vsel %vm2026, %v7117, 0.0
  %v7150 = vsel %vm2027, %v7118, 0.0
  %v7151 = vsel %vm2028, %v7119, 0.0
  %v7152 = vadd.f32 %v7120, 0.0
  %v7153 = vadd.f32 %v7121, 0.0
  %v7154 = vadd.f32 %v7122, 0.0
  %v7155 = vadd.f32 %v7123, 0.0
  %v7156 = vadd.f32 %v7124, 0.0
  %v7157 = vadd.f32 %v7125, 0.0
  %v7158 = vadd.f32 %v7126, 0.0
  %v7159 = vadd.f32 %v7127, 0.0
  %v7160 = vadd.f32 %v7128, 0.0
  %v7161 = vadd.f32 %v7129, 0.0
  %v7162 = vadd.f32 %v7130, 0.0
  %v7163 = vadd.f32 %v7131, 0.0
  %v7164 = vadd.f32 %v7132, 0.0
  %v7165 = vadd.f32 %v7133, 0.0
  %v7166 = vadd.f32 %v7134, 0.0
  %v7167 = vadd.f32 %v7135, 0.0
  %v7168 = vadd.f32 %v7136, 0.0
  %v7169 = vadd.f32 %v7137, 0.0
  %v7170 = vadd.f32 %v7138, 0.0
  %v7171 = vadd.f32 %v7139, 0.0
  %v7172 = vadd.f32 %v7140, 0.0
  %v7173 = vadd.f32 %v7141, 0.0
  %v7174 = vadd.f32 %v7142, 0.0
  %v7175 = vadd.f32 %v7143, 0.0
  %v7176 = vadd.f32 %v7144, 0.0
  %v7177 = vadd.f32 %v7145, 0.0
  %v7178 = vadd.f32 %v7146, 0.0
  %v7179 = vadd.f32 %v7147, 0.0
  %v7180 = vadd.f32 %v7148, 0.0
  %v7181 = vadd.f32 %v7149, 0.0
  %v7182 = vadd.f32 %v7150, 0.0
  %v7183 = vadd.f32 %v7151, 0.0
  %v7184 = vld [vmem:[#allocation2 + $0x10] sm:$0xff]
  %v7185 = vld [vmem:[#allocation2 + $0x18] sm:$0xff]
  %v7186 = vld [vmem:[#allocation2 + $0x20] sm:$0xff]
  %v7187 = vld [vmem:[#allocation2 + $0x28] sm:$0xff]
  %v7188 = vld [vmem:[#allocation2 + $0x30] sm:$0xff]
  %v7189 = vld [vmem:[#allocation2 + $0x38] sm:$0xff]
  %v7190 = vld [vmem:[#allocation2 + $0x40] sm:$0xff]
  %v7191 = vld [vmem:[#allocation2 + $0x48] sm:$0xff]
  %v7192 = vld [vmem:[#allocation2 + $0x50] sm:$0xff]
  %v7193 = vld [vmem:[#allocation2 + $0x58] sm:$0xff]
  %v7194 = vld [vmem:[#allocation2 + $0x60] sm:$0xff]
  %v7195 = vld [vmem:[#allocation2 + $0x68] sm:$0xff]
  %v7196 = vld [vmem:[#allocation2 + $0x70] sm:$0xff]
  %v7197 = vld [vmem:[#allocation2 + $0x78] sm:$0xff]
  %v7198 = vld [vmem:[#allocation2 + $0x80] sm:$0xff]
  %v7199 = vld [vmem:[#allocation2 + $0x88] sm:$0xff]
  %v7200 = vld [vmem:[#allocation2 + $0x90] sm:$0xff]
  %v7201 = vld [vmem:[#allocation2 + $0x98] sm:$0xff]
  %v7202 = vld [vmem:[#allocation2 + $0xa0] sm:$0xff]
  %v7203 = vld [vmem:[#allocation2 + $0xa8] sm:$0xff]
  %v7204 = vld [vmem:[#allocation2 + $0xb0] sm:$0xff]
  %v7205 = vld [vmem:[#allocation2 + $0xb8] sm:$0xff]
  %v7206 = vld [vmem:[#allocation2 + $0xc0] sm:$0xff]
  %v7207 = vld [vmem:[#allocation2 + $0xc8] sm:$0xff]
  %v7208 = vld [vmem:[#allocation2 + $0xd0] sm:$0xff]
  %v7209 = vld [vmem:[#allocation2 + $0xd8] sm:$0xff]
  %v7210 = vld [vmem:[#allocation2 + $0xe0] sm:$0xff]
  %v7211 = vld [vmem:[#allocation2 + $0xe8] sm:$0xff]
  %v7212 = vld [vmem:[#allocation2 + $0xf0] sm:$0xff]
  %v7213 = vld [vmem:[#allocation2 + $0xf8] sm:$0xff]
  %v7214 = vld [vmem:[#allocation2 + $0x100] sm:$0xff]
  %v7215 = vld [vmem:[#allocation2 + $0x108] sm:$0xff]
  %v7216 = vmul.f32 %v7184, %v2125
  %v7217 = vmul.f32 %v7185, %v2125
  %v7218 = vmul.f32 %v7186, %v2125
  %v7219 = vmul.f32 %v7187, %v2125
  %v7220 = vmul.f32 %v7188, %v2125
  %v7221 = vmul.f32 %v7189, %v2125
  %v7222 = vmul.f32 %v7190, %v2125
  %v7223 = vmul.f32 %v7191, %v2125
  %v7224 = vmul.f32 %v7192, %v2125
  %v7225 = vmul.f32 %v7193, %v2125
  %v7226 = vmul.f32 %v7194, %v2125
  %v7227 = vmul.f32 %v7195, %v2125
  %v7228 = vmul.f32 %v7196, %v2125
  %v7229 = vmul.f32 %v7197, %v2125
  %v7230 = vmul.f32 %v7198, %v2125
  %v7231 = vmul.f32 %v7199, %v2125
  %v7232 = vmul.f32 %v7200, %v2125
  %v7233 = vmul.f32 %v7201, %v2125
  %v7234 = vmul.f32 %v7202, %v2125
  %v7235 = vmul.f32 %v7203, %v2125
  %v7236 = vmul.f32 %v7204, %v2125
  %v7237 = vmul.f32 %v7205, %v2125
  %v7238 = vmul.f32 %v7206, %v2125
  %v7239 = vmul.f32 %v7207, %v2125
  %v7240 = vmul.f32 %v7208, %v2125
  %v7241 = vmul.f32 %v7209, %v2125
  %v7242 = vmul.f32 %v7210, %v2125
  %v7243 = vmul.f32 %v7211, %v2125
  %v7244 = vmul.f32 %v7212, %v2125
  %v7245 = vmul.f32 %v7213, %v2125
  %v7246 = vmul.f32 %v7214, %v2125
  %v7247 = vmul.f32 %v7215, %v2125
  %v7248 = vadd.f32 %v7216, 0.0
  %v7249 = vadd.f32 %v7217, 0.0
  %v7250 = vadd.f32 %v7218, 0.0
  %v7251 = vadd.f32 %v7219, 0.0
  %v7252 = vadd.f32 %v7220, 0.0
  %v7253 = vadd.f32 %v7221, 0.0
  %v7254 = vadd.f32 %v7222, 0.0
  %v7255 = vadd.f32 %v7223, 0.0
  %v7256 = vadd.f32 %v7224, 0.0
  %v7257 = vadd.f32 %v7225, 0.0
  %v7258 = vadd.f32 %v7226, 0.0
  %v7259 = vadd.f32 %v7227, 0.0
  %v7260 = vadd.f32 %v7228, 0.0
  %v7261 = vadd.f32 %v7229, 0.0
  %v7262 = vadd.f32 %v7230, 0.0
  %v7263 = vadd.f32 %v7231, 0.0
  %v7264 = vadd.f32 %v7232, 0.0
  %v7265 = vadd.f32 %v7233, 0.0
  %v7266 = vadd.f32 %v7234, 0.0
  %v7267 = vadd.f32 %v7235, 0.0
  %v7268 = vadd.f32 %v7236, 0.0
  %v7269 = vadd.f32 %v7237, 0.0
  %v7270 = vadd.f32 %v7238, 0.0
  %v7271 = vadd.f32 %v7239, 0.0
  %v7272 = vadd.f32 %v7240, 0.0
  %v7273 = vadd.f32 %v7241, 0.0
  %v7274 = vadd.f32 %v7242, 0.0
  %v7275 = vadd.f32 %v7243, 0.0
  %v7276 = vadd.f32 %v7244, 0.0
  %v7277 = vadd.f32 %v7245, 0.0
  %v7278 = vadd.f32 %v7246, 0.0
  %v7279 = vadd.f32 %v7247, 0.0
  %v7280 = vld [vmem:[#allocation2 + $0x110] sm:$0xff]
  %v7281 = vld [vmem:[#allocation2 + $0x118] sm:$0xff]
  %v7282 = vmul.f32 %v7186, %v2192
  %v7283 = vmul.f32 %v7187, %v2192
  %v7284 = vmul.f32 %v7188, %v2192
  %v7285 = vmul.f32 %v7189, %v2192
  %v7286 = vmul.f32 %v7190, %v2192
  %v7287 = vmul.f32 %v7191, %v2192
  %v7288 = vmul.f32 %v7192, %v2192
  %v7289 = vmul.f32 %v7193, %v2192
  %v7290 = vmul.f32 %v7194, %v2192
  %v7291 = vmul.f32 %v7195, %v2192
  %v7292 = vmul.f32 %v7196, %v2192
  %v7293 = vmul.f32 %v7197, %v2192
  %v7294 = vmul.f32 %v7198, %v2192
  %v7295 = vmul.f32 %v7199, %v2192
  %v7296 = vmul.f32 %v7200, %v2192
  %v7297 = vmul.f32 %v7201, %v2192
  %v7298 = vmul.f32 %v7202, %v2192
  %v7299 = vmul.f32 %v7203, %v2192
  %v7300 = vmul.f32 %v7204, %v2192
  %v7301 = vmul.f32 %v7205, %v2192
  %v7302 = vmul.f32 %v7206, %v2192
  %v7303 = vmul.f32 %v7207, %v2192
  %v7304 = vmul.f32 %v7208, %v2192
  %v7305 = vmul.f32 %v7209, %v2192
  %v7306 = vmul.f32 %v7210, %v2192
  %v7307 = vmul.f32 %v7211, %v2192
  %v7308 = vmul.f32 %v7212, %v2192
  %v7309 = vmul.f32 %v7213, %v2192
  %v7310 = vmul.f32 %v7214, %v2192
  %v7311 = vmul.f32 %v7215, %v2192
  %v7312 = vmul.f32 %v7280, %v2192
  %v7313 = vmul.f32 %v7281, %v2192
  %v7314 = vadd.f32 %v7248, %v7282
  %v7315 = vadd.f32 %v7249, %v7283
  %v7316 = vadd.f32 %v7250, %v7284
  %v7317 = vadd.f32 %v7251, %v7285
  %v7318 = vadd.f32 %v7252, %v7286
  %v7319 = vadd.f32 %v7253, %v7287
  %v7320 = vadd.f32 %v7254, %v7288
  %v7321 = vadd.f32 %v7255, %v7289
  %v7322 = vadd.f32 %v7256, %v7290
  %v7323 = vadd.f32 %v7257, %v7291
  %v7324 = vadd.f32 %v7258, %v7292
  %v7325 = vadd.f32 %v7259, %v7293
  %v7326 = vadd.f32 %v7260, %v7294
  %v7327 = vadd.f32 %v7261, %v7295
  %v7328 = vadd.f32 %v7262, %v7296
  %v7329 = vadd.f32 %v7263, %v7297
  %v7330 = vadd.f32 %v7264, %v7298
  %v7331 = vadd.f32 %v7265, %v7299
  %v7332 = vadd.f32 %v7266, %v7300
  %v7333 = vadd.f32 %v7267, %v7301
  %v7334 = vadd.f32 %v7268, %v7302
  %v7335 = vadd.f32 %v7269, %v7303
  %v7336 = vadd.f32 %v7270, %v7304
  %v7337 = vadd.f32 %v7271, %v7305
  %v7338 = vadd.f32 %v7272, %v7306
  %v7339 = vadd.f32 %v7273, %v7307
  %v7340 = vadd.f32 %v7274, %v7308
  %v7341 = vadd.f32 %v7275, %v7309
  %v7342 = vadd.f32 %v7276, %v7310
  %v7343 = vadd.f32 %v7277, %v7311
  %v7344 = vadd.f32 %v7278, %v7312
  %v7345 = vadd.f32 %v7279, %v7313
  %v7346 = vld [vmem:[#allocation2 + $0x120] sm:$0xff]
  %v7347 = vld [vmem:[#allocation2 + $0x128] sm:$0xff]
  %v7348 = vmul.f32 %v7188, %v2259
  %v7349 = vmul.f32 %v7189, %v2259
  %v7350 = vmul.f32 %v7190, %v2259
  %v7351 = vmul.f32 %v7191, %v2259
  %v7352 = vmul.f32 %v7192, %v2259
  %v7353 = vmul.f32 %v7193, %v2259
  %v7354 = vmul.f32 %v7194, %v2259
  %v7355 = vmul.f32 %v7195, %v2259
  %v7356 = vmul.f32 %v7196, %v2259
  %v7357 = vmul.f32 %v7197, %v2259
  %v7358 = vmul.f32 %v7198, %v2259
  %v7359 = vmul.f32 %v7199, %v2259
  %v7360 = vmul.f32 %v7200, %v2259
  %v7361 = vmul.f32 %v7201, %v2259
  %v7362 = vmul.f32 %v7202, %v2259
  %v7363 = vmul.f32 %v7203, %v2259
  %v7364 = vmul.f32 %v7204, %v2259
  %v7365 = vmul.f32 %v7205, %v2259
  %v7366 = vmul.f32 %v7206, %v2259
  %v7367 = vmul.f32 %v7207, %v2259
  %v7368 = vmul.f32 %v7208, %v2259
  %v7369 = vmul.f32 %v7209, %v2259
  %v7370 = vmul.f32 %v7210, %v2259
  %v7371 = vmul.f32 %v7211, %v2259
  %v7372 = vmul.f32 %v7212, %v2259
  %v7373 = vmul.f32 %v7213, %v2259
  %v7374 = vmul.f32 %v7214, %v2259
  %v7375 = vmul.f32 %v7215, %v2259
  %v7376 = vmul.f32 %v7280, %v2259
  %v7377 = vmul.f32 %v7281, %v2259
  %v7378 = vmul.f32 %v7346, %v2259
  %v7379 = vmul.f32 %v7347, %v2259
  %v7380 = vadd.f32 %v7314, %v7348
  %v7381 = vadd.f32 %v7315, %v7349
  %v7382 = vadd.f32 %v7316, %v7350
  %v7383 = vadd.f32 %v7317, %v7351
  %v7384 = vadd.f32 %v7318, %v7352
  %v7385 = vadd.f32 %v7319, %v7353
  %v7386 = vadd.f32 %v7320, %v7354
  %v7387 = vadd.f32 %v7321, %v7355
  %v7388 = vadd.f32 %v7322, %v7356
  %v7389 = vadd.f32 %v7323, %v7357
  %v7390 = vadd.f32 %v7324, %v7358
  %v7391 = vadd.f32 %v7325, %v7359
  %v7392 = vadd.f32 %v7326, %v7360
  %v7393 = vadd.f32 %v7327, %v7361
  %v7394 = vadd.f32 %v7328, %v7362
  %v7395 = vadd.f32 %v7329, %v7363
  %v7396 = vadd.f32 %v7330, %v7364
  %v7397 = vadd.f32 %v7331, %v7365
  %v7398 = vadd.f32 %v7332, %v7366
  %v7399 = vadd.f32 %v7333, %v7367
  %v7400 = vadd.f32 %v7334, %v7368
  %v7401 = vadd.f32 %v7335, %v7369
  %v7402 = vadd.f32 %v7336, %v7370
  %v7403 = vadd.f32 %v7337, %v7371
  %v7404 = vadd.f32 %v7338, %v7372
  %v7405 = vadd.f32 %v7339, %v7373
  %v7406 = vadd.f32 %v7340, %v7374
  %v7407 = vadd.f32 %v7341, %v7375
  %v7408 = vadd.f32 %v7342, %v7376
  %v7409 = vadd.f32 %v7343, %v7377
  %v7410 = vadd.f32 %v7344, %v7378
  %v7411 = vadd.f32 %v7345, %v7379
  %v7412 = vadd.f32 %v7152, %v7380
  %v7413 = vadd.f32 %v7153, %v7381
  %v7414 = vadd.f32 %v7154, %v7382
  %v7415 = vadd.f32 %v7155, %v7383
  %v7416 = vadd.f32 %v7156, %v7384
  %v7417 = vadd.f32 %v7157, %v7385
  %v7418 = vadd.f32 %v7158, %v7386
  %v7419 = vadd.f32 %v7159, %v7387
  %v7420 = vadd.f32 %v7160, %v7388
  %v7421 = vadd.f32 %v7161, %v7389
  %v7422 = vadd.f32 %v7162, %v7390
  %v7423 = vadd.f32 %v7163, %v7391
  %v7424 = vadd.f32 %v7164, %v7392
  %v7425 = vadd.f32 %v7165, %v7393
  %v7426 = vadd.f32 %v7166, %v7394
  %v7427 = vadd.f32 %v7167, %v7395
  %v7428 = vadd.f32 %v7168, %v7396
  %v7429 = vadd.f32 %v7169, %v7397
  %v7430 = vadd.f32 %v7170, %v7398
  %v7431 = vadd.f32 %v7171, %v7399
  %v7432 = vadd.f32 %v7172, %v7400
  %v7433 = vadd.f32 %v7173, %v7401
  %v7434 = vadd.f32 %v7174, %v7402
  %v7435 = vadd.f32 %v7175, %v7403
  %v7436 = vadd.f32 %v7176, %v7404
  %v7437 = vadd.f32 %v7177, %v7405
  %v7438 = vadd.f32 %v7178, %v7406
  %v7439 = vadd.f32 %v7179, %v7407
  %v7440 = vadd.f32 %v7180, %v7408
  %v7441 = vadd.f32 %v7181, %v7409
  %v7442 = vadd.f32 %v7182, %v7410
  %v7443 = vadd.f32 %v7183, %v7411
  %v7444 = vld [vmem:[#allocation2 + $0x11] sm:$0xff]
  %v7445 = vld [vmem:[#allocation2 + $0x19] sm:$0xff]
  %v7446 = vld [vmem:[#allocation2 + $0x21] sm:$0xff]
  %v7447 = vld [vmem:[#allocation2 + $0x29] sm:$0xff]
  %v7448 = vld [vmem:[#allocation2 + $0x31] sm:$0xff]
  %v7449 = vld [vmem:[#allocation2 + $0x39] sm:$0xff]
  %v7450 = vld [vmem:[#allocation2 + $0x41] sm:$0xff]
  %v7451 = vld [vmem:[#allocation2 + $0x49] sm:$0xff]
  %v7452 = vld [vmem:[#allocation2 + $0x51] sm:$0xff]
  %v7453 = vld [vmem:[#allocation2 + $0x59] sm:$0xff]
  %v7454 = vld [vmem:[#allocation2 + $0x61] sm:$0xff]
  %v7455 = vld [vmem:[#allocation2 + $0x69] sm:$0xff]
  %v7456 = vld [vmem:[#allocation2 + $0x71] sm:$0xff]
  %v7457 = vld [vmem:[#allocation2 + $0x79] sm:$0xff]
  %v7458 = vld [vmem:[#allocation2 + $0x81] sm:$0xff]
  %v7459 = vld [vmem:[#allocation2 + $0x89] sm:$0xff]
  %v7460 = vld [vmem:[#allocation2 + $0x91] sm:$0xff]
  %v7461 = vld [vmem:[#allocation2 + $0x99] sm:$0xff]
  %v7462 = vld [vmem:[#allocation2 + $0xa1] sm:$0xff]
  %v7463 = vld [vmem:[#allocation2 + $0xa9] sm:$0xff]
  %v7464 = vld [vmem:[#allocation2 + $0xb1] sm:$0xff]
  %v7465 = vld [vmem:[#allocation2 + $0xb9] sm:$0xff]
  %v7466 = vld [vmem:[#allocation2 + $0xc1] sm:$0xff]
  %v7467 = vld [vmem:[#allocation2 + $0xc9] sm:$0xff]
  %v7468 = vld [vmem:[#allocation2 + $0xd1] sm:$0xff]
  %v7469 = vld [vmem:[#allocation2 + $0xd9] sm:$0xff]
  %v7470 = vld [vmem:[#allocation2 + $0xe1] sm:$0xff]
  %v7471 = vld [vmem:[#allocation2 + $0xe9] sm:$0xff]
  %v7472 = vld [vmem:[#allocation2 + $0xf1] sm:$0xff]
  %v7473 = vld [vmem:[#allocation2 + $0xf9] sm:$0xff]
  %v7474 = vld [vmem:[#allocation2 + $0x101] sm:$0xff]
  %v7475 = vld [vmem:[#allocation2 + $0x109] sm:$0xff]
  %v7476 = vmul.f32 %v7444, %v2388
  %v7477 = vmul.f32 %v7445, %v2388
  %v7478 = vmul.f32 %v7446, %v2388
  %v7479 = vmul.f32 %v7447, %v2388
  %v7480 = vmul.f32 %v7448, %v2388
  %v7481 = vmul.f32 %v7449, %v2388
  %v7482 = vmul.f32 %v7450, %v2388
  %v7483 = vmul.f32 %v7451, %v2388
  %v7484 = vmul.f32 %v7452, %v2388
  %v7485 = vmul.f32 %v7453, %v2388
  %v7486 = vmul.f32 %v7454, %v2388
  %v7487 = vmul.f32 %v7455, %v2388
  %v7488 = vmul.f32 %v7456, %v2388
  %v7489 = vmul.f32 %v7457, %v2388
  %v7490 = vmul.f32 %v7458, %v2388
  %v7491 = vmul.f32 %v7459, %v2388
  %v7492 = vmul.f32 %v7460, %v2388
  %v7493 = vmul.f32 %v7461, %v2388
  %v7494 = vmul.f32 %v7462, %v2388
  %v7495 = vmul.f32 %v7463, %v2388
  %v7496 = vmul.f32 %v7464, %v2388
  %v7497 = vmul.f32 %v7465, %v2388
  %v7498 = vmul.f32 %v7466, %v2388
  %v7499 = vmul.f32 %v7467, %v2388
  %v7500 = vmul.f32 %v7468, %v2388
  %v7501 = vmul.f32 %v7469, %v2388
  %v7502 = vmul.f32 %v7470, %v2388
  %v7503 = vmul.f32 %v7471, %v2388
  %v7504 = vmul.f32 %v7472, %v2388
  %v7505 = vmul.f32 %v7473, %v2388
  %v7506 = vmul.f32 %v7474, %v2388
  %v7507 = vmul.f32 %v7475, %v2388
  %v7508 = vadd.f32 %v7476, 0.0
  %v7509 = vadd.f32 %v7477, 0.0
  %v7510 = vadd.f32 %v7478, 0.0
  %v7511 = vadd.f32 %v7479, 0.0
  %v7512 = vadd.f32 %v7480, 0.0
  %v7513 = vadd.f32 %v7481, 0.0
  %v7514 = vadd.f32 %v7482, 0.0
  %v7515 = vadd.f32 %v7483, 0.0
  %v7516 = vadd.f32 %v7484, 0.0
  %v7517 = vadd.f32 %v7485, 0.0
  %v7518 = vadd.f32 %v7486, 0.0
  %v7519 = vadd.f32 %v7487, 0.0
  %v7520 = vadd.f32 %v7488, 0.0
  %v7521 = vadd.f32 %v7489, 0.0
  %v7522 = vadd.f32 %v7490, 0.0
  %v7523 = vadd.f32 %v7491, 0.0
  %v7524 = vadd.f32 %v7492, 0.0
  %v7525 = vadd.f32 %v7493, 0.0
  %v7526 = vadd.f32 %v7494, 0.0
  %v7527 = vadd.f32 %v7495, 0.0
  %v7528 = vadd.f32 %v7496, 0.0
  %v7529 = vadd.f32 %v7497, 0.0
  %v7530 = vadd.f32 %v7498, 0.0
  %v7531 = vadd.f32 %v7499, 0.0
  %v7532 = vadd.f32 %v7500, 0.0
  %v7533 = vadd.f32 %v7501, 0.0
  %v7534 = vadd.f32 %v7502, 0.0
  %v7535 = vadd.f32 %v7503, 0.0
  %v7536 = vadd.f32 %v7504, 0.0
  %v7537 = vadd.f32 %v7505, 0.0
  %v7538 = vadd.f32 %v7506, 0.0
  %v7539 = vadd.f32 %v7507, 0.0
  %v7540 = vld [vmem:[#allocation2 + $0x111] sm:$0xff]
  %v7541 = vld [vmem:[#allocation2 + $0x119] sm:$0xff]
  %v7542 = vmul.f32 %v7446, %v2455
  %v7543 = vmul.f32 %v7447, %v2455
  %v7544 = vmul.f32 %v7448, %v2455
  %v7545 = vmul.f32 %v7449, %v2455
  %v7546 = vmul.f32 %v7450, %v2455
  %v7547 = vmul.f32 %v7451, %v2455
  %v7548 = vmul.f32 %v7452, %v2455
  %v7549 = vmul.f32 %v7453, %v2455
  %v7550 = vmul.f32 %v7454, %v2455
  %v7551 = vmul.f32 %v7455, %v2455
  %v7552 = vmul.f32 %v7456, %v2455
  %v7553 = vmul.f32 %v7457, %v2455
  %v7554 = vmul.f32 %v7458, %v2455
  %v7555 = vmul.f32 %v7459, %v2455
  %v7556 = vmul.f32 %v7460, %v2455
  %v7557 = vmul.f32 %v7461, %v2455
  %v7558 = vmul.f32 %v7462, %v2455
  %v7559 = vmul.f32 %v7463, %v2455
  %v7560 = vmul.f32 %v7464, %v2455
  %v7561 = vmul.f32 %v7465, %v2455
  %v7562 = vmul.f32 %v7466, %v2455
  %v7563 = vmul.f32 %v7467, %v2455
  %v7564 = vmul.f32 %v7468, %v2455
  %v7565 = vmul.f32 %v7469, %v2455
  %v7566 = vmul.f32 %v7470, %v2455
  %v7567 = vmul.f32 %v7471, %v2455
  %v7568 = vmul.f32 %v7472, %v2455
  %v7569 = vmul.f32 %v7473, %v2455
  %v7570 = vmul.f32 %v7474, %v2455
  %v7571 = vmul.f32 %v7475, %v2455
  %v7572 = vmul.f32 %v7540, %v2455
  %v7573 = vmul.f32 %v7541, %v2455
  %v7574 = vadd.f32 %v7508, %v7542
  %v7575 = vadd.f32 %v7509, %v7543
  %v7576 = vadd.f32 %v7510, %v7544
  %v7577 = vadd.f32 %v7511, %v7545
  %v7578 = vadd.f32 %v7512, %v7546
  %v7579 = vadd.f32 %v7513, %v7547
  %v7580 = vadd.f32 %v7514, %v7548
  %v7581 = vadd.f32 %v7515, %v7549
  %v7582 = vadd.f32 %v7516, %v7550
  %v7583 = vadd.f32 %v7517, %v7551
  %v7584 = vadd.f32 %v7518, %v7552
  %v7585 = vadd.f32 %v7519, %v7553
  %v7586 = vadd.f32 %v7520, %v7554
  %v7587 = vadd.f32 %v7521, %v7555
  %v7588 = vadd.f32 %v7522, %v7556
  %v7589 = vadd.f32 %v7523, %v7557
  %v7590 = vadd.f32 %v7524, %v7558
  %v7591 = vadd.f32 %v7525, %v7559
  %v7592 = vadd.f32 %v7526, %v7560
  %v7593 = vadd.f32 %v7527, %v7561
  %v7594 = vadd.f32 %v7528, %v7562
  %v7595 = vadd.f32 %v7529, %v7563
  %v7596 = vadd.f32 %v7530, %v7564
  %v7597 = vadd.f32 %v7531, %v7565
  %v7598 = vadd.f32 %v7532, %v7566
  %v7599 = vadd.f32 %v7533, %v7567
  %v7600 = vadd.f32 %v7534, %v7568
  %v7601 = vadd.f32 %v7535, %v7569
  %v7602 = vadd.f32 %v7536, %v7570
  %v7603 = vadd.f32 %v7537, %v7571
  %v7604 = vadd.f32 %v7538, %v7572
  %v7605 = vadd.f32 %v7539, %v7573
  %v7606 = vld [vmem:[#allocation2 + $0x121] sm:$0xff]
  %v7607 = vld [vmem:[#allocation2 + $0x129] sm:$0xff]
  %v7608 = vmul.f32 %v7448, %v2522
  %v7609 = vmul.f32 %v7449, %v2522
  %v7610 = vmul.f32 %v7450, %v2522
  %v7611 = vmul.f32 %v7451, %v2522
  %v7612 = vmul.f32 %v7452, %v2522
  %v7613 = vmul.f32 %v7453, %v2522
  %v7614 = vmul.f32 %v7454, %v2522
  %v7615 = vmul.f32 %v7455, %v2522
  %v7616 = vmul.f32 %v7456, %v2522
  %v7617 = vmul.f32 %v7457, %v2522
  %v7618 = vmul.f32 %v7458, %v2522
  %v7619 = vmul.f32 %v7459, %v2522
  %v7620 = vmul.f32 %v7460, %v2522
  %v7621 = vmul.f32 %v7461, %v2522
  %v7622 = vmul.f32 %v7462, %v2522
  %v7623 = vmul.f32 %v7463, %v2522
  %v7624 = vmul.f32 %v7464, %v2522
  %v7625 = vmul.f32 %v7465, %v2522
  %v7626 = vmul.f32 %v7466, %v2522
  %v7627 = vmul.f32 %v7467, %v2522
  %v7628 = vmul.f32 %v7468, %v2522
  %v7629 = vmul.f32 %v7469, %v2522
  %v7630 = vmul.f32 %v7470, %v2522
  %v7631 = vmul.f32 %v7471, %v2522
  %v7632 = vmul.f32 %v7472, %v2522
  %v7633 = vmul.f32 %v7473, %v2522
  %v7634 = vmul.f32 %v7474, %v2522
  %v7635 = vmul.f32 %v7475, %v2522
  %v7636 = vmul.f32 %v7540, %v2522
  %v7637 = vmul.f32 %v7541, %v2522
  %v7638 = vmul.f32 %v7606, %v2522
  %v7639 = vmul.f32 %v7607, %v2522
  %v7640 = vadd.f32 %v7574, %v7608
  %v7641 = vadd.f32 %v7575, %v7609
  %v7642 = vadd.f32 %v7576, %v7610
  %v7643 = vadd.f32 %v7577, %v7611
  %v7644 = vadd.f32 %v7578, %v7612
  %v7645 = vadd.f32 %v7579, %v7613
  %v7646 = vadd.f32 %v7580, %v7614
  %v7647 = vadd.f32 %v7581, %v7615
  %v7648 = vadd.f32 %v7582, %v7616
  %v7649 = vadd.f32 %v7583, %v7617
  %v7650 = vadd.f32 %v7584, %v7618
  %v7651 = vadd.f32 %v7585, %v7619
  %v7652 = vadd.f32 %v7586, %v7620
  %v7653 = vadd.f32 %v7587, %v7621
  %v7654 = vadd.f32 %v7588, %v7622
  %v7655 = vadd.f32 %v7589, %v7623
  %v7656 = vadd.f32 %v7590, %v7624
  %v7657 = vadd.f32 %v7591, %v7625
  %v7658 = vadd.f32 %v7592, %v7626
  %v7659 = vadd.f32 %v7593, %v7627
  %v7660 = vadd.f32 %v7594, %v7628
  %v7661 = vadd.f32 %v7595, %v7629
  %v7662 = vadd.f32 %v7596, %v7630
  %v7663 = vadd.f32 %v7597, %v7631
  %v7664 = vadd.f32 %v7598, %v7632
  %v7665 = vadd.f32 %v7599, %v7633
  %v7666 = vadd.f32 %v7600, %v7634
  %v7667 = vadd.f32 %v7601, %v7635
  %v7668 = vadd.f32 %v7602, %v7636
  %v7669 = vadd.f32 %v7603, %v7637
  %v7670 = vadd.f32 %v7604, %v7638
  %v7671 = vadd.f32 %v7605, %v7639
  %v7672 = vsel %vm2715, %v7640, 0.0
  %v7673 = vsel %vm2716, %v7641, 0.0
  %v7674 = vsel %vm2717, %v7642, 0.0
  %v7675 = vsel %vm2718, %v7643, 0.0
  %v7676 = vsel %vm2719, %v7644, 0.0
  %v7677 = vsel %vm2720, %v7645, 0.0
  %v7678 = vsel %vm2721, %v7646, 0.0
  %v7679 = vsel %vm2722, %v7647, 0.0
  %v7680 = vsel %vm2723, %v7648, 0.0
  %v7681 = vsel %vm2724, %v7649, 0.0
  %v7682 = vsel %vm2725, %v7650, 0.0
  %v7683 = vsel %vm2726, %v7651, 0.0
  %v7684 = vsel %vm2727, %v7652, 0.0
  %v7685 = vsel %vm2728, %v7653, 0.0
  %v7686 = vsel %vm2729, %v7654, 0.0
  %v7687 = vsel %vm2730, %v7655, 0.0
  %v7688 = vsel %vm2731, %v7656, 0.0
  %v7689 = vsel %vm2732, %v7657, 0.0
  %v7690 = vsel %vm2733, %v7658, 0.0
  %v7691 = vsel %vm2734, %v7659, 0.0
  %v7692 = vsel %vm2735, %v7660, 0.0
  %v7693 = vsel %vm2736, %v7661, 0.0
  %v7694 = vsel %vm2737, %v7662, 0.0
  %v7695 = vsel %vm2738, %v7663, 0.0
  %v7696 = vsel %vm2739, %v7664, 0.0
  %v7697 = vsel %vm2740, %v7665, 0.0
  %v7698 = vsel %vm2741, %v7666, 0.0
  %v7699 = vsel %vm2742, %v7667, 0.0
  %v7700 = vsel %vm2743, %v7668, 0.0
  %v7701 = vsel %vm2744, %v7669, 0.0
  %v7702 = vsel %vm2745, %v7670, 0.0
  %v7703 = vsel %vm2746, %v7671, 0.0
  %v7704 = vadd.f32 %v7412, %v7672
  %v7705 = vadd.f32 %v7413, %v7673
  %v7706 = vadd.f32 %v7414, %v7674
  %v7707 = vadd.f32 %v7415, %v7675
  %v7708 = vadd.f32 %v7416, %v7676
  %v7709 = vadd.f32 %v7417, %v7677
  %v7710 = vadd.f32 %v7418, %v7678
  %v7711 = vadd.f32 %v7419, %v7679
  %v7712 = vadd.f32 %v7420, %v7680
  %v7713 = vadd.f32 %v7421, %v7681
  %v7714 = vadd.f32 %v7422, %v7682
  %v7715 = vadd.f32 %v7423, %v7683
  %v7716 = vadd.f32 %v7424, %v7684
  %v7717 = vadd.f32 %v7425, %v7685
  %v7718 = vadd.f32 %v7426, %v7686
  %v7719 = vadd.f32 %v7427, %v7687
  %v7720 = vadd.f32 %v7428, %v7688
  %v7721 = vadd.f32 %v7429, %v7689
  %v7722 = vadd.f32 %v7430, %v7690
  %v7723 = vadd.f32 %v7431, %v7691
  %v7724 = vadd.f32 %v7432, %v7692
  %v7725 = vadd.f32 %v7433, %v7693
  %v7726 = vadd.f32 %v7434, %v7694
  %v7727 = vadd.f32 %v7435, %v7695
  %v7728 = vadd.f32 %v7436, %v7696
  %v7729 = vadd.f32 %v7437, %v7697
  %v7730 = vadd.f32 %v7438, %v7698
  %v7731 = vadd.f32 %v7439, %v7699
  %v7732 = vadd.f32 %v7440, %v7700
  %v7733 = vadd.f32 %v7441, %v7701
  %v7734 = vadd.f32 %v7442, %v7702
  %v7735 = vadd.f32 %v7443, %v7703
  %v7736 = vadd.f32 %v7704, %v2812
  %v7737 = vadd.f32 %v7705, %v2812
  %v7738 = vadd.f32 %v7706, %v2812
  %v7739 = vadd.f32 %v7707, %v2812
  %v7740 = vadd.f32 %v7708, %v2812
  %v7741 = vadd.f32 %v7709, %v2812
  %v7742 = vadd.f32 %v7710, %v2812
  %v7743 = vadd.f32 %v7711, %v2812
  %v7744 = vadd.f32 %v7712, %v2812
  %v7745 = vadd.f32 %v7713, %v2812
  %v7746 = vadd.f32 %v7714, %v2812
  %v7747 = vadd.f32 %v7715, %v2812
  %v7748 = vadd.f32 %v7716, %v2812
  %v7749 = vadd.f32 %v7717, %v2812
  %v7750 = vadd.f32 %v7718, %v2812
  %v7751 = vadd.f32 %v7719, %v2812
  %v7752 = vadd.f32 %v7720, %v2812
  %v7753 = vadd.f32 %v7721, %v2812
  %v7754 = vadd.f32 %v7722, %v2812
  %v7755 = vadd.f32 %v7723, %v2812
  %v7756 = vadd.f32 %v7724, %v2812
  %v7757 = vadd.f32 %v7725, %v2812
  %v7758 = vadd.f32 %v7726, %v2812
  %v7759 = vadd.f32 %v7727, %v2812
  %v7760 = vadd.f32 %v7728, %v2812
  %v7761 = vadd.f32 %v7729, %v2812
  %v7762 = vadd.f32 %v7730, %v2812
  %v7763 = vadd.f32 %v7731, %v2812
  %v7764 = vadd.f32 %v7732, %v2812
  %v7765 = vadd.f32 %v7733, %v2812
  %v7766 = vadd.f32 %v7734, %v2812
  %v7767 = vadd.f32 %v7735, %v2812
  %v7768 = vmul.f32 %v7736, 0.5
  %v7769 = vmul.f32 %v7737, 0.5
  %v7770 = vmul.f32 %v7738, 0.5
  %v7771 = vmul.f32 %v7739, 0.5
  %v7772 = vmul.f32 %v7740, 0.5
  %v7773 = vmul.f32 %v7741, 0.5
  %v7774 = vmul.f32 %v7742, 0.5
  %v7775 = vmul.f32 %v7743, 0.5
  %v7776 = vmul.f32 %v7744, 0.5
  %v7777 = vmul.f32 %v7745, 0.5
  %v7778 = vmul.f32 %v7746, 0.5
  %v7779 = vmul.f32 %v7747, 0.5
  %v7780 = vmul.f32 %v7748, 0.5
  %v7781 = vmul.f32 %v7749, 0.5
  %v7782 = vmul.f32 %v7750, 0.5
  %v7783 = vmul.f32 %v7751, 0.5
  %v7784 = vmul.f32 %v7752, 0.5
  %v7785 = vmul.f32 %v7753, 0.5
  %v7786 = vmul.f32 %v7754, 0.5
  %v7787 = vmul.f32 %v7755, 0.5
  %v7788 = vmul.f32 %v7756, 0.5
  %v7789 = vmul.f32 %v7757, 0.5
  %v7790 = vmul.f32 %v7758, 0.5
  %v7791 = vmul.f32 %v7759, 0.5
  %v7792 = vmul.f32 %v7760, 0.5
  %v7793 = vmul.f32 %v7761, 0.5
  %v7794 = vmul.f32 %v7762, 0.5
  %v7795 = vmul.f32 %v7763, 0.5
  %v7796 = vmul.f32 %v7764, 0.5
  %v7797 = vmul.f32 %v7765, 0.5
  %v7798 = vmul.f32 %v7766, 0.5
  %v7799 = vmul.f32 %v7767, 0.5
  %v7800 = vmul.f32 %v7736, 0.70710677
  %v7801 = vmul.f32 %v7737, 0.70710677
  %v7802 = vmul.f32 %v7738, 0.70710677
  %v7803 = vmul.f32 %v7739, 0.70710677
  %v7804 = vmul.f32 %v7740, 0.70710677
  %v7805 = vmul.f32 %v7741, 0.70710677
  %v7806 = vmul.f32 %v7742, 0.70710677
  %v7807 = vmul.f32 %v7743, 0.70710677
  %v7808 = vmul.f32 %v7744, 0.70710677
  %v7809 = vmul.f32 %v7745, 0.70710677
  %v7810 = vmul.f32 %v7746, 0.70710677
  %v7811 = vmul.f32 %v7747, 0.70710677
  %v7812 = vmul.f32 %v7748, 0.70710677
  %v7813 = vmul.f32 %v7749, 0.70710677
  %v7814 = vmul.f32 %v7750, 0.70710677
  %v7815 = vmul.f32 %v7751, 0.70710677
  %v7816 = vmul.f32 %v7752, 0.70710677
  %v7817 = vmul.f32 %v7753, 0.70710677
  %v7818 = vmul.f32 %v7754, 0.70710677
  %v7819 = vmul.f32 %v7755, 0.70710677
  %v7820 = vmul.f32 %v7756, 0.70710677
  %v7821 = vmul.f32 %v7757, 0.70710677
  %v7822 = vmul.f32 %v7758, 0.70710677
  %v7823 = vmul.f32 %v7759, 0.70710677
  %v7824 = vmul.f32 %v7760, 0.70710677
  %v7825 = vmul.f32 %v7761, 0.70710677
  %v7826 = vmul.f32 %v7762, 0.70710677
  %v7827 = vmul.f32 %v7763, 0.70710677
  %v7828 = vmul.f32 %v7764, 0.70710677
  %v7829 = vmul.f32 %v7765, 0.70710677
  %v7830 = vmul.f32 %v7766, 0.70710677
  %v7831 = vmul.f32 %v7767, 0.70710677
  %vm7832 = vcmp.lt.f32.partialorder %v7800, 0.0
  %vm7833 = vcmp.lt.f32.partialorder %v7801, 0.0
  %vm7834 = vcmp.lt.f32.partialorder %v7802, 0.0
  %vm7835 = vcmp.lt.f32.partialorder %v7803, 0.0
  %vm7836 = vcmp.lt.f32.partialorder %v7804, 0.0
  %vm7837 = vcmp.lt.f32.partialorder %v7805, 0.0
  %vm7838 = vcmp.lt.f32.partialorder %v7806, 0.0
  %vm7839 = vcmp.lt.f32.partialorder %v7807, 0.0
  %vm7840 = vcmp.lt.f32.partialorder %v7808, 0.0
  %vm7841 = vcmp.lt.f32.partialorder %v7809, 0.0
  %vm7842 = vcmp.lt.f32.partialorder %v7810, 0.0
  %vm7843 = vcmp.lt.f32.partialorder %v7811, 0.0
  %vm7844 = vcmp.lt.f32.partialorder %v7812, 0.0
  %vm7845 = vcmp.lt.f32.partialorder %v7813, 0.0
  %vm7846 = vcmp.lt.f32.partialorder %v7814, 0.0
  %vm7847 = vcmp.lt.f32.partialorder %v7815, 0.0
  %vm7848 = vcmp.lt.f32.partialorder %v7816, 0.0
  %vm7849 = vcmp.lt.f32.partialorder %v7817, 0.0
  %vm7850 = vcmp.lt.f32.partialorder %v7818, 0.0
  %vm7851 = vcmp.lt.f32.partialorder %v7819, 0.0
  %vm7852 = vcmp.lt.f32.partialorder %v7820, 0.0
  %vm7853 = vcmp.lt.f32.partialorder %v7821, 0.0
  %vm7854 = vcmp.lt.f32.partialorder %v7822, 0.0
  %vm7855 = vcmp.lt.f32.partialorder %v7823, 0.0
  %vm7856 = vcmp.lt.f32.partialorder %v7824, 0.0
  %vm7857 = vcmp.lt.f32.partialorder %v7825, 0.0
  %vm7858 = vcmp.lt.f32.partialorder %v7826, 0.0
  %vm7859 = vcmp.lt.f32.partialorder %v7827, 0.0
  %vm7860 = vcmp.lt.f32.partialorder %v7828, 0.0
  %vm7861 = vcmp.lt.f32.partialorder %v7829, 0.0
  %vm7862 = vcmp.lt.f32.partialorder %v7830, 0.0
  %vm7863 = vcmp.lt.f32.partialorder %v7831, 0.0
  %v7864 = vsel %vm7832, -1.0, 1.0
  %v7865 = vsel %vm7833, -1.0, 1.0
  %v7866 = vsel %vm7834, -1.0, 1.0
  %v7867 = vsel %vm7835, -1.0, 1.0
  %v7868 = vsel %vm7836, -1.0, 1.0
  %v7869 = vsel %vm7837, -1.0, 1.0
  %v7870 = vsel %vm7838, -1.0, 1.0
  %v7871 = vsel %vm7839, -1.0, 1.0
  %v7872 = vsel %vm7840, -1.0, 1.0
  %v7873 = vsel %vm7841, -1.0, 1.0
  %v7874 = vsel %vm7842, -1.0, 1.0
  %v7875 = vsel %vm7843, -1.0, 1.0
  %v7876 = vsel %vm7844, -1.0, 1.0
  %v7877 = vsel %vm7845, -1.0, 1.0
  %v7878 = vsel %vm7846, -1.0, 1.0
  %v7879 = vsel %vm7847, -1.0, 1.0
  %v7880 = vsel %vm7848, -1.0, 1.0
  %v7881 = vsel %vm7849, -1.0, 1.0
  %v7882 = vsel %vm7850, -1.0, 1.0
  %v7883 = vsel %vm7851, -1.0, 1.0
  %v7884 = vsel %vm7852, -1.0, 1.0
  %v7885 = vsel %vm7853, -1.0, 1.0
  %v7886 = vsel %vm7854, -1.0, 1.0
  %v7887 = vsel %vm7855, -1.0, 1.0
  %v7888 = vsel %vm7856, -1.0, 1.0
  %v7889 = vsel %vm7857, -1.0, 1.0
  %v7890 = vsel %vm7858, -1.0, 1.0
  %v7891 = vsel %vm7859, -1.0, 1.0
  %v7892 = vsel %vm7860, -1.0, 1.0
  %v7893 = vsel %vm7861, -1.0, 1.0
  %v7894 = vsel %vm7862, -1.0, 1.0
  %v7895 = vsel %vm7863, -1.0, 1.0
  %v7896 = vand.u32 2147483647, %v7800
  %v7897 = vand.u32 2147483647, %v7801
  %v7898 = vand.u32 2147483647, %v7802
  %v7899 = vand.u32 2147483647, %v7803
  %v7900 = vand.u32 2147483647, %v7804
  %v7901 = vand.u32 2147483647, %v7805
  %v7902 = vand.u32 2147483647, %v7806
  %v7903 = vand.u32 2147483647, %v7807
  %v7904 = vand.u32 2147483647, %v7808
  %v7905 = vand.u32 2147483647, %v7809
  %v7906 = vand.u32 2147483647, %v7810
  %v7907 = vand.u32 2147483647, %v7811
  %v7908 = vand.u32 2147483647, %v7812
  %v7909 = vand.u32 2147483647, %v7813
  %v7910 = vand.u32 2147483647, %v7814
  %v7911 = vand.u32 2147483647, %v7815
  %v7912 = vand.u32 2147483647, %v7816
  %v7913 = vand.u32 2147483647, %v7817
  %v7914 = vand.u32 2147483647, %v7818
  %v7915 = vand.u32 2147483647, %v7819
  %v7916 = vand.u32 2147483647, %v7820
  %v7917 = vand.u32 2147483647, %v7821
  %v7918 = vand.u32 2147483647, %v7822
  %v7919 = vand.u32 2147483647, %v7823
  %v7920 = vand.u32 2147483647, %v7824
  %v7921 = vand.u32 2147483647, %v7825
  %v7922 = vand.u32 2147483647, %v7826
  %v7923 = vand.u32 2147483647, %v7827
  %v7924 = vand.u32 2147483647, %v7828
  %v7925 = vand.u32 2147483647, %v7829
  %v7926 = vand.u32 2147483647, %v7830
  %v7927 = vand.u32 2147483647, %v7831
  %v7928 = vmul.f32 %v7896, 0.3275911
  %v7929 = vmul.f32 %v7897, 0.3275911
  %v7930 = vmul.f32 %v7898, 0.3275911
  %v7931 = vmul.f32 %v7899, 0.3275911
  %v7932 = vmul.f32 %v7900, 0.3275911
  %v7933 = vmul.f32 %v7901, 0.3275911
  %v7934 = vmul.f32 %v7902, 0.3275911
  %v7935 = vmul.f32 %v7903, 0.3275911
  %v7936 = vmul.f32 %v7904, 0.3275911
  %v7937 = vmul.f32 %v7905, 0.3275911
  %v7938 = vmul.f32 %v7906, 0.3275911
  %v7939 = vmul.f32 %v7907, 0.3275911
  %v7940 = vmul.f32 %v7908, 0.3275911
  %v7941 = vmul.f32 %v7909, 0.3275911
  %v7942 = vmul.f32 %v7910, 0.3275911
  %v7943 = vmul.f32 %v7911, 0.3275911
  %v7944 = vmul.f32 %v7912, 0.3275911
  %v7945 = vmul.f32 %v7913, 0.3275911
  %v7946 = vmul.f32 %v7914, 0.3275911
  %v7947 = vmul.f32 %v7915, 0.3275911
  %v7948 = vmul.f32 %v7916, 0.3275911
  %v7949 = vmul.f32 %v7917, 0.3275911
  %v7950 = vmul.f32 %v7918, 0.3275911
  %v7951 = vmul.f32 %v7919, 0.3275911
  %v7952 = vmul.f32 %v7920, 0.3275911
  %v7953 = vmul.f32 %v7921, 0.3275911
  %v7954 = vmul.f32 %v7922, 0.3275911
  %v7955 = vmul.f32 %v7923, 0.3275911
  %v7956 = vmul.f32 %v7924, 0.3275911
  %v7957 = vmul.f32 %v7925, 0.3275911
  %v7958 = vmul.f32 %v7926, 0.3275911
  %v7959 = vmul.f32 %v7927, 0.3275911
  %v7960 = vadd.f32 %v7928, 1.0
  %v7961 = vadd.f32 %v7929, 1.0
  %v7962 = vadd.f32 %v7930, 1.0
  %v7963 = vadd.f32 %v7931, 1.0
  %v7964 = vadd.f32 %v7932, 1.0
  %v7965 = vadd.f32 %v7933, 1.0
  %v7966 = vadd.f32 %v7934, 1.0
  %v7967 = vadd.f32 %v7935, 1.0
  %v7968 = vadd.f32 %v7936, 1.0
  %v7969 = vadd.f32 %v7937, 1.0
  %v7970 = vadd.f32 %v7938, 1.0
  %v7971 = vadd.f32 %v7939, 1.0
  %v7972 = vadd.f32 %v7940, 1.0
  %v7973 = vadd.f32 %v7941, 1.0
  %v7974 = vadd.f32 %v7942, 1.0
  %v7975 = vadd.f32 %v7943, 1.0
  %v7976 = vadd.f32 %v7944, 1.0
  %v7977 = vadd.f32 %v7945, 1.0
  %v7978 = vadd.f32 %v7946, 1.0
  %v7979 = vadd.f32 %v7947, 1.0
  %v7980 = vadd.f32 %v7948, 1.0
  %v7981 = vadd.f32 %v7949, 1.0
  %v7982 = vadd.f32 %v7950, 1.0
  %v7983 = vadd.f32 %v7951, 1.0
  %v7984 = vadd.f32 %v7952, 1.0
  %v7985 = vadd.f32 %v7953, 1.0
  %v7986 = vadd.f32 %v7954, 1.0
  %v7987 = vadd.f32 %v7955, 1.0
  %v7988 = vadd.f32 %v7956, 1.0
  %v7989 = vadd.f32 %v7957, 1.0
  %v7990 = vadd.f32 %v7958, 1.0
  %v7991 = vadd.f32 %v7959, 1.0
  %v7992 = vrcp.pop %v7960
  %v7993 = vmul.f32 %v7960, %v7992
  %v7994 = vsub.f32 1.0, %v7993
  %v7995 = vmul.f32 %v7992, %v7994
  %v7996 = vadd.f32 %v7992, %v7995
  %vm7997 = vweird.f32 %v7960
  %vm7998 = vweird.f32 %v7992
  %vm7999 = vmor %vm7997, %vm7998
  %v8000 = vsel %vm7999, %v7992, %v7996
  %v8001 = vand.u32 2147483647, %v7960
  %vm8002 = vcmp.eq.f32.partialorder %v8001, 8.507059e+37
  %v8003 = vand.u32 %v7960, 2147483648
  %v8004 = vor.u32 1.1754944e-38, %v8003
  %v8005 = vsel %vm8002, %v8004, %v8000
  %v8006 = vmul.f32 1.0, %v8005
  %v8007 = vrcp.pop %v7961
  %v8008 = vmul.f32 %v7961, %v8007
  %v8009 = vsub.f32 1.0, %v8008
  %v8010 = vmul.f32 %v8007, %v8009
  %v8011 = vadd.f32 %v8007, %v8010
  %vm8012 = vweird.f32 %v7961
  %vm8013 = vweird.f32 %v8007
  %vm8014 = vmor %vm8012, %vm8013
  %v8015 = vsel %vm8014, %v8007, %v8011
  %v8016 = vand.u32 2147483647, %v7961
  %vm8017 = vcmp.eq.f32.partialorder %v8016, 8.507059e+37
  %v8018 = vand.u32 %v7961, 2147483648
  %v8019 = vor.u32 1.1754944e-38, %v8018
  %v8020 = vsel %vm8017, %v8019, %v8015
  %v8021 = vmul.f32 1.0, %v8020
  %v8022 = vrcp.pop %v7962
  %v8023 = vmul.f32 %v7962, %v8022
  %v8024 = vsub.f32 1.0, %v8023
  %v8025 = vmul.f32 %v8022, %v8024
  %v8026 = vadd.f32 %v8022, %v8025
  %vm8027 = vweird.f32 %v7962
  %vm8028 = vweird.f32 %v8022
  %vm8029 = vmor %vm8027, %vm8028
  %v8030 = vsel %vm8029, %v8022, %v8026
  %v8031 = vand.u32 2147483647, %v7962
  %vm8032 = vcmp.eq.f32.partialorder %v8031, 8.507059e+37
  %v8033 = vand.u32 %v7962, 2147483648
  %v8034 = vor.u32 1.1754944e-38, %v8033
  %v8035 = vsel %vm8032, %v8034, %v8030
  %v8036 = vmul.f32 1.0, %v8035
  %v8037 = vrcp.pop %v7963
  %v8038 = vmul.f32 %v7963, %v8037
  %v8039 = vsub.f32 1.0, %v8038
  %v8040 = vmul.f32 %v8037, %v8039
  %v8041 = vadd.f32 %v8037, %v8040
  %vm8042 = vweird.f32 %v7963
  %vm8043 = vweird.f32 %v8037
  %vm8044 = vmor %vm8042, %vm8043
  %v8045 = vsel %vm8044, %v8037, %v8041
  %v8046 = vand.u32 2147483647, %v7963
  %vm8047 = vcmp.eq.f32.partialorder %v8046, 8.507059e+37
  %v8048 = vand.u32 %v7963, 2147483648
  %v8049 = vor.u32 1.1754944e-38, %v8048
  %v8050 = vsel %vm8047, %v8049, %v8045
  %v8051 = vmul.f32 1.0, %v8050
  %v8052 = vrcp.pop %v7964
  %v8053 = vmul.f32 %v7964, %v8052
  %v8054 = vsub.f32 1.0, %v8053
  %v8055 = vmul.f32 %v8052, %v8054
  %v8056 = vadd.f32 %v8052, %v8055
  %vm8057 = vweird.f32 %v7964
  %vm8058 = vweird.f32 %v8052
  %vm8059 = vmor %vm8057, %vm8058
  %v8060 = vsel %vm8059, %v8052, %v8056
  %v8061 = vand.u32 2147483647, %v7964
  %vm8062 = vcmp.eq.f32.partialorder %v8061, 8.507059e+37
  %v8063 = vand.u32 %v7964, 2147483648
  %v8064 = vor.u32 1.1754944e-38, %v8063
  %v8065 = vsel %vm8062, %v8064, %v8060
  %v8066 = vmul.f32 1.0, %v8065
  %v8067 = vrcp.pop %v7965
  %v8068 = vmul.f32 %v7965, %v8067
  %v8069 = vsub.f32 1.0, %v8068
  %v8070 = vmul.f32 %v8067, %v8069
  %v8071 = vadd.f32 %v8067, %v8070
  %vm8072 = vweird.f32 %v7965
  %vm8073 = vweird.f32 %v8067
  %vm8074 = vmor %vm8072, %vm8073
  %v8075 = vsel %vm8074, %v8067, %v8071
  %v8076 = vand.u32 2147483647, %v7965
  %vm8077 = vcmp.eq.f32.partialorder %v8076, 8.507059e+37
  %v8078 = vand.u32 %v7965, 2147483648
  %v8079 = vor.u32 1.1754944e-38, %v8078
  %v8080 = vsel %vm8077, %v8079, %v8075
  %v8081 = vmul.f32 1.0, %v8080
  %v8082 = vrcp.pop %v7966
  %v8083 = vmul.f32 %v7966, %v8082
  %v8084 = vsub.f32 1.0, %v8083
  %v8085 = vmul.f32 %v8082, %v8084
  %v8086 = vadd.f32 %v8082, %v8085
  %vm8087 = vweird.f32 %v7966
  %vm8088 = vweird.f32 %v8082
  %vm8089 = vmor %vm8087, %vm8088
  %v8090 = vsel %vm8089, %v8082, %v8086
  %v8091 = vand.u32 2147483647, %v7966
  %vm8092 = vcmp.eq.f32.partialorder %v8091, 8.507059e+37
  %v8093 = vand.u32 %v7966, 2147483648
  %v8094 = vor.u32 1.1754944e-38, %v8093
  %v8095 = vsel %vm8092, %v8094, %v8090
  %v8096 = vmul.f32 1.0, %v8095
  %v8097 = vrcp.pop %v7967
  %v8098 = vmul.f32 %v7967, %v8097
  %v8099 = vsub.f32 1.0, %v8098
  %v8100 = vmul.f32 %v8097, %v8099
  %v8101 = vadd.f32 %v8097, %v8100
  %vm8102 = vweird.f32 %v7967
  %vm8103 = vweird.f32 %v8097
  %vm8104 = vmor %vm8102, %vm8103
  %v8105 = vsel %vm8104, %v8097, %v8101
  %v8106 = vand.u32 2147483647, %v7967
  %vm8107 = vcmp.eq.f32.partialorder %v8106, 8.507059e+37
  %v8108 = vand.u32 %v7967, 2147483648
  %v8109 = vor.u32 1.1754944e-38, %v8108
  %v8110 = vsel %vm8107, %v8109, %v8105
  %v8111 = vmul.f32 1.0, %v8110
  %v8112 = vrcp.pop %v7968
  %v8113 = vmul.f32 %v7968, %v8112
  %v8114 = vsub.f32 1.0, %v8113
  %v8115 = vmul.f32 %v8112, %v8114
  %v8116 = vadd.f32 %v8112, %v8115
  %vm8117 = vweird.f32 %v7968
  %vm8118 = vweird.f32 %v8112
  %vm8119 = vmor %vm8117, %vm8118
  %v8120 = vsel %vm8119, %v8112, %v8116
  %v8121 = vand.u32 2147483647, %v7968
  %vm8122 = vcmp.eq.f32.partialorder %v8121, 8.507059e+37
  %v8123 = vand.u32 %v7968, 2147483648
  %v8124 = vor.u32 1.1754944e-38, %v8123
  %v8125 = vsel %vm8122, %v8124, %v8120
  %v8126 = vmul.f32 1.0, %v8125
  %v8127 = vrcp.pop %v7969
  %v8128 = vmul.f32 %v7969, %v8127
  %v8129 = vsub.f32 1.0, %v8128
  %v8130 = vmul.f32 %v8127, %v8129
  %v8131 = vadd.f32 %v8127, %v8130
  %vm8132 = vweird.f32 %v7969
  %vm8133 = vweird.f32 %v8127
  %vm8134 = vmor %vm8132, %vm8133
  %v8135 = vsel %vm8134, %v8127, %v8131
  %v8136 = vand.u32 2147483647, %v7969
  %vm8137 = vcmp.eq.f32.partialorder %v8136, 8.507059e+37
  %v8138 = vand.u32 %v7969, 2147483648
  %v8139 = vor.u32 1.1754944e-38, %v8138
  %v8140 = vsel %vm8137, %v8139, %v8135
  %v8141 = vmul.f32 1.0, %v8140
  %v8142 = vrcp.pop %v7970
  %v8143 = vmul.f32 %v7970, %v8142
  %v8144 = vsub.f32 1.0, %v8143
  %v8145 = vmul.f32 %v8142, %v8144
  %v8146 = vadd.f32 %v8142, %v8145
  %vm8147 = vweird.f32 %v7970
  %vm8148 = vweird.f32 %v8142
  %vm8149 = vmor %vm8147, %vm8148
  %v8150 = vsel %vm8149, %v8142, %v8146
  %v8151 = vand.u32 2147483647, %v7970
  %vm8152 = vcmp.eq.f32.partialorder %v8151, 8.507059e+37
  %v8153 = vand.u32 %v7970, 2147483648
  %v8154 = vor.u32 1.1754944e-38, %v8153
  %v8155 = vsel %vm8152, %v8154, %v8150
  %v8156 = vmul.f32 1.0, %v8155
  %v8157 = vrcp.pop %v7971
  %v8158 = vmul.f32 %v7971, %v8157
  %v8159 = vsub.f32 1.0, %v8158
  %v8160 = vmul.f32 %v8157, %v8159
  %v8161 = vadd.f32 %v8157, %v8160
  %vm8162 = vweird.f32 %v7971
  %vm8163 = vweird.f32 %v8157
  %vm8164 = vmor %vm8162, %vm8163
  %v8165 = vsel %vm8164, %v8157, %v8161
  %v8166 = vand.u32 2147483647, %v7971
  %vm8167 = vcmp.eq.f32.partialorder %v8166, 8.507059e+37
  %v8168 = vand.u32 %v7971, 2147483648
  %v8169 = vor.u32 1.1754944e-38, %v8168
  %v8170 = vsel %vm8167, %v8169, %v8165
  %v8171 = vmul.f32 1.0, %v8170
  %v8172 = vrcp.pop %v7972
  %v8173 = vmul.f32 %v7972, %v8172
  %v8174 = vsub.f32 1.0, %v8173
  %v8175 = vmul.f32 %v8172, %v8174
  %v8176 = vadd.f32 %v8172, %v8175
  %vm8177 = vweird.f32 %v7972
  %vm8178 = vweird.f32 %v8172
  %vm8179 = vmor %vm8177, %vm8178
  %v8180 = vsel %vm8179, %v8172, %v8176
  %v8181 = vand.u32 2147483647, %v7972
  %vm8182 = vcmp.eq.f32.partialorder %v8181, 8.507059e+37
  %v8183 = vand.u32 %v7972, 2147483648
  %v8184 = vor.u32 1.1754944e-38, %v8183
  %v8185 = vsel %vm8182, %v8184, %v8180
  %v8186 = vmul.f32 1.0, %v8185
  %v8187 = vrcp.pop %v7973
  %v8188 = vmul.f32 %v7973, %v8187
  %v8189 = vsub.f32 1.0, %v8188
  %v8190 = vmul.f32 %v8187, %v8189
  %v8191 = vadd.f32 %v8187, %v8190
  %vm8192 = vweird.f32 %v7973
  %vm8193 = vweird.f32 %v8187
  %vm8194 = vmor %vm8192, %vm8193
  %v8195 = vsel %vm8194, %v8187, %v8191
  %v8196 = vand.u32 2147483647, %v7973
  %vm8197 = vcmp.eq.f32.partialorder %v8196, 8.507059e+37
  %v8198 = vand.u32 %v7973, 2147483648
  %v8199 = vor.u32 1.1754944e-38, %v8198
  %v8200 = vsel %vm8197, %v8199, %v8195
  %v8201 = vmul.f32 1.0, %v8200
  %v8202 = vrcp.pop %v7974
  %v8203 = vmul.f32 %v7974, %v8202
  %v8204 = vsub.f32 1.0, %v8203
  %v8205 = vmul.f32 %v8202, %v8204
  %v8206 = vadd.f32 %v8202, %v8205
  %vm8207 = vweird.f32 %v7974
  %vm8208 = vweird.f32 %v8202
  %vm8209 = vmor %vm8207, %vm8208
  %v8210 = vsel %vm8209, %v8202, %v8206
  %v8211 = vand.u32 2147483647, %v7974
  %vm8212 = vcmp.eq.f32.partialorder %v8211, 8.507059e+37
  %v8213 = vand.u32 %v7974, 2147483648
  %v8214 = vor.u32 1.1754944e-38, %v8213
  %v8215 = vsel %vm8212, %v8214, %v8210
  %v8216 = vmul.f32 1.0, %v8215
  %v8217 = vrcp.pop %v7975
  %v8218 = vmul.f32 %v7975, %v8217
  %v8219 = vsub.f32 1.0, %v8218
  %v8220 = vmul.f32 %v8217, %v8219
  %v8221 = vadd.f32 %v8217, %v8220
  %vm8222 = vweird.f32 %v7975
  %vm8223 = vweird.f32 %v8217
  %vm8224 = vmor %vm8222, %vm8223
  %v8225 = vsel %vm8224, %v8217, %v8221
  %v8226 = vand.u32 2147483647, %v7975
  %vm8227 = vcmp.eq.f32.partialorder %v8226, 8.507059e+37
  %v8228 = vand.u32 %v7975, 2147483648
  %v8229 = vor.u32 1.1754944e-38, %v8228
  %v8230 = vsel %vm8227, %v8229, %v8225
  %v8231 = vmul.f32 1.0, %v8230
  %v8232 = vrcp.pop %v7976
  %v8233 = vmul.f32 %v7976, %v8232
  %v8234 = vsub.f32 1.0, %v8233
  %v8235 = vmul.f32 %v8232, %v8234
  %v8236 = vadd.f32 %v8232, %v8235
  %vm8237 = vweird.f32 %v7976
  %vm8238 = vweird.f32 %v8232
  %vm8239 = vmor %vm8237, %vm8238
  %v8240 = vsel %vm8239, %v8232, %v8236
  %v8241 = vand.u32 2147483647, %v7976
  %vm8242 = vcmp.eq.f32.partialorder %v8241, 8.507059e+37
  %v8243 = vand.u32 %v7976, 2147483648
  %v8244 = vor.u32 1.1754944e-38, %v8243
  %v8245 = vsel %vm8242, %v8244, %v8240
  %v8246 = vmul.f32 1.0, %v8245
  %v8247 = vrcp.pop %v7977
  %v8248 = vmul.f32 %v7977, %v8247
  %v8249 = vsub.f32 1.0, %v8248
  %v8250 = vmul.f32 %v8247, %v8249
  %v8251 = vadd.f32 %v8247, %v8250
  %vm8252 = vweird.f32 %v7977
  %vm8253 = vweird.f32 %v8247
  %vm8254 = vmor %vm8252, %vm8253
  %v8255 = vsel %vm8254, %v8247, %v8251
  %v8256 = vand.u32 2147483647, %v7977
  %vm8257 = vcmp.eq.f32.partialorder %v8256, 8.507059e+37
  %v8258 = vand.u32 %v7977, 2147483648
  %v8259 = vor.u32 1.1754944e-38, %v8258
  %v8260 = vsel %vm8257, %v8259, %v8255
  %v8261 = vmul.f32 1.0, %v8260
  %v8262 = vrcp.pop %v7978
  %v8263 = vmul.f32 %v7978, %v8262
  %v8264 = vsub.f32 1.0, %v8263
  %v8265 = vmul.f32 %v8262, %v8264
  %v8266 = vadd.f32 %v8262, %v8265
  %vm8267 = vweird.f32 %v7978
  %vm8268 = vweird.f32 %v8262
  %vm8269 = vmor %vm8267, %vm8268
  %v8270 = vsel %vm8269, %v8262, %v8266
  %v8271 = vand.u32 2147483647, %v7978
  %vm8272 = vcmp.eq.f32.partialorder %v8271, 8.507059e+37
  %v8273 = vand.u32 %v7978, 2147483648
  %v8274 = vor.u32 1.1754944e-38, %v8273
  %v8275 = vsel %vm8272, %v8274, %v8270
  %v8276 = vmul.f32 1.0, %v8275
  %v8277 = vrcp.pop %v7979
  %v8278 = vmul.f32 %v7979, %v8277
  %v8279 = vsub.f32 1.0, %v8278
  %v8280 = vmul.f32 %v8277, %v8279
  %v8281 = vadd.f32 %v8277, %v8280
  %vm8282 = vweird.f32 %v7979
  %vm8283 = vweird.f32 %v8277
  %vm8284 = vmor %vm8282, %vm8283
  %v8285 = vsel %vm8284, %v8277, %v8281
  %v8286 = vand.u32 2147483647, %v7979
  %vm8287 = vcmp.eq.f32.partialorder %v8286, 8.507059e+37
  %v8288 = vand.u32 %v7979, 2147483648
  %v8289 = vor.u32 1.1754944e-38, %v8288
  %v8290 = vsel %vm8287, %v8289, %v8285
  %v8291 = vmul.f32 1.0, %v8290
  %v8292 = vrcp.pop %v7980
  %v8293 = vmul.f32 %v7980, %v8292
  %v8294 = vsub.f32 1.0, %v8293
  %v8295 = vmul.f32 %v8292, %v8294
  %v8296 = vadd.f32 %v8292, %v8295
  %vm8297 = vweird.f32 %v7980
  %vm8298 = vweird.f32 %v8292
  %vm8299 = vmor %vm8297, %vm8298
  %v8300 = vsel %vm8299, %v8292, %v8296
  %v8301 = vand.u32 2147483647, %v7980
  %vm8302 = vcmp.eq.f32.partialorder %v8301, 8.507059e+37
  %v8303 = vand.u32 %v7980, 2147483648
  %v8304 = vor.u32 1.1754944e-38, %v8303
  %v8305 = vsel %vm8302, %v8304, %v8300
  %v8306 = vmul.f32 1.0, %v8305
  %v8307 = vrcp.pop %v7981
  %v8308 = vmul.f32 %v7981, %v8307
  %v8309 = vsub.f32 1.0, %v8308
  %v8310 = vmul.f32 %v8307, %v8309
  %v8311 = vadd.f32 %v8307, %v8310
  %vm8312 = vweird.f32 %v7981
  %vm8313 = vweird.f32 %v8307
  %vm8314 = vmor %vm8312, %vm8313
  %v8315 = vsel %vm8314, %v8307, %v8311
  %v8316 = vand.u32 2147483647, %v7981
  %vm8317 = vcmp.eq.f32.partialorder %v8316, 8.507059e+37
  %v8318 = vand.u32 %v7981, 2147483648
  %v8319 = vor.u32 1.1754944e-38, %v8318
  %v8320 = vsel %vm8317, %v8319, %v8315
  %v8321 = vmul.f32 1.0, %v8320
  %v8322 = vrcp.pop %v7982
  %v8323 = vmul.f32 %v7982, %v8322
  %v8324 = vsub.f32 1.0, %v8323
  %v8325 = vmul.f32 %v8322, %v8324
  %v8326 = vadd.f32 %v8322, %v8325
  %vm8327 = vweird.f32 %v7982
  %vm8328 = vweird.f32 %v8322
  %vm8329 = vmor %vm8327, %vm8328
  %v8330 = vsel %vm8329, %v8322, %v8326
  %v8331 = vand.u32 2147483647, %v7982
  %vm8332 = vcmp.eq.f32.partialorder %v8331, 8.507059e+37
  %v8333 = vand.u32 %v7982, 2147483648
  %v8334 = vor.u32 1.1754944e-38, %v8333
  %v8335 = vsel %vm8332, %v8334, %v8330
  %v8336 = vmul.f32 1.0, %v8335
  %v8337 = vrcp.pop %v7983
  %v8338 = vmul.f32 %v7983, %v8337
  %v8339 = vsub.f32 1.0, %v8338
  %v8340 = vmul.f32 %v8337, %v8339
  %v8341 = vadd.f32 %v8337, %v8340
  %vm8342 = vweird.f32 %v7983
  %vm8343 = vweird.f32 %v8337
  %vm8344 = vmor %vm8342, %vm8343
  %v8345 = vsel %vm8344, %v8337, %v8341
  %v8346 = vand.u32 2147483647, %v7983
  %vm8347 = vcmp.eq.f32.partialorder %v8346, 8.507059e+37
  %v8348 = vand.u32 %v7983, 2147483648
  %v8349 = vor.u32 1.1754944e-38, %v8348
  %v8350 = vsel %vm8347, %v8349, %v8345
  %v8351 = vmul.f32 1.0, %v8350
  %v8352 = vrcp.pop %v7984
  %v8353 = vmul.f32 %v7984, %v8352
  %v8354 = vsub.f32 1.0, %v8353
  %v8355 = vmul.f32 %v8352, %v8354
  %v8356 = vadd.f32 %v8352, %v8355
  %vm8357 = vweird.f32 %v7984
  %vm8358 = vweird.f32 %v8352
  %vm8359 = vmor %vm8357, %vm8358
  %v8360 = vsel %vm8359, %v8352, %v8356
  %v8361 = vand.u32 2147483647, %v7984
  %vm8362 = vcmp.eq.f32.partialorder %v8361, 8.507059e+37
  %v8363 = vand.u32 %v7984, 2147483648
  %v8364 = vor.u32 1.1754944e-38, %v8363
  %v8365 = vsel %vm8362, %v8364, %v8360
  %v8366 = vmul.f32 1.0, %v8365
  %v8367 = vrcp.pop %v7985
  %v8368 = vmul.f32 %v7985, %v8367
  %v8369 = vsub.f32 1.0, %v8368
  %v8370 = vmul.f32 %v8367, %v8369
  %v8371 = vadd.f32 %v8367, %v8370
  %vm8372 = vweird.f32 %v7985
  %vm8373 = vweird.f32 %v8367
  %vm8374 = vmor %vm8372, %vm8373
  %v8375 = vsel %vm8374, %v8367, %v8371
  %v8376 = vand.u32 2147483647, %v7985
  %vm8377 = vcmp.eq.f32.partialorder %v8376, 8.507059e+37
  %v8378 = vand.u32 %v7985, 2147483648
  %v8379 = vor.u32 1.1754944e-38, %v8378
  %v8380 = vsel %vm8377, %v8379, %v8375
  %v8381 = vmul.f32 1.0, %v8380
  %v8382 = vrcp.pop %v7986
  %v8383 = vmul.f32 %v7986, %v8382
  %v8384 = vsub.f32 1.0, %v8383
  %v8385 = vmul.f32 %v8382, %v8384
  %v8386 = vadd.f32 %v8382, %v8385
  %vm8387 = vweird.f32 %v7986
  %vm8388 = vweird.f32 %v8382
  %vm8389 = vmor %vm8387, %vm8388
  %v8390 = vsel %vm8389, %v8382, %v8386
  %v8391 = vand.u32 2147483647, %v7986
  %vm8392 = vcmp.eq.f32.partialorder %v8391, 8.507059e+37
  %v8393 = vand.u32 %v7986, 2147483648
  %v8394 = vor.u32 1.1754944e-38, %v8393
  %v8395 = vsel %vm8392, %v8394, %v8390
  %v8396 = vmul.f32 1.0, %v8395
  %v8397 = vrcp.pop %v7987
  %v8398 = vmul.f32 %v7987, %v8397
  %v8399 = vsub.f32 1.0, %v8398
  %v8400 = vmul.f32 %v8397, %v8399
  %v8401 = vadd.f32 %v8397, %v8400
  %vm8402 = vweird.f32 %v7987
  %vm8403 = vweird.f32 %v8397
  %vm8404 = vmor %vm8402, %vm8403
  %v8405 = vsel %vm8404, %v8397, %v8401
  %v8406 = vand.u32 2147483647, %v7987
  %vm8407 = vcmp.eq.f32.partialorder %v8406, 8.507059e+37
  %v8408 = vand.u32 %v7987, 2147483648
  %v8409 = vor.u32 1.1754944e-38, %v8408
  %v8410 = vsel %vm8407, %v8409, %v8405
  %v8411 = vmul.f32 1.0, %v8410
  %v8412 = vrcp.pop %v7988
  %v8413 = vmul.f32 %v7988, %v8412
  %v8414 = vsub.f32 1.0, %v8413
  %v8415 = vmul.f32 %v8412, %v8414
  %v8416 = vadd.f32 %v8412, %v8415
  %vm8417 = vweird.f32 %v7988
  %vm8418 = vweird.f32 %v8412
  %vm8419 = vmor %vm8417, %vm8418
  %v8420 = vsel %vm8419, %v8412, %v8416
  %v8421 = vand.u32 2147483647, %v7988
  %vm8422 = vcmp.eq.f32.partialorder %v8421, 8.507059e+37
  %v8423 = vand.u32 %v7988, 2147483648
  %v8424 = vor.u32 1.1754944e-38, %v8423
  %v8425 = vsel %vm8422, %v8424, %v8420
  %v8426 = vmul.f32 1.0, %v8425
  %v8427 = vrcp.pop %v7989
  %v8428 = vmul.f32 %v7989, %v8427
  %v8429 = vsub.f32 1.0, %v8428
  %v8430 = vmul.f32 %v8427, %v8429
  %v8431 = vadd.f32 %v8427, %v8430
  %vm8432 = vweird.f32 %v7989
  %vm8433 = vweird.f32 %v8427
  %vm8434 = vmor %vm8432, %vm8433
  %v8435 = vsel %vm8434, %v8427, %v8431
  %v8436 = vand.u32 2147483647, %v7989
  %vm8437 = vcmp.eq.f32.partialorder %v8436, 8.507059e+37
  %v8438 = vand.u32 %v7989, 2147483648
  %v8439 = vor.u32 1.1754944e-38, %v8438
  %v8440 = vsel %vm8437, %v8439, %v8435
  %v8441 = vmul.f32 1.0, %v8440
  %v8442 = vrcp.pop %v7990
  %v8443 = vmul.f32 %v7990, %v8442
  %v8444 = vsub.f32 1.0, %v8443
  %v8445 = vmul.f32 %v8442, %v8444
  %v8446 = vadd.f32 %v8442, %v8445
  %vm8447 = vweird.f32 %v7990
  %vm8448 = vweird.f32 %v8442
  %vm8449 = vmor %vm8447, %vm8448
  %v8450 = vsel %vm8449, %v8442, %v8446
  %v8451 = vand.u32 2147483647, %v7990
  %vm8452 = vcmp.eq.f32.partialorder %v8451, 8.507059e+37
  %v8453 = vand.u32 %v7990, 2147483648
  %v8454 = vor.u32 1.1754944e-38, %v8453
  %v8455 = vsel %vm8452, %v8454, %v8450
  %v8456 = vmul.f32 1.0, %v8455
  %v8457 = vrcp.pop %v7991
  %v8458 = vmul.f32 %v7991, %v8457
  %v8459 = vsub.f32 1.0, %v8458
  %v8460 = vmul.f32 %v8457, %v8459
  %v8461 = vadd.f32 %v8457, %v8460
  %vm8462 = vweird.f32 %v7991
  %vm8463 = vweird.f32 %v8457
  %vm8464 = vmor %vm8462, %vm8463
  %v8465 = vsel %vm8464, %v8457, %v8461
  %v8466 = vand.u32 2147483647, %v7991
  %vm8467 = vcmp.eq.f32.partialorder %v8466, 8.507059e+37
  %v8468 = vand.u32 %v7991, 2147483648
  %v8469 = vor.u32 1.1754944e-38, %v8468
  %v8470 = vsel %vm8467, %v8469, %v8465
  %v8471 = vmul.f32 1.0, %v8470
  %v8472 = vmul.f32 %v8006, 1.0614054
  %v8473 = vmul.f32 %v8021, 1.0614054
  %v8474 = vmul.f32 %v8036, 1.0614054
  %v8475 = vmul.f32 %v8051, 1.0614054
  %v8476 = vmul.f32 %v8066, 1.0614054
  %v8477 = vmul.f32 %v8081, 1.0614054
  %v8478 = vmul.f32 %v8096, 1.0614054
  %v8479 = vmul.f32 %v8111, 1.0614054
  %v8480 = vmul.f32 %v8126, 1.0614054
  %v8481 = vmul.f32 %v8141, 1.0614054
  %v8482 = vmul.f32 %v8156, 1.0614054
  %v8483 = vmul.f32 %v8171, 1.0614054
  %v8484 = vmul.f32 %v8186, 1.0614054
  %v8485 = vmul.f32 %v8201, 1.0614054
  %v8486 = vmul.f32 %v8216, 1.0614054
  %v8487 = vmul.f32 %v8231, 1.0614054
  %v8488 = vmul.f32 %v8246, 1.0614054
  %v8489 = vmul.f32 %v8261, 1.0614054
  %v8490 = vmul.f32 %v8276, 1.0614054
  %v8491 = vmul.f32 %v8291, 1.0614054
  %v8492 = vmul.f32 %v8306, 1.0614054
  %v8493 = vmul.f32 %v8321, 1.0614054
  %v8494 = vmul.f32 %v8336, 1.0614054
  %v8495 = vmul.f32 %v8351, 1.0614054
  %v8496 = vmul.f32 %v8366, 1.0614054
  %v8497 = vmul.f32 %v8381, 1.0614054
  %v8498 = vmul.f32 %v8396, 1.0614054
  %v8499 = vmul.f32 %v8411, 1.0614054
  %v8500 = vmul.f32 %v8426, 1.0614054
  %v8501 = vmul.f32 %v8441, 1.0614054
  %v8502 = vmul.f32 %v8456, 1.0614054
  %v8503 = vmul.f32 %v8471, 1.0614054
  %v8504 = vadd.f32 %v8472, -1.4531521
  %v8505 = vadd.f32 %v8473, -1.4531521
  %v8506 = vadd.f32 %v8474, -1.4531521
  %v8507 = vadd.f32 %v8475, -1.4531521
  %v8508 = vadd.f32 %v8476, -1.4531521
  %v8509 = vadd.f32 %v8477, -1.4531521
  %v8510 = vadd.f32 %v8478, -1.4531521
  %v8511 = vadd.f32 %v8479, -1.4531521
  %v8512 = vadd.f32 %v8480, -1.4531521
  %v8513 = vadd.f32 %v8481, -1.4531521
  %v8514 = vadd.f32 %v8482, -1.4531521
  %v8515 = vadd.f32 %v8483, -1.4531521
  %v8516 = vadd.f32 %v8484, -1.4531521
  %v8517 = vadd.f32 %v8485, -1.4531521
  %v8518 = vadd.f32 %v8486, -1.4531521
  %v8519 = vadd.f32 %v8487, -1.4531521
  %v8520 = vadd.f32 %v8488, -1.4531521
  %v8521 = vadd.f32 %v8489, -1.4531521
  %v8522 = vadd.f32 %v8490, -1.4531521
  %v8523 = vadd.f32 %v8491, -1.4531521
  %v8524 = vadd.f32 %v8492, -1.4531521
  %v8525 = vadd.f32 %v8493, -1.4531521
  %v8526 = vadd.f32 %v8494, -1.4531521
  %v8527 = vadd.f32 %v8495, -1.4531521
  %v8528 = vadd.f32 %v8496, -1.4531521
  %v8529 = vadd.f32 %v8497, -1.4531521
  %v8530 = vadd.f32 %v8498, -1.4531521
  %v8531 = vadd.f32 %v8499, -1.4531521
  %v8532 = vadd.f32 %v8500, -1.4531521
  %v8533 = vadd.f32 %v8501, -1.4531521
  %v8534 = vadd.f32 %v8502, -1.4531521
  %v8535 = vadd.f32 %v8503, -1.4531521
  %v8536 = vmul.f32 %v8504, %v8006
  %v8537 = vmul.f32 %v8505, %v8021
  %v8538 = vmul.f32 %v8506, %v8036
  %v8539 = vmul.f32 %v8507, %v8051
  %v8540 = vmul.f32 %v8508, %v8066
  %v8541 = vmul.f32 %v8509, %v8081
  %v8542 = vmul.f32 %v8510, %v8096
  %v8543 = vmul.f32 %v8511, %v8111
  %v8544 = vmul.f32 %v8512, %v8126
  %v8545 = vmul.f32 %v8513, %v8141
  %v8546 = vmul.f32 %v8514, %v8156
  %v8547 = vmul.f32 %v8515, %v8171
  %v8548 = vmul.f32 %v8516, %v8186
  %v8549 = vmul.f32 %v8517, %v8201
  %v8550 = vmul.f32 %v8518, %v8216
  %v8551 = vmul.f32 %v8519, %v8231
  %v8552 = vmul.f32 %v8520, %v8246
  %v8553 = vmul.f32 %v8521, %v8261
  %v8554 = vmul.f32 %v8522, %v8276
  %v8555 = vmul.f32 %v8523, %v8291
  %v8556 = vmul.f32 %v8524, %v8306
  %v8557 = vmul.f32 %v8525, %v8321
  %v8558 = vmul.f32 %v8526, %v8336
  %v8559 = vmul.f32 %v8527, %v8351
  %v8560 = vmul.f32 %v8528, %v8366
  %v8561 = vmul.f32 %v8529, %v8381
  %v8562 = vmul.f32 %v8530, %v8396
  %v8563 = vmul.f32 %v8531, %v8411
  %v8564 = vmul.f32 %v8532, %v8426
  %v8565 = vmul.f32 %v8533, %v8441
  %v8566 = vmul.f32 %v8534, %v8456
  %v8567 = vmul.f32 %v8535, %v8471
  %v8568 = vadd.f32 %v8536, 1.4214138
  %v8569 = vadd.f32 %v8537, 1.4214138
  %v8570 = vadd.f32 %v8538, 1.4214138
  %v8571 = vadd.f32 %v8539, 1.4214138
  %v8572 = vadd.f32 %v8540, 1.4214138
  %v8573 = vadd.f32 %v8541, 1.4214138
  %v8574 = vadd.f32 %v8542, 1.4214138
  %v8575 = vadd.f32 %v8543, 1.4214138
  %v8576 = vadd.f32 %v8544, 1.4214138
  %v8577 = vadd.f32 %v8545, 1.4214138
  %v8578 = vadd.f32 %v8546, 1.4214138
  %v8579 = vadd.f32 %v8547, 1.4214138
  %v8580 = vadd.f32 %v8548, 1.4214138
  %v8581 = vadd.f32 %v8549, 1.4214138
  %v8582 = vadd.f32 %v8550, 1.4214138
  %v8583 = vadd.f32 %v8551, 1.4214138
  %v8584 = vadd.f32 %v8552, 1.4214138
  %v8585 = vadd.f32 %v8553, 1.4214138
  %v8586 = vadd.f32 %v8554, 1.4214138
  %v8587 = vadd.f32 %v8555, 1.4214138
  %v8588 = vadd.f32 %v8556, 1.4214138
  %v8589 = vadd.f32 %v8557, 1.4214138
  %v8590 = vadd.f32 %v8558, 1.4214138
  %v8591 = vadd.f32 %v8559, 1.4214138
  %v8592 = vadd.f32 %v8560, 1.4214138
  %v8593 = vadd.f32 %v8561, 1.4214138
  %v8594 = vadd.f32 %v8562, 1.4214138
  %v8595 = vadd.f32 %v8563, 1.4214138
  %v8596 = vadd.f32 %v8564, 1.4214138
  %v8597 = vadd.f32 %v8565, 1.4214138
  %v8598 = vadd.f32 %v8566, 1.4214138
  %v8599 = vadd.f32 %v8567, 1.4214138
  %v8600 = vmul.f32 %v8568, %v8006
  %v8601 = vmul.f32 %v8569, %v8021
  %v8602 = vmul.f32 %v8570, %v8036
  %v8603 = vmul.f32 %v8571, %v8051
  %v8604 = vmul.f32 %v8572, %v8066
  %v8605 = vmul.f32 %v8573, %v8081
  %v8606 = vmul.f32 %v8574, %v8096
  %v8607 = vmul.f32 %v8575, %v8111
  %v8608 = vmul.f32 %v8576, %v8126
  %v8609 = vmul.f32 %v8577, %v8141
  %v8610 = vmul.f32 %v8578, %v8156
  %v8611 = vmul.f32 %v8579, %v8171
  %v8612 = vmul.f32 %v8580, %v8186
  %v8613 = vmul.f32 %v8581, %v8201
  %v8614 = vmul.f32 %v8582, %v8216
  %v8615 = vmul.f32 %v8583, %v8231
  %v8616 = vmul.f32 %v8584, %v8246
  %v8617 = vmul.f32 %v8585, %v8261
  %v8618 = vmul.f32 %v8586, %v8276
  %v8619 = vmul.f32 %v8587, %v8291
  %v8620 = vmul.f32 %v8588, %v8306
  %v8621 = vmul.f32 %v8589, %v8321
  %v8622 = vmul.f32 %v8590, %v8336
  %v8623 = vmul.f32 %v8591, %v8351
  %v8624 = vmul.f32 %v8592, %v8366
  %v8625 = vmul.f32 %v8593, %v8381
  %v8626 = vmul.f32 %v8594, %v8396
  %v8627 = vmul.f32 %v8595, %v8411
  %v8628 = vmul.f32 %v8596, %v8426
  %v8629 = vmul.f32 %v8597, %v8441
  %v8630 = vmul.f32 %v8598, %v8456
  %v8631 = vmul.f32 %v8599, %v8471
  %v8632 = vadd.f32 %v8600, -0.28449672
  %v8633 = vadd.f32 %v8601, -0.28449672
  %v8634 = vadd.f32 %v8602, -0.28449672
  %v8635 = vadd.f32 %v8603, -0.28449672
  %v8636 = vadd.f32 %v8604, -0.28449672
  %v8637 = vadd.f32 %v8605, -0.28449672
  %v8638 = vadd.f32 %v8606, -0.28449672
  %v8639 = vadd.f32 %v8607, -0.28449672
  %v8640 = vadd.f32 %v8608, -0.28449672
  %v8641 = vadd.f32 %v8609, -0.28449672
  %v8642 = vadd.f32 %v8610, -0.28449672
  %v8643 = vadd.f32 %v8611, -0.28449672
  %v8644 = vadd.f32 %v8612, -0.28449672
  %v8645 = vadd.f32 %v8613, -0.28449672
  %v8646 = vadd.f32 %v8614, -0.28449672
  %v8647 = vadd.f32 %v8615, -0.28449672
  %v8648 = vadd.f32 %v8616, -0.28449672
  %v8649 = vadd.f32 %v8617, -0.28449672
  %v8650 = vadd.f32 %v8618, -0.28449672
  %v8651 = vadd.f32 %v8619, -0.28449672
  %v8652 = vadd.f32 %v8620, -0.28449672
  %v8653 = vadd.f32 %v8621, -0.28449672
  %v8654 = vadd.f32 %v8622, -0.28449672
  %v8655 = vadd.f32 %v8623, -0.28449672
  %v8656 = vadd.f32 %v8624, -0.28449672
  %v8657 = vadd.f32 %v8625, -0.28449672
  %v8658 = vadd.f32 %v8626, -0.28449672
  %v8659 = vadd.f32 %v8627, -0.28449672
  %v8660 = vadd.f32 %v8628, -0.28449672
  %v8661 = vadd.f32 %v8629, -0.28449672
  %v8662 = vadd.f32 %v8630, -0.28449672
  %v8663 = vadd.f32 %v8631, -0.28449672
  %v8664 = vmul.f32 %v8632, %v8006
  %v8665 = vmul.f32 %v8633, %v8021
  %v8666 = vmul.f32 %v8634, %v8036
  %v8667 = vmul.f32 %v8635, %v8051
  %v8668 = vmul.f32 %v8636, %v8066
  %v8669 = vmul.f32 %v8637, %v8081
  %v8670 = vmul.f32 %v8638, %v8096
  %v8671 = vmul.f32 %v8639, %v8111
  %v8672 = vmul.f32 %v8640, %v8126
  %v8673 = vmul.f32 %v8641, %v8141
  %v8674 = vmul.f32 %v8642, %v8156
  %v8675 = vmul.f32 %v8643, %v8171
  %v8676 = vmul.f32 %v8644, %v8186
  %v8677 = vmul.f32 %v8645, %v8201
  %v8678 = vmul.f32 %v8646, %v8216
  %v8679 = vmul.f32 %v8647, %v8231
  %v8680 = vmul.f32 %v8648, %v8246
  %v8681 = vmul.f32 %v8649, %v8261
  %v8682 = vmul.f32 %v8650, %v8276
  %v8683 = vmul.f32 %v8651, %v8291
  %v8684 = vmul.f32 %v8652, %v8306
  %v8685 = vmul.f32 %v8653, %v8321
  %v8686 = vmul.f32 %v8654, %v8336
  %v8687 = vmul.f32 %v8655, %v8351
  %v8688 = vmul.f32 %v8656, %v8366
  %v8689 = vmul.f32 %v8657, %v8381
  %v8690 = vmul.f32 %v8658, %v8396
  %v8691 = vmul.f32 %v8659, %v8411
  %v8692 = vmul.f32 %v8660, %v8426
  %v8693 = vmul.f32 %v8661, %v8441
  %v8694 = vmul.f32 %v8662, %v8456
  %v8695 = vmul.f32 %v8663, %v8471
  %v8696 = vadd.f32 %v8664, 0.2548296
  %v8697 = vadd.f32 %v8665, 0.2548296
  %v8698 = vadd.f32 %v8666, 0.2548296
  %v8699 = vadd.f32 %v8667, 0.2548296
  %v8700 = vadd.f32 %v8668, 0.2548296
  %v8701 = vadd.f32 %v8669, 0.2548296
  %v8702 = vadd.f32 %v8670, 0.2548296
  %v8703 = vadd.f32 %v8671, 0.2548296
  %v8704 = vadd.f32 %v8672, 0.2548296
  %v8705 = vadd.f32 %v8673, 0.2548296
  %v8706 = vadd.f32 %v8674, 0.2548296
  %v8707 = vadd.f32 %v8675, 0.2548296
  %v8708 = vadd.f32 %v8676, 0.2548296
  %v8709 = vadd.f32 %v8677, 0.2548296
  %v8710 = vadd.f32 %v8678, 0.2548296
  %v8711 = vadd.f32 %v8679, 0.2548296
  %v8712 = vadd.f32 %v8680, 0.2548296
  %v8713 = vadd.f32 %v8681, 0.2548296
  %v8714 = vadd.f32 %v8682, 0.2548296
  %v8715 = vadd.f32 %v8683, 0.2548296
  %v8716 = vadd.f32 %v8684, 0.2548296
  %v8717 = vadd.f32 %v8685, 0.2548296
  %v8718 = vadd.f32 %v8686, 0.2548296
  %v8719 = vadd.f32 %v8687, 0.2548296
  %v8720 = vadd.f32 %v8688, 0.2548296
  %v8721 = vadd.f32 %v8689, 0.2548296
  %v8722 = vadd.f32 %v8690, 0.2548296
  %v8723 = vadd.f32 %v8691, 0.2548296
  %v8724 = vadd.f32 %v8692, 0.2548296
  %v8725 = vadd.f32 %v8693, 0.2548296
  %v8726 = vadd.f32 %v8694, 0.2548296
  %v8727 = vadd.f32 %v8695, 0.2548296
  %v8728 = vmul.f32 %v8696, %v8006
  %v8729 = vmul.f32 %v8697, %v8021
  %v8730 = vmul.f32 %v8698, %v8036
  %v8731 = vmul.f32 %v8699, %v8051
  %v8732 = vmul.f32 %v8700, %v8066
  %v8733 = vmul.f32 %v8701, %v8081
  %v8734 = vmul.f32 %v8702, %v8096
  %v8735 = vmul.f32 %v8703, %v8111
  %v8736 = vmul.f32 %v8704, %v8126
  %v8737 = vmul.f32 %v8705, %v8141
  %v8738 = vmul.f32 %v8706, %v8156
  %v8739 = vmul.f32 %v8707, %v8171
  %v8740 = vmul.f32 %v8708, %v8186
  %v8741 = vmul.f32 %v8709, %v8201
  %v8742 = vmul.f32 %v8710, %v8216
  %v8743 = vmul.f32 %v8711, %v8231
  %v8744 = vmul.f32 %v8712, %v8246
  %v8745 = vmul.f32 %v8713, %v8261
  %v8746 = vmul.f32 %v8714, %v8276
  %v8747 = vmul.f32 %v8715, %v8291
  %v8748 = vmul.f32 %v8716, %v8306
  %v8749 = vmul.f32 %v8717, %v8321
  %v8750 = vmul.f32 %v8718, %v8336
  %v8751 = vmul.f32 %v8719, %v8351
  %v8752 = vmul.f32 %v8720, %v8366
  %v8753 = vmul.f32 %v8721, %v8381
  %v8754 = vmul.f32 %v8722, %v8396
  %v8755 = vmul.f32 %v8723, %v8411
  %v8756 = vmul.f32 %v8724, %v8426
  %v8757 = vmul.f32 %v8725, %v8441
  %v8758 = vmul.f32 %v8726, %v8456
  %v8759 = vmul.f32 %v8727, %v8471
  %v8760 = vsub.f32 0.0, %v7896
  %v8761 = vsub.f32 0.0, %v7897
  %v8762 = vsub.f32 0.0, %v7898
  %v8763 = vsub.f32 0.0, %v7899
  %v8764 = vsub.f32 0.0, %v7900
  %v8765 = vsub.f32 0.0, %v7901
  %v8766 = vsub.f32 0.0, %v7902
  %v8767 = vsub.f32 0.0, %v7903
  %v8768 = vsub.f32 0.0, %v7904
  %v8769 = vsub.f32 0.0, %v7905
  %v8770 = vsub.f32 0.0, %v7906
  %v8771 = vsub.f32 0.0, %v7907
  %v8772 = vsub.f32 0.0, %v7908
  %v8773 = vsub.f32 0.0, %v7909
  %v8774 = vsub.f32 0.0, %v7910
  %v8775 = vsub.f32 0.0, %v7911
  %v8776 = vsub.f32 0.0, %v7912
  %v8777 = vsub.f32 0.0, %v7913
  %v8778 = vsub.f32 0.0, %v7914
  %v8779 = vsub.f32 0.0, %v7915
  %v8780 = vsub.f32 0.0, %v7916
  %v8781 = vsub.f32 0.0, %v7917
  %v8782 = vsub.f32 0.0, %v7918
  %v8783 = vsub.f32 0.0, %v7919
  %v8784 = vsub.f32 0.0, %v7920
  %v8785 = vsub.f32 0.0, %v7921
  %v8786 = vsub.f32 0.0, %v7922
  %v8787 = vsub.f32 0.0, %v7923
  %v8788 = vsub.f32 0.0, %v7924
  %v8789 = vsub.f32 0.0, %v7925
  %v8790 = vsub.f32 0.0, %v7926
  %v8791 = vsub.f32 0.0, %v7927
  %v8792 = vmul.f32 %v8760, %v7896
  %v8793 = vmul.f32 %v8761, %v7897
  %v8794 = vmul.f32 %v8762, %v7898
  %v8795 = vmul.f32 %v8763, %v7899
  %v8796 = vmul.f32 %v8764, %v7900
  %v8797 = vmul.f32 %v8765, %v7901
  %v8798 = vmul.f32 %v8766, %v7902
  %v8799 = vmul.f32 %v8767, %v7903
  %v8800 = vmul.f32 %v8768, %v7904
  %v8801 = vmul.f32 %v8769, %v7905
  %v8802 = vmul.f32 %v8770, %v7906
  %v8803 = vmul.f32 %v8771, %v7907
  %v8804 = vmul.f32 %v8772, %v7908
  %v8805 = vmul.f32 %v8773, %v7909
  %v8806 = vmul.f32 %v8774, %v7910
  %v8807 = vmul.f32 %v8775, %v7911
  %v8808 = vmul.f32 %v8776, %v7912
  %v8809 = vmul.f32 %v8777, %v7913
  %v8810 = vmul.f32 %v8778, %v7914
  %v8811 = vmul.f32 %v8779, %v7915
  %v8812 = vmul.f32 %v8780, %v7916
  %v8813 = vmul.f32 %v8781, %v7917
  %v8814 = vmul.f32 %v8782, %v7918
  %v8815 = vmul.f32 %v8783, %v7919
  %v8816 = vmul.f32 %v8784, %v7920
  %v8817 = vmul.f32 %v8785, %v7921
  %v8818 = vmul.f32 %v8786, %v7922
  %v8819 = vmul.f32 %v8787, %v7923
  %v8820 = vmul.f32 %v8788, %v7924
  %v8821 = vmul.f32 %v8789, %v7925
  %v8822 = vmul.f32 %v8790, %v7926
  %v8823 = vmul.f32 %v8791, %v7927
  %v8824 = vmul.f32 %v8792, 1.442695
  %v8825 = vpow.pop %v8824
  %v8826 = vmul.f32 %v8793, 1.442695
  %v8827 = vpow.pop %v8826
  %v8828 = vmul.f32 %v8794, 1.442695
  %v8829 = vpow.pop %v8828
  %v8830 = vmul.f32 %v8795, 1.442695
  %v8831 = vpow.pop %v8830
  %v8832 = vmul.f32 %v8796, 1.442695
  %v8833 = vpow.pop %v8832
  %v8834 = vmul.f32 %v8797, 1.442695
  %v8835 = vpow.pop %v8834
  %v8836 = vmul.f32 %v8798, 1.442695
  %v8837 = vpow.pop %v8836
  %v8838 = vmul.f32 %v8799, 1.442695
  %v8839 = vpow.pop %v8838
  %v8840 = vmul.f32 %v8800, 1.442695
  %v8841 = vpow.pop %v8840
  %v8842 = vmul.f32 %v8801, 1.442695
  %v8843 = vpow.pop %v8842
  %v8844 = vmul.f32 %v8802, 1.442695
  %v8845 = vpow.pop %v8844
  %v8846 = vmul.f32 %v8803, 1.442695
  %v8847 = vpow.pop %v8846
  %v8848 = vmul.f32 %v8804, 1.442695
  %v8849 = vpow.pop %v8848
  %v8850 = vmul.f32 %v8805, 1.442695
  %v8851 = vpow.pop %v8850
  %v8852 = vmul.f32 %v8806, 1.442695
  %v8853 = vpow.pop %v8852
  %v8854 = vmul.f32 %v8807, 1.442695
  %v8855 = vpow.pop %v8854
  %v8856 = vmul.f32 %v8808, 1.442695
  %v8857 = vpow.pop %v8856
  %v8858 = vmul.f32 %v8809, 1.442695
  %v8859 = vpow.pop %v8858
  %v8860 = vmul.f32 %v8810, 1.442695
  %v8861 = vpow.pop %v8860
  %v8862 = vmul.f32 %v8811, 1.442695
  %v8863 = vpow.pop %v8862
  %v8864 = vmul.f32 %v8812, 1.442695
  %v8865 = vpow.pop %v8864
  %v8866 = vmul.f32 %v8813, 1.442695
  %v8867 = vpow.pop %v8866
  %v8868 = vmul.f32 %v8814, 1.442695
  %v8869 = vpow.pop %v8868
  %v8870 = vmul.f32 %v8815, 1.442695
  %v8871 = vpow.pop %v8870
  %v8872 = vmul.f32 %v8816, 1.442695
  %v8873 = vpow.pop %v8872
  %v8874 = vmul.f32 %v8817, 1.442695
  %v8875 = vpow.pop %v8874
  %v8876 = vmul.f32 %v8818, 1.442695
  %v8877 = vpow.pop %v8876
  %v8878 = vmul.f32 %v8819, 1.442695
  %v8879 = vpow.pop %v8878
  %v8880 = vmul.f32 %v8820, 1.442695
  %v8881 = vpow.pop %v8880
  %v8882 = vmul.f32 %v8821, 1.442695
  %v8883 = vpow.pop %v8882
  %v8884 = vmul.f32 %v8822, 1.442695
  %v8885 = vpow.pop %v8884
  %v8886 = vmul.f32 %v8823, 1.442695
  %v8887 = vpow.pop %v8886
  %v8888 = vmul.f32 %v8728, %v8825
  %v8889 = vmul.f32 %v8729, %v8827
  %v8890 = vmul.f32 %v8730, %v8829
  %v8891 = vmul.f32 %v8731, %v8831
  %v8892 = vmul.f32 %v8732, %v8833
  %v8893 = vmul.f32 %v8733, %v8835
  %v8894 = vmul.f32 %v8734, %v8837
  %v8895 = vmul.f32 %v8735, %v8839
  %v8896 = vmul.f32 %v8736, %v8841
  %v8897 = vmul.f32 %v8737, %v8843
  %v8898 = vmul.f32 %v8738, %v8845
  %v8899 = vmul.f32 %v8739, %v8847
  %v8900 = vmul.f32 %v8740, %v8849
  %v8901 = vmul.f32 %v8741, %v8851
  %v8902 = vmul.f32 %v8742, %v8853
  %v8903 = vmul.f32 %v8743, %v8855
  %v8904 = vmul.f32 %v8744, %v8857
  %v8905 = vmul.f32 %v8745, %v8859
  %v8906 = vmul.f32 %v8746, %v8861
  %v8907 = vmul.f32 %v8747, %v8863
  %v8908 = vmul.f32 %v8748, %v8865
  %v8909 = vmul.f32 %v8749, %v8867
  %v8910 = vmul.f32 %v8750, %v8869
  %v8911 = vmul.f32 %v8751, %v8871
  %v8912 = vmul.f32 %v8752, %v8873
  %v8913 = vmul.f32 %v8753, %v8875
  %v8914 = vmul.f32 %v8754, %v8877
  %v8915 = vmul.f32 %v8755, %v8879
  %v8916 = vmul.f32 %v8756, %v8881
  %v8917 = vmul.f32 %v8757, %v8883
  %v8918 = vmul.f32 %v8758, %v8885
  %v8919 = vmul.f32 %v8759, %v8887
  %v8920 = vsub.f32 1.0, %v8888
  %v8921 = vsub.f32 1.0, %v8889
  %v8922 = vsub.f32 1.0, %v8890
  %v8923 = vsub.f32 1.0, %v8891
  %v8924 = vsub.f32 1.0, %v8892
  %v8925 = vsub.f32 1.0, %v8893
  %v8926 = vsub.f32 1.0, %v8894
  %v8927 = vsub.f32 1.0, %v8895
  %v8928 = vsub.f32 1.0, %v8896
  %v8929 = vsub.f32 1.0, %v8897
  %v8930 = vsub.f32 1.0, %v8898
  %v8931 = vsub.f32 1.0, %v8899
  %v8932 = vsub.f32 1.0, %v8900
  %v8933 = vsub.f32 1.0, %v8901
  %v8934 = vsub.f32 1.0, %v8902
  %v8935 = vsub.f32 1.0, %v8903
  %v8936 = vsub.f32 1.0, %v8904
  %v8937 = vsub.f32 1.0, %v8905
  %v8938 = vsub.f32 1.0, %v8906
  %v8939 = vsub.f32 1.0, %v8907
  %v8940 = vsub.f32 1.0, %v8908
  %v8941 = vsub.f32 1.0, %v8909
  %v8942 = vsub.f32 1.0, %v8910
  %v8943 = vsub.f32 1.0, %v8911
  %v8944 = vsub.f32 1.0, %v8912
  %v8945 = vsub.f32 1.0, %v8913
  %v8946 = vsub.f32 1.0, %v8914
  %v8947 = vsub.f32 1.0, %v8915
  %v8948 = vsub.f32 1.0, %v8916
  %v8949 = vsub.f32 1.0, %v8917
  %v8950 = vsub.f32 1.0, %v8918
  %v8951 = vsub.f32 1.0, %v8919
  %v8952 = vmul.f32 %v7864, %v8920
  %v8953 = vmul.f32 %v7865, %v8921
  %v8954 = vmul.f32 %v7866, %v8922
  %v8955 = vmul.f32 %v7867, %v8923
  %v8956 = vmul.f32 %v7868, %v8924
  %v8957 = vmul.f32 %v7869, %v8925
  %v8958 = vmul.f32 %v7870, %v8926
  %v8959 = vmul.f32 %v7871, %v8927
  %v8960 = vmul.f32 %v7872, %v8928
  %v8961 = vmul.f32 %v7873, %v8929
  %v8962 = vmul.f32 %v7874, %v8930
  %v8963 = vmul.f32 %v7875, %v8931
  %v8964 = vmul.f32 %v7876, %v8932
  %v8965 = vmul.f32 %v7877, %v8933
  %v8966 = vmul.f32 %v7878, %v8934
  %v8967 = vmul.f32 %v7879, %v8935
  %v8968 = vmul.f32 %v7880, %v8936
  %v8969 = vmul.f32 %v7881, %v8937
  %v8970 = vmul.f32 %v7882, %v8938
  %v8971 = vmul.f32 %v7883, %v8939
  %v8972 = vmul.f32 %v7884, %v8940
  %v8973 = vmul.f32 %v7885, %v8941
  %v8974 = vmul.f32 %v7886, %v8942
  %v8975 = vmul.f32 %v7887, %v8943
  %v8976 = vmul.f32 %v7888, %v8944
  %v8977 = vmul.f32 %v7889, %v8945
  %v8978 = vmul.f32 %v7890, %v8946
  %v8979 = vmul.f32 %v7891, %v8947
  %v8980 = vmul.f32 %v7892, %v8948
  %v8981 = vmul.f32 %v7893, %v8949
  %v8982 = vmul.f32 %v7894, %v8950
  %v8983 = vmul.f32 %v7895, %v8951
  %v8984 = vadd.f32 %v8952, 1.0
  %v8985 = vadd.f32 %v8953, 1.0
  %v8986 = vadd.f32 %v8954, 1.0
  %v8987 = vadd.f32 %v8955, 1.0
  %v8988 = vadd.f32 %v8956, 1.0
  %v8989 = vadd.f32 %v8957, 1.0
  %v8990 = vadd.f32 %v8958, 1.0
  %v8991 = vadd.f32 %v8959, 1.0
  %v8992 = vadd.f32 %v8960, 1.0
  %v8993 = vadd.f32 %v8961, 1.0
  %v8994 = vadd.f32 %v8962, 1.0
  %v8995 = vadd.f32 %v8963, 1.0
  %v8996 = vadd.f32 %v8964, 1.0
  %v8997 = vadd.f32 %v8965, 1.0
  %v8998 = vadd.f32 %v8966, 1.0
  %v8999 = vadd.f32 %v8967, 1.0
  %v9000 = vadd.f32 %v8968, 1.0
  %v9001 = vadd.f32 %v8969, 1.0
  %v9002 = vadd.f32 %v8970, 1.0
  %v9003 = vadd.f32 %v8971, 1.0
  %v9004 = vadd.f32 %v8972, 1.0
  %v9005 = vadd.f32 %v8973, 1.0
  %v9006 = vadd.f32 %v8974, 1.0
  %v9007 = vadd.f32 %v8975, 1.0
  %v9008 = vadd.f32 %v8976, 1.0
  %v9009 = vadd.f32 %v8977, 1.0
  %v9010 = vadd.f32 %v8978, 1.0
  %v9011 = vadd.f32 %v8979, 1.0
  %v9012 = vadd.f32 %v8980, 1.0
  %v9013 = vadd.f32 %v8981, 1.0
  %v9014 = vadd.f32 %v8982, 1.0
  %v9015 = vadd.f32 %v8983, 1.0
  %v9016 = vmul.f32 %v7768, %v8984
  %v9017 = vmul.f32 %v7769, %v8985
  %v9018 = vmul.f32 %v7770, %v8986
  %v9019 = vmul.f32 %v7771, %v8987
  %v9020 = vmul.f32 %v7772, %v8988
  %v9021 = vmul.f32 %v7773, %v8989
  %v9022 = vmul.f32 %v7774, %v8990
  %v9023 = vmul.f32 %v7775, %v8991
  %v9024 = vmul.f32 %v7776, %v8992
  %v9025 = vmul.f32 %v7777, %v8993
  %v9026 = vmul.f32 %v7778, %v8994
  %v9027 = vmul.f32 %v7779, %v8995
  %v9028 = vmul.f32 %v7780, %v8996
  %v9029 = vmul.f32 %v7781, %v8997
  %v9030 = vmul.f32 %v7782, %v8998
  %v9031 = vmul.f32 %v7783, %v8999
  %v9032 = vmul.f32 %v7784, %v9000
  %v9033 = vmul.f32 %v7785, %v9001
  %v9034 = vmul.f32 %v7786, %v9002
  %v9035 = vmul.f32 %v7787, %v9003
  %v9036 = vmul.f32 %v7788, %v9004
  %v9037 = vmul.f32 %v7789, %v9005
  %v9038 = vmul.f32 %v7790, %v9006
  %v9039 = vmul.f32 %v7791, %v9007
  %v9040 = vmul.f32 %v7792, %v9008
  %v9041 = vmul.f32 %v7793, %v9009
  %v9042 = vmul.f32 %v7794, %v9010
  %v9043 = vmul.f32 %v7795, %v9011
  %v9044 = vmul.f32 %v7796, %v9012
  %v9045 = vmul.f32 %v7797, %v9013
  %v9046 = vmul.f32 %v7798, %v9014
  %v9047 = vmul.f32 %v7799, %v9015
  %9048 = vst.msk [vmem:[#allocation2 + $0x20] sm:$0xff] %vm35, %v9016
  %9049 = vst.msk [vmem:[#allocation2 + $0x28] sm:$0xff] %vm35, %v9017
  %9050 = vst.msk [vmem:[#allocation2 + $0x30] sm:$0xff] %vm35, %v9018
  %9051 = vst.msk [vmem:[#allocation2 + $0x38] sm:$0xff] %vm35, %v9019
  %9052 = vst.msk [vmem:[#allocation2 + $0x40] sm:$0xff] %vm35, %v9020
  %9053 = vst.msk [vmem:[#allocation2 + $0x48] sm:$0xff] %vm35, %v9021
  %9054 = vst.msk [vmem:[#allocation2 + $0x50] sm:$0xff] %vm35, %v9022
  %9055 = vst.msk [vmem:[#allocation2 + $0x58] sm:$0xff] %vm35, %v9023
  %9056 = vst.msk [vmem:[#allocation2 + $0x60] sm:$0xff] %vm35, %v9024
  %9057 = vst.msk [vmem:[#allocation2 + $0x68] sm:$0xff] %vm35, %v9025
  %9058 = vst.msk [vmem:[#allocation2 + $0x70] sm:$0xff] %vm35, %v9026
  %9059 = vst.msk [vmem:[#allocation2 + $0x78] sm:$0xff] %vm35, %v9027
  %9060 = vst.msk [vmem:[#allocation2 + $0x80] sm:$0xff] %vm35, %v9028
  %9061 = vst.msk [vmem:[#allocation2 + $0x88] sm:$0xff] %vm35, %v9029
  %9062 = vst.msk [vmem:[#allocation2 + $0x90] sm:$0xff] %vm35, %v9030
  %9063 = vst.msk [vmem:[#allocation2 + $0x98] sm:$0xff] %vm35, %v9031
  %9064 = vst.msk [vmem:[#allocation2 + $0xa0] sm:$0xff] %vm35, %v9032
  %9065 = vst.msk [vmem:[#allocation2 + $0xa8] sm:$0xff] %vm35, %v9033
  %9066 = vst.msk [vmem:[#allocation2 + $0xb0] sm:$0xff] %vm35, %v9034
  %9067 = vst.msk [vmem:[#allocation2 + $0xb8] sm:$0xff] %vm35, %v9035
  %9068 = vst.msk [vmem:[#allocation2 + $0xc0] sm:$0xff] %vm35, %v9036
  %9069 = vst.msk [vmem:[#allocation2 + $0xc8] sm:$0xff] %vm35, %v9037
  %9070 = vst.msk [vmem:[#allocation2 + $0xd0] sm:$0xff] %vm35, %v9038
  %9071 = vst.msk [vmem:[#allocation2 + $0xd8] sm:$0xff] %vm35, %v9039
  %9072 = vst.msk [vmem:[#allocation2 + $0xe0] sm:$0xff] %vm35, %v9040
  %9073 = vst.msk [vmem:[#allocation2 + $0xe8] sm:$0xff] %vm35, %v9041
  %9074 = vst.msk [vmem:[#allocation2 + $0xf0] sm:$0xff] %vm35, %v9042
  %9075 = vst.msk [vmem:[#allocation2 + $0xf8] sm:$0xff] %vm35, %v9043
  %9076 = vst.msk [vmem:[#allocation2 + $0x100] sm:$0xff] %vm35, %v9044
  %9077 = vst.msk [vmem:[#allocation2 + $0x108] sm:$0xff] %vm35, %v9045
  %9078 = vst.msk [vmem:[#allocation2 + $0x110] sm:$0xff] %vm35, %v9046
  %9079 = vst.msk [vmem:[#allocation2 + $0x118] sm:$0xff] %vm35, %v9047
  %v9080 = vld [vmem:[#allocation2 + $0x22] sm:$0xff]
  %v9081 = vld [vmem:[#allocation2 + $0x2a] sm:$0xff]
  %v9082 = vld [vmem:[#allocation2 + $0x32] sm:$0xff]
  %v9083 = vld [vmem:[#allocation2 + $0x3a] sm:$0xff]
  %v9084 = vld [vmem:[#allocation2 + $0x42] sm:$0xff]
  %v9085 = vld [vmem:[#allocation2 + $0x4a] sm:$0xff]
  %v9086 = vld [vmem:[#allocation2 + $0x52] sm:$0xff]
  %v9087 = vld [vmem:[#allocation2 + $0x5a] sm:$0xff]
  %v9088 = vld [vmem:[#allocation2 + $0x62] sm:$0xff]
  %v9089 = vld [vmem:[#allocation2 + $0x6a] sm:$0xff]
  %v9090 = vld [vmem:[#allocation2 + $0x72] sm:$0xff]
  %v9091 = vld [vmem:[#allocation2 + $0x7a] sm:$0xff]
  %v9092 = vld [vmem:[#allocation2 + $0x82] sm:$0xff]
  %v9093 = vld [vmem:[#allocation2 + $0x8a] sm:$0xff]
  %v9094 = vld [vmem:[#allocation2 + $0x92] sm:$0xff]
  %v9095 = vld [vmem:[#allocation2 + $0x9a] sm:$0xff]
  %v9096 = vld [vmem:[#allocation2 + $0xa2] sm:$0xff]
  %v9097 = vld [vmem:[#allocation2 + $0xaa] sm:$0xff]
  %v9098 = vld [vmem:[#allocation2 + $0xb2] sm:$0xff]
  %v9099 = vld [vmem:[#allocation2 + $0xba] sm:$0xff]
  %v9100 = vld [vmem:[#allocation2 + $0xc2] sm:$0xff]
  %v9101 = vld [vmem:[#allocation2 + $0xca] sm:$0xff]
  %v9102 = vld [vmem:[#allocation2 + $0xd2] sm:$0xff]
  %v9103 = vld [vmem:[#allocation2 + $0xda] sm:$0xff]
  %v9104 = vld [vmem:[#allocation2 + $0xe2] sm:$0xff]
  %v9105 = vld [vmem:[#allocation2 + $0xea] sm:$0xff]
  %v9106 = vld [vmem:[#allocation2 + $0xf2] sm:$0xff]
  %v9107 = vld [vmem:[#allocation2 + $0xfa] sm:$0xff]
  %v9108 = vld [vmem:[#allocation2 + $0x102] sm:$0xff]
  %v9109 = vld [vmem:[#allocation2 + $0x10a] sm:$0xff]
  %v9110 = vld [vmem:[#allocation2 + $0x112] sm:$0xff]
  %v9111 = vld [vmem:[#allocation2 + $0x11a] sm:$0xff]
  %v9112 = vsel %vm4382, %v9080, 0.0
  %v9113 = vsel %vm4383, %v9081, 0.0
  %v9114 = vsel %vm4384, %v9082, 0.0
  %v9115 = vsel %vm4385, %v9083, 0.0
  %v9116 = vsel %vm4386, %v9084, 0.0
  %v9117 = vsel %vm4387, %v9085, 0.0
  %v9118 = vsel %vm4388, %v9086, 0.0
  %v9119 = vsel %vm4389, %v9087, 0.0
  %v9120 = vsel %vm4390, %v9088, 0.0
  %v9121 = vsel %vm4391, %v9089, 0.0
  %v9122 = vsel %vm4392, %v9090, 0.0
  %v9123 = vsel %vm4393, %v9091, 0.0
  %v9124 = vsel %vm4394, %v9092, 0.0
  %v9125 = vsel %vm4395, %v9093, 0.0
  %v9126 = vsel %vm4396, %v9094, 0.0
  %v9127 = vsel %vm4397, %v9095, 0.0
  %v9128 = vsel %vm4398, %v9096, 0.0
  %v9129 = vsel %vm4399, %v9097, 0.0
  %v9130 = vsel %vm4400, %v9098, 0.0
  %v9131 = vsel %vm4401, %v9099, 0.0
  %v9132 = vsel %vm4402, %v9100, 0.0
  %v9133 = vsel %vm4403, %v9101, 0.0
  %v9134 = vsel %vm4404, %v9102, 0.0
  %v9135 = vsel %vm4405, %v9103, 0.0
  %v9136 = vsel %vm4406, %v9104, 0.0
  %v9137 = vsel %vm4407, %v9105, 0.0
  %v9138 = vsel %vm4408, %v9106, 0.0
  %v9139 = vsel %vm4409, %v9107, 0.0
  %v9140 = vsel %vm4410, %v9108, 0.0
  %v9141 = vsel %vm4411, %v9109, 0.0
  %v9142 = vsel %vm4412, %v9110, 0.0
  %v9143 = vsel %vm4413, %v9111, 0.0
  %v9144 = vadd.f32 %v9112, 0.0
  %v9145 = vadd.f32 %v9113, 0.0
  %v9146 = vadd.f32 %v9114, 0.0
  %v9147 = vadd.f32 %v9115, 0.0
  %v9148 = vadd.f32 %v9116, 0.0
  %v9149 = vadd.f32 %v9117, 0.0
  %v9150 = vadd.f32 %v9118, 0.0
  %v9151 = vadd.f32 %v9119, 0.0
  %v9152 = vadd.f32 %v9120, 0.0
  %v9153 = vadd.f32 %v9121, 0.0
  %v9154 = vadd.f32 %v9122, 0.0
  %v9155 = vadd.f32 %v9123, 0.0
  %v9156 = vadd.f32 %v9124, 0.0
  %v9157 = vadd.f32 %v9125, 0.0
  %v9158 = vadd.f32 %v9126, 0.0
  %v9159 = vadd.f32 %v9127, 0.0
  %v9160 = vadd.f32 %v9128, 0.0
  %v9161 = vadd.f32 %v9129, 0.0
  %v9162 = vadd.f32 %v9130, 0.0
  %v9163 = vadd.f32 %v9131, 0.0
  %v9164 = vadd.f32 %v9132, 0.0
  %v9165 = vadd.f32 %v9133, 0.0
  %v9166 = vadd.f32 %v9134, 0.0
  %v9167 = vadd.f32 %v9135, 0.0
  %v9168 = vadd.f32 %v9136, 0.0
  %v9169 = vadd.f32 %v9137, 0.0
  %v9170 = vadd.f32 %v9138, 0.0
  %v9171 = vadd.f32 %v9139, 0.0
  %v9172 = vadd.f32 %v9140, 0.0
  %v9173 = vadd.f32 %v9141, 0.0
  %v9174 = vadd.f32 %v9142, 0.0
  %v9175 = vadd.f32 %v9143, 0.0
  %v9176 = vld [vmem:[#allocation2 + $0x21] sm:$0xff]
  %v9177 = vld [vmem:[#allocation2 + $0x29] sm:$0xff]
  %v9178 = vld [vmem:[#allocation2 + $0x31] sm:$0xff]
  %v9179 = vld [vmem:[#allocation2 + $0x39] sm:$0xff]
  %v9180 = vld [vmem:[#allocation2 + $0x41] sm:$0xff]
  %v9181 = vld [vmem:[#allocation2 + $0x49] sm:$0xff]
  %v9182 = vld [vmem:[#allocation2 + $0x51] sm:$0xff]
  %v9183 = vld [vmem:[#allocation2 + $0x59] sm:$0xff]
  %v9184 = vld [vmem:[#allocation2 + $0x61] sm:$0xff]
  %v9185 = vld [vmem:[#allocation2 + $0x69] sm:$0xff]
  %v9186 = vld [vmem:[#allocation2 + $0x71] sm:$0xff]
  %v9187 = vld [vmem:[#allocation2 + $0x79] sm:$0xff]
  %v9188 = vld [vmem:[#allocation2 + $0x81] sm:$0xff]
  %v9189 = vld [vmem:[#allocation2 + $0x89] sm:$0xff]
  %v9190 = vld [vmem:[#allocation2 + $0x91] sm:$0xff]
  %v9191 = vld [vmem:[#allocation2 + $0x99] sm:$0xff]
  %v9192 = vld [vmem:[#allocation2 + $0xa1] sm:$0xff]
  %v9193 = vld [vmem:[#allocation2 + $0xa9] sm:$0xff]
  %v9194 = vld [vmem:[#allocation2 + $0xb1] sm:$0xff]
  %v9195 = vld [vmem:[#allocation2 + $0xb9] sm:$0xff]
  %v9196 = vld [vmem:[#allocation2 + $0xc1] sm:$0xff]
  %v9197 = vld [vmem:[#allocation2 + $0xc9] sm:$0xff]
  %v9198 = vld [vmem:[#allocation2 + $0xd1] sm:$0xff]
  %v9199 = vld [vmem:[#allocation2 + $0xd9] sm:$0xff]
  %v9200 = vld [vmem:[#allocation2 + $0xe1] sm:$0xff]
  %v9201 = vld [vmem:[#allocation2 + $0xe9] sm:$0xff]
  %v9202 = vld [vmem:[#allocation2 + $0xf1] sm:$0xff]
  %v9203 = vld [vmem:[#allocation2 + $0xf9] sm:$0xff]
  %v9204 = vld [vmem:[#allocation2 + $0x101] sm:$0xff]
  %v9205 = vld [vmem:[#allocation2 + $0x109] sm:$0xff]
  %v9206 = vld [vmem:[#allocation2 + $0x111] sm:$0xff]
  %v9207 = vld [vmem:[#allocation2 + $0x119] sm:$0xff]
  %v9208 = vsel %vm4510, %v9176, 0.0
  %v9209 = vsel %vm4511, %v9177, 0.0
  %v9210 = vsel %vm4512, %v9178, 0.0
  %v9211 = vsel %vm4513, %v9179, 0.0
  %v9212 = vsel %vm4514, %v9180, 0.0
  %v9213 = vsel %vm4515, %v9181, 0.0
  %v9214 = vsel %vm4516, %v9182, 0.0
  %v9215 = vsel %vm4517, %v9183, 0.0
  %v9216 = vsel %vm4518, %v9184, 0.0
  %v9217 = vsel %vm4519, %v9185, 0.0
  %v9218 = vsel %vm4520, %v9186, 0.0
  %v9219 = vsel %vm4521, %v9187, 0.0
  %v9220 = vsel %vm4522, %v9188, 0.0
  %v9221 = vsel %vm4523, %v9189, 0.0
  %v9222 = vsel %vm4524, %v9190, 0.0
  %v9223 = vsel %vm4525, %v9191, 0.0
  %v9224 = vsel %vm4526, %v9192, 0.0
  %v9225 = vsel %vm4527, %v9193, 0.0
  %v9226 = vsel %vm4528, %v9194, 0.0
  %v9227 = vsel %vm4529, %v9195, 0.0
  %v9228 = vsel %vm4530, %v9196, 0.0
  %v9229 = vsel %vm4531, %v9197, 0.0
  %v9230 = vsel %vm4532, %v9198, 0.0
  %v9231 = vsel %vm4533, %v9199, 0.0
  %v9232 = vsel %vm4534, %v9200, 0.0
  %v9233 = vsel %vm4535, %v9201, 0.0
  %v9234 = vsel %vm4536, %v9202, 0.0
  %v9235 = vsel %vm4537, %v9203, 0.0
  %v9236 = vsel %vm4538, %v9204, 0.0
  %v9237 = vsel %vm4539, %v9205, 0.0
  %v9238 = vsel %vm4540, %v9206, 0.0
  %v9239 = vsel %vm4541, %v9207, 0.0
  %v9240 = vadd.f32 %v9144, %v9208
  %v9241 = vadd.f32 %v9145, %v9209
  %v9242 = vadd.f32 %v9146, %v9210
  %v9243 = vadd.f32 %v9147, %v9211
  %v9244 = vadd.f32 %v9148, %v9212
  %v9245 = vadd.f32 %v9149, %v9213
  %v9246 = vadd.f32 %v9150, %v9214
  %v9247 = vadd.f32 %v9151, %v9215
  %v9248 = vadd.f32 %v9152, %v9216
  %v9249 = vadd.f32 %v9153, %v9217
  %v9250 = vadd.f32 %v9154, %v9218
  %v9251 = vadd.f32 %v9155, %v9219
  %v9252 = vadd.f32 %v9156, %v9220
  %v9253 = vadd.f32 %v9157, %v9221
  %v9254 = vadd.f32 %v9158, %v9222
  %v9255 = vadd.f32 %v9159, %v9223
  %v9256 = vadd.f32 %v9160, %v9224
  %v9257 = vadd.f32 %v9161, %v9225
  %v9258 = vadd.f32 %v9162, %v9226
  %v9259 = vadd.f32 %v9163, %v9227
  %v9260 = vadd.f32 %v9164, %v9228
  %v9261 = vadd.f32 %v9165, %v9229
  %v9262 = vadd.f32 %v9166, %v9230
  %v9263 = vadd.f32 %v9167, %v9231
  %v9264 = vadd.f32 %v9168, %v9232
  %v9265 = vadd.f32 %v9169, %v9233
  %v9266 = vadd.f32 %v9170, %v9234
  %v9267 = vadd.f32 %v9171, %v9235
  %v9268 = vadd.f32 %v9172, %v9236
  %v9269 = vadd.f32 %v9173, %v9237
  %v9270 = vadd.f32 %v9174, %v9238
  %v9271 = vadd.f32 %v9175, %v9239
  %v9272 = vld [vmem:[#allocation2 + $0x20] sm:$0xff]
  %v9273 = vld [vmem:[#allocation2 + $0x28] sm:$0xff]
  %v9274 = vld [vmem:[#allocation2 + $0x30] sm:$0xff]
  %v9275 = vld [vmem:[#allocation2 + $0x38] sm:$0xff]
  %v9276 = vld [vmem:[#allocation2 + $0x40] sm:$0xff]
  %v9277 = vld [vmem:[#allocation2 + $0x48] sm:$0xff]
  %v9278 = vld [vmem:[#allocation2 + $0x50] sm:$0xff]
  %v9279 = vld [vmem:[#allocation2 + $0x58] sm:$0xff]
  %v9280 = vld [vmem:[#allocation2 + $0x60] sm:$0xff]
  %v9281 = vld [vmem:[#allocation2 + $0x68] sm:$0xff]
  %v9282 = vld [vmem:[#allocation2 + $0x70] sm:$0xff]
  %v9283 = vld [vmem:[#allocation2 + $0x78] sm:$0xff]
  %v9284 = vld [vmem:[#allocation2 + $0x80] sm:$0xff]
  %v9285 = vld [vmem:[#allocation2 + $0x88] sm:$0xff]
  %v9286 = vld [vmem:[#allocation2 + $0x90] sm:$0xff]
  %v9287 = vld [vmem:[#allocation2 + $0x98] sm:$0xff]
  %v9288 = vld [vmem:[#allocation2 + $0xa0] sm:$0xff]
  %v9289 = vld [vmem:[#allocation2 + $0xa8] sm:$0xff]
  %v9290 = vld [vmem:[#allocation2 + $0xb0] sm:$0xff]
  %v9291 = vld [vmem:[#allocation2 + $0xb8] sm:$0xff]
  %v9292 = vld [vmem:[#allocation2 + $0xc0] sm:$0xff]
  %v9293 = vld [vmem:[#allocation2 + $0xc8] sm:$0xff]
  %v9294 = vld [vmem:[#allocation2 + $0xd0] sm:$0xff]
  %v9295 = vld [vmem:[#allocation2 + $0xd8] sm:$0xff]
  %v9296 = vld [vmem:[#allocation2 + $0xe0] sm:$0xff]
  %v9297 = vld [vmem:[#allocation2 + $0xe8] sm:$0xff]
  %v9298 = vld [vmem:[#allocation2 + $0xf0] sm:$0xff]
  %v9299 = vld [vmem:[#allocation2 + $0xf8] sm:$0xff]
  %v9300 = vld [vmem:[#allocation2 + $0x100] sm:$0xff]
  %v9301 = vld [vmem:[#allocation2 + $0x108] sm:$0xff]
  %v9302 = vld [vmem:[#allocation2 + $0x110] sm:$0xff]
  %v9303 = vld [vmem:[#allocation2 + $0x118] sm:$0xff]
  %v9304 = vsel %vm1193, %v9272, 0.0
  %v9305 = vsel %vm1193, %v9273, 0.0
  %v9306 = vsel %vm1193, %v9274, 0.0
  %v9307 = vsel %vm1193, %v9275, 0.0
  %v9308 = vsel %vm1193, %v9276, 0.0
  %v9309 = vsel %vm1193, %v9277, 0.0
  %v9310 = vsel %vm1193, %v9278, 0.0
  %v9311 = vsel %vm1193, %v9279, 0.0
  %v9312 = vsel %vm1193, %v9280, 0.0
  %v9313 = vsel %vm1193, %v9281, 0.0
  %v9314 = vsel %vm1193, %v9282, 0.0
  %v9315 = vsel %vm1193, %v9283, 0.0
  %v9316 = vsel %vm1193, %v9284, 0.0
  %v9317 = vsel %vm1193, %v9285, 0.0
  %v9318 = vsel %vm1193, %v9286, 0.0
  %v9319 = vsel %vm1193, %v9287, 0.0
  %v9320 = vsel %vm1193, %v9288, 0.0
  %v9321 = vsel %vm1193, %v9289, 0.0
  %v9322 = vsel %vm1193, %v9290, 0.0
  %v9323 = vsel %vm1193, %v9291, 0.0
  %v9324 = vsel %vm1193, %v9292, 0.0
  %v9325 = vsel %vm1193, %v9293, 0.0
  %v9326 = vsel %vm1193, %v9294, 0.0
  %v9327 = vsel %vm1193, %v9295, 0.0
  %v9328 = vsel %vm1193, %v9296, 0.0
  %v9329 = vsel %vm1193, %v9297, 0.0
  %v9330 = vsel %vm1193, %v9298, 0.0
  %v9331 = vsel %vm1193, %v9299, 0.0
  %v9332 = vsel %vm1193, %v9300, 0.0
  %v9333 = vsel %vm1193, %v9301, 0.0
  %v9334 = vsel %vm1193, %v9302, 0.0
  %v9335 = vsel %vm1193, %v9303, 0.0
  %v9336 = vadd.f32 %v9240, %v9304
  %v9337 = vadd.f32 %v9241, %v9305
  %v9338 = vadd.f32 %v9242, %v9306
  %v9339 = vadd.f32 %v9243, %v9307
  %v9340 = vadd.f32 %v9244, %v9308
  %v9341 = vadd.f32 %v9245, %v9309
  %v9342 = vadd.f32 %v9246, %v9310
  %v9343 = vadd.f32 %v9247, %v9311
  %v9344 = vadd.f32 %v9248, %v9312
  %v9345 = vadd.f32 %v9249, %v9313
  %v9346 = vadd.f32 %v9250, %v9314
  %v9347 = vadd.f32 %v9251, %v9315
  %v9348 = vadd.f32 %v9252, %v9316
  %v9349 = vadd.f32 %v9253, %v9317
  %v9350 = vadd.f32 %v9254, %v9318
  %v9351 = vadd.f32 %v9255, %v9319
  %v9352 = vadd.f32 %v9256, %v9320
  %v9353 = vadd.f32 %v9257, %v9321
  %v9354 = vadd.f32 %v9258, %v9322
  %v9355 = vadd.f32 %v9259, %v9323
  %v9356 = vadd.f32 %v9260, %v9324
  %v9357 = vadd.f32 %v9261, %v9325
  %v9358 = vadd.f32 %v9262, %v9326
  %v9359 = vadd.f32 %v9263, %v9327
  %v9360 = vadd.f32 %v9264, %v9328
  %v9361 = vadd.f32 %v9265, %v9329
  %v9362 = vadd.f32 %v9266, %v9330
  %v9363 = vadd.f32 %v9267, %v9331
  %v9364 = vadd.f32 %v9268, %v9332
  %v9365 = vadd.f32 %v9269, %v9333
  %v9366 = vadd.f32 %v9270, %v9334
  %v9367 = vadd.f32 %v9271, %v9335
  %v9368 = vld [vmem:[#allocation2 + $0x1f] sm:$0xff]
  %v9369 = vld [vmem:[#allocation2 + $0x27] sm:$0xff]
  %v9370 = vld [vmem:[#allocation2 + $0x2f] sm:$0xff]
  %v9371 = vld [vmem:[#allocation2 + $0x37] sm:$0xff]
  %v9372 = vld [vmem:[#allocation2 + $0x3f] sm:$0xff]
  %v9373 = vld [vmem:[#allocation2 + $0x47] sm:$0xff]
  %v9374 = vld [vmem:[#allocation2 + $0x4f] sm:$0xff]
  %v9375 = vld [vmem:[#allocation2 + $0x57] sm:$0xff]
  %v9376 = vld [vmem:[#allocation2 + $0x5f] sm:$0xff]
  %v9377 = vld [vmem:[#allocation2 + $0x67] sm:$0xff]
  %v9378 = vld [vmem:[#allocation2 + $0x6f] sm:$0xff]
  %v9379 = vld [vmem:[#allocation2 + $0x77] sm:$0xff]
  %v9380 = vld [vmem:[#allocation2 + $0x7f] sm:$0xff]
  %v9381 = vld [vmem:[#allocation2 + $0x87] sm:$0xff]
  %v9382 = vld [vmem:[#allocation2 + $0x8f] sm:$0xff]
  %v9383 = vld [vmem:[#allocation2 + $0x97] sm:$0xff]
  %v9384 = vld [vmem:[#allocation2 + $0x9f] sm:$0xff]
  %v9385 = vld [vmem:[#allocation2 + $0xa7] sm:$0xff]
  %v9386 = vld [vmem:[#allocation2 + $0xaf] sm:$0xff]
  %v9387 = vld [vmem:[#allocation2 + $0xb7] sm:$0xff]
  %v9388 = vld [vmem:[#allocation2 + $0xbf] sm:$0xff]
  %v9389 = vld [vmem:[#allocation2 + $0xc7] sm:$0xff]
  %v9390 = vld [vmem:[#allocation2 + $0xcf] sm:$0xff]
  %v9391 = vld [vmem:[#allocation2 + $0xd7] sm:$0xff]
  %v9392 = vld [vmem:[#allocation2 + $0xdf] sm:$0xff]
  %v9393 = vld [vmem:[#allocation2 + $0xe7] sm:$0xff]
  %v9394 = vld [vmem:[#allocation2 + $0xef] sm:$0xff]
  %v9395 = vld [vmem:[#allocation2 + $0xf7] sm:$0xff]
  %v9396 = vld [vmem:[#allocation2 + $0xff] sm:$0xff]
  %v9397 = vld [vmem:[#allocation2 + $0x107] sm:$0xff]
  %v9398 = vld [vmem:[#allocation2 + $0x10f] sm:$0xff]
  %v9399 = vld [vmem:[#allocation2 + $0x117] sm:$0xff]
  %v9400 = vsel %vm4734, %v9368, 0.0
  %v9401 = vsel %vm4735, %v9369, 0.0
  %v9402 = vsel %vm4736, %v9370, 0.0
  %v9403 = vsel %vm4737, %v9371, 0.0
  %v9404 = vsel %vm4738, %v9372, 0.0
  %v9405 = vsel %vm4739, %v9373, 0.0
  %v9406 = vsel %vm4740, %v9374, 0.0
  %v9407 = vsel %vm4741, %v9375, 0.0
  %v9408 = vsel %vm4742, %v9376, 0.0
  %v9409 = vsel %vm4743, %v9377, 0.0
  %v9410 = vsel %vm4744, %v9378, 0.0
  %v9411 = vsel %vm4745, %v9379, 0.0
  %v9412 = vsel %vm4746, %v9380, 0.0
  %v9413 = vsel %vm4747, %v9381, 0.0
  %v9414 = vsel %vm4748, %v9382, 0.0
  %v9415 = vsel %vm4749, %v9383, 0.0
  %v9416 = vsel %vm4750, %v9384, 0.0
  %v9417 = vsel %vm4751, %v9385, 0.0
  %v9418 = vsel %vm4752, %v9386, 0.0
  %v9419 = vsel %vm4753, %v9387, 0.0
  %v9420 = vsel %vm4754, %v9388, 0.0
  %v9421 = vsel %vm4755, %v9389, 0.0
  %v9422 = vsel %vm4756, %v9390, 0.0
  %v9423 = vsel %vm4757, %v9391, 0.0
  %v9424 = vsel %vm4758, %v9392, 0.0
  %v9425 = vsel %vm4759, %v9393, 0.0
  %v9426 = vsel %vm4760, %v9394, 0.0
  %v9427 = vsel %vm4761, %v9395, 0.0
  %v9428 = vsel %vm4762, %v9396, 0.0
  %v9429 = vsel %vm4763, %v9397, 0.0
  %v9430 = vsel %vm4764, %v9398, 0.0
  %v9431 = vsel %vm4765, %v9399, 0.0
  %v9432 = vadd.f32 %v9336, %v9400
  %v9433 = vadd.f32 %v9337, %v9401
  %v9434 = vadd.f32 %v9338, %v9402
  %v9435 = vadd.f32 %v9339, %v9403
  %v9436 = vadd.f32 %v9340, %v9404
  %v9437 = vadd.f32 %v9341, %v9405
  %v9438 = vadd.f32 %v9342, %v9406
  %v9439 = vadd.f32 %v9343, %v9407
  %v9440 = vadd.f32 %v9344, %v9408
  %v9441 = vadd.f32 %v9345, %v9409
  %v9442 = vadd.f32 %v9346, %v9410
  %v9443 = vadd.f32 %v9347, %v9411
  %v9444 = vadd.f32 %v9348, %v9412
  %v9445 = vadd.f32 %v9349, %v9413
  %v9446 = vadd.f32 %v9350, %v9414
  %v9447 = vadd.f32 %v9351, %v9415
  %v9448 = vadd.f32 %v9352, %v9416
  %v9449 = vadd.f32 %v9353, %v9417
  %v9450 = vadd.f32 %v9354, %v9418
  %v9451 = vadd.f32 %v9355, %v9419
  %v9452 = vadd.f32 %v9356, %v9420
  %v9453 = vadd.f32 %v9357, %v9421
  %v9454 = vadd.f32 %v9358, %v9422
  %v9455 = vadd.f32 %v9359, %v9423
  %v9456 = vadd.f32 %v9360, %v9424
  %v9457 = vadd.f32 %v9361, %v9425
  %v9458 = vadd.f32 %v9362, %v9426
  %v9459 = vadd.f32 %v9363, %v9427
  %v9460 = vadd.f32 %v9364, %v9428
  %v9461 = vadd.f32 %v9365, %v9429
  %v9462 = vadd.f32 %v9366, %v9430
  %v9463 = vadd.f32 %v9367, %v9431
  %v9464 = vld [vmem:[#allocation2 + $0x1e] sm:$0xff]
  %v9465 = vld [vmem:[#allocation2 + $0x26] sm:$0xff]
  %v9466 = vld [vmem:[#allocation2 + $0x2e] sm:$0xff]
  %v9467 = vld [vmem:[#allocation2 + $0x36] sm:$0xff]
  %v9468 = vld [vmem:[#allocation2 + $0x3e] sm:$0xff]
  %v9469 = vld [vmem:[#allocation2 + $0x46] sm:$0xff]
  %v9470 = vld [vmem:[#allocation2 + $0x4e] sm:$0xff]
  %v9471 = vld [vmem:[#allocation2 + $0x56] sm:$0xff]
  %v9472 = vld [vmem:[#allocation2 + $0x5e] sm:$0xff]
  %v9473 = vld [vmem:[#allocation2 + $0x66] sm:$0xff]
  %v9474 = vld [vmem:[#allocation2 + $0x6e] sm:$0xff]
  %v9475 = vld [vmem:[#allocation2 + $0x76] sm:$0xff]
  %v9476 = vld [vmem:[#allocation2 + $0x7e] sm:$0xff]
  %v9477 = vld [vmem:[#allocation2 + $0x86] sm:$0xff]
  %v9478 = vld [vmem:[#allocation2 + $0x8e] sm:$0xff]
  %v9479 = vld [vmem:[#allocation2 + $0x96] sm:$0xff]
  %v9480 = vld [vmem:[#allocation2 + $0x9e] sm:$0xff]
  %v9481 = vld [vmem:[#allocation2 + $0xa6] sm:$0xff]
  %v9482 = vld [vmem:[#allocation2 + $0xae] sm:$0xff]
  %v9483 = vld [vmem:[#allocation2 + $0xb6] sm:$0xff]
  %v9484 = vld [vmem:[#allocation2 + $0xbe] sm:$0xff]
  %v9485 = vld [vmem:[#allocation2 + $0xc6] sm:$0xff]
  %v9486 = vld [vmem:[#allocation2 + $0xce] sm:$0xff]
  %v9487 = vld [vmem:[#allocation2 + $0xd6] sm:$0xff]
  %v9488 = vld [vmem:[#allocation2 + $0xde] sm:$0xff]
  %v9489 = vld [vmem:[#allocation2 + $0xe6] sm:$0xff]
  %v9490 = vld [vmem:[#allocation2 + $0xee] sm:$0xff]
  %v9491 = vld [vmem:[#allocation2 + $0xf6] sm:$0xff]
  %v9492 = vld [vmem:[#allocation2 + $0xfe] sm:$0xff]
  %v9493 = vld [vmem:[#allocation2 + $0x106] sm:$0xff]
  %v9494 = vld [vmem:[#allocation2 + $0x10e] sm:$0xff]
  %v9495 = vld [vmem:[#allocation2 + $0x116] sm:$0xff]
  %v9496 = vsel %vm5054, %v9464, 0.0
  %v9497 = vsel %vm5055, %v9465, 0.0
  %v9498 = vsel %vm5056, %v9466, 0.0
  %v9499 = vsel %vm5057, %v9467, 0.0
  %v9500 = vsel %vm5058, %v9468, 0.0
  %v9501 = vsel %vm5059, %v9469, 0.0
  %v9502 = vsel %vm5060, %v9470, 0.0
  %v9503 = vsel %vm5061, %v9471, 0.0
  %v9504 = vsel %vm5062, %v9472, 0.0
  %v9505 = vsel %vm5063, %v9473, 0.0
  %v9506 = vsel %vm5064, %v9474, 0.0
  %v9507 = vsel %vm5065, %v9475, 0.0
  %v9508 = vsel %vm5066, %v9476, 0.0
  %v9509 = vsel %vm5067, %v9477, 0.0
  %v9510 = vsel %vm5068, %v9478, 0.0
  %v9511 = vsel %vm5069, %v9479, 0.0
  %v9512 = vsel %vm5070, %v9480, 0.0
  %v9513 = vsel %vm5071, %v9481, 0.0
  %v9514 = vsel %vm5072, %v9482, 0.0
  %v9515 = vsel %vm5073, %v9483, 0.0
  %v9516 = vsel %vm5074, %v9484, 0.0
  %v9517 = vsel %vm5075, %v9485, 0.0
  %v9518 = vsel %vm5076, %v9486, 0.0
  %v9519 = vsel %vm5077, %v9487, 0.0
  %v9520 = vsel %vm5078, %v9488, 0.0
  %v9521 = vsel %vm5079, %v9489, 0.0
  %v9522 = vsel %vm5080, %v9490, 0.0
  %v9523 = vsel %vm5081, %v9491, 0.0
  %v9524 = vsel %vm5082, %v9492, 0.0
  %v9525 = vsel %vm5083, %v9493, 0.0
  %v9526 = vsel %vm5084, %v9494, 0.0
  %v9527 = vsel %vm5085, %v9495, 0.0
  %v9528 = vadd.f32 %v9432, %v9496
  %v9529 = vadd.f32 %v9433, %v9497
  %v9530 = vadd.f32 %v9434, %v9498
  %v9531 = vadd.f32 %v9435, %v9499
  %v9532 = vadd.f32 %v9436, %v9500
  %v9533 = vadd.f32 %v9437, %v9501
  %v9534 = vadd.f32 %v9438, %v9502
  %v9535 = vadd.f32 %v9439, %v9503
  %v9536 = vadd.f32 %v9440, %v9504
  %v9537 = vadd.f32 %v9441, %v9505
  %v9538 = vadd.f32 %v9442, %v9506
  %v9539 = vadd.f32 %v9443, %v9507
  %v9540 = vadd.f32 %v9444, %v9508
  %v9541 = vadd.f32 %v9445, %v9509
  %v9542 = vadd.f32 %v9446, %v9510
  %v9543 = vadd.f32 %v9447, %v9511
  %v9544 = vadd.f32 %v9448, %v9512
  %v9545 = vadd.f32 %v9449, %v9513
  %v9546 = vadd.f32 %v9450, %v9514
  %v9547 = vadd.f32 %v9451, %v9515
  %v9548 = vadd.f32 %v9452, %v9516
  %v9549 = vadd.f32 %v9453, %v9517
  %v9550 = vadd.f32 %v9454, %v9518
  %v9551 = vadd.f32 %v9455, %v9519
  %v9552 = vadd.f32 %v9456, %v9520
  %v9553 = vadd.f32 %v9457, %v9521
  %v9554 = vadd.f32 %v9458, %v9522
  %v9555 = vadd.f32 %v9459, %v9523
  %v9556 = vadd.f32 %v9460, %v9524
  %v9557 = vadd.f32 %v9461, %v9525
  %v9558 = vadd.f32 %v9462, %v9526
  %v9559 = vadd.f32 %v9463, %v9527
  %v9561 = vsel %vm35, %v9528, 0
  %v9564 = vsel %vm35, %v9529, 0
  %v9567 = vsel %vm35, %v9530, 0
  %v9570 = vsel %vm35, %v9531, 0
  %v9573 = vsel %vm35, %v9532, 0
  %v9576 = vsel %vm35, %v9533, 0
  %v9579 = vsel %vm35, %v9534, 0
  %v9582 = vsel %vm35, %v9535, 0
  %v9585 = vsel %vm35, %v9536, 0
  %v9588 = vsel %vm35, %v9537, 0
  %v9591 = vsel %vm35, %v9538, 0
  %v9594 = vsel %vm35, %v9539, 0
  %v9597 = vsel %vm35, %v9540, 0
  %v9600 = vsel %vm35, %v9541, 0
  %v9603 = vsel %vm35, %v9542, 0
  %v9606 = vsel %vm35, %v9543, 0
  %v9609 = vsel %vm35, %v9544, 0
  %v9612 = vsel %vm35, %v9545, 0
  %v9615 = vsel %vm35, %v9546, 0
  %v9618 = vsel %vm35, %v9547, 0
  %v9621 = vsel %vm35, %v9548, 0
  %v9624 = vsel %vm35, %v9549, 0
  %v9627 = vsel %vm35, %v9550, 0
  %v9630 = vsel %vm35, %v9551, 0
  %v9633 = vsel %vm35, %v9552, 0
  %v9636 = vsel %vm35, %v9553, 0
  %v9639 = vsel %vm35, %v9554, 0
  %v9642 = vsel %vm35, %v9555, 0
  %v9645 = vsel %vm35, %v9556, 0
  %v9648 = vsel %vm35, %v9557, 0
  %v9651 = vsel %vm35, %v9558, 0
  %v9654 = vsel %vm35, %v9559, 0
  %9656 = vmatpush.msra.mxu0 0.0
  %9657 = vmatpush.msra.mxu0 0.0
  %9658 = vmatpush.msra.mxu0 0.0
  %9659 = vmatpush.msra.mxu0 0.0
  %9660 = vmatpush.msra.mxu0 0.0
  %9661 = vmatpush.msra.mxu0 0.0
  %9662 = vmatpush.msra.mxu0 0.0
  %9663 = vmatpush.msra.mxu0 0.0
  %9664 = vmatpush.msra.mxu0 0.0
  %9665 = vmatpush.msra.mxu0 0.0
  %9666 = vmatpush.msra.mxu0 0.0
  %9667 = vmatpush.msra.mxu0 0.0
  %9668 = vmatpush.msra.mxu0 %v56
  %9669 = vmatpush.msra.mxu0 %v55
  %9670 = vmatpush.msra.mxu0 %v54
  %9671 = vmatpush.msra.mxu0 %v53
  %9672 = vmatmul.f32.gmra.mxu0 %v9561
  %v9673 = vpop.f32.mrf.mxu0
  %v9674 = vadd.f32 %v5151, %v9673
  %9675 = vmatmul.f32.gmra.mxu0 %v9564
  %v9676 = vpop.f32.mrf.mxu0
  %v9677 = vadd.f32 %v5151, %v9676
  %9678 = vmatmul.f32.gmra.mxu0 %v9567
  %v9679 = vpop.f32.mrf.mxu0
  %v9680 = vadd.f32 %v5151, %v9679
  %9681 = vmatmul.f32.gmra.mxu0 %v9570
  %v9682 = vpop.f32.mrf.mxu0
  %v9683 = vadd.f32 %v5151, %v9682
  %9684 = vmatmul.f32.gmra.mxu0 %v9573
  %v9685 = vpop.f32.mrf.mxu0
  %v9686 = vadd.f32 %v5151, %v9685
  %9687 = vmatmul.f32.gmra.mxu0 %v9576
  %v9688 = vpop.f32.mrf.mxu0
  %v9689 = vadd.f32 %v5151, %v9688
  %9690 = vmatmul.f32.gmra.mxu0 %v9579
  %v9691 = vpop.f32.mrf.mxu0
  %v9692 = vadd.f32 %v5151, %v9691
  %9693 = vmatmul.f32.gmra.mxu0 %v9582
  %v9694 = vpop.f32.mrf.mxu0
  %v9695 = vadd.f32 %v5151, %v9694
  %9696 = vmatmul.f32.gmra.mxu0 %v9585
  %v9697 = vpop.f32.mrf.mxu0
  %v9698 = vadd.f32 %v5151, %v9697
  %9699 = vmatmul.f32.gmra.mxu0 %v9588
  %v9700 = vpop.f32.mrf.mxu0
  %v9701 = vadd.f32 %v5151, %v9700
  %9702 = vmatmul.f32.gmra.mxu0 %v9591
  %v9703 = vpop.f32.mrf.mxu0
  %v9704 = vadd.f32 %v5151, %v9703
  %9705 = vmatmul.f32.gmra.mxu0 %v9594
  %v9706 = vpop.f32.mrf.mxu0
  %v9707 = vadd.f32 %v5151, %v9706
  %9708 = vmatmul.f32.gmra.mxu0 %v9597
  %v9709 = vpop.f32.mrf.mxu0
  %v9710 = vadd.f32 %v5151, %v9709
  %9711 = vmatmul.f32.gmra.mxu0 %v9600
  %v9712 = vpop.f32.mrf.mxu0
  %v9713 = vadd.f32 %v5151, %v9712
  %9714 = vmatmul.f32.gmra.mxu0 %v9603
  %v9715 = vpop.f32.mrf.mxu0
  %v9716 = vadd.f32 %v5151, %v9715
  %9717 = vmatmul.f32.gmra.mxu0 %v9606
  %v9718 = vpop.f32.mrf.mxu0
  %v9719 = vadd.f32 %v5151, %v9718
  %9720 = vmatmul.f32.gmra.mxu0 %v9609
  %v9721 = vpop.f32.mrf.mxu0
  %v9722 = vadd.f32 %v5151, %v9721
  %9723 = vmatmul.f32.gmra.mxu0 %v9612
  %v9724 = vpop.f32.mrf.mxu0
  %v9725 = vadd.f32 %v5151, %v9724
  %9726 = vmatmul.f32.gmra.mxu0 %v9615
  %v9727 = vpop.f32.mrf.mxu0
  %v9728 = vadd.f32 %v5151, %v9727
  %9729 = vmatmul.f32.gmra.mxu0 %v9618
  %v9730 = vpop.f32.mrf.mxu0
  %v9731 = vadd.f32 %v5151, %v9730
  %9732 = vmatmul.f32.gmra.mxu0 %v9621
  %v9733 = vpop.f32.mrf.mxu0
  %v9734 = vadd.f32 %v5151, %v9733
  %9735 = vmatmul.f32.gmra.mxu0 %v9624
  %v9736 = vpop.f32.mrf.mxu0
  %v9737 = vadd.f32 %v5151, %v9736
  %9738 = vmatmul.f32.gmra.mxu0 %v9627
  %v9739 = vpop.f32.mrf.mxu0
  %v9740 = vadd.f32 %v5151, %v9739
  %9741 = vmatmul.f32.gmra.mxu0 %v9630
  %v9742 = vpop.f32.mrf.mxu0
  %v9743 = vadd.f32 %v5151, %v9742
  %9744 = vmatmul.f32.gmra.mxu0 %v9633
  %v9745 = vpop.f32.mrf.mxu0
  %v9746 = vadd.f32 %v5151, %v9745
  %9747 = vmatmul.f32.gmra.mxu0 %v9636
  %v9748 = vpop.f32.mrf.mxu0
  %v9749 = vadd.f32 %v5151, %v9748
  %9750 = vmatmul.f32.gmra.mxu0 %v9639
  %v9751 = vpop.f32.mrf.mxu0
  %v9752 = vadd.f32 %v5151, %v9751
  %9753 = vmatmul.f32.gmra.mxu0 %v9642
  %v9754 = vpop.f32.mrf.mxu0
  %v9755 = vadd.f32 %v5151, %v9754
  %9756 = vmatmul.f32.gmra.mxu0 %v9645
  %v9757 = vpop.f32.mrf.mxu0
  %v9758 = vadd.f32 %v5151, %v9757
  %9759 = vmatmul.f32.gmra.mxu0 %v9648
  %v9760 = vpop.f32.mrf.mxu0
  %v9761 = vadd.f32 %v5151, %v9760
  %9762 = vmatmul.f32.gmra.mxu0 %v9651
  %v9763 = vpop.f32.mrf.mxu0
  %v9764 = vadd.f32 %v5151, %v9763
  %9765 = vmatmul.f32.gmra.mxu0 %v9654
  %v9766 = vpop.f32.mrf.mxu0
  %v9767 = vadd.f32 %v5151, %v9766
  %9768 = vdwg.mxu0
  %v9769 = vld [vmem:[%s5458] sm:$0xff]
  %v9770 = vld [vmem:[%s5458 + $0x8] sm:$0xff]
  %v9771 = vld [vmem:[%s5458 + $0x10] sm:$0xff]
  %v9772 = vld [vmem:[%s5458 + $0x18] sm:$0xff]
  %v9773 = vld [vmem:[%s5458 + $0x20] sm:$0xff]
  %v9774 = vld [vmem:[%s5458 + $0x28] sm:$0xff]
  %v9775 = vld [vmem:[%s5458 + $0x30] sm:$0xff]
  %v9776 = vld [vmem:[%s5458 + $0x38] sm:$0xff]
  %v9777 = vld [vmem:[%s5458 + $0x40] sm:$0xff]
  %v9778 = vld [vmem:[%s5458 + $0x48] sm:$0xff]
  %v9779 = vld [vmem:[%s5458 + $0x50] sm:$0xff]
  %v9780 = vld [vmem:[%s5458 + $0x58] sm:$0xff]
  %v9781 = vld [vmem:[%s5458 + $0x60] sm:$0xff]
  %v9782 = vld [vmem:[%s5458 + $0x68] sm:$0xff]
  %v9783 = vld [vmem:[%s5458 + $0x70] sm:$0xff]
  %v9784 = vld [vmem:[%s5458 + $0x78] sm:$0xff]
  %v9785 = vld [vmem:[%s5458 + $0x80] sm:$0xff]
  %v9786 = vld [vmem:[%s5458 + $0x88] sm:$0xff]
  %v9787 = vld [vmem:[%s5458 + $0x90] sm:$0xff]
  %v9788 = vld [vmem:[%s5458 + $0x98] sm:$0xff]
  %v9789 = vld [vmem:[%s5458 + $0xa0] sm:$0xff]
  %v9790 = vld [vmem:[%s5458 + $0xa8] sm:$0xff]
  %v9791 = vld [vmem:[%s5458 + $0xb0] sm:$0xff]
  %v9792 = vld [vmem:[%s5458 + $0xb8] sm:$0xff]
  %v9793 = vld [vmem:[%s5458 + $0xc0] sm:$0xff]
  %v9794 = vld [vmem:[%s5458 + $0xc8] sm:$0xff]
  %v9795 = vld [vmem:[%s5458 + $0xd0] sm:$0xff]
  %v9796 = vld [vmem:[%s5458 + $0xd8] sm:$0xff]
  %v9797 = vld [vmem:[%s5458 + $0xe0] sm:$0xff]
  %v9798 = vld [vmem:[%s5458 + $0xe8] sm:$0xff]
  %v9799 = vld [vmem:[%s5458 + $0xf0] sm:$0xff]
  %v9800 = vld [vmem:[%s5458 + $0xf8] sm:$0xff]
  %v9801 = vadd.f32 %v9674, %v9769
  %v9802 = vadd.f32 %v9677, %v9770
  %v9803 = vadd.f32 %v9680, %v9771
  %v9804 = vadd.f32 %v9683, %v9772
  %v9805 = vadd.f32 %v9686, %v9773
  %v9806 = vadd.f32 %v9689, %v9774
  %v9807 = vadd.f32 %v9692, %v9775
  %v9808 = vadd.f32 %v9695, %v9776
  %v9809 = vadd.f32 %v9698, %v9777
  %v9810 = vadd.f32 %v9701, %v9778
  %v9811 = vadd.f32 %v9704, %v9779
  %v9812 = vadd.f32 %v9707, %v9780
  %v9813 = vadd.f32 %v9710, %v9781
  %v9814 = vadd.f32 %v9713, %v9782
  %v9815 = vadd.f32 %v9716, %v9783
  %v9816 = vadd.f32 %v9719, %v9784
  %v9817 = vadd.f32 %v9722, %v9785
  %v9818 = vadd.f32 %v9725, %v9786
  %v9819 = vadd.f32 %v9728, %v9787
  %v9820 = vadd.f32 %v9731, %v9788
  %v9821 = vadd.f32 %v9734, %v9789
  %v9822 = vadd.f32 %v9737, %v9790
  %v9823 = vadd.f32 %v9740, %v9791
  %v9824 = vadd.f32 %v9743, %v9792
  %v9825 = vadd.f32 %v9746, %v9793
  %v9826 = vadd.f32 %v9749, %v9794
  %v9827 = vadd.f32 %v9752, %v9795
  %v9828 = vadd.f32 %v9755, %v9796
  %v9829 = vadd.f32 %v9758, %v9797
  %v9830 = vadd.f32 %v9761, %v9798
  %v9831 = vadd.f32 %v9764, %v9799
  %v9832 = vadd.f32 %v9767, %v9800
  %s9833 = scalar_lea.vmem %s10, 256
  %9834 = vst.msk [vmem:[%s9833] sm:$0xff] %vm35, %v9801
  %9835 = vst.msk [vmem:[%s9833 + $0x8] sm:$0xff] %vm35, %v9802
  %9836 = vst.msk [vmem:[%s9833 + $0x10] sm:$0xff] %vm35, %v9803
  %9837 = vst.msk [vmem:[%s9833 + $0x18] sm:$0xff] %vm35, %v9804
  %9838 = vst.msk [vmem:[%s9833 + $0x20] sm:$0xff] %vm35, %v9805
  %9839 = vst.msk [vmem:[%s9833 + $0x28] sm:$0xff] %vm35, %v9806
  %9840 = vst.msk [vmem:[%s9833 + $0x30] sm:$0xff] %vm35, %v9807
  %9841 = vst.msk [vmem:[%s9833 + $0x38] sm:$0xff] %vm35, %v9808
  %9842 = vst.msk [vmem:[%s9833 + $0x40] sm:$0xff] %vm35, %v9809
  %9843 = vst.msk [vmem:[%s9833 + $0x48] sm:$0xff] %vm35, %v9810
  %9844 = vst.msk [vmem:[%s9833 + $0x50] sm:$0xff] %vm35, %v9811
  %9845 = vst.msk [vmem:[%s9833 + $0x58] sm:$0xff] %vm35, %v9812
  %9846 = vst.msk [vmem:[%s9833 + $0x60] sm:$0xff] %vm35, %v9813
  %9847 = vst.msk [vmem:[%s9833 + $0x68] sm:$0xff] %vm35, %v9814
  %9848 = vst.msk [vmem:[%s9833 + $0x70] sm:$0xff] %vm35, %v9815
  %9849 = vst.msk [vmem:[%s9833 + $0x78] sm:$0xff] %vm35, %v9816
  %9850 = vst.msk [vmem:[%s9833 + $0x80] sm:$0xff] %vm35, %v9817
  %9851 = vst.msk [vmem:[%s9833 + $0x88] sm:$0xff] %vm35, %v9818
  %9852 = vst.msk [vmem:[%s9833 + $0x90] sm:$0xff] %vm35, %v9819
  %9853 = vst.msk [vmem:[%s9833 + $0x98] sm:$0xff] %vm35, %v9820
  %9854 = vst.msk [vmem:[%s9833 + $0xa0] sm:$0xff] %vm35, %v9821
  %9855 = vst.msk [vmem:[%s9833 + $0xa8] sm:$0xff] %vm35, %v9822
  %9856 = vst.msk [vmem:[%s9833 + $0xb0] sm:$0xff] %vm35, %v9823
  %9857 = vst.msk [vmem:[%s9833 + $0xb8] sm:$0xff] %vm35, %v9824
  %9858 = vst.msk [vmem:[%s9833 + $0xc0] sm:$0xff] %vm35, %v9825
  %9859 = vst.msk [vmem:[%s9833 + $0xc8] sm:$0xff] %vm35, %v9826
  %9860 = vst.msk [vmem:[%s9833 + $0xd0] sm:$0xff] %vm35, %v9827
  %9861 = vst.msk [vmem:[%s9833 + $0xd8] sm:$0xff] %vm35, %v9828
  %9862 = vst.msk [vmem:[%s9833 + $0xe0] sm:$0xff] %vm35, %v9829
  %9863 = vst.msk [vmem:[%s9833 + $0xe8] sm:$0xff] %vm35, %v9830
  %9864 = vst.msk [vmem:[%s9833 + $0xf0] sm:$0xff] %vm35, %v9831
  %9865 = vst.msk [vmem:[%s9833 + $0xf8] sm:$0xff] %vm35, %v9832
  // Predicated region
  $region42: #{tpu_custom_call.1} parent=0 // pred_check
    _
  $region43: #{tpu_custom_call.1} parent=0 // pred_check_branch
    %9867 = sbr.rel (0) target = $region45
  $region44: #{tpu_custom_call.1} parent=0 // pred_region
    _
  $region45: #{tpu_custom_call.1} parent=0 // pred_fallthru
    _
  // Predicated region
  $region46: #{tpu_custom_call.1} parent=0 // pred_check
    _
  $region47: #{tpu_custom_call.1} parent=0 // pred_check_branch
    %9869 = sbr.rel (0) target = $region49
  $region48: #{tpu_custom_call.1} parent=0 // pred_region
    _
  $region49: #{tpu_custom_call.1} parent=0 // pred_fallthru
    _

</llo_original>
